<compile_context>
chip_gen: v6e
topology: v6e:2x2x1
jax: 0.10.0
libtpu: 0.0.40
codegen_flags: <defaults>
</compile_context>

<pallas_src>
import math

import jax
import jax.numpy as jnp
from jax.experimental import pallas as pl
from jax.experimental.pallas import tpu as pltpu

# ---- small, shape-consistent hyper-parameters (module defaults scaled down) --
D_MODEL = 32          # d_model
NHEAD = 4             # nhead
NUM_LAYERS = 2        # num_layers
DIM_FF = 64           # dim_feedforward
MAX_LENGTH = 7        # module stores max_length + 1
NUM_CLASSES = 37      # num_classes
T = MAX_LENGTH + 1    # sequence length used by BCNLanguage
HEAD_DIM = D_MODEL // NHEAD
LN_EPS = 1e-5
NEG = -1e30           # finite "-inf" (avoids NaN for fully masked rows)

N_BATCH = 8           # test batch
B_BLK = 4             # sequences folded into one grid step
R_BLK = B_BLK * T     # rows per grid step (32)
C_PAD = 128           # padded class dim (lane-dense tokens / logits)
OUT_W = 2 * C_PAD     # fused output slab: [hidden | logits], both 128 wide

# -------- packed weight blob layout (rows, 128) --------
OFF_W_PROJ = 0                                   # (C_PAD, D_MODEL)
OFF_PE = OFF_W_PROJ + C_PAD                      # (R_BLK, D_MODEL)  pe tiled
OFF_WKV = OFF_PE + R_BLK                         # (D_MODEL, L*2*D_MODEL)
OFF_LAYER0 = OFF_WKV + D_MODEL
LAYER_STRIDE = 3 * D_MODEL + DIM_FF              # wq(32)+wo(32)+w1(32)+w2(64)
OFF_W_CLS = OFF_LAYER0 + NUM_LAYERS * LAYER_STRIDE
ROWS_W = OFF_W_CLS + D_MODEL                     # 544

# -------- packed bias / LayerNorm blob layout (rows, 128) --------
B_KV = 0          # bkv_all (L*2*D_MODEL == 128)
B_CLS = 1         # b_cls padded to 128
B_LAYER0 = 2      # per layer: bq, bo, ln2_g, ln2_b, b1, b2, ln3_g, ln3_b
B_PER_LAYER = 8
ROWS_B = ((B_LAYER0 + B_PER_LAYER * NUM_LAYERS + 7) // 8) * 8   # 24


def _layer_norm(v, g, b):
    mu = jnp.mean(v, axis=-1, keepdims=True)
    var = jnp.mean((v - mu) ** 2, axis=-1, keepdims=True)
    return (v - mu) * jax.lax.rsqrt(var + LN_EPS) * g + b


def bcn_kernel(lens_ref, tokens_ref, wblob_ref, bblob_ref, out_ref):
    """BCNLanguage forward for a block of B_BLK sequences (R_BLK rows)."""
    g = pl.program_id(0)
    scale = HEAD_DIM ** -0.5

    tokens = tokens_ref[...]                                        # (R, 128)
    w_proj = wblob_ref[OFF_W_PROJ:OFF_W_PROJ + C_PAD, :D_MODEL]     # (128, 32)
    pe = wblob_ref[OFF_PE:OFF_PE + R_BLK, :D_MODEL]                 # (R, 32)
    wkv_all = wblob_ref[OFF_WKV:OFF_WKV + D_MODEL, :]               # (32, 128)
    bkv_all = bblob_ref[B_KV:B_KV + 1, :]                           # (1, 128)

    # embed = proj(tokens) + PE   (token_encoder dropout = identity at eval)
    embed = jnp.dot(tokens, w_proj, preferred_element_type=jnp.float32) + pe
    # kv projection hoisted across layers: one (R,32)x(32,128) matmul
    kv_all = jnp.dot(embed, wkv_all,
                     preferred_element_type=jnp.float32) + bkv_all  # (R, 128)

    # ---- additive attention mask, built in-kernel from prefetched lengths ----
    jj = jax.lax.broadcasted_iota(jnp.int32, (T, T), 1)
    ii = jax.lax.broadcasted_iota(jnp.int32, (T, T), 0)
    diag = ii == jj
    masks = []
    for b in range(B_BLK):
        ln = lens_ref[g * B_BLK + b]
        masks.append(jnp.where(jnp.logical_or(jj >= ln, diag), NEG, 0.0))
    mask = jnp.stack(masks, axis=0)                                 # (B, T, T)

    # query = pos_encoder(zeros) = PE
    x = pe

    for l in range(NUM_LAYERS):
        base = OFF_LAYER0 + l * LAYER_STRIDE
        wq = wblob_ref[base:base + D_MODEL, :D_MODEL]
        wo = wblob_ref[base + D_MODEL:base + 2 * D_MODEL, :D_MODEL]
        w1 = wblob_ref[base + 2 * D_MODEL:base + 3 * D_MODEL, :DIM_FF]
        w2 = wblob_ref[base + 3 * D_MODEL:base + 3 * D_MODEL + DIM_FF, :D_MODEL]

        bl = B_LAYER0 + l * B_PER_LAYER
        bq = bblob_ref[bl + 0:bl + 1, :D_MODEL]
        bo = bblob_ref[bl + 1:bl + 2, :D_MODEL]
        ln2_g = bblob_ref[bl + 2:bl + 3, :D_MODEL]
        ln2_b = bblob_ref[bl + 3:bl + 4, :D_MODEL]
        b1 = bblob_ref[bl + 4:bl + 5, :DIM_FF]
        b2 = bblob_ref[bl + 5:bl + 6, :D_MODEL]
        ln3_g = bblob_ref[bl + 6:bl + 7, :D_MODEL]
        ln3_b = bblob_ref[bl + 7:bl + 8, :D_MODEL]

        # ---- cross attention (with_self_attn=False, with_cross_attn=True) ----
        q = jnp.dot(x, wq, preferred_element_type=jnp.float32) + bq     # (R,32)
        kv = kv_all[:, l * 2 * D_MODEL:(l + 1) * 2 * D_MODEL]           # (R,64)
        k = kv[:, :D_MODEL]
        v = kv[:, D_MODEL:]

        attn = jnp.zeros((R_BLK, D_MODEL), jnp.float32)
        for h in range(NHEAD):
            sl0, sl1 = h * HEAD_DIM, (h + 1) * HEAD_DIM
            qh = q[:, sl0:sl1].reshape(B_BLK, T, HEAD_DIM)
            kh = k[:, sl0:sl1].reshape(B_BLK, T, HEAD_DIM)
            vh = v[:, sl0:sl1].reshape(B_BLK, T, HEAD_DIM)
            # batched over sequences; contraction on last axes (no .T)
            s = jnp.einsum('bqd,bkd->bqk', qh, kh,
                           preferred_element_type=jnp.float32) * scale + mask
            m = jnp.max(s, axis=-1, keepdims=True)
            p = jnp.exp(s - m)
            p = p / jnp.sum(p, axis=-1, keepdims=True)
            oh = jnp.einsum('bqk,bkd->bqd', p, vh,
                            preferred_element_type=jnp.float32)     # (B,T,hd)
            # accumulate head output directly into the output projection
            attn = attn + jnp.dot(oh.reshape(R_BLK, HEAD_DIM), wo[sl0:sl1, :],
                                  preferred_element_type=jnp.float32)
        attn = attn + bo

        # residual + LayerNorm (norm2)
        x = _layer_norm(x + attn, ln2_g, ln2_b)

        # ---- MLP (Linear -> ReLU -> Linear), residual + LayerNorm (norm3) ----
        hid = jnp.maximum(
            jnp.dot(x, w1, preferred_element_type=jnp.float32) + b1, 0.0)
        mlp = jnp.dot(hid, w2, preferred_element_type=jnp.float32) + b2
        x = _layer_norm(x + mlp, ln3_g, ln3_b)

    # ---- single fused, lane-dense output slab: [hidden(128) | logits(128)] ----
    w_cls = wblob_ref[OFF_W_CLS:OFF_W_CLS + D_MODEL, :]              # (32, 128)
    b_cls = bblob_ref[B_CLS:B_CLS + 1, :]                            # (1, 128)
    logits = jnp.dot(x, w_cls, preferred_element_type=jnp.float32) + b_cls
    hidden_pad = jnp.concatenate(
        [x, jnp.zeros((R_BLK, C_PAD - D_MODEL), jnp.float32)], axis=-1)
    out_ref[...] = jnp.concatenate([hidden_pad, logits], axis=-1)    # (R, 256)


# ---------------- host-side parameter packing ----------------
def pack_params(params):
    pe_tiled = jnp.tile(params["pe"], (B_BLK, 1))                    # (R_BLK, D)
    wkv_all = jnp.concatenate([params["wkv"][l] for l in range(NUM_LAYERS)],
                              axis=-1)                               # (D, L*2D)
    bkv_all = jnp.concatenate([params["bkv"][l] for l in range(NUM_LAYERS)],
                              axis=-1)                               # (1, L*2D)

    wblob = jnp.zeros((ROWS_W, 128), jnp.float32)
    wblob = wblob.at[OFF_W_PROJ:OFF_W_PROJ + NUM_CLASSES, :D_MODEL].set(
        params["w_proj"])
    wblob = wblob.at[OFF_PE:OFF_PE + R_BLK, :D_MODEL].set(pe_tiled)
    wblob = wblob.at[OFF_WKV:OFF_WKV + D_MODEL, :].set(wkv_all)
    for l in range(NUM_LAYERS):
        base = OFF_LAYER0 + l * LAYER_STRIDE
        wblob = wblob.at[base:base + D_MODEL, :D_MODEL].set(params["wq"][l])
        wblob = wblob.at[base + D_MODEL:base + 2 * D_MODEL, :D_MODEL].set(
            params["wo"][l])
        wblob = wblob.at[base + 2 * D_MODEL:base + 3 * D_MODEL, :DIM_FF].set(
            params["w1"][l])
        wblob = wblob.at[base + 3 * D_MODEL:base + 3 * D_MODEL + DIM_FF,
                         :D_MODEL].set(params["w2"][l])
    wblob = wblob.at[OFF_W_CLS:OFF_W_CLS + D_MODEL, :NUM_CLASSES].set(
        params["w_cls"])

    bblob = jnp.zeros((ROWS_B, 128), jnp.float32)
    bblob = bblob.at[B_KV, :].set(bkv_all[0])
    bblob = bblob.at[B_CLS, :NUM_CLASSES].set(params["b_cls"][0])
    for l in range(NUM_LAYERS):
        bl = B_LAYER0 + l * B_PER_LAYER
        bblob = bblob.at[bl + 0, :D_MODEL].set(params["bq"][l, 0])
        bblob = bblob.at[bl + 1, :D_MODEL].set(params["bo"][l, 0])
        bblob = bblob.at[bl + 2, :D_MODEL].set(params["ln2_g"][l, 0])
        bblob = bblob.at[bl + 3, :D_MODEL].set(params["ln2_b"][l, 0])
        bblob = bblob.at[bl + 4, :DIM_FF].set(params["b1"][l, 0])
        bblob = bblob.at[bl + 5, :D_MODEL].set(params["b2"][l, 0])
        bblob = bblob.at[bl + 6, :D_MODEL].set(params["ln3_g"][l, 0])
        bblob = bblob.at[bl + 7, :D_MODEL].set(params["ln3_b"][l, 0])
    return wblob, bblob


def bcn_language_forward(tokens, lengths, params):
    n = tokens.shape[0]
    assert n % B_BLK == 0, "batch must be a multiple of B_BLK"
    n_blocks = n // B_BLK
    rows = n * T

    tokens_flat = jnp.zeros((rows, C_PAD), jnp.float32)
    tokens_flat = tokens_flat.at[:, :NUM_CLASSES].set(
        tokens.reshape(rows, NUM_CLASSES).astype(jnp.float32))
    wblob, bblob = pack_params(params)

    grid_spec = pltpu.PrefetchScalarGridSpec(
        num_scalar_prefetch=1,
        grid=(n_blocks,),
        in_specs=[
            pl.BlockSpec((R_BLK, C_PAD), lambda g, lens: (g, 0)),    # tokens
            pl.BlockSpec((ROWS_W, 128), lambda g, lens: (0, 0)),     # weight blob
            pl.BlockSpec((ROWS_B, 128), lambda g, lens: (0, 0)),     # bias blob
        ],
        out_specs=pl.BlockSpec((R_BLK, OUT_W), lambda g, lens: (g, 0)),
    )

    fused = pl.pallas_call(
        bcn_kernel,
        grid_spec=grid_spec,
        out_shape=jax.ShapeDtypeStruct((rows, OUT_W), jnp.float32),
        compiler_params=pltpu.CompilerParams(
            dimension_semantics=("parallel",)),
    )(lengths.astype(jnp.int32), tokens_flat, wblob, bblob)

    out = fused[:, :D_MODEL].reshape(n, T, D_MODEL)
    logits = fused[:, C_PAD:C_PAD + NUM_CLASSES].reshape(n, T, NUM_CLASSES)
    return out, logits


# ---------------- deterministic parameter construction ----------------
def make_params(key):
    ks = jax.random.split(key, 24)
    s = 0.05

    position = jnp.arange(T, dtype=jnp.float32)[:, None]
    div_term = jnp.exp(jnp.arange(0, D_MODEL, 2, dtype=jnp.float32)
                       * (-math.log(10000.0) / D_MODEL))
    pe = jnp.zeros((T, D_MODEL), jnp.float32)
    pe = pe.at[:, 0::2].set(jnp.sin(position * div_term))
    pe = pe.at[:, 1::2].set(jnp.cos(position * div_term))

    def rnd(k, shape):
        return (s * jax.random.normal(k, shape)).astype(jnp.float32)

    params = dict(
        pe=pe,
        w_proj=rnd(ks[0], (NUM_CLASSES, D_MODEL)),
        wq=rnd(ks[1], (NUM_LAYERS, D_MODEL, D_MODEL)),
        bq=rnd(ks[2], (NUM_LAYERS, 1, D_MODEL)),
        wkv=rnd(ks[3], (NUM_LAYERS, D_MODEL, 2 * D_MODEL)),
        bkv=rnd(ks[4], (NUM_LAYERS, 1, 2 * D_MODEL)),
        wo=rnd(ks[5], (NUM_LAYERS, D_MODEL, D_MODEL)),
        bo=rnd(ks[6], (NUM_LAYERS, 1, D_MODEL)),
        ln2_g=1.0 + rnd(ks[7], (NUM_LAYERS, 1, D_MODEL)),
        ln2_b=rnd(ks[8], (NUM_LAYERS, 1, D_MODEL)),
        w1=rnd(ks[9], (NUM_LAYERS, D_MODEL, DIM_FF)),
        b1=rnd(ks[10], (NUM_LAYERS, 1, DIM_FF)),
        w2=rnd(ks[11], (NUM_LAYERS, DIM_FF, D_MODEL)),
        b2=rnd(ks[12], (NUM_LAYERS, 1, D_MODEL)),
        ln3_g=1.0 + rnd(ks[13], (NUM_LAYERS, 1, D_MODEL)),
        ln3_b=rnd(ks[14], (NUM_LAYERS, 1, D_MODEL)),
        w_cls=rnd(ks[15], (D_MODEL, NUM_CLASSES)),
        b_cls=rnd(ks[16], (1, NUM_CLASSES)),
    )
    return params, ks[17]


# ---------------- pure-JAX reference (same math, vectorized) ----------------
def reference(tokens, lengths, params):
    n = tokens.shape[0]
    pe = params["pe"]
    grid = jnp.arange(T)[None, :]
    key_mask = jnp.where(grid >= lengths[:, None], NEG, 0.0)
    diag = jnp.where(jnp.eye(T, dtype=bool), NEG, 0.0)
    mask = (key_mask[:, None, :] + diag[None])[:, None]          # (N,1,T,T)

    embed = tokens @ params["w_proj"] + pe[None]
    x = jnp.broadcast_to(pe[None], embed.shape)
    scale = HEAD_DIM ** -0.5
    for l in range(NUM_LAYERS):
        q = x @ params["wq"][l] + params["bq"][l]
        kv = embed @ params["wkv"][l] + params["bkv"][l]
        k, v = kv[..., :D_MODEL], kv[..., D_MODEL:]
        qh = q.reshape(n, T, NHEAD, HEAD_DIM).transpose(0, 2, 1, 3)
        kh = k.reshape(n, T, NHEAD, HEAD_DIM).transpose(0, 2, 1, 3)
        vh = v.reshape(n, T, NHEAD, HEAD_DIM).transpose(0, 2, 1, 3)
        s = jnp.einsum('nhqd,nhkd->nhqk', qh, kh) * scale + mask
        p = jax.nn.softmax(s, axis=-1)
        o = jnp.einsum('nhqk,nhkd->nhqd', p, vh).transpose(0, 2, 1, 3)
        o = o.reshape(n, T, D_MODEL) @ params["wo"][l] + params["bo"][l]
        x = _layer_norm(x + o, params["ln2_g"][l], params["ln2_b"][l])
        hid = jnp.maximum(x @ params["w1"][l] + params["b1"][l], 0.0)
        mlp = hid @ params["w2"][l] + params["b2"][l]
        x = _layer_norm(x + mlp, params["ln3_g"][l], params["ln3_b"][l])
    logits = x @ params["w_cls"] + params["b_cls"]
    return x, logits


if __name__ == "__main__":
    params, kx = make_params(jax.random.PRNGKey(0))
    # tokens are class "probabilities" in ABINet -> softmax for realism
    tokens = jax.nn.softmax(
        jax.random.normal(kx, (N_BATCH, T, NUM_CLASSES), dtype=jnp.float32),
        axis=-1)
    lengths = jnp.array([5, 8, 3, 7, 2, 8, 6, 4], dtype=jnp.int32)

    out, logits = bcn_language_forward(tokens, lengths, params)
    jax.block_until_ready((out, logits))

    ref_out, ref_logits = reference(tokens, lengths, params)
    assert jnp.allclose(out, ref_out, atol=5e-4, rtol=5e-4)
    assert jnp.allclose(logits, ref_logits, atol=5e-4, rtol=5e-4)
    print("KERNEL_OK")
</pallas_src>

<mosaic_0001>
module attributes {stable_mosaic.version = 11 : i64} {
  func.func @bcn_kernel(%arg0: i32, %arg1: memref<8xi32, #tpu.memory_space<smem>>, %arg2: memref<32x128xf32, #tpu.memory_space<vmem>>, %arg3: memref<544x128xf32, #tpu.memory_space<vmem>>, %arg4: memref<24x128xf32, #tpu.memory_space<vmem>>, %arg5: memref<32x256xf32, #tpu.memory_space<vmem>>) attributes {dimension_semantics = [#tpu.dimension_semantics<parallel>], iteration_bounds = array<i64: 2>, scalar_prefetch = 1 : i64, scratch_operands = 0 : i64, tpu.core_type = #tpu.core_type<tc>, window_params = [{transform_indices = @transform_0, window_bounds = array<i64: 32, 128>}, {pipeline_mode = #tpu.pipeline_mode<synchronous>, transform_indices = @transform_1, window_bounds = array<i64: 544, 128>}, {pipeline_mode = #tpu.pipeline_mode<synchronous>, transform_indices = @transform_2, window_bounds = array<i64: 24, 128>}, {transform_indices = @transform_3, window_bounds = array<i64: 32, 256>}]} {
    %c0 = arith.constant 0 : index
    %c0_0 = arith.constant 0 : index
    %0 = vector.load %arg2[%c0, %c0_0] : memref<32x128xf32, #tpu.memory_space<vmem>>, vector<32x128xf32>
    %c0_1 = arith.constant 0 : index
    %c0_2 = arith.constant 0 : index
    %1 = vector.load %arg3[%c0_1, %c0_2] : memref<544x128xf32, #tpu.memory_space<vmem>>, vector<128x32xf32>
    %c128 = arith.constant 128 : index
    %c0_3 = arith.constant 0 : index
    %2 = vector.load %arg3[%c128, %c0_3] : memref<544x128xf32, #tpu.memory_space<vmem>>, vector<32x32xf32>
    %c160 = arith.constant 160 : index
    %c0_4 = arith.constant 0 : index
    %3 = vector.load %arg3[%c160, %c0_4] : memref<544x128xf32, #tpu.memory_space<vmem>>, vector<32x128xf32>
    %c0_5 = arith.constant 0 : index
    %c0_6 = arith.constant 0 : index
    %4 = vector.load %arg4[%c0_5, %c0_6] : memref<24x128xf32, #tpu.memory_space<vmem>>, vector<1x128xf32>
    %cst = arith.constant dense<0.000000e+00> : vector<32x32xf32>
    %5 = tpu.matmul %0, %1, %cst {dimension_numbers = #tpu.dot_dimension_numbers<[1], [0], [0], [1], [0, 0, 1, 1], [], []>} : vector<32x128xf32>, vector<128x32xf32>, vector<32x32xf32> -> vector<32x32xf32>
    %6 = arith.addf %5, %2 : vector<32x32xf32>
    %cst_7 = arith.constant dense<0.000000e+00> : vector<32x128xf32>
    %7 = tpu.matmul %6, %3, %cst_7 {dimension_numbers = #tpu.dot_dimension_numbers<[1], [0], [0], [1], [0, 0, 1, 1], [], []>} : vector<32x32xf32>, vector<32x128xf32>, vector<32x128xf32> -> vector<32x128xf32>
    %8 = vector.broadcast %4 : vector<1x128xf32> to vector<32x128xf32>
    %9 = arith.addf %7, %8 : vector<32x128xf32>
    %10 = tpu.iota {dimensions = array<i32: 1>} : vector<8x8xi32>
    %11 = tpu.iota {dimensions = array<i32: 0>} : vector<8x8xi32>
    %12 = arith.cmpi eq, %11, %10 : vector<8x8xi32>
    %c4_i32 = arith.constant 4 : i32
    %13 = arith.muli %arg0, %c4_i32 : i32
    %c0_i32 = arith.constant 0 : i32
    %14 = arith.addi %13, %c0_i32 : i32
    %15 = arith.index_cast %14 : i32 to index
    %16 = memref.load %arg1[%15] : memref<8xi32, #tpu.memory_space<smem>>
    %17 = vector.broadcast %16 : i32 to vector<8x8xi32>
    %18 = arith.cmpi sge, %10, %17 : vector<8x8xi32>
    %19 = arith.ori %18, %12 : vector<8x8xi1>
    %cst_8 = arith.constant -1.000000e+30 : f32
    %cst_9 = arith.constant 0.000000e+00 : f32
    %20 = vector.broadcast %cst_8 : f32 to vector<8x8xf32>
    %21 = vector.broadcast %cst_9 : f32 to vector<8x8xf32>
    %22 = arith.select %19, %20, %21 : vector<8x8xi1>, vector<8x8xf32>
    %c4_i32_10 = arith.constant 4 : i32
    %23 = arith.muli %arg0, %c4_i32_10 : i32
    %c1_i32 = arith.constant 1 : i32
    %24 = arith.addi %23, %c1_i32 : i32
    %25 = arith.index_cast %24 : i32 to index
    %26 = memref.load %arg1[%25] : memref<8xi32, #tpu.memory_space<smem>>
    %27 = vector.broadcast %26 : i32 to vector<8x8xi32>
    %28 = arith.cmpi sge, %10, %27 : vector<8x8xi32>
    %29 = arith.ori %28, %12 : vector<8x8xi1>
    %cst_11 = arith.constant -1.000000e+30 : f32
    %cst_12 = arith.constant 0.000000e+00 : f32
    %30 = vector.broadcast %cst_11 : f32 to vector<8x8xf32>
    %31 = vector.broadcast %cst_12 : f32 to vector<8x8xf32>
    %32 = arith.select %29, %30, %31 : vector<8x8xi1>, vector<8x8xf32>
    %c4_i32_13 = arith.constant 4 : i32
    %33 = arith.muli %arg0, %c4_i32_13 : i32
    %c2_i32 = arith.constant 2 : i32
    %34 = arith.addi %33, %c2_i32 : i32
    %35 = arith.index_cast %34 : i32 to index
    %36 = memref.load %arg1[%35] : memref<8xi32, #tpu.memory_space<smem>>
    %37 = vector.broadcast %36 : i32 to vector<8x8xi32>
    %38 = arith.cmpi sge, %10, %37 : vector<8x8xi32>
    %39 = arith.ori %38, %12 : vector<8x8xi1>
    %cst_14 = arith.constant -1.000000e+30 : f32
    %cst_15 = arith.constant 0.000000e+00 : f32
    %40 = vector.broadcast %cst_14 : f32 to vector<8x8xf32>
    %41 = vector.broadcast %cst_15 : f32 to vector<8x8xf32>
    %42 = arith.select %39, %40, %41 : vector<8x8xi1>, vector<8x8xf32>
    %c4_i32_16 = arith.constant 4 : i32
    %43 = arith.muli %arg0, %c4_i32_16 : i32
    %c3_i32 = arith.constant 3 : i32
    %44 = arith.addi %43, %c3_i32 : i32
    %45 = arith.index_cast %44 : i32 to index
    %46 = memref.load %arg1[%45] : memref<8xi32, #tpu.memory_space<smem>>
    %47 = vector.broadcast %46 : i32 to vector<8x8xi32>
    %48 = arith.cmpi sge, %10, %47 : vector<8x8xi32>
    %49 = arith.ori %48, %12 : vector<8x8xi1>
    %cst_17 = arith.constant -1.000000e+30 : f32
    %cst_18 = arith.constant 0.000000e+00 : f32
    %50 = vector.broadcast %cst_17 : f32 to vector<8x8xf32>
    %51 = vector.broadcast %cst_18 : f32 to vector<8x8xf32>
    %52 = arith.select %49, %50, %51 : vector<8x8xi1>, vector<8x8xf32>
    %53 = vector.shape_cast %22 : vector<8x8xf32> to vector<1x8x8xf32>
    %54 = vector.shape_cast %32 : vector<8x8xf32> to vector<1x8x8xf32>
    %55 = vector.shape_cast %42 : vector<8x8xf32> to vector<1x8x8xf32>
    %56 = vector.shape_cast %52 : vector<8x8xf32> to vector<1x8x8xf32>
    %57 = tpu.concatenate %53, %54, %55, %56 in 0 : vector<1x8x8xf32>, vector<1x8x8xf32>, vector<1x8x8xf32>, vector<1x8x8xf32> -> vector<4x8x8xf32>
    %c192 = arith.constant 192 : index
    %c0_19 = arith.constant 0 : index
    %58 = vector.load %arg3[%c192, %c0_19] : memref<544x128xf32, #tpu.memory_space<vmem>>, vector<32x32xf32>
    %c224 = arith.constant 224 : index
    %c0_20 = arith.constant 0 : index
    %59 = vector.load %arg3[%c224, %c0_20] : memref<544x128xf32, #tpu.memory_space<vmem>>, vector<32x32xf32>
    %c256 = arith.constant 256 : index
    %c0_21 = arith.constant 0 : index
    %60 = vector.load %arg3[%c256, %c0_21] : memref<544x128xf32, #tpu.memory_space<vmem>>, vector<32x64xf32>
    %c288 = arith.constant 288 : index
    %c0_22 = arith.constant 0 : index
    %61 = vector.load %arg3[%c288, %c0_22] : memref<544x128xf32, #tpu.memory_space<vmem>>, vector<64x32xf32>
    %c2 = arith.constant 2 : index
    %c0_23 = arith.constant 0 : index
    %62 = vector.load %arg4[%c2, %c0_23] : memref<24x128xf32, #tpu.memory_space<vmem>>, vector<1x32xf32>
    %c3 = arith.constant 3 : index
    %c0_24 = arith.constant 0 : index
    %63 = vector.load %arg4[%c3, %c0_24] : memref<24x128xf32, #tpu.memory_space<vmem>>, vector<1x32xf32>
    %c4 = arith.constant 4 : index
    %c0_25 = arith.constant 0 : index
    %64 = vector.load %arg4[%c4, %c0_25] : memref<24x128xf32, #tpu.memory_space<vmem>>, vector<1x32xf32>
    %c5 = arith.constant 5 : index
    %c0_26 = arith.constant 0 : index
    %65 = vector.load %arg4[%c5, %c0_26] : memref<24x128xf32, #tpu.memory_space<vmem>>, vector<1x32xf32>
    %c6 = arith.constant 6 : index
    %c0_27 = arith.constant 0 : index
    %66 = vector.load %arg4[%c6, %c0_27] : memref<24x128xf32, #tpu.memory_space<vmem>>, vector<1x64xf32>
    %c7 = arith.constant 7 : index
    %c0_28 = arith.constant 0 : index
    %67 = vector.load %arg4[%c7, %c0_28] : memref<24x128xf32, #tpu.memory_space<vmem>>, vector<1x32xf32>
    %c8 = arith.constant 8 : index
    %c0_29 = arith.constant 0 : index
    %68 = vector.load %arg4[%c8, %c0_29] : memref<24x128xf32, #tpu.memory_space<vmem>>, vector<1x32xf32>
    %c9 = arith.constant 9 : index
    %c0_30 = arith.constant 0 : index
    %69 = vector.load %arg4[%c9, %c0_30] : memref<24x128xf32, #tpu.memory_space<vmem>>, vector<1x32xf32>
    %cst_31 = arith.constant dense<0.000000e+00> : vector<32x32xf32>
    %70 = tpu.matmul %2, %58, %cst_31 {dimension_numbers = #tpu.dot_dimension_numbers<[1], [0], [0], [1], [0, 0, 1, 1], [], []>} : vector<32x32xf32>, vector<32x32xf32>, vector<32x32xf32> -> vector<32x32xf32>
    %71 = vector.broadcast %62 : vector<1x32xf32> to vector<32x32xf32>
    %72 = arith.addf %70, %71 : vector<32x32xf32>
    %73 = vector.extract_strided_slice %9 {offsets = [0, 0], sizes = [32, 64], strides = [1, 1]} : vector<32x128xf32> to vector<32x64xf32>
    %74 = vector.extract_strided_slice %73 {offsets = [0, 0], sizes = [32, 32], strides = [1, 1]} : vector<32x64xf32> to vector<32x32xf32>
    %75 = vector.extract_strided_slice %73 {offsets = [0, 32], sizes = [32, 32], strides = [1, 1]} : vector<32x64xf32> to vector<32x32xf32>
    %cst_32 = arith.constant 0.000000e+00 : f32
    %76 = vector.broadcast %cst_32 : f32 to vector<32x32xf32>
    %77 = vector.extract_strided_slice %72 {offsets = [0, 0], sizes = [32, 8], strides = [1, 1]} : vector<32x32xf32> to vector<32x8xf32>
    %78 = vector.shape_cast %77 : vector<32x8xf32> to vector<4x8x8xf32>
    %79 = vector.extract_strided_slice %74 {offsets = [0, 0], sizes = [32, 8], strides = [1, 1]} : vector<32x32xf32> to vector<32x8xf32>
    %80 = vector.shape_cast %79 : vector<32x8xf32> to vector<4x8x8xf32>
    %81 = vector.extract_strided_slice %75 {offsets = [0, 0], sizes = [32, 8], strides = [1, 1]} : vector<32x32xf32> to vector<32x8xf32>
    %82 = vector.shape_cast %81 : vector<32x8xf32> to vector<4x8x8xf32>
    "tpu.trace_start"() <{level = 10 : i32, message = "bqd,bkd->bqk"}> : () -> ()
    %cst_33 = arith.constant dense<0.000000e+00> : vector<4x8x8xf32>
    %83 = tpu.matmul %78, %80, %cst_33 {dimension_numbers = #tpu.dot_dimension_numbers<[2], [2], [1], [1], [0, 0, 0, 1, 1, 1], [0], [0]>} : vector<4x8x8xf32>, vector<4x8x8xf32>, vector<4x8x8xf32> -> vector<4x8x8xf32>
    "tpu.trace_stop"() : () -> ()
    %cst_34 = arith.constant 0.353553385 : f32
    %84 = vector.broadcast %cst_34 : f32 to vector<4x8x8xf32>
    %85 = arith.mulf %83, %84 : vector<4x8x8xf32>
    %86 = arith.addf %85, %57 : vector<4x8x8xf32>
    %cst_35 = arith.constant dense<0xFF800000> : vector<4x8xf32>
    %87 = vector.multi_reduction <maximumf>, %86, %cst_35 [2] : vector<4x8x8xf32> to vector<4x8xf32>
    %88 = vector.shape_cast %87 : vector<4x8xf32> to vector<4x8x1xf32>
    %89 = vector.broadcast %88 : vector<4x8x1xf32> to vector<4x8x8xf32>
    %90 = arith.subf %86, %89 : vector<4x8x8xf32>
    %91 = math.exp %90 : vector<4x8x8xf32>
    %cst_36 = arith.constant dense<0.000000e+00> : vector<4x8xf32>
    %92 = vector.multi_reduction <add>, %91, %cst_36 [2] : vector<4x8x8xf32> to vector<4x8xf32>
    %93 = vector.shape_cast %92 : vector<4x8xf32> to vector<4x8x1xf32>
    %94 = vector.broadcast %93 : vector<4x8x1xf32> to vector<4x8x8xf32>
    %95 = arith.divf %91, %94 : vector<4x8x8xf32>
    "tpu.trace_start"() <{level = 10 : i32, message = "bqk,bkd->bqd"}> : () -> ()
    %cst_37 = arith.constant dense<0.000000e+00> : vector<4x8x8xf32>
    %96 = tpu.matmul %95, %82, %cst_37 {dimension_numbers = #tpu.dot_dimension_numbers<[2], [1], [1], [2], [0, 0, 0, 1, 1, 2], [0], [0]>} : vector<4x8x8xf32>, vector<4x8x8xf32>, vector<4x8x8xf32> -> vector<4x8x8xf32>
    "tpu.trace_stop"() : () -> ()
    %97 = vector.shape_cast %96 : vector<4x8x8xf32> to vector<32x8xf32>
    %98 = vector.extract_strided_slice %59 {offsets = [0, 0], sizes = [8, 32], strides = [1, 1]} : vector<32x32xf32> to vector<8x32xf32>
    %cst_38 = arith.constant dense<0.000000e+00> : vector<32x32xf32>
    %99 = tpu.matmul %97, %98, %cst_38 {dimension_numbers = #tpu.dot_dimension_numbers<[1], [0], [0], [1], [0, 0, 1, 1], [], []>} : vector<32x8xf32>, vector<8x32xf32>, vector<32x32xf32> -> vector<32x32xf32>
    %100 = arith.addf %76, %99 : vector<32x32xf32>
    %101 = vector.extract_strided_slice %72 {offsets = [0, 8], sizes = [32, 8], strides = [1, 1]} : vector<32x32xf32> to vector<32x8xf32>
    %102 = vector.shape_cast %101 : vector<32x8xf32> to vector<4x8x8xf32>
    %103 = vector.extract_strided_slice %74 {offsets = [0, 8], sizes = [32, 8], strides = [1, 1]} : vector<32x32xf32> to vector<32x8xf32>
    %104 = vector.shape_cast %103 : vector<32x8xf32> to vector<4x8x8xf32>
    %105 = vector.extract_strided_slice %75 {offsets = [0, 8], sizes = [32, 8], strides = [1, 1]} : vector<32x32xf32> to vector<32x8xf32>
    %106 = vector.shape_cast %105 : vector<32x8xf32> to vector<4x8x8xf32>
    "tpu.trace_start"() <{level = 10 : i32, message = "bqd,bkd->bqk"}> : () -> ()
    %cst_39 = arith.constant dense<0.000000e+00> : vector<4x8x8xf32>
    %107 = tpu.matmul %102, %104, %cst_39 {dimension_numbers = #tpu.dot_dimension_numbers<[2], [2], [1], [1], [0, 0, 0, 1, 1, 1], [0], [0]>} : vector<4x8x8xf32>, vector<4x8x8xf32>, vector<4x8x8xf32> -> vector<4x8x8xf32>
    "tpu.trace_stop"() : () -> ()
    %cst_40 = arith.constant 0.353553385 : f32
    %108 = vector.broadcast %cst_40 : f32 to vector<4x8x8xf32>
    %109 = arith.mulf %107, %108 : vector<4x8x8xf32>
    %110 = arith.addf %109, %57 : vector<4x8x8xf32>
    %cst_41 = arith.constant dense<0xFF800000> : vector<4x8xf32>
    %111 = vector.multi_reduction <maximumf>, %110, %cst_41 [2] : vector<4x8x8xf32> to vector<4x8xf32>
    %112 = vector.shape_cast %111 : vector<4x8xf32> to vector<4x8x1xf32>
    %113 = vector.broadcast %112 : vector<4x8x1xf32> to vector<4x8x8xf32>
    %114 = arith.subf %110, %113 : vector<4x8x8xf32>
    %115 = math.exp %114 : vector<4x8x8xf32>
    %cst_42 = arith.constant dense<0.000000e+00> : vector<4x8xf32>
    %116 = vector.multi_reduction <add>, %115, %cst_42 [2] : vector<4x8x8xf32> to vector<4x8xf32>
    %117 = vector.shape_cast %116 : vector<4x8xf32> to vector<4x8x1xf32>
    %118 = vector.broadcast %117 : vector<4x8x1xf32> to vector<4x8x8xf32>
    %119 = arith.divf %115, %118 : vector<4x8x8xf32>
    "tpu.trace_start"() <{level = 10 : i32, message = "bqk,bkd->bqd"}> : () -> ()
    %cst_43 = arith.constant dense<0.000000e+00> : vector<4x8x8xf32>
    %120 = tpu.matmul %119, %106, %cst_43 {dimension_numbers = #tpu.dot_dimension_numbers<[2], [1], [1], [2], [0, 0, 0, 1, 1, 2], [0], [0]>} : vector<4x8x8xf32>, vector<4x8x8xf32>, vector<4x8x8xf32> -> vector<4x8x8xf32>
    "tpu.trace_stop"() : () -> ()
    %121 = vector.shape_cast %120 : vector<4x8x8xf32> to vector<32x8xf32>
    %122 = vector.extract_strided_slice %59 {offsets = [8, 0], sizes = [8, 32], strides = [1, 1]} : vector<32x32xf32> to vector<8x32xf32>
    %cst_44 = arith.constant dense<0.000000e+00> : vector<32x32xf32>
    %123 = tpu.matmul %121, %122, %cst_44 {dimension_numbers = #tpu.dot_dimension_numbers<[1], [0], [0], [1], [0, 0, 1, 1], [], []>} : vector<32x8xf32>, vector<8x32xf32>, vector<32x32xf32> -> vector<32x32xf32>
    %124 = arith.addf %100, %123 : vector<32x32xf32>
    %125 = vector.extract_strided_slice %72 {offsets = [0, 16], sizes = [32, 8], strides = [1, 1]} : vector<32x32xf32> to vector<32x8xf32>
    %126 = vector.shape_cast %125 : vector<32x8xf32> to vector<4x8x8xf32>
    %127 = vector.extract_strided_slice %74 {offsets = [0, 16], sizes = [32, 8], strides = [1, 1]} : vector<32x32xf32> to vector<32x8xf32>
    %128 = vector.shape_cast %127 : vector<32x8xf32> to vector<4x8x8xf32>
    %129 = vector.extract_strided_slice %75 {offsets = [0, 16], sizes = [32, 8], strides = [1, 1]} : vector<32x32xf32> to vector<32x8xf32>
    %130 = vector.shape_cast %129 : vector<32x8xf32> to vector<4x8x8xf32>
    "tpu.trace_start"() <{level = 10 : i32, message = "bqd,bkd->bqk"}> : () -> ()
    %cst_45 = arith.constant dense<0.000000e+00> : vector<4x8x8xf32>
    %131 = tpu.matmul %126, %128, %cst_45 {dimension_numbers = #tpu.dot_dimension_numbers<[2], [2], [1], [1], [0, 0, 0, 1, 1, 1], [0], [0]>} : vector<4x8x8xf32>, vector<4x8x8xf32>, vector<4x8x8xf32> -> vector<4x8x8xf32>
    "tpu.trace_stop"() : () -> ()
    %cst_46 = arith.constant 0.353553385 : f32
    %132 = vector.broadcast %cst_46 : f32 to vector<4x8x8xf32>
    %133 = arith.mulf %131, %132 : vector<4x8x8xf32>
    %134 = arith.addf %133, %57 : vector<4x8x8xf32>
    %cst_47 = arith.constant dense<0xFF800000> : vector<4x8xf32>
    %135 = vector.multi_reduction <maximumf>, %134, %cst_47 [2] : vector<4x8x8xf32> to vector<4x8xf32>
    %136 = vector.shape_cast %135 : vector<4x8xf32> to vector<4x8x1xf32>
    %137 = vector.broadcast %136 : vector<4x8x1xf32> to vector<4x8x8xf32>
    %138 = arith.subf %134, %137 : vector<4x8x8xf32>
    %139 = math.exp %138 : vector<4x8x8xf32>
    %cst_48 = arith.constant dense<0.000000e+00> : vector<4x8xf32>
    %140 = vector.multi_reduction <add>, %139, %cst_48 [2] : vector<4x8x8xf32> to vector<4x8xf32>
    %141 = vector.shape_cast %140 : vector<4x8xf32> to vector<4x8x1xf32>
    %142 = vector.broadcast %141 : vector<4x8x1xf32> to vector<4x8x8xf32>
    %143 = arith.divf %139, %142 : vector<4x8x8xf32>
    "tpu.trace_start"() <{level = 10 : i32, message = "bqk,bkd->bqd"}> : () -> ()
    %cst_49 = arith.constant dense<0.000000e+00> : vector<4x8x8xf32>
    %144 = tpu.matmul %143, %130, %cst_49 {dimension_numbers = #tpu.dot_dimension_numbers<[2], [1], [1], [2], [0, 0, 0, 1, 1, 2], [0], [0]>} : vector<4x8x8xf32>, vector<4x8x8xf32>, vector<4x8x8xf32> -> vector<4x8x8xf32>
    "tpu.trace_stop"() : () -> ()
    %145 = vector.shape_cast %144 : vector<4x8x8xf32> to vector<32x8xf32>
    %146 = vector.extract_strided_slice %59 {offsets = [16, 0], sizes = [8, 32], strides = [1, 1]} : vector<32x32xf32> to vector<8x32xf32>
    %cst_50 = arith.constant dense<0.000000e+00> : vector<32x32xf32>
    %147 = tpu.matmul %145, %146, %cst_50 {dimension_numbers = #tpu.dot_dimension_numbers<[1], [0], [0], [1], [0, 0, 1, 1], [], []>} : vector<32x8xf32>, vector<8x32xf32>, vector<32x32xf32> -> vector<32x32xf32>
    %148 = arith.addf %124, %147 : vector<32x32xf32>
    %149 = vector.extract_strided_slice %72 {offsets = [0, 24], sizes = [32, 8], strides = [1, 1]} : vector<32x32xf32> to vector<32x8xf32>
    %150 = vector.shape_cast %149 : vector<32x8xf32> to vector<4x8x8xf32>
    %151 = vector.extract_strided_slice %74 {offsets = [0, 24], sizes = [32, 8], strides = [1, 1]} : vector<32x32xf32> to vector<32x8xf32>
    %152 = vector.shape_cast %151 : vector<32x8xf32> to vector<4x8x8xf32>
    %153 = vector.extract_strided_slice %75 {offsets = [0, 24], sizes = [32, 8], strides = [1, 1]} : vector<32x32xf32> to vector<32x8xf32>
    %154 = vector.shape_cast %153 : vector<32x8xf32> to vector<4x8x8xf32>
    "tpu.trace_start"() <{level = 10 : i32, message = "bqd,bkd->bqk"}> : () -> ()
    %cst_51 = arith.constant dense<0.000000e+00> : vector<4x8x8xf32>
    %155 = tpu.matmul %150, %152, %cst_51 {dimension_numbers = #tpu.dot_dimension_numbers<[2], [2], [1], [1], [0, 0, 0, 1, 1, 1], [0], [0]>} : vector<4x8x8xf32>, vector<4x8x8xf32>, vector<4x8x8xf32> -> vector<4x8x8xf32>
    "tpu.trace_stop"() : () -> ()
    %cst_52 = arith.constant 0.353553385 : f32
    %156 = vector.broadcast %cst_52 : f32 to vector<4x8x8xf32>
    %157 = arith.mulf %155, %156 : vector<4x8x8xf32>
    %158 = arith.addf %157, %57 : vector<4x8x8xf32>
    %cst_53 = arith.constant dense<0xFF800000> : vector<4x8xf32>
    %159 = vector.multi_reduction <maximumf>, %158, %cst_53 [2] : vector<4x8x8xf32> to vector<4x8xf32>
    %160 = vector.shape_cast %159 : vector<4x8xf32> to vector<4x8x1xf32>
    %161 = vector.broadcast %160 : vector<4x8x1xf32> to vector<4x8x8xf32>
    %162 = arith.subf %158, %161 : vector<4x8x8xf32>
    %163 = math.exp %162 : vector<4x8x8xf32>
    %cst_54 = arith.constant dense<0.000000e+00> : vector<4x8xf32>
    %164 = vector.multi_reduction <add>, %163, %cst_54 [2] : vector<4x8x8xf32> to vector<4x8xf32>
    %165 = vector.shape_cast %164 : vector<4x8xf32> to vector<4x8x1xf32>
    %166 = vector.broadcast %165 : vector<4x8x1xf32> to vector<4x8x8xf32>
    %167 = arith.divf %163, %166 : vector<4x8x8xf32>
    "tpu.trace_start"() <{level = 10 : i32, message = "bqk,bkd->bqd"}> : () -> ()
    %cst_55 = arith.constant dense<0.000000e+00> : vector<4x8x8xf32>
    %168 = tpu.matmul %167, %154, %cst_55 {dimension_numbers = #tpu.dot_dimension_numbers<[2], [1], [1], [2], [0, 0, 0, 1, 1, 2], [0], [0]>} : vector<4x8x8xf32>, vector<4x8x8xf32>, vector<4x8x8xf32> -> vector<4x8x8xf32>
    "tpu.trace_stop"() : () -> ()
    %169 = vector.shape_cast %168 : vector<4x8x8xf32> to vector<32x8xf32>
    %170 = vector.extract_strided_slice %59 {offsets = [24, 0], sizes = [8, 32], strides = [1, 1]} : vector<32x32xf32> to vector<8x32xf32>
    %cst_56 = arith.constant dense<0.000000e+00> : vector<32x32xf32>
    %171 = tpu.matmul %169, %170, %cst_56 {dimension_numbers = #tpu.dot_dimension_numbers<[1], [0], [0], [1], [0, 0, 1, 1], [], []>} : vector<32x8xf32>, vector<8x32xf32>, vector<32x32xf32> -> vector<32x32xf32>
    %172 = arith.addf %148, %171 : vector<32x32xf32>
    %173 = vector.broadcast %63 : vector<1x32xf32> to vector<32x32xf32>
    %174 = arith.addf %172, %173 : vector<32x32xf32>
    %175 = arith.addf %2, %174 : vector<32x32xf32>
    %cst_57 = arith.constant dense<0.000000e+00> : vector<32xf32>
    %176 = vector.multi_reduction <add>, %175, %cst_57 [1] : vector<32x32xf32> to vector<32xf32>
    %177 = vector.shape_cast %176 : vector<32xf32> to vector<32x1xf32>
    %cst_58 = arith.constant 3.200000e+01 : f32
    %178 = vector.broadcast %cst_58 : f32 to vector<32x1xf32>
    %179 = arith.divf %177, %178 : vector<32x1xf32>
    %180 = vector.broadcast %179 : vector<32x1xf32> to vector<32x32xf32>
    %181 = arith.subf %175, %180 : vector<32x32xf32>
    %182 = arith.mulf %181, %181 : vector<32x32xf32>
    %cst_59 = arith.constant dense<0.000000e+00> : vector<32xf32>
    %183 = vector.multi_reduction <add>, %182, %cst_59 [1] : vector<32x32xf32> to vector<32xf32>
    %184 = vector.shape_cast %183 : vector<32xf32> to vector<32x1xf32>
    %cst_60 = arith.constant 3.200000e+01 : f32
    %185 = vector.broadcast %cst_60 : f32 to vector<32x1xf32>
    %186 = arith.divf %184, %185 : vector<32x1xf32>
    %187 = vector.broadcast %179 : vector<32x1xf32> to vector<32x32xf32>
    %188 = arith.subf %175, %187 : vector<32x32xf32>
    %cst_61 = arith.constant 9.99999974E-6 : f32
    %189 = vector.broadcast %cst_61 : f32 to vector<32x1xf32>
    %190 = arith.addf %186, %189 : vector<32x1xf32>
    %191 = math.rsqrt %190 : vector<32x1xf32>
    %192 = vector.broadcast %191 : vector<32x1xf32> to vector<32x32xf32>
    %193 = arith.mulf %188, %192 : vector<32x32xf32>
    %194 = vector.broadcast %64 : vector<1x32xf32> to vector<32x32xf32>
    %195 = arith.mulf %193, %194 : vector<32x32xf32>
    %196 = vector.broadcast %65 : vector<1x32xf32> to vector<32x32xf32>
    %197 = arith.addf %195, %196 : vector<32x32xf32>
    %cst_62 = arith.constant dense<0.000000e+00> : vector<32x64xf32>
    %198 = tpu.matmul %197, %60, %cst_62 {dimension_numbers = #tpu.dot_dimension_numbers<[1], [0], [0], [1], [0, 0, 1, 1], [], []>} : vector<32x32xf32>, vector<32x64xf32>, vector<32x64xf32> -> vector<32x64xf32>
    %199 = vector.broadcast %66 : vector<1x64xf32> to vector<32x64xf32>
    %200 = arith.addf %198, %199 : vector<32x64xf32>
    %cst_63 = arith.constant 0.000000e+00 : f32
    %201 = vector.broadcast %cst_63 : f32 to vector<32x64xf32>
    %202 = arith.maximumf %200, %201 : vector<32x64xf32>
    %cst_64 = arith.constant dense<0.000000e+00> : vector<32x32xf32>
    %203 = tpu.matmul %202, %61, %cst_64 {dimension_numbers = #tpu.dot_dimension_numbers<[1], [0], [0], [1], [0, 0, 1, 1], [], []>} : vector<32x64xf32>, vector<64x32xf32>, vector<32x32xf32> -> vector<32x32xf32>
    %204 = vector.broadcast %67 : vector<1x32xf32> to vector<32x32xf32>
    %205 = arith.addf %203, %204 : vector<32x32xf32>
    %206 = arith.addf %197, %205 : vector<32x32xf32>
    %cst_65 = arith.constant dense<0.000000e+00> : vector<32xf32>
    %207 = vector.multi_reduction <add>, %206, %cst_65 [1] : vector<32x32xf32> to vector<32xf32>
    %208 = vector.shape_cast %207 : vector<32xf32> to vector<32x1xf32>
    %cst_66 = arith.constant 3.200000e+01 : f32
    %209 = vector.broadcast %cst_66 : f32 to vector<32x1xf32>
    %210 = arith.divf %208, %209 : vector<32x1xf32>
    %211 = vector.broadcast %210 : vector<32x1xf32> to vector<32x32xf32>
    %212 = arith.subf %206, %211 : vector<32x32xf32>
    %213 = arith.mulf %212, %212 : vector<32x32xf32>
    %cst_67 = arith.constant dense<0.000000e+00> : vector<32xf32>
    %214 = vector.multi_reduction <add>, %213, %cst_67 [1] : vector<32x32xf32> to vector<32xf32>
    %215 = vector.shape_cast %214 : vector<32xf32> to vector<32x1xf32>
    %cst_68 = arith.constant 3.200000e+01 : f32
    %216 = vector.broadcast %cst_68 : f32 to vector<32x1xf32>
    %217 = arith.divf %215, %216 : vector<32x1xf32>
    %218 = vector.broadcast %210 : vector<32x1xf32> to vector<32x32xf32>
    %219 = arith.subf %206, %218 : vector<32x32xf32>
    %cst_69 = arith.constant 9.99999974E-6 : f32
    %220 = vector.broadcast %cst_69 : f32 to vector<32x1xf32>
    %221 = arith.addf %217, %220 : vector<32x1xf32>
    %222 = math.rsqrt %221 : vector<32x1xf32>
    %223 = vector.broadcast %222 : vector<32x1xf32> to vector<32x32xf32>
    %224 = arith.mulf %219, %223 : vector<32x32xf32>
    %225 = vector.broadcast %68 : vector<1x32xf32> to vector<32x32xf32>
    %226 = arith.mulf %224, %225 : vector<32x32xf32>
    %227 = vector.broadcast %69 : vector<1x32xf32> to vector<32x32xf32>
    %228 = arith.addf %226, %227 : vector<32x32xf32>
    %c352 = arith.constant 352 : index
    %c0_70 = arith.constant 0 : index
    %229 = vector.load %arg3[%c352, %c0_70] : memref<544x128xf32, #tpu.memory_space<vmem>>, vector<32x32xf32>
    %c384 = arith.constant 384 : index
    %c0_71 = arith.constant 0 : index
    %230 = vector.load %arg3[%c384, %c0_71] : memref<544x128xf32, #tpu.memory_space<vmem>>, vector<32x32xf32>
    %c416 = arith.constant 416 : index
    %c0_72 = arith.constant 0 : index
    %231 = vector.load %arg3[%c416, %c0_72] : memref<544x128xf32, #tpu.memory_space<vmem>>, vector<32x64xf32>
    %c448 = arith.constant 448 : index
    %c0_73 = arith.constant 0 : index
    %232 = vector.load %arg3[%c448, %c0_73] : memref<544x128xf32, #tpu.memory_space<vmem>>, vector<64x32xf32>
    %c10 = arith.constant 10 : index
    %c0_74 = arith.constant 0 : index
    %233 = vector.load %arg4[%c10, %c0_74] : memref<24x128xf32, #tpu.memory_space<vmem>>, vector<1x32xf32>
    %c11 = arith.constant 11 : index
    %c0_75 = arith.constant 0 : index
    %234 = vector.load %arg4[%c11, %c0_75] : memref<24x128xf32, #tpu.memory_space<vmem>>, vector<1x32xf32>
    %c12 = arith.constant 12 : index
    %c0_76 = arith.constant 0 : index
    %235 = vector.load %arg4[%c12, %c0_76] : memref<24x128xf32, #tpu.memory_space<vmem>>, vector<1x32xf32>
    %c13 = arith.constant 13 : index
    %c0_77 = arith.constant 0 : index
    %236 = vector.load %arg4[%c13, %c0_77] : memref<24x128xf32, #tpu.memory_space<vmem>>, vector<1x32xf32>
    %c14 = arith.constant 14 : index
    %c0_78 = arith.constant 0 : index
    %237 = vector.load %arg4[%c14, %c0_78] : memref<24x128xf32, #tpu.memory_space<vmem>>, vector<1x64xf32>
    %c15 = arith.constant 15 : index
    %c0_79 = arith.constant 0 : index
    %238 = vector.load %arg4[%c15, %c0_79] : memref<24x128xf32, #tpu.memory_space<vmem>>, vector<1x32xf32>
    %c16 = arith.constant 16 : index
    %c0_80 = arith.constant 0 : index
    %239 = vector.load %arg4[%c16, %c0_80] : memref<24x128xf32, #tpu.memory_space<vmem>>, vector<1x32xf32>
    %c17 = arith.constant 17 : index
    %c0_81 = arith.constant 0 : index
    %240 = vector.load %arg4[%c17, %c0_81] : memref<24x128xf32, #tpu.memory_space<vmem>>, vector<1x32xf32>
    %cst_82 = arith.constant dense<0.000000e+00> : vector<32x32xf32>
    %241 = tpu.matmul %228, %229, %cst_82 {dimension_numbers = #tpu.dot_dimension_numbers<[1], [0], [0], [1], [0, 0, 1, 1], [], []>} : vector<32x32xf32>, vector<32x32xf32>, vector<32x32xf32> -> vector<32x32xf32>
    %242 = vector.broadcast %233 : vector<1x32xf32> to vector<32x32xf32>
    %243 = arith.addf %241, %242 : vector<32x32xf32>
    %244 = vector.extract_strided_slice %9 {offsets = [0, 64], sizes = [32, 64], strides = [1, 1]} : vector<32x128xf32> to vector<32x64xf32>
    %245 = vector.extract_strided_slice %244 {offsets = [0, 0], sizes = [32, 32], strides = [1, 1]} : vector<32x64xf32> to vector<32x32xf32>
    %246 = vector.extract_strided_slice %244 {offsets = [0, 32], sizes = [32, 32], strides = [1, 1]} : vector<32x64xf32> to vector<32x32xf32>
    %cst_83 = arith.constant 0.000000e+00 : f32
    %247 = vector.broadcast %cst_83 : f32 to vector<32x32xf32>
    %248 = vector.extract_strided_slice %243 {offsets = [0, 0], sizes = [32, 8], strides = [1, 1]} : vector<32x32xf32> to vector<32x8xf32>
    %249 = vector.shape_cast %248 : vector<32x8xf32> to vector<4x8x8xf32>
    %250 = vector.extract_strided_slice %245 {offsets = [0, 0], sizes = [32, 8], strides = [1, 1]} : vector<32x32xf32> to vector<32x8xf32>
    %251 = vector.shape_cast %250 : vector<32x8xf32> to vector<4x8x8xf32>
    %252 = vector.extract_strided_slice %246 {offsets = [0, 0], sizes = [32, 8], strides = [1, 1]} : vector<32x32xf32> to vector<32x8xf32>
    %253 = vector.shape_cast %252 : vector<32x8xf32> to vector<4x8x8xf32>
    "tpu.trace_start"() <{level = 10 : i32, message = "bqd,bkd->bqk"}> : () -> ()
    %cst_84 = arith.constant dense<0.000000e+00> : vector<4x8x8xf32>
    %254 = tpu.matmul %249, %251, %cst_84 {dimension_numbers = #tpu.dot_dimension_numbers<[2], [2], [1], [1], [0, 0, 0, 1, 1, 1], [0], [0]>} : vector<4x8x8xf32>, vector<4x8x8xf32>, vector<4x8x8xf32> -> vector<4x8x8xf32>
    "tpu.trace_stop"() : () -> ()
    %cst_85 = arith.constant 0.353553385 : f32
    %255 = vector.broadcast %cst_85 : f32 to vector<4x8x8xf32>
    %256 = arith.mulf %254, %255 : vector<4x8x8xf32>
    %257 = arith.addf %256, %57 : vector<4x8x8xf32>
    %cst_86 = arith.constant dense<0xFF800000> : vector<4x8xf32>
    %258 = vector.multi_reduction <maximumf>, %257, %cst_86 [2] : vector<4x8x8xf32> to vector<4x8xf32>
    %259 = vector.shape_cast %258 : vector<4x8xf32> to vector<4x8x1xf32>
    %260 = vector.broadcast %259 : vector<4x8x1xf32> to vector<4x8x8xf32>
    %261 = arith.subf %257, %260 : vector<4x8x8xf32>
    %262 = math.exp %261 : vector<4x8x8xf32>
    %cst_87 = arith.constant dense<0.000000e+00> : vector<4x8xf32>
    %263 = vector.multi_reduction <add>, %262, %cst_87 [2] : vector<4x8x8xf32> to vector<4x8xf32>
    %264 = vector.shape_cast %263 : vector<4x8xf32> to vector<4x8x1xf32>
    %265 = vector.broadcast %264 : vector<4x8x1xf32> to vector<4x8x8xf32>
    %266 = arith.divf %262, %265 : vector<4x8x8xf32>
    "tpu.trace_start"() <{level = 10 : i32, message = "bqk,bkd->bqd"}> : () -> ()
    %cst_88 = arith.constant dense<0.000000e+00> : vector<4x8x8xf32>
    %267 = tpu.matmul %266, %253, %cst_88 {dimension_numbers = #tpu.dot_dimension_numbers<[2], [1], [1], [2], [0, 0, 0, 1, 1, 2], [0], [0]>} : vector<4x8x8xf32>, vector<4x8x8xf32>, vector<4x8x8xf32> -> vector<4x8x8xf32>
    "tpu.trace_stop"() : () -> ()
    %268 = vector.shape_cast %267 : vector<4x8x8xf32> to vector<32x8xf32>
    %269 = vector.extract_strided_slice %230 {offsets = [0, 0], sizes = [8, 32], strides = [1, 1]} : vector<32x32xf32> to vector<8x32xf32>
    %cst_89 = arith.constant dense<0.000000e+00> : vector<32x32xf32>
    %270 = tpu.matmul %268, %269, %cst_89 {dimension_numbers = #tpu.dot_dimension_numbers<[1], [0], [0], [1], [0, 0, 1, 1], [], []>} : vector<32x8xf32>, vector<8x32xf32>, vector<32x32xf32> -> vector<32x32xf32>
    %271 = arith.addf %247, %270 : vector<32x32xf32>
    %272 = vector.extract_strided_slice %243 {offsets = [0, 8], sizes = [32, 8], strides = [1, 1]} : vector<32x32xf32> to vector<32x8xf32>
    %273 = vector.shape_cast %272 : vector<32x8xf32> to vector<4x8x8xf32>
    %274 = vector.extract_strided_slice %245 {offsets = [0, 8], sizes = [32, 8], strides = [1, 1]} : vector<32x32xf32> to vector<32x8xf32>
    %275 = vector.shape_cast %274 : vector<32x8xf32> to vector<4x8x8xf32>
    %276 = vector.extract_strided_slice %246 {offsets = [0, 8], sizes = [32, 8], strides = [1, 1]} : vector<32x32xf32> to vector<32x8xf32>
    %277 = vector.shape_cast %276 : vector<32x8xf32> to vector<4x8x8xf32>
    "tpu.trace_start"() <{level = 10 : i32, message = "bqd,bkd->bqk"}> : () -> ()
    %cst_90 = arith.constant dense<0.000000e+00> : vector<4x8x8xf32>
    %278 = tpu.matmul %273, %275, %cst_90 {dimension_numbers = #tpu.dot_dimension_numbers<[2], [2], [1], [1], [0, 0, 0, 1, 1, 1], [0], [0]>} : vector<4x8x8xf32>, vector<4x8x8xf32>, vector<4x8x8xf32> -> vector<4x8x8xf32>
    "tpu.trace_stop"() : () -> ()
    %cst_91 = arith.constant 0.353553385 : f32
    %279 = vector.broadcast %cst_91 : f32 to vector<4x8x8xf32>
    %280 = arith.mulf %278, %279 : vector<4x8x8xf32>
    %281 = arith.addf %280, %57 : vector<4x8x8xf32>
    %cst_92 = arith.constant dense<0xFF800000> : vector<4x8xf32>
    %282 = vector.multi_reduction <maximumf>, %281, %cst_92 [2] : vector<4x8x8xf32> to vector<4x8xf32>
    %283 = vector.shape_cast %282 : vector<4x8xf32> to vector<4x8x1xf32>
    %284 = vector.broadcast %283 : vector<4x8x1xf32> to vector<4x8x8xf32>
    %285 = arith.subf %281, %284 : vector<4x8x8xf32>
    %286 = math.exp %285 : vector<4x8x8xf32>
    %cst_93 = arith.constant dense<0.000000e+00> : vector<4x8xf32>
    %287 = vector.multi_reduction <add>, %286, %cst_93 [2] : vector<4x8x8xf32> to vector<4x8xf32>
    %288 = vector.shape_cast %287 : vector<4x8xf32> to vector<4x8x1xf32>
    %289 = vector.broadcast %288 : vector<4x8x1xf32> to vector<4x8x8xf32>
    %290 = arith.divf %286, %289 : vector<4x8x8xf32>
    "tpu.trace_start"() <{level = 10 : i32, message = "bqk,bkd->bqd"}> : () -> ()
    %cst_94 = arith.constant dense<0.000000e+00> : vector<4x8x8xf32>
    %291 = tpu.matmul %290, %277, %cst_94 {dimension_numbers = #tpu.dot_dimension_numbers<[2], [1], [1], [2], [0, 0, 0, 1, 1, 2], [0], [0]>} : vector<4x8x8xf32>, vector<4x8x8xf32>, vector<4x8x8xf32> -> vector<4x8x8xf32>
    "tpu.trace_stop"() : () -> ()
    %292 = vector.shape_cast %291 : vector<4x8x8xf32> to vector<32x8xf32>
    %293 = vector.extract_strided_slice %230 {offsets = [8, 0], sizes = [8, 32], strides = [1, 1]} : vector<32x32xf32> to vector<8x32xf32>
    %cst_95 = arith.constant dense<0.000000e+00> : vector<32x32xf32>
    %294 = tpu.matmul %292, %293, %cst_95 {dimension_numbers = #tpu.dot_dimension_numbers<[1], [0], [0], [1], [0, 0, 1, 1], [], []>} : vector<32x8xf32>, vector<8x32xf32>, vector<32x32xf32> -> vector<32x32xf32>
    %295 = arith.addf %271, %294 : vector<32x32xf32>
    %296 = vector.extract_strided_slice %243 {offsets = [0, 16], sizes = [32, 8], strides = [1, 1]} : vector<32x32xf32> to vector<32x8xf32>
    %297 = vector.shape_cast %296 : vector<32x8xf32> to vector<4x8x8xf32>
    %298 = vector.extract_strided_slice %245 {offsets = [0, 16], sizes = [32, 8], strides = [1, 1]} : vector<32x32xf32> to vector<32x8xf32>
    %299 = vector.shape_cast %298 : vector<32x8xf32> to vector<4x8x8xf32>
    %300 = vector.extract_strided_slice %246 {offsets = [0, 16], sizes = [32, 8], strides = [1, 1]} : vector<32x32xf32> to vector<32x8xf32>
    %301 = vector.shape_cast %300 : vector<32x8xf32> to vector<4x8x8xf32>
    "tpu.trace_start"() <{level = 10 : i32, message = "bqd,bkd->bqk"}> : () -> ()
    %cst_96 = arith.constant dense<0.000000e+00> : vector<4x8x8xf32>
    %302 = tpu.matmul %297, %299, %cst_96 {dimension_numbers = #tpu.dot_dimension_numbers<[2], [2], [1], [1], [0, 0, 0, 1, 1, 1], [0], [0]>} : vector<4x8x8xf32>, vector<4x8x8xf32>, vector<4x8x8xf32> -> vector<4x8x8xf32>
    "tpu.trace_stop"() : () -> ()
    %cst_97 = arith.constant 0.353553385 : f32
    %303 = vector.broadcast %cst_97 : f32 to vector<4x8x8xf32>
    %304 = arith.mulf %302, %303 : vector<4x8x8xf32>
    %305 = arith.addf %304, %57 : vector<4x8x8xf32>
    %cst_98 = arith.constant dense<0xFF800000> : vector<4x8xf32>
    %306 = vector.multi_reduction <maximumf>, %305, %cst_98 [2] : vector<4x8x8xf32> to vector<4x8xf32>
    %307 = vector.shape_cast %306 : vector<4x8xf32> to vector<4x8x1xf32>
    %308 = vector.broadcast %307 : vector<4x8x1xf32> to vector<4x8x8xf32>
    %309 = arith.subf %305, %308 : vector<4x8x8xf32>
    %310 = math.exp %309 : vector<4x8x8xf32>
    %cst_99 = arith.constant dense<0.000000e+00> : vector<4x8xf32>
    %311 = vector.multi_reduction <add>, %310, %cst_99 [2] : vector<4x8x8xf32> to vector<4x8xf32>
    %312 = vector.shape_cast %311 : vector<4x8xf32> to vector<4x8x1xf32>
    %313 = vector.broadcast %312 : vector<4x8x1xf32> to vector<4x8x8xf32>
    %314 = arith.divf %310, %313 : vector<4x8x8xf32>
    "tpu.trace_start"() <{level = 10 : i32, message = "bqk,bkd->bqd"}> : () -> ()
    %cst_100 = arith.constant dense<0.000000e+00> : vector<4x8x8xf32>
    %315 = tpu.matmul %314, %301, %cst_100 {dimension_numbers = #tpu.dot_dimension_numbers<[2], [1], [1], [2], [0, 0, 0, 1, 1, 2], [0], [0]>} : vector<4x8x8xf32>, vector<4x8x8xf32>, vector<4x8x8xf32> -> vector<4x8x8xf32>
    "tpu.trace_stop"() : () -> ()
    %316 = vector.shape_cast %315 : vector<4x8x8xf32> to vector<32x8xf32>
    %317 = vector.extract_strided_slice %230 {offsets = [16, 0], sizes = [8, 32], strides = [1, 1]} : vector<32x32xf32> to vector<8x32xf32>
    %cst_101 = arith.constant dense<0.000000e+00> : vector<32x32xf32>
    %318 = tpu.matmul %316, %317, %cst_101 {dimension_numbers = #tpu.dot_dimension_numbers<[1], [0], [0], [1], [0, 0, 1, 1], [], []>} : vector<32x8xf32>, vector<8x32xf32>, vector<32x32xf32> -> vector<32x32xf32>
    %319 = arith.addf %295, %318 : vector<32x32xf32>
    %320 = vector.extract_strided_slice %243 {offsets = [0, 24], sizes = [32, 8], strides = [1, 1]} : vector<32x32xf32> to vector<32x8xf32>
    %321 = vector.shape_cast %320 : vector<32x8xf32> to vector<4x8x8xf32>
    %322 = vector.extract_strided_slice %245 {offsets = [0, 24], sizes = [32, 8], strides = [1, 1]} : vector<32x32xf32> to vector<32x8xf32>
    %323 = vector.shape_cast %322 : vector<32x8xf32> to vector<4x8x8xf32>
    %324 = vector.extract_strided_slice %246 {offsets = [0, 24], sizes = [32, 8], strides = [1, 1]} : vector<32x32xf32> to vector<32x8xf32>
    %325 = vector.shape_cast %324 : vector<32x8xf32> to vector<4x8x8xf32>
    "tpu.trace_start"() <{level = 10 : i32, message = "bqd,bkd->bqk"}> : () -> ()
    %cst_102 = arith.constant dense<0.000000e+00> : vector<4x8x8xf32>
    %326 = tpu.matmul %321, %323, %cst_102 {dimension_numbers = #tpu.dot_dimension_numbers<[2], [2], [1], [1], [0, 0, 0, 1, 1, 1], [0], [0]>} : vector<4x8x8xf32>, vector<4x8x8xf32>, vector<4x8x8xf32> -> vector<4x8x8xf32>
    "tpu.trace_stop"() : () -> ()
    %cst_103 = arith.constant 0.353553385 : f32
    %327 = vector.broadcast %cst_103 : f32 to vector<4x8x8xf32>
    %328 = arith.mulf %326, %327 : vector<4x8x8xf32>
    %329 = arith.addf %328, %57 : vector<4x8x8xf32>
    %cst_104 = arith.constant dense<0xFF800000> : vector<4x8xf32>
    %330 = vector.multi_reduction <maximumf>, %329, %cst_104 [2] : vector<4x8x8xf32> to vector<4x8xf32>
    %331 = vector.shape_cast %330 : vector<4x8xf32> to vector<4x8x1xf32>
    %332 = vector.broadcast %331 : vector<4x8x1xf32> to vector<4x8x8xf32>
    %333 = arith.subf %329, %332 : vector<4x8x8xf32>
    %334 = math.exp %333 : vector<4x8x8xf32>
    %cst_105 = arith.constant dense<0.000000e+00> : vector<4x8xf32>
    %335 = vector.multi_reduction <add>, %334, %cst_105 [2] : vector<4x8x8xf32> to vector<4x8xf32>
    %336 = vector.shape_cast %335 : vector<4x8xf32> to vector<4x8x1xf32>
    %337 = vector.broadcast %336 : vector<4x8x1xf32> to vector<4x8x8xf32>
    %338 = arith.divf %334, %337 : vector<4x8x8xf32>
    "tpu.trace_start"() <{level = 10 : i32, message = "bqk,bkd->bqd"}> : () -> ()
    %cst_106 = arith.constant dense<0.000000e+00> : vector<4x8x8xf32>
    %339 = tpu.matmul %338, %325, %cst_106 {dimension_numbers = #tpu.dot_dimension_numbers<[2], [1], [1], [2], [0, 0, 0, 1, 1, 2], [0], [0]>} : vector<4x8x8xf32>, vector<4x8x8xf32>, vector<4x8x8xf32> -> vector<4x8x8xf32>
    "tpu.trace_stop"() : () -> ()
    %340 = vector.shape_cast %339 : vector<4x8x8xf32> to vector<32x8xf32>
    %341 = vector.extract_strided_slice %230 {offsets = [24, 0], sizes = [8, 32], strides = [1, 1]} : vector<32x32xf32> to vector<8x32xf32>
    %cst_107 = arith.constant dense<0.000000e+00> : vector<32x32xf32>
    %342 = tpu.matmul %340, %341, %cst_107 {dimension_numbers = #tpu.dot_dimension_numbers<[1], [0], [0], [1], [0, 0, 1, 1], [], []>} : vector<32x8xf32>, vector<8x32xf32>, vector<32x32xf32> -> vector<32x32xf32>
    %343 = arith.addf %319, %342 : vector<32x32xf32>
    %344 = vector.broadcast %234 : vector<1x32xf32> to vector<32x32xf32>
    %345 = arith.addf %343, %344 : vector<32x32xf32>
    %346 = arith.addf %228, %345 : vector<32x32xf32>
    %cst_108 = arith.constant dense<0.000000e+00> : vector<32xf32>
    %347 = vector.multi_reduction <add>, %346, %cst_108 [1] : vector<32x32xf32> to vector<32xf32>
    %348 = vector.shape_cast %347 : vector<32xf32> to vector<32x1xf32>
    %cst_109 = arith.constant 3.200000e+01 : f32
    %349 = vector.broadcast %cst_109 : f32 to vector<32x1xf32>
    %350 = arith.divf %348, %349 : vector<32x1xf32>
    %351 = vector.broadcast %350 : vector<32x1xf32> to vector<32x32xf32>
    %352 = arith.subf %346, %351 : vector<32x32xf32>
    %353 = arith.mulf %352, %352 : vector<32x32xf32>
    %cst_110 = arith.constant dense<0.000000e+00> : vector<32xf32>
    %354 = vector.multi_reduction <add>, %353, %cst_110 [1] : vector<32x32xf32> to vector<32xf32>
    %355 = vector.shape_cast %354 : vector<32xf32> to vector<32x1xf32>
    %cst_111 = arith.constant 3.200000e+01 : f32
    %356 = vector.broadcast %cst_111 : f32 to vector<32x1xf32>
    %357 = arith.divf %355, %356 : vector<32x1xf32>
    %358 = vector.broadcast %350 : vector<32x1xf32> to vector<32x32xf32>
    %359 = arith.subf %346, %358 : vector<32x32xf32>
    %cst_112 = arith.constant 9.99999974E-6 : f32
    %360 = vector.broadcast %cst_112 : f32 to vector<32x1xf32>
    %361 = arith.addf %357, %360 : vector<32x1xf32>
    %362 = math.rsqrt %361 : vector<32x1xf32>
    %363 = vector.broadcast %362 : vector<32x1xf32> to vector<32x32xf32>
    %364 = arith.mulf %359, %363 : vector<32x32xf32>
    %365 = vector.broadcast %235 : vector<1x32xf32> to vector<32x32xf32>
    %366 = arith.mulf %364, %365 : vector<32x32xf32>
    %367 = vector.broadcast %236 : vector<1x32xf32> to vector<32x32xf32>
    %368 = arith.addf %366, %367 : vector<32x32xf32>
    %cst_113 = arith.constant dense<0.000000e+00> : vector<32x64xf32>
    %369 = tpu.matmul %368, %231, %cst_113 {dimension_numbers = #tpu.dot_dimension_numbers<[1], [0], [0], [1], [0, 0, 1, 1], [], []>} : vector<32x32xf32>, vector<32x64xf32>, vector<32x64xf32> -> vector<32x64xf32>
    %370 = vector.broadcast %237 : vector<1x64xf32> to vector<32x64xf32>
    %371 = arith.addf %369, %370 : vector<32x64xf32>
    %cst_114 = arith.constant 0.000000e+00 : f32
    %372 = vector.broadcast %cst_114 : f32 to vector<32x64xf32>
    %373 = arith.maximumf %371, %372 : vector<32x64xf32>
    %cst_115 = arith.constant dense<0.000000e+00> : vector<32x32xf32>
    %374 = tpu.matmul %373, %232, %cst_115 {dimension_numbers = #tpu.dot_dimension_numbers<[1], [0], [0], [1], [0, 0, 1, 1], [], []>} : vector<32x64xf32>, vector<64x32xf32>, vector<32x32xf32> -> vector<32x32xf32>
    %375 = vector.broadcast %238 : vector<1x32xf32> to vector<32x32xf32>
    %376 = arith.addf %374, %375 : vector<32x32xf32>
    %377 = arith.addf %368, %376 : vector<32x32xf32>
    %cst_116 = arith.constant dense<0.000000e+00> : vector<32xf32>
    %378 = vector.multi_reduction <add>, %377, %cst_116 [1] : vector<32x32xf32> to vector<32xf32>
    %379 = vector.shape_cast %378 : vector<32xf32> to vector<32x1xf32>
    %cst_117 = arith.constant 3.200000e+01 : f32
    %380 = vector.broadcast %cst_117 : f32 to vector<32x1xf32>
    %381 = arith.divf %379, %380 : vector<32x1xf32>
    %382 = vector.broadcast %381 : vector<32x1xf32> to vector<32x32xf32>
    %383 = arith.subf %377, %382 : vector<32x32xf32>
    %384 = arith.mulf %383, %383 : vector<32x32xf32>
    %cst_118 = arith.constant dense<0.000000e+00> : vector<32xf32>
    %385 = vector.multi_reduction <add>, %384, %cst_118 [1] : vector<32x32xf32> to vector<32xf32>
    %386 = vector.shape_cast %385 : vector<32xf32> to vector<32x1xf32>
    %cst_119 = arith.constant 3.200000e+01 : f32
    %387 = vector.broadcast %cst_119 : f32 to vector<32x1xf32>
    %388 = arith.divf %386, %387 : vector<32x1xf32>
    %389 = vector.broadcast %381 : vector<32x1xf32> to vector<32x32xf32>
    %390 = arith.subf %377, %389 : vector<32x32xf32>
    %cst_120 = arith.constant 9.99999974E-6 : f32
    %391 = vector.broadcast %cst_120 : f32 to vector<32x1xf32>
    %392 = arith.addf %388, %391 : vector<32x1xf32>
    %393 = math.rsqrt %392 : vector<32x1xf32>
    %394 = vector.broadcast %393 : vector<32x1xf32> to vector<32x32xf32>
    %395 = arith.mulf %390, %394 : vector<32x32xf32>
    %396 = vector.broadcast %239 : vector<1x32xf32> to vector<32x32xf32>
    %397 = arith.mulf %395, %396 : vector<32x32xf32>
    %398 = vector.broadcast %240 : vector<1x32xf32> to vector<32x32xf32>
    %399 = arith.addf %397, %398 : vector<32x32xf32>
    %c512 = arith.constant 512 : index
    %c0_121 = arith.constant 0 : index
    %400 = vector.load %arg3[%c512, %c0_121] : memref<544x128xf32, #tpu.memory_space<vmem>>, vector<32x128xf32>
    %c1 = arith.constant 1 : index
    %c0_122 = arith.constant 0 : index
    %401 = vector.load %arg4[%c1, %c0_122] : memref<24x128xf32, #tpu.memory_space<vmem>>, vector<1x128xf32>
    %cst_123 = arith.constant dense<0.000000e+00> : vector<32x128xf32>
    %402 = tpu.matmul %399, %400, %cst_123 {dimension_numbers = #tpu.dot_dimension_numbers<[1], [0], [0], [1], [0, 0, 1, 1], [], []>} : vector<32x32xf32>, vector<32x128xf32>, vector<32x128xf32> -> vector<32x128xf32>
    %403 = vector.broadcast %401 : vector<1x128xf32> to vector<32x128xf32>
    %404 = arith.addf %402, %403 : vector<32x128xf32>
    %cst_124 = arith.constant 0.000000e+00 : f32
    %405 = vector.broadcast %cst_124 : f32 to vector<32x96xf32>
    %406 = tpu.concatenate %399, %405 in 1 : vector<32x32xf32>, vector<32x96xf32> -> vector<32x128xf32>
    %407 = tpu.concatenate %406, %404 in 1 : vector<32x128xf32>, vector<32x128xf32> -> vector<32x256xf32>
    %c0_125 = arith.constant 0 : index
    %c0_126 = arith.constant 0 : index
    %408 = vector.load %arg5[%c0_125, %c0_126] : memref<32x256xf32, #tpu.memory_space<vmem>>, vector<32x256xf32>
    tpu.vector_store %arg5[%c0_125, %c0_126], %407 {strides = array<i32>} : memref<32x256xf32, #tpu.memory_space<vmem>>, vector<32x256xf32>,
    return
  }
  func.func @transform_0(%arg0: i32, %arg1: memref<8xi32, #tpu.memory_space<smem>>) -> (i32, i32) {
    %c0_i32 = arith.constant 0 : i32
    %c0_i32_0 = arith.constant 0 : i32
    return %arg0, %c0_i32 : i32, i32
  }
  func.func @transform_1(%arg0: i32, %arg1: memref<8xi32, #tpu.memory_space<smem>>) -> (i32, i32) {
    %c0_i32 = arith.constant 0 : i32
    %c0_i32_0 = arith.constant 0 : i32
    %c0_i32_1 = arith.constant 0 : i32
    return %c0_i32, %c0_i32_0 : i32, i32
  }
  func.func @transform_2(%arg0: i32, %arg1: memref<8xi32, #tpu.memory_space<smem>>) -> (i32, i32) {
    %c0_i32 = arith.constant 0 : i32
    %c0_i32_0 = arith.constant 0 : i32
    %c0_i32_1 = arith.constant 0 : i32
    return %c0_i32, %c0_i32_0 : i32, i32
  }
  func.func @transform_3(%arg0: i32, %arg1: memref<8xi32, #tpu.memory_space<smem>>) -> (i32, i32) {
    %c0_i32 = arith.constant 0 : i32
    %c0_i32_0 = arith.constant 0 : i32
    return %arg0, %c0_i32 : i32, i32
  }
}

</mosaic_0001>

<llo_original>
// kernel: tpu_custom_call.1
$region0: #{tpu_custom_call.1}
  #allocation0 [shape = 'u32[]', space=smem, size = 0x4, offset = 0x4, fixed_abs, tag = 'smem constant byte address 0x4 - core index']
  #allocation1 [shape = 'u32[144,128]{1,0:T(1,128)}', space=vmem, size = 0x12000, scoped, tag = 'internal scratch']
  #allocation2 [shape = 's32[1]{0}', space=sflag, size = 0x4, scoped, tag = 'scoped memory for tpu_custom_call.1']
  #allocation3 [shape = 'u8[512]{0}', space=smem, size = 0x200, scoped, tag = 'prefetched SMEM operand 0']
  %s0 = inlined_call_operand.hbm [shape: s32[8], index: 0, kind: input, shape index: {}]
  %s1 = inlined_call_operand.hbm [shape: f32[64,128], index: 1, kind: input, shape index: {}]
  %s2 = inlined_call_operand.hbm [shape: f32[544,128], index: 2, kind: input, shape index: {}]
  %s3 = inlined_call_operand.hbm [shape: f32[24,128], index: 3, kind: input, shape index: {}]
  %s4 = inlined_call_operand.hbm [shape: f32[64,256], index: 4, kind: output, shape index: {}]
  %s5 = sld [smem:[#allocation0]]
  $region57: #{tpu_custom_call.1} parent=0
    _
  %s7 = ssub.s32 1, %s5
  %s8 = scalar_select 0, %s7, %s5
  %10 = dma.hbm_to_smem %s0, 16, [#allocation3], [#allocation2]
  %11 = dma.done [#allocation2], 16
  %12 = sfence
  $region1: #{tpu_custom_call.1} parent=0
    #allocation4 [shape = 'u8[32768]{0}', space=vmem, size = 0x8000, scoped, tag = 'input window, operand 1']
    #allocation5 [shape = 's32[2]{0}', space=sflag, size = 0x8, scoped, tag = 'scoped memory for tpu_custom_call.1']
    #allocation6 [shape = 's32[2]{0}', space=sflag, size = 0x8, scoped, tag = 'scoped memory for tpu_custom_call.1']
    #allocation7 [shape = 'u8[278528]{0}', space=vmem, size = 0x44000, scoped, tag = 'input window, operand 2, single buffered']
    #allocation8 [shape = 's32[1]{0}', space=sflag, size = 0x4, scoped, tag = 'scoped memory for tpu_custom_call.1']
    #allocation9 [shape = 'u8[12288]{0}', space=vmem, size = 0x3000, scoped, tag = 'input window, operand 3, single buffered']
    #allocation10 [shape = 'u8[65536]{0}', space=vmem, size = 0x10000, scoped, tag = 'output window, operand 0']
    %13 = vsyncpa [#allocation5], 0
    %s14 = scalar_lea.sflag [#allocation5], 1
    %15 = vsyncpa %s14, 0
    %16 = vsyncpa [#allocation8], 0
    %17 = vsyncpa [#allocation6], 0
    %s18 = scalar_lea.sflag [#allocation6], 1
    %19 = vsyncpa %s18, 0
    loop: start=0, step=1, limit=4
    $region2: #{tpu_custom_call.1} parent=1 // loop_pre_header
      _
    $region3: #{tpu_custom_call.1} parent=1 // loop_header
      %s21 = sphi 0, %s25
      %p22 = scmp.ge.s32.totalorder %s21, 4
      %s31 = sphi 0, %s33
      %s34 = sphi 0, %s31
      %s35 = sphi 0, %s34
      %s51 = sphi 0, %s35
      %s55 = sphi 0, %s55
      %s57 = sphi 0, %s55
      %s58 = sphi 0, %s57
      %s72 = sphi 0, %s58
      %s76 = sphi 0, %s76
      %s78 = sphi 0, %s76
      %s79 = sphi 0, %s78
      %s93 = sphi 0, %s79
      %s99 = sphi 0, %s101
      %s102 = sphi 0, %s99
      %s103 = sphi 0, %s102
      %s119 = sphi 0, %s103
    $region4: #{tpu_custom_call.1} parent=1 // loop_header_branch
      %24 = sbr.rel (%p22) target = $region8
    $region5: #{tpu_custom_call.1} parent=1 // loop_body
      %s26 = ssub.s32 %s21, 1
      %s27 = ssub.s32 %s21, 2
      %s28 = sadd.s32 %s21, 1
      %s29 = ssub.s32 %s21, %s28
      %p30 = scmp.eq.s32.totalorder %s29, 0
      %s32 = sadd.s32 %s31, 1
      %s33 = scalar_select %p30, %s31, %s32
      %p36 = pneg %p30
      %p37 = scmp.eq.s32.totalorder %s21, 1
      %p38 = por %p36, %p37
      %p39 = scmp.ne.s32.totalorder %s31, %s34
      %p40 = scmp.eq.s32.totalorder %s21, 0
      %p41 = por %p39, %p40
      %p42 = scmp.ne.s32.totalorder %s31, %s34
      %p43 = scmp.eq.s32.totalorder %s26, 1
      %p44 = por %p42, %p43
      %p45 = scmp.ne.s32.totalorder %s34, %s35
      %p46 = scmp.eq.s32.totalorder %s26, 0
      %p47 = por %p45, %p46
      %p48 = scmp.ne.s32.totalorder %s34, %s35
      %p49 = scmp.eq.s32.totalorder %s27, 1
      %p50 = por %p48, %p49
      %p52 = scmp.ne.s32.totalorder %s35, %s51
      %p53 = scmp.eq.s32.totalorder %s27, 0
      %p54 = por %p52, %p53
      %s56 = sadd.s32 %s55, 1
      %p59 = scmp.eq.s32.totalorder %s21, 1
      %p60 = scmp.ne.s32.totalorder %s55, %s57
      %p61 = scmp.eq.s32.totalorder %s21, 0
      %p62 = por %p60, %p61
      %p63 = scmp.ne.s32.totalorder %s55, %s57
      %p64 = scmp.eq.s32.totalorder %s26, 1
      %p65 = por %p63, %p64
      %p66 = scmp.ne.s32.totalorder %s57, %s58
      %p67 = scmp.eq.s32.totalorder %s26, 0
      %p68 = por %p66, %p67
      %p69 = scmp.ne.s32.totalorder %s57, %s58
      %p70 = scmp.eq.s32.totalorder %s27, 1
      %p71 = por %p69, %p70
      %p73 = scmp.ne.s32.totalorder %s58, %s72
      %p74 = scmp.eq.s32.totalorder %s27, 0
      %p75 = por %p73, %p74
      %s77 = sadd.s32 %s76, 1
      %p80 = scmp.eq.s32.totalorder %s21, 1
      %p81 = scmp.ne.s32.totalorder %s76, %s78
      %p82 = scmp.eq.s32.totalorder %s21, 0
      %p83 = por %p81, %p82
      %p84 = scmp.ne.s32.totalorder %s76, %s78
      %p85 = scmp.eq.s32.totalorder %s26, 1
      %p86 = por %p84, %p85
      %p87 = scmp.ne.s32.totalorder %s78, %s79
      %p88 = scmp.eq.s32.totalorder %s26, 0
      %p89 = por %p87, %p88
      %p90 = scmp.ne.s32.totalorder %s78, %s79
      %p91 = scmp.eq.s32.totalorder %s27, 1
      %p92 = por %p90, %p91
      %p94 = scmp.ne.s32.totalorder %s79, %s93
      %p95 = scmp.eq.s32.totalorder %s27, 0
      %p96 = por %p94, %p95
      %s97 = ssub.s32 %s21, %s28
      %p98 = scmp.eq.s32.totalorder %s97, 0
      %s100 = sadd.s32 %s99, 1
      %s101 = scalar_select %p98, %s99, %s100
      %p104 = pneg %p98
      %p105 = scmp.eq.s32.totalorder %s21, 1
      %p106 = por %p104, %p105
      %p107 = scmp.ne.s32.totalorder %s99, %s102
      %p108 = scmp.eq.s32.totalorder %s21, 0
      %p109 = por %p107, %p108
      %p110 = scmp.ne.s32.totalorder %s99, %s102
      %p111 = scmp.eq.s32.totalorder %s26, 1
      %p112 = por %p110, %p111
      %p113 = scmp.ne.s32.totalorder %s102, %s103
      %p114 = scmp.eq.s32.totalorder %s26, 0
      %p115 = por %p113, %p114
      %p116 = scmp.ne.s32.totalorder %s102, %s103
      %p117 = scmp.eq.s32.totalorder %s27, 1
      %p118 = por %p116, %p117
      %p120 = scmp.ne.s32.totalorder %s103, %s119
      %p121 = scmp.eq.s32.totalorder %s27, 0
      %p122 = por %p120, %p121
      %p123 = scmp.le.s32.totalorder 1, %s21
      %p124 = scmp.lt.s32.totalorder %s21, 3
      %p125 = pnand %p123, %p124
      %p126 = pneg %p125
      // Predicated region
      $region9: #{tpu_custom_call.1} parent=5 // pred_check
        _
      $region10: #{tpu_custom_call.1} parent=5 // pred_check_branch
        %128 = sbr.rel (%p125) target = $region12
      $region11: #{tpu_custom_call.1} parent=5 // pred_region
        %s129 = ssub.s32 %s21, 1
        // Predicated region
        $region13: #{tpu_custom_call.1} parent=11 // pred_check
          %p130 = pneg %p68
        $region14: #{tpu_custom_call.1} parent=11 // pred_check_branch
          %132 = sbr.rel (%p130) target = $region16
        $region15: #{tpu_custom_call.1} parent=11 // pred_region
          %s134 = ssub.s32 8704, 8704
          %135 = vsyncadd [#allocation8], %s134
          %s136 = sshll.u32 [#allocation7], 4
          %s137 = int_to_ptr.vmem [resolvable:$true] %s136
          %142 = dma.hbm_to_vmem [thread:$0]  %s2, 8704, %s137, [#allocation8], 128, 128, 8
        $region16: #{tpu_custom_call.1} parent=11 // pred_fallthru
          _
        // Predicated region
        $region17: #{tpu_custom_call.1} parent=11 // pred_check
          %p143 = pneg %p89
        $region18: #{tpu_custom_call.1} parent=11 // pred_check_branch
          %145 = sbr.rel (%p143) target = $region20
        $region19: #{tpu_custom_call.1} parent=11 // pred_region
          %s147 = ssub.s32 384, 384
          %148 = vsyncadd [#allocation8], %s147
          %s149 = sshll.u32 [#allocation9], 4
          %s150 = int_to_ptr.vmem [resolvable:$true] %s149
          %155 = dma.hbm_to_vmem [thread:$0]  %s3, 384, %s150, [#allocation8], 128, 128, 8
        $region20: #{tpu_custom_call.1} parent=11 // pred_fallthru
          _
      $region12: #{tpu_custom_call.1} parent=5 // pred_fallthru
        _
      %p156 = scmp.lt.s32.totalorder %s21, 2
      // Predicated region
      $region21: #{tpu_custom_call.1} parent=5 // pred_check
        %p157 = pneg %p156
      $region22: #{tpu_custom_call.1} parent=5 // pred_check_branch
        %159 = sbr.rel (%p157) target = $region24
      $region23: #{tpu_custom_call.1} parent=5 // pred_region
        // Predicated region
        $region25: #{tpu_custom_call.1} parent=23 // pred_check
          %p160 = pneg %p41
        $region26: #{tpu_custom_call.1} parent=23 // pred_check_branch
          %162 = sbr.rel (%p160) target = $region28
        $region27: #{tpu_custom_call.1} parent=23 // pred_region
          %s163 = sand.u32 %s31, 1
          %s164 = scalar_lea.sflag [#allocation5], %s163
          %s165 = sand.u32 %s31, 1
          %s166 = smul.addr %s165, 32
          %s167 = scalar_lea.vmem [#allocation4], %s166
          %s168 = smul.u32 4, %s21
          %s170 = ssub.s32 512, 512
          %171 = vsyncadd %s164, %s170
          %s172 = smul.addr %s168, 128
          %s173 = scalar_lea.hbm %s1, %s172
          %s174 = sshll.u32 %s167, 4
          %s175 = int_to_ptr.vmem [resolvable:$true] %s174
          %180 = dma.hbm_to_vmem [thread:$0]  %s173, 512, %s175, %s164, 128, 128, 8
        $region28: #{tpu_custom_call.1} parent=23 // pred_fallthru
          _
      $region24: #{tpu_custom_call.1} parent=5 // pred_fallthru
        _
      %p181 = scmp.le.s32.totalorder 1, %s21
      %p182 = scmp.lt.s32.totalorder %s21, 3
      %p183 = pnand %p181, %p182
      %p184 = pneg %p183
      // Predicated region
      $region29: #{tpu_custom_call.1} parent=5 // pred_check
        _
      $region30: #{tpu_custom_call.1} parent=5 // pred_check_branch
        %186 = sbr.rel (%p183) target = $region32
      $region31: #{tpu_custom_call.1} parent=5 // pred_region
        %s187 = ssub.s32 %s21, 1
        %s188 = sand.u32 %s34, 1
        %s189 = scalar_lea.sflag [#allocation5], %s188
        %s190 = sand.u32 %s34, 1
        %s191 = smul.addr %s190, 32
        %s192 = scalar_lea.vmem [#allocation4], %s191
        // Predicated region
        $region33: #{tpu_custom_call.1} parent=31 // pred_check
          %p193 = pneg %p47
        $region34: #{tpu_custom_call.1} parent=31 // pred_check_branch
          %195 = sbr.rel (%p193) target = $region36
        $region35: #{tpu_custom_call.1} parent=31 // pred_region
          %196 = dma.done %s189, 512
        $region36: #{tpu_custom_call.1} parent=31 // pred_fallthru
          _
        // Predicated region
        $region37: #{tpu_custom_call.1} parent=31 // pred_check
          %p197 = pneg %p68
        $region38: #{tpu_custom_call.1} parent=31 // pred_check_branch
          %199 = sbr.rel (%p197) target = $region40
        $region39: #{tpu_custom_call.1} parent=31 // pred_region
          %200 = dma.done [#allocation8], 8704
        $region40: #{tpu_custom_call.1} parent=31 // pred_fallthru
          _
        // Predicated region
        $region41: #{tpu_custom_call.1} parent=31 // pred_check
          %p201 = pneg %p89
        $region42: #{tpu_custom_call.1} parent=31 // pred_check_branch
          %203 = sbr.rel (%p201) target = $region44
        $region43: #{tpu_custom_call.1} parent=31 // pred_region
          %204 = dma.done [#allocation8], 384
        $region44: #{tpu_custom_call.1} parent=31 // pred_fallthru
          _
        %s205 = sand.u32 %s34, 1
        %s206 = scalar_lea.sflag [#allocation5], %s205
        %s207 = sand.u32 %s34, 1
        %s208 = smul.addr %s207, 32
        %s209 = scalar_lea.vmem [#allocation4], %s208
        %p210 = pneg %p47
        %p211 = pneg %p44
        %p212 = pneg %p68
        %p213 = pneg %p65
        %p214 = pneg %p89
        %p215 = pneg %p86
        %p216 = pneg %p115
        %p217 = pneg %p112
        %s218 = sand.u32 %s102, 1
        %s219 = scalar_lea.sflag [#allocation6], %s218
        %s220 = sand.u32 %s102, 1
        %s221 = smul.addr %s220, 64
        %s222 = scalar_lea.vmem [#allocation10], %s221
        %s223 = smul.u32 4, %s26
        %s224 = smul.u32 4, %s26
        %v225 = vld [vmem:[%s192] sm:$0xff]
        %v226 = vld [vmem:[%s192 + $0x8] sm:$0xff]
        %v227 = vld [vmem:[%s192 + $0x10] sm:$0xff]
        %v228 = vld [vmem:[%s192 + $0x18] sm:$0xff]
        %v229 = vld [vmem:[#allocation7] sm:$0xff]
        %v230 = vld [vmem:[#allocation7 + $0x8] sm:$0xff]
        %v231 = vld [vmem:[#allocation7 + $0x10] sm:$0xff]
        %v232 = vld [vmem:[#allocation7 + $0x18] sm:$0xff]
        %v233 = vld [vmem:[#allocation7 + $0x20] sm:$0xff]
        %v234 = vld [vmem:[#allocation7 + $0x28] sm:$0xff]
        %v235 = vld [vmem:[#allocation7 + $0x30] sm:$0xff]
        %v236 = vld [vmem:[#allocation7 + $0x38] sm:$0xff]
        %v237 = vld [vmem:[#allocation7 + $0x40] sm:$0xff]
        %v238 = vld [vmem:[#allocation7 + $0x48] sm:$0xff]
        %v239 = vld [vmem:[#allocation7 + $0x50] sm:$0xff]
        %v240 = vld [vmem:[#allocation7 + $0x58] sm:$0xff]
        %v241 = vld [vmem:[#allocation7 + $0x60] sm:$0xff]
        %v242 = vld [vmem:[#allocation7 + $0x68] sm:$0xff]
        %v243 = vld [vmem:[#allocation7 + $0x70] sm:$0xff]
        %v244 = vld [vmem:[#allocation7 + $0x78] sm:$0xff]
        %v245 = vld [vmem:[#allocation7 + $0x80] sm:$0xff]
        %v246 = vld [vmem:[#allocation7 + $0x88] sm:$0xff]
        %v247 = vld [vmem:[#allocation7 + $0x90] sm:$0xff]
        %v248 = vld [vmem:[#allocation7 + $0x98] sm:$0xff]
        %v249 = vld [vmem:[#allocation7 + $0xa0] sm:$0xff]
        %v250 = vld [vmem:[#allocation7 + $0xa8] sm:$0xff]
        %v251 = vld [vmem:[#allocation7 + $0xb0] sm:$0xff]
        %v252 = vld [vmem:[#allocation7 + $0xb8] sm:$0xff]
        %v253 = vld [vmem:[#allocation9] sm:$0x1]
        %254 = vmatprep.subr.mxu0 0.0
        %255 = vmatpush1.msra.mxu0 %v244
        %256 = vmatprep.subr.mxu0 0.0
        %257 = vmatpush1.msra.mxu0 %v243
        %258 = vmatprep.subr.mxu0 0.0
        %259 = vmatpush1.msra.mxu0 %v242
        %260 = vmatprep.subr.mxu0 0.0
        %261 = vmatpush1.msra.mxu0 %v241
        %262 = vmatprep.subr.mxu0 0.0
        %263 = vmatpush1.msra.mxu0 %v240
        %264 = vmatprep.subr.mxu0 0.0
        %265 = vmatpush1.msra.mxu0 %v239
        %266 = vmatprep.subr.mxu0 0.0
        %267 = vmatpush1.msra.mxu0 %v238
        %268 = vmatprep.subr.mxu0 0.0
        %269 = vmatpush1.msra.mxu0 %v237
        %270 = vmatprep.subr.mxu0 0.0
        %271 = vmatpush1.msra.mxu0 %v236
        %272 = vmatprep.subr.mxu0 0.0
        %273 = vmatpush1.msra.mxu0 %v235
        %274 = vmatprep.subr.mxu0 0.0
        %275 = vmatpush1.msra.mxu0 %v234
        %276 = vmatprep.subr.mxu0 0.0
        %277 = vmatpush1.msra.mxu0 %v233
        %278 = vmatprep.subr.mxu0 0.0
        %279 = vmatpush1.msra.mxu0 %v232
        %280 = vmatprep.subr.mxu0 0.0
        %281 = vmatpush1.msra.mxu0 %v231
        %282 = vmatprep.subr.mxu0 0.0
        %283 = vmatpush1.msra.mxu0 %v230
        %284 = vmatprep.subr.mxu0 0.0
        %285 = vmatpush1.msra.mxu0 %v229
        %286 = vmatprep.subr.mxu0 0.0
        %287 = vmatpush2.msra.mxu0 0.0
        %288 = vmatprep.subr.mxu0 0.0
        %289 = vmatpush2.msra.mxu0 0.0
        %290 = vmatprep.subr.mxu0 0.0
        %291 = vmatpush2.msra.mxu0 0.0
        %292 = vmatprep.subr.mxu0 0.0
        %293 = vmatpush2.msra.mxu0 0.0
        %294 = vmatprep.subr.mxu0 0.0
        %295 = vmatpush2.msra.mxu0 0.0
        %296 = vmatprep.subr.mxu0 0.0
        %297 = vmatpush2.msra.mxu0 0.0
        %298 = vmatprep.subr.mxu0 0.0
        %299 = vmatpush2.msra.mxu0 0.0
        %300 = vmatprep.subr.mxu0 0.0
        %301 = vmatpush2.msra.mxu0 0.0
        %302 = vmatprep.subr.mxu0 0.0
        %303 = vmatpush2.msra.mxu0 0.0
        %304 = vmatprep.subr.mxu0 0.0
        %305 = vmatpush2.msra.mxu0 0.0
        %306 = vmatprep.subr.mxu0 0.0
        %307 = vmatpush2.msra.mxu0 0.0
        %308 = vmatprep.subr.mxu0 0.0
        %309 = vmatpush2.msra.mxu0 0.0
        %310 = vmatprep.subr.mxu0 0.0
        %311 = vmatpush2.msra.mxu0 0.0
        %312 = vmatprep.subr.mxu0 0.0
        %313 = vmatpush2.msra.mxu0 0.0
        %314 = vmatprep.subr.mxu0 0.0
        %315 = vmatpush2.msra.mxu0 0.0
        %316 = vmatprep.subr.mxu0 0.0
        %317 = vmatpush2.msra.mxu0 0.0
        %318 = vmatprep.mubr.f32.mxu0 0.0
        %319 = vmatmul.mubr.f32.gmra.mxu0 %v225
        %v320 = vpop.f32.mrf.mxu0
        %v321 = vadd.f32 %v245, %v320
        %v322 = vpop.f32.mrf.mxu0
        %323 = vmatprep.mubr.f32.mxu0 0.0
        %324 = vmatmul.mubr.f32.gmra.mxu0 %v226
        %v325 = vpop.f32.mrf.mxu0
        %v326 = vadd.f32 %v246, %v325
        %v327 = vpop.f32.mrf.mxu0
        %328 = vmatprep.mubr.f32.mxu0 0.0
        %329 = vmatmul.mubr.f32.gmra.mxu0 %v227
        %v330 = vpop.f32.mrf.mxu0
        %v331 = vadd.f32 %v247, %v330
        %v332 = vpop.f32.mrf.mxu0
        %333 = vmatprep.mubr.f32.mxu0 0.0
        %334 = vmatmul.mubr.f32.gmra.mxu0 %v228
        %v335 = vpop.f32.mrf.mxu0
        %v336 = vadd.f32 %v248, %v335
        %v337 = vpop.f32.mrf.mxu0
        %338 = vdwg.mxu0
        %v339 = vlaneseq
        %v340 = vshrl.u32 %v339, 7
        %v341 = vsub.s32 0, %v340
        %v342 = vrot.slane %v253, %v341
        %vm343 = vcmask 261120
        %v345 = vsel %vm343, %v321, 0
        %v348 = vsel %vm343, %v326, 0
        %v351 = vsel %vm343, %v331, 0
        %v354 = vsel %vm343, %v336, 0
        %356 = vmatprep.subr.mxu0 0.0
        %357 = vmatpush1.msra.mxu0 0.0
        %358 = vmatprep.subr.mxu0 0.0
        %359 = vmatpush1.msra.mxu0 0.0
        %360 = vmatprep.subr.mxu0 0.0
        %361 = vmatpush1.msra.mxu0 0.0
        %362 = vmatprep.subr.mxu0 0.0
        %363 = vmatpush1.msra.mxu0 0.0
        %364 = vmatprep.subr.mxu0 0.0
        %365 = vmatpush1.msra.mxu0 0.0
        %366 = vmatprep.subr.mxu0 0.0
        %367 = vmatpush1.msra.mxu0 0.0
        %368 = vmatprep.subr.mxu0 0.0
        %369 = vmatpush1.msra.mxu0 0.0
        %370 = vmatprep.subr.mxu0 0.0
        %371 = vmatpush1.msra.mxu0 0.0
        %372 = vmatprep.subr.mxu0 0.0
        %373 = vmatpush1.msra.mxu0 0.0
        %374 = vmatprep.subr.mxu0 0.0
        %375 = vmatpush1.msra.mxu0 0.0
        %376 = vmatprep.subr.mxu0 0.0
        %377 = vmatpush1.msra.mxu0 0.0
        %378 = vmatprep.subr.mxu0 0.0
        %379 = vmatpush1.msra.mxu0 0.0
        %380 = vmatprep.subr.mxu0 0.0
        %381 = vmatpush1.msra.mxu0 %v252
        %382 = vmatprep.subr.mxu0 0.0
        %383 = vmatpush1.msra.mxu0 %v251
        %384 = vmatprep.subr.mxu0 0.0
        %385 = vmatpush1.msra.mxu0 %v250
        %386 = vmatprep.subr.mxu0 0.0
        %387 = vmatpush1.msra.mxu0 %v249
        %388 = vmatprep.subr.mxu0 0.0
        %389 = vmatpush2.msra.mxu0 0.0
        %390 = vmatprep.subr.mxu0 0.0
        %391 = vmatpush2.msra.mxu0 0.0
        %392 = vmatprep.subr.mxu0 0.0
        %393 = vmatpush2.msra.mxu0 0.0
        %394 = vmatprep.subr.mxu0 0.0
        %395 = vmatpush2.msra.mxu0 0.0
        %396 = vmatprep.subr.mxu0 0.0
        %397 = vmatpush2.msra.mxu0 0.0
        %398 = vmatprep.subr.mxu0 0.0
        %399 = vmatpush2.msra.mxu0 0.0
        %400 = vmatprep.subr.mxu0 0.0
        %401 = vmatpush2.msra.mxu0 0.0
        %402 = vmatprep.subr.mxu0 0.0
        %403 = vmatpush2.msra.mxu0 0.0
        %404 = vmatprep.subr.mxu0 0.0
        %405 = vmatpush2.msra.mxu0 0.0
        %406 = vmatprep.subr.mxu0 0.0
        %407 = vmatpush2.msra.mxu0 0.0
        %408 = vmatprep.subr.mxu0 0.0
        %409 = vmatpush2.msra.mxu0 0.0
        %410 = vmatprep.subr.mxu0 0.0
        %411 = vmatpush2.msra.mxu0 0.0
        %412 = vmatprep.subr.mxu0 0.0
        %413 = vmatpush2.msra.mxu0 0.0
        %414 = vmatprep.subr.mxu0 0.0
        %415 = vmatpush2.msra.mxu0 0.0
        %416 = vmatprep.subr.mxu0 0.0
        %417 = vmatpush2.msra.mxu0 0.0
        %418 = vmatprep.subr.mxu0 0.0
        %419 = vmatpush2.msra.mxu0 0.0
        %420 = vmatprep.mubr.f32.mxu0 0.0
        %421 = vmatmul.mubr.f32.gmra.mxu0 %v345
        %v422 = vpop.f32.mrf.mxu0
        %v423 = vadd.f32 %v342, %v422
        %v424 = vpop.f32.mrf.mxu0
        %425 = vmatprep.mubr.f32.mxu0 0.0
        %426 = vmatmul.mubr.f32.gmra.mxu0 %v348
        %v427 = vpop.f32.mrf.mxu0
        %v428 = vadd.f32 %v342, %v427
        %v429 = vpop.f32.mrf.mxu0
        %430 = vmatprep.mubr.f32.mxu0 0.0
        %431 = vmatmul.mubr.f32.gmra.mxu0 %v351
        %v432 = vpop.f32.mrf.mxu0
        %v433 = vadd.f32 %v342, %v432
        %v434 = vpop.f32.mrf.mxu0
        %435 = vmatprep.mubr.f32.mxu0 0.0
        %436 = vmatmul.mubr.f32.gmra.mxu0 %v354
        %v437 = vpop.f32.mrf.mxu0
        %v438 = vadd.f32 %v342, %v437
        %v439 = vpop.f32.mrf.mxu0
        %440 = vdwg.mxu0
        %v441 = vlaneseq
        %v442 = vand.u32 %v441, 127
        %v443 = vlaneseq
        %v444 = vshrl.u32 %v443, 7
        %vm445 = vcmp.eq.s32.totalorder %v444, %v442
        %s446 = smul.u32 %s26, 4
        %s447 = sld [smem:[#allocation3 + %s446]]
        %v448 = vstv %s447
        %vm449 = vcmp.ge.s32.totalorder %v442, %v448
        %vm450 = vmor %vm449, %vm445
        %v451 = vsel %vm450, -1e+30, 0.0
        %s452 = sadd.s32 %s446, 1
        %s453 = sld [smem:[#allocation3 + %s452]]
        %v454 = vstv %s453
        %vm455 = vcmp.ge.s32.totalorder %v442, %v454
        %vm456 = vmor %vm455, %vm445
        %v457 = vsel %vm456, -1e+30, 0.0
        %s458 = sadd.s32 %s446, 2
        %s459 = sld [smem:[#allocation3 + %s458]]
        %v460 = vstv %s459
        %vm461 = vcmp.ge.s32.totalorder %v442, %v460
        %vm462 = vmor %vm461, %vm445
        %v463 = vsel %vm462, -1e+30, 0.0
        %s464 = sadd.s32 %s446, 3
        %s465 = sld [smem:[#allocation3 + %s464]]
        %v466 = vstv %s465
        %vm467 = vcmp.ge.s32.totalorder %v442, %v466
        %vm468 = vmor %vm467, %vm445
        %v469 = vsel %vm468, -1e+30, 0.0
        %v470 = vld [vmem:[#allocation7 + $0xc0] sm:$0xff]
        %v471 = vld [vmem:[#allocation7 + $0xc8] sm:$0xff]
        %v472 = vld [vmem:[#allocation7 + $0xd0] sm:$0xff]
        %v473 = vld [vmem:[#allocation7 + $0xd8] sm:$0xff]
        %v474 = vld [vmem:[#allocation7 + $0xe0] sm:$0xff]
        %v475 = vld [vmem:[#allocation7 + $0xe8] sm:$0xff]
        %v476 = vld [vmem:[#allocation7 + $0xf0] sm:$0xff]
        %v477 = vld [vmem:[#allocation7 + $0xf8] sm:$0xff]
        %v478 = vld [vmem:[#allocation7 + $0x100] sm:$0xff]
        %v479 = vld [vmem:[#allocation7 + $0x108] sm:$0xff]
        %v480 = vld [vmem:[#allocation7 + $0x110] sm:$0xff]
        %v481 = vld [vmem:[#allocation7 + $0x118] sm:$0xff]
        %v482 = vld [vmem:[#allocation7 + $0x120] sm:$0xff]
        %v483 = vld [vmem:[#allocation7 + $0x128] sm:$0xff]
        %v484 = vld [vmem:[#allocation7 + $0x130] sm:$0xff]
        %v485 = vld [vmem:[#allocation7 + $0x138] sm:$0xff]
        %v486 = vld [vmem:[#allocation7 + $0x140] sm:$0xff]
        %v487 = vld [vmem:[#allocation7 + $0x148] sm:$0xff]
        %v488 = vld [vmem:[#allocation7 + $0x150] sm:$0xff]
        %v489 = vld [vmem:[#allocation7 + $0x158] sm:$0xff]
        %v490 = vld [vmem:[#allocation9 + $0x2] sm:$0x1]
        %v491 = vld [vmem:[#allocation9 + $0x3] sm:$0x1]
        %v492 = vld [vmem:[#allocation9 + $0x4] sm:$0x1]
        %v493 = vld [vmem:[#allocation9 + $0x5] sm:$0x1]
        %v494 = vld [vmem:[#allocation9 + $0x6] sm:$0x1]
        %v495 = vld [vmem:[#allocation9 + $0x7] sm:$0x1]
        %v496 = vld [vmem:[#allocation9 + $0x8] sm:$0x1]
        %v497 = vld [vmem:[#allocation9 + $0x9] sm:$0x1]
        %v498 = vlaneseq
        %v499 = vshrl.u32 %v498, 7
        %v500 = vsub.s32 0, %v499
        %v501 = vrot.slane %v490, %v500
        %v503 = vsel %vm343, %v245, 0
        %v506 = vsel %vm343, %v246, 0
        %v509 = vsel %vm343, %v247, 0
        %v512 = vsel %vm343, %v248, 0
        %514 = vmatprep.subr.mxu0 0.0
        %515 = vmatpush1.msra.mxu0 0.0
        %516 = vmatprep.subr.mxu0 0.0
        %517 = vmatpush1.msra.mxu0 0.0
        %518 = vmatprep.subr.mxu0 0.0
        %519 = vmatpush1.msra.mxu0 0.0
        %520 = vmatprep.subr.mxu0 0.0
        %521 = vmatpush1.msra.mxu0 0.0
        %522 = vmatprep.subr.mxu0 0.0
        %523 = vmatpush1.msra.mxu0 0.0
        %524 = vmatprep.subr.mxu0 0.0
        %525 = vmatpush1.msra.mxu0 0.0
        %526 = vmatprep.subr.mxu0 0.0
        %527 = vmatpush1.msra.mxu0 0.0
        %528 = vmatprep.subr.mxu0 0.0
        %529 = vmatpush1.msra.mxu0 0.0
        %530 = vmatprep.subr.mxu0 0.0
        %531 = vmatpush1.msra.mxu0 0.0
        %532 = vmatprep.subr.mxu0 0.0
        %533 = vmatpush1.msra.mxu0 0.0
        %534 = vmatprep.subr.mxu0 0.0
        %535 = vmatpush1.msra.mxu0 0.0
        %536 = vmatprep.subr.mxu0 0.0
        %537 = vmatpush1.msra.mxu0 0.0
        %538 = vmatprep.subr.mxu0 0.0
        %539 = vmatpush1.msra.mxu0 %v473
        %540 = vmatprep.subr.mxu0 0.0
        %541 = vmatpush1.msra.mxu0 %v472
        %542 = vmatprep.subr.mxu0 0.0
        %543 = vmatpush1.msra.mxu0 %v471
        %544 = vmatprep.subr.mxu0 0.0
        %545 = vmatpush1.msra.mxu0 %v470
        %546 = vmatprep.subr.mxu0 0.0
        %547 = vmatpush2.msra.mxu0 0.0
        %548 = vmatprep.subr.mxu0 0.0
        %549 = vmatpush2.msra.mxu0 0.0
        %550 = vmatprep.subr.mxu0 0.0
        %551 = vmatpush2.msra.mxu0 0.0
        %552 = vmatprep.subr.mxu0 0.0
        %553 = vmatpush2.msra.mxu0 0.0
        %554 = vmatprep.subr.mxu0 0.0
        %555 = vmatpush2.msra.mxu0 0.0
        %556 = vmatprep.subr.mxu0 0.0
        %557 = vmatpush2.msra.mxu0 0.0
        %558 = vmatprep.subr.mxu0 0.0
        %559 = vmatpush2.msra.mxu0 0.0
        %560 = vmatprep.subr.mxu0 0.0
        %561 = vmatpush2.msra.mxu0 0.0
        %562 = vmatprep.subr.mxu0 0.0
        %563 = vmatpush2.msra.mxu0 0.0
        %564 = vmatprep.subr.mxu0 0.0
        %565 = vmatpush2.msra.mxu0 0.0
        %566 = vmatprep.subr.mxu0 0.0
        %567 = vmatpush2.msra.mxu0 0.0
        %568 = vmatprep.subr.mxu0 0.0
        %569 = vmatpush2.msra.mxu0 0.0
        %570 = vmatprep.subr.mxu0 0.0
        %571 = vmatpush2.msra.mxu0 0.0
        %572 = vmatprep.subr.mxu0 0.0
        %573 = vmatpush2.msra.mxu0 0.0
        %574 = vmatprep.subr.mxu0 0.0
        %575 = vmatpush2.msra.mxu0 0.0
        %576 = vmatprep.subr.mxu0 0.0
        %577 = vmatpush2.msra.mxu0 0.0
        %578 = vmatprep.mubr.f32.mxu0 0.0
        %579 = vmatmul.mubr.f32.gmra.mxu0 %v503
        %v580 = vpop.f32.mrf.mxu0
        %v581 = vadd.f32 %v501, %v580
        %v582 = vpop.f32.mrf.mxu0
        %583 = vmatprep.mubr.f32.mxu0 0.0
        %584 = vmatmul.mubr.f32.gmra.mxu0 %v506
        %v585 = vpop.f32.mrf.mxu0
        %v586 = vadd.f32 %v501, %v585
        %v587 = vpop.f32.mrf.mxu0
        %588 = vmatprep.mubr.f32.mxu0 0.0
        %589 = vmatmul.mubr.f32.gmra.mxu0 %v509
        %v590 = vpop.f32.mrf.mxu0
        %v591 = vadd.f32 %v501, %v590
        %v592 = vpop.f32.mrf.mxu0
        %593 = vmatprep.mubr.f32.mxu0 0.0
        %594 = vmatmul.mubr.f32.gmra.mxu0 %v512
        %v595 = vpop.f32.mrf.mxu0
        %v596 = vadd.f32 %v501, %v595
        %v597 = vpop.f32.mrf.mxu0
        %598 = vdwg.mxu0
        %vm599 = vcmask 64512
        %v601 = vsel %vm599, %v581, 0
        %v604 = vsel %vm599, %v423, 0
        %606 = vmatprep.subr.mxu0 0.0
        %607 = vmatpush1.xpose.msra.mxu0 0.0
        %608 = vmatprep.subr.mxu0 0.0
        %609 = vmatpush1.xpose.msra.mxu0 0.0
        %610 = vmatprep.subr.mxu0 0.0
        %611 = vmatpush1.xpose.msra.mxu0 0.0
        %612 = vmatprep.subr.mxu0 0.0
        %613 = vmatpush1.xpose.msra.mxu0 0.0
        %614 = vmatprep.subr.mxu0 0.0
        %615 = vmatpush1.xpose.msra.mxu0 0.0
        %616 = vmatprep.subr.mxu0 0.0
        %617 = vmatpush1.xpose.msra.mxu0 0.0
        %618 = vmatprep.subr.mxu0 0.0
        %619 = vmatpush1.xpose.msra.mxu0 0.0
        %620 = vmatprep.subr.mxu0 0.0
        %621 = vmatpush1.xpose.msra.mxu0 0.0
        %622 = vmatprep.subr.mxu0 0.0
        %623 = vmatpush1.xpose.msra.mxu0 0.0
        %624 = vmatprep.subr.mxu0 0.0
        %625 = vmatpush1.xpose.msra.mxu0 0.0
        %626 = vmatprep.subr.mxu0 0.0
        %627 = vmatpush1.xpose.msra.mxu0 0.0
        %628 = vmatprep.subr.mxu0 0.0
        %629 = vmatpush1.xpose.msra.mxu0 0.0
        %630 = vmatprep.subr.mxu0 0.0
        %631 = vmatpush1.xpose.msra.mxu0 0.0
        %632 = vmatprep.subr.mxu0 0.0
        %633 = vmatpush1.xpose.msra.mxu0 0.0
        %634 = vmatprep.subr.mxu0 0.0
        %635 = vmatpush1.xpose.msra.mxu0 0.0
        %636 = vmatprep.subr.mxu0 0.0
        %637 = vmatpush1.xpose.msra.mxu0 %v604
        %638 = vmatprep.subr.mxu0 0.0
        %639 = vmatpush2.xpose.msra.mxu0 0.0
        %640 = vmatprep.subr.mxu0 0.0
        %641 = vmatpush2.xpose.msra.mxu0 0.0
        %642 = vmatprep.subr.mxu0 0.0
        %643 = vmatpush2.xpose.msra.mxu0 0.0
        %644 = vmatprep.subr.mxu0 0.0
        %645 = vmatpush2.xpose.msra.mxu0 0.0
        %646 = vmatprep.subr.mxu0 0.0
        %647 = vmatpush2.xpose.msra.mxu0 0.0
        %648 = vmatprep.subr.mxu0 0.0
        %649 = vmatpush2.xpose.msra.mxu0 0.0
        %650 = vmatprep.subr.mxu0 0.0
        %651 = vmatpush2.xpose.msra.mxu0 0.0
        %652 = vmatprep.subr.mxu0 0.0
        %653 = vmatpush2.xpose.msra.mxu0 0.0
        %654 = vmatprep.subr.mxu0 0.0
        %655 = vmatpush2.xpose.msra.mxu0 0.0
        %656 = vmatprep.subr.mxu0 0.0
        %657 = vmatpush2.xpose.msra.mxu0 0.0
        %658 = vmatprep.subr.mxu0 0.0
        %659 = vmatpush2.xpose.msra.mxu0 0.0
        %660 = vmatprep.subr.mxu0 0.0
        %661 = vmatpush2.xpose.msra.mxu0 0.0
        %662 = vmatprep.subr.mxu0 0.0
        %663 = vmatpush2.xpose.msra.mxu0 0.0
        %664 = vmatprep.subr.mxu0 0.0
        %665 = vmatpush2.xpose.msra.mxu0 0.0
        %666 = vmatprep.subr.mxu0 0.0
        %667 = vmatpush2.xpose.msra.mxu0 0.0
        %668 = vmatprep.subr.mxu0 0.0
        %669 = vmatpush2.xpose.msra.mxu0 0.0
        %670 = vmatprep.mubr.f32.mxu0 0.0
        %671 = vmatmul.mubr.f32.gmra.mxu0 %v601
        %v672 = vpop.f32.mrf.mxu0
        %v673 = vadd.f32 0.0, %v672
        %v674 = vpop.f32.mrf.mxu0
        %675 = vdwg.mxu0
        %v677 = vsel %vm599, %v586, 0
        %v680 = vsel %vm599, %v428, 0
        %682 = vmatprep.subr.mxu0 0.0
        %683 = vmatpush1.xpose.msra.mxu0 0.0
        %684 = vmatprep.subr.mxu0 0.0
        %685 = vmatpush1.xpose.msra.mxu0 0.0
        %686 = vmatprep.subr.mxu0 0.0
        %687 = vmatpush1.xpose.msra.mxu0 0.0
        %688 = vmatprep.subr.mxu0 0.0
        %689 = vmatpush1.xpose.msra.mxu0 0.0
        %690 = vmatprep.subr.mxu0 0.0
        %691 = vmatpush1.xpose.msra.mxu0 0.0
        %692 = vmatprep.subr.mxu0 0.0
        %693 = vmatpush1.xpose.msra.mxu0 0.0
        %694 = vmatprep.subr.mxu0 0.0
        %695 = vmatpush1.xpose.msra.mxu0 0.0
        %696 = vmatprep.subr.mxu0 0.0
        %697 = vmatpush1.xpose.msra.mxu0 0.0
        %698 = vmatprep.subr.mxu0 0.0
        %699 = vmatpush1.xpose.msra.mxu0 0.0
        %700 = vmatprep.subr.mxu0 0.0
        %701 = vmatpush1.xpose.msra.mxu0 0.0
        %702 = vmatprep.subr.mxu0 0.0
        %703 = vmatpush1.xpose.msra.mxu0 0.0
        %704 = vmatprep.subr.mxu0 0.0
        %705 = vmatpush1.xpose.msra.mxu0 0.0
        %706 = vmatprep.subr.mxu0 0.0
        %707 = vmatpush1.xpose.msra.mxu0 0.0
        %708 = vmatprep.subr.mxu0 0.0
        %709 = vmatpush1.xpose.msra.mxu0 0.0
        %710 = vmatprep.subr.mxu0 0.0
        %711 = vmatpush1.xpose.msra.mxu0 0.0
        %712 = vmatprep.subr.mxu0 0.0
        %713 = vmatpush1.xpose.msra.mxu0 %v680
        %714 = vmatprep.subr.mxu0 0.0
        %715 = vmatpush2.xpose.msra.mxu0 0.0
        %716 = vmatprep.subr.mxu0 0.0
        %717 = vmatpush2.xpose.msra.mxu0 0.0
        %718 = vmatprep.subr.mxu0 0.0
        %719 = vmatpush2.xpose.msra.mxu0 0.0
        %720 = vmatprep.subr.mxu0 0.0
        %721 = vmatpush2.xpose.msra.mxu0 0.0
        %722 = vmatprep.subr.mxu0 0.0
        %723 = vmatpush2.xpose.msra.mxu0 0.0
        %724 = vmatprep.subr.mxu0 0.0
        %725 = vmatpush2.xpose.msra.mxu0 0.0
        %726 = vmatprep.subr.mxu0 0.0
        %727 = vmatpush2.xpose.msra.mxu0 0.0
        %728 = vmatprep.subr.mxu0 0.0
        %729 = vmatpush2.xpose.msra.mxu0 0.0
        %730 = vmatprep.subr.mxu0 0.0
        %731 = vmatpush2.xpose.msra.mxu0 0.0
        %732 = vmatprep.subr.mxu0 0.0
        %733 = vmatpush2.xpose.msra.mxu0 0.0
        %734 = vmatprep.subr.mxu0 0.0
        %735 = vmatpush2.xpose.msra.mxu0 0.0
        %736 = vmatprep.subr.mxu0 0.0
        %737 = vmatpush2.xpose.msra.mxu0 0.0
        %738 = vmatprep.subr.mxu0 0.0
        %739 = vmatpush2.xpose.msra.mxu0 0.0
        %740 = vmatprep.subr.mxu0 0.0
        %741 = vmatpush2.xpose.msra.mxu0 0.0
        %742 = vmatprep.subr.mxu0 0.0
        %743 = vmatpush2.xpose.msra.mxu0 0.0
        %744 = vmatprep.subr.mxu0 0.0
        %745 = vmatpush2.xpose.msra.mxu0 0.0
        %746 = vmatprep.mubr.f32.mxu0 0.0
        %747 = vmatmul.mubr.f32.gmra.mxu0 %v677
        %v748 = vpop.f32.mrf.mxu0
        %v749 = vadd.f32 0.0, %v748
        %v750 = vpop.f32.mrf.mxu0
        %751 = vdwg.mxu0
        %v753 = vsel %vm599, %v591, 0
        %v756 = vsel %vm599, %v433, 0
        %758 = vmatprep.subr.mxu0 0.0
        %759 = vmatpush1.xpose.msra.mxu0 0.0
        %760 = vmatprep.subr.mxu0 0.0
        %761 = vmatpush1.xpose.msra.mxu0 0.0
        %762 = vmatprep.subr.mxu0 0.0
        %763 = vmatpush1.xpose.msra.mxu0 0.0
        %764 = vmatprep.subr.mxu0 0.0
        %765 = vmatpush1.xpose.msra.mxu0 0.0
        %766 = vmatprep.subr.mxu0 0.0
        %767 = vmatpush1.xpose.msra.mxu0 0.0
        %768 = vmatprep.subr.mxu0 0.0
        %769 = vmatpush1.xpose.msra.mxu0 0.0
        %770 = vmatprep.subr.mxu0 0.0
        %771 = vmatpush1.xpose.msra.mxu0 0.0
        %772 = vmatprep.subr.mxu0 0.0
        %773 = vmatpush1.xpose.msra.mxu0 0.0
        %774 = vmatprep.subr.mxu0 0.0
        %775 = vmatpush1.xpose.msra.mxu0 0.0
        %776 = vmatprep.subr.mxu0 0.0
        %777 = vmatpush1.xpose.msra.mxu0 0.0
        %778 = vmatprep.subr.mxu0 0.0
        %779 = vmatpush1.xpose.msra.mxu0 0.0
        %780 = vmatprep.subr.mxu0 0.0
        %781 = vmatpush1.xpose.msra.mxu0 0.0
        %782 = vmatprep.subr.mxu0 0.0
        %783 = vmatpush1.xpose.msra.mxu0 0.0
        %784 = vmatprep.subr.mxu0 0.0
        %785 = vmatpush1.xpose.msra.mxu0 0.0
        %786 = vmatprep.subr.mxu0 0.0
        %787 = vmatpush1.xpose.msra.mxu0 0.0
        %788 = vmatprep.subr.mxu0 0.0
        %789 = vmatpush1.xpose.msra.mxu0 %v756
        %790 = vmatprep.subr.mxu0 0.0
        %791 = vmatpush2.xpose.msra.mxu0 0.0
        %792 = vmatprep.subr.mxu0 0.0
        %793 = vmatpush2.xpose.msra.mxu0 0.0
        %794 = vmatprep.subr.mxu0 0.0
        %795 = vmatpush2.xpose.msra.mxu0 0.0
        %796 = vmatprep.subr.mxu0 0.0
        %797 = vmatpush2.xpose.msra.mxu0 0.0
        %798 = vmatprep.subr.mxu0 0.0
        %799 = vmatpush2.xpose.msra.mxu0 0.0
        %800 = vmatprep.subr.mxu0 0.0
        %801 = vmatpush2.xpose.msra.mxu0 0.0
        %802 = vmatprep.subr.mxu0 0.0
        %803 = vmatpush2.xpose.msra.mxu0 0.0
        %804 = vmatprep.subr.mxu0 0.0
        %805 = vmatpush2.xpose.msra.mxu0 0.0
        %806 = vmatprep.subr.mxu0 0.0
        %807 = vmatpush2.xpose.msra.mxu0 0.0
        %808 = vmatprep.subr.mxu0 0.0
        %809 = vmatpush2.xpose.msra.mxu0 0.0
        %810 = vmatprep.subr.mxu0 0.0
        %811 = vmatpush2.xpose.msra.mxu0 0.0
        %812 = vmatprep.subr.mxu0 0.0
        %813 = vmatpush2.xpose.msra.mxu0 0.0
        %814 = vmatprep.subr.mxu0 0.0
        %815 = vmatpush2.xpose.msra.mxu0 0.0
        %816 = vmatprep.subr.mxu0 0.0
        %817 = vmatpush2.xpose.msra.mxu0 0.0
        %818 = vmatprep.subr.mxu0 0.0
        %819 = vmatpush2.xpose.msra.mxu0 0.0
        %820 = vmatprep.subr.mxu0 0.0
        %821 = vmatpush2.xpose.msra.mxu0 0.0
        %822 = vmatprep.mubr.f32.mxu0 0.0
        %823 = vmatmul.mubr.f32.gmra.mxu0 %v753
        %v824 = vpop.f32.mrf.mxu0
        %v825 = vadd.f32 0.0, %v824
        %v826 = vpop.f32.mrf.mxu0
        %827 = vdwg.mxu0
        %v829 = vsel %vm599, %v596, 0
        %v832 = vsel %vm599, %v438, 0
        %834 = vmatprep.subr.mxu0 0.0
        %835 = vmatpush1.xpose.msra.mxu0 0.0
        %836 = vmatprep.subr.mxu0 0.0
        %837 = vmatpush1.xpose.msra.mxu0 0.0
        %838 = vmatprep.subr.mxu0 0.0
        %839 = vmatpush1.xpose.msra.mxu0 0.0
        %840 = vmatprep.subr.mxu0 0.0
        %841 = vmatpush1.xpose.msra.mxu0 0.0
        %842 = vmatprep.subr.mxu0 0.0
        %843 = vmatpush1.xpose.msra.mxu0 0.0
        %844 = vmatprep.subr.mxu0 0.0
        %845 = vmatpush1.xpose.msra.mxu0 0.0
        %846 = vmatprep.subr.mxu0 0.0
        %847 = vmatpush1.xpose.msra.mxu0 0.0
        %848 = vmatprep.subr.mxu0 0.0
        %849 = vmatpush1.xpose.msra.mxu0 0.0
        %850 = vmatprep.subr.mxu0 0.0
        %851 = vmatpush1.xpose.msra.mxu0 0.0
        %852 = vmatprep.subr.mxu0 0.0
        %853 = vmatpush1.xpose.msra.mxu0 0.0
        %854 = vmatprep.subr.mxu0 0.0
        %855 = vmatpush1.xpose.msra.mxu0 0.0
        %856 = vmatprep.subr.mxu0 0.0
        %857 = vmatpush1.xpose.msra.mxu0 0.0
        %858 = vmatprep.subr.mxu0 0.0
        %859 = vmatpush1.xpose.msra.mxu0 0.0
        %860 = vmatprep.subr.mxu0 0.0
        %861 = vmatpush1.xpose.msra.mxu0 0.0
        %862 = vmatprep.subr.mxu0 0.0
        %863 = vmatpush1.xpose.msra.mxu0 0.0
        %864 = vmatprep.subr.mxu0 0.0
        %865 = vmatpush1.xpose.msra.mxu0 %v832
        %866 = vmatprep.subr.mxu0 0.0
        %867 = vmatpush2.xpose.msra.mxu0 0.0
        %868 = vmatprep.subr.mxu0 0.0
        %869 = vmatpush2.xpose.msra.mxu0 0.0
        %870 = vmatprep.subr.mxu0 0.0
        %871 = vmatpush2.xpose.msra.mxu0 0.0
        %872 = vmatprep.subr.mxu0 0.0
        %873 = vmatpush2.xpose.msra.mxu0 0.0
        %874 = vmatprep.subr.mxu0 0.0
        %875 = vmatpush2.xpose.msra.mxu0 0.0
        %876 = vmatprep.subr.mxu0 0.0
        %877 = vmatpush2.xpose.msra.mxu0 0.0
        %878 = vmatprep.subr.mxu0 0.0
        %879 = vmatpush2.xpose.msra.mxu0 0.0
        %880 = vmatprep.subr.mxu0 0.0
        %881 = vmatpush2.xpose.msra.mxu0 0.0
        %882 = vmatprep.subr.mxu0 0.0
        %883 = vmatpush2.xpose.msra.mxu0 0.0
        %884 = vmatprep.subr.mxu0 0.0
        %885 = vmatpush2.xpose.msra.mxu0 0.0
        %886 = vmatprep.subr.mxu0 0.0
        %887 = vmatpush2.xpose.msra.mxu0 0.0
        %888 = vmatprep.subr.mxu0 0.0
        %889 = vmatpush2.xpose.msra.mxu0 0.0
        %890 = vmatprep.subr.mxu0 0.0
        %891 = vmatpush2.xpose.msra.mxu0 0.0
        %892 = vmatprep.subr.mxu0 0.0
        %893 = vmatpush2.xpose.msra.mxu0 0.0
        %894 = vmatprep.subr.mxu0 0.0
        %895 = vmatpush2.xpose.msra.mxu0 0.0
        %896 = vmatprep.subr.mxu0 0.0
        %897 = vmatpush2.xpose.msra.mxu0 0.0
        %898 = vmatprep.mubr.f32.mxu0 0.0
        %899 = vmatmul.mubr.f32.gmra.mxu0 %v829
        %v900 = vpop.f32.mrf.mxu0
        %v901 = vadd.f32 0.0, %v900
        %v902 = vpop.f32.mrf.mxu0
        %903 = vdwg.mxu0
        %v904 = vmul.f32 %v673, 0.35355338
        %v905 = vmul.f32 %v749, 0.35355338
        %v906 = vmul.f32 %v825, 0.35355338
        %v907 = vmul.f32 %v901, 0.35355338
        %v908 = vadd.f32 %v904, %v451
        %v909 = vadd.f32 %v905, %v457
        %v910 = vadd.f32 %v906, %v463
        %v911 = vadd.f32 %v907, %v469
        %v912 = vsel %vm599, %v908, -inf
        %913 = vmax.xlane.f32.xlu0 %v912
        %v914 = vpop.xlane.xlu0 %913
        %v915 = vsel %vm599, %v909, -inf
        %916 = vmax.xlane.f32.xlu0 %v915
        %v917 = vpop.xlane.xlu0 %916
        %v918 = vsel %vm599, %v910, -inf
        %919 = vmax.xlane.f32.xlu0 %v918
        %v920 = vpop.xlane.xlu0 %919
        %v921 = vsel %vm599, %v911, -inf
        %922 = vmax.xlane.f32.xlu0 %v921
        %v923 = vpop.xlane.xlu0 %922
        %v924 = vsub.f32 %v908, %v914
        %v925 = vsub.f32 %v909, %v917
        %v926 = vsub.f32 %v910, %v920
        %v927 = vsub.f32 %v911, %v923
        %v928 = vmul.f32 %v924, 1.442695
        %v929 = vpow.pop %v928
        %v930 = vmul.f32 %v925, 1.442695
        %v931 = vpow.pop %v930
        %v932 = vmul.f32 %v926, 1.442695
        %v933 = vpow.pop %v932
        %v934 = vmul.f32 %v927, 1.442695
        %v935 = vpow.pop %v934
        %v936 = vsel %vm599, %v929, 0.0
        %937 = vadd.xlane.f32.xlu0 %v936
        %v938 = vpop.xlane.xlu0 %937
        %v939 = vsel %vm599, %v931, 0.0
        %940 = vadd.xlane.f32.xlu0 %v939
        %v941 = vpop.xlane.xlu0 %940
        %v942 = vsel %vm599, %v933, 0.0
        %943 = vadd.xlane.f32.xlu0 %v942
        %v944 = vpop.xlane.xlu0 %943
        %v945 = vsel %vm599, %v935, 0.0
        %946 = vadd.xlane.f32.xlu0 %v945
        %v947 = vpop.xlane.xlu0 %946
        %v948 = vrcp.pop %v938
        %v949 = vmul.f32 %v929, %v948
        %v950 = vrcp.pop %v941
        %v951 = vmul.f32 %v931, %v950
        %v952 = vrcp.pop %v944
        %v953 = vmul.f32 %v933, %v952
        %v954 = vrcp.pop %v947
        %v955 = vmul.f32 %v935, %v954
        %956 = vrot.lane.b32.xlu0 %v423, 96
        %v957 = vpop.permute.xlu0 %956
        %v960 = vsel %vm599, %v949, 0
        %962 = vmatprep.subr.mxu0 0.0
        %963 = vmatpush1.msra.mxu0 0.0
        %964 = vmatprep.subr.mxu0 0.0
        %965 = vmatpush1.msra.mxu0 0.0
        %966 = vmatprep.subr.mxu0 0.0
        %967 = vmatpush1.msra.mxu0 0.0
        %968 = vmatprep.subr.mxu0 0.0
        %969 = vmatpush1.msra.mxu0 0.0
        %970 = vmatprep.subr.mxu0 0.0
        %971 = vmatpush1.msra.mxu0 0.0
        %972 = vmatprep.subr.mxu0 0.0
        %973 = vmatpush1.msra.mxu0 0.0
        %974 = vmatprep.subr.mxu0 0.0
        %975 = vmatpush1.msra.mxu0 0.0
        %976 = vmatprep.subr.mxu0 0.0
        %977 = vmatpush1.msra.mxu0 0.0
        %978 = vmatprep.subr.mxu0 0.0
        %979 = vmatpush1.msra.mxu0 0.0
        %980 = vmatprep.subr.mxu0 0.0
        %981 = vmatpush1.msra.mxu0 0.0
        %982 = vmatprep.subr.mxu0 0.0
        %983 = vmatpush1.msra.mxu0 0.0
        %984 = vmatprep.subr.mxu0 0.0
        %985 = vmatpush1.msra.mxu0 0.0
        %986 = vmatprep.subr.mxu0 0.0
        %987 = vmatpush1.msra.mxu0 0.0
        %988 = vmatprep.subr.mxu0 0.0
        %989 = vmatpush1.msra.mxu0 0.0
        %990 = vmatprep.subr.mxu0 0.0
        %991 = vmatpush1.msra.mxu0 0.0
        %992 = vmatprep.subr.mxu0 0.0
        %993 = vmatpush1.msra.mxu0 %v957
        %994 = vmatprep.subr.mxu0 0.0
        %995 = vmatpush2.msra.mxu0 0.0
        %996 = vmatprep.subr.mxu0 0.0
        %997 = vmatpush2.msra.mxu0 0.0
        %998 = vmatprep.subr.mxu0 0.0
        %999 = vmatpush2.msra.mxu0 0.0
        %1000 = vmatprep.subr.mxu0 0.0
        %1001 = vmatpush2.msra.mxu0 0.0
        %1002 = vmatprep.subr.mxu0 0.0
        %1003 = vmatpush2.msra.mxu0 0.0
        %1004 = vmatprep.subr.mxu0 0.0
        %1005 = vmatpush2.msra.mxu0 0.0
        %1006 = vmatprep.subr.mxu0 0.0
        %1007 = vmatpush2.msra.mxu0 0.0
        %1008 = vmatprep.subr.mxu0 0.0
        %1009 = vmatpush2.msra.mxu0 0.0
        %1010 = vmatprep.subr.mxu0 0.0
        %1011 = vmatpush2.msra.mxu0 0.0
        %1012 = vmatprep.subr.mxu0 0.0
        %1013 = vmatpush2.msra.mxu0 0.0
        %1014 = vmatprep.subr.mxu0 0.0
        %1015 = vmatpush2.msra.mxu0 0.0
        %1016 = vmatprep.subr.mxu0 0.0
        %1017 = vmatpush2.msra.mxu0 0.0
        %1018 = vmatprep.subr.mxu0 0.0
        %1019 = vmatpush2.msra.mxu0 0.0
        %1020 = vmatprep.subr.mxu0 0.0
        %1021 = vmatpush2.msra.mxu0 0.0
        %1022 = vmatprep.subr.mxu0 0.0
        %1023 = vmatpush2.msra.mxu0 0.0
        %1024 = vmatprep.subr.mxu0 0.0
        %1025 = vmatpush2.msra.mxu0 0.0
        %1026 = vmatprep.mubr.f32.mxu0 0.0
        %1027 = vmatmul.mubr.f32.gmra.mxu0 %v960
        %v1028 = vpop.f32.mrf.mxu0
        %v1029 = vadd.f32 0.0, %v1028
        %v1030 = vpop.f32.mrf.mxu0
        %1031 = vdwg.mxu0
        %1032 = vrot.lane.b32.xlu0 %v428, 96
        %v1033 = vpop.permute.xlu0 %1032
        %v1036 = vsel %vm599, %v951, 0
        %1038 = vmatprep.subr.mxu0 0.0
        %1039 = vmatpush1.msra.mxu0 0.0
        %1040 = vmatprep.subr.mxu0 0.0
        %1041 = vmatpush1.msra.mxu0 0.0
        %1042 = vmatprep.subr.mxu0 0.0
        %1043 = vmatpush1.msra.mxu0 0.0
        %1044 = vmatprep.subr.mxu0 0.0
        %1045 = vmatpush1.msra.mxu0 0.0
        %1046 = vmatprep.subr.mxu0 0.0
        %1047 = vmatpush1.msra.mxu0 0.0
        %1048 = vmatprep.subr.mxu0 0.0
        %1049 = vmatpush1.msra.mxu0 0.0
        %1050 = vmatprep.subr.mxu0 0.0
        %1051 = vmatpush1.msra.mxu0 0.0
        %1052 = vmatprep.subr.mxu0 0.0
        %1053 = vmatpush1.msra.mxu0 0.0
        %1054 = vmatprep.subr.mxu0 0.0
        %1055 = vmatpush1.msra.mxu0 0.0
        %1056 = vmatprep.subr.mxu0 0.0
        %1057 = vmatpush1.msra.mxu0 0.0
        %1058 = vmatprep.subr.mxu0 0.0
        %1059 = vmatpush1.msra.mxu0 0.0
        %1060 = vmatprep.subr.mxu0 0.0
        %1061 = vmatpush1.msra.mxu0 0.0
        %1062 = vmatprep.subr.mxu0 0.0
        %1063 = vmatpush1.msra.mxu0 0.0
        %1064 = vmatprep.subr.mxu0 0.0
        %1065 = vmatpush1.msra.mxu0 0.0
        %1066 = vmatprep.subr.mxu0 0.0
        %1067 = vmatpush1.msra.mxu0 0.0
        %1068 = vmatprep.subr.mxu0 0.0
        %1069 = vmatpush1.msra.mxu0 %v1033
        %1070 = vmatprep.subr.mxu0 0.0
        %1071 = vmatpush2.msra.mxu0 0.0
        %1072 = vmatprep.subr.mxu0 0.0
        %1073 = vmatpush2.msra.mxu0 0.0
        %1074 = vmatprep.subr.mxu0 0.0
        %1075 = vmatpush2.msra.mxu0 0.0
        %1076 = vmatprep.subr.mxu0 0.0
        %1077 = vmatpush2.msra.mxu0 0.0
        %1078 = vmatprep.subr.mxu0 0.0
        %1079 = vmatpush2.msra.mxu0 0.0
        %1080 = vmatprep.subr.mxu0 0.0
        %1081 = vmatpush2.msra.mxu0 0.0
        %1082 = vmatprep.subr.mxu0 0.0
        %1083 = vmatpush2.msra.mxu0 0.0
        %1084 = vmatprep.subr.mxu0 0.0
        %1085 = vmatpush2.msra.mxu0 0.0
        %1086 = vmatprep.subr.mxu0 0.0
        %1087 = vmatpush2.msra.mxu0 0.0
        %1088 = vmatprep.subr.mxu0 0.0
        %1089 = vmatpush2.msra.mxu0 0.0
        %1090 = vmatprep.subr.mxu0 0.0
        %1091 = vmatpush2.msra.mxu0 0.0
        %1092 = vmatprep.subr.mxu0 0.0
        %1093 = vmatpush2.msra.mxu0 0.0
        %1094 = vmatprep.subr.mxu0 0.0
        %1095 = vmatpush2.msra.mxu0 0.0
        %1096 = vmatprep.subr.mxu0 0.0
        %1097 = vmatpush2.msra.mxu0 0.0
        %1098 = vmatprep.subr.mxu0 0.0
        %1099 = vmatpush2.msra.mxu0 0.0
        %1100 = vmatprep.subr.mxu0 0.0
        %1101 = vmatpush2.msra.mxu0 0.0
        %1102 = vmatprep.mubr.f32.mxu0 0.0
        %1103 = vmatmul.mubr.f32.gmra.mxu0 %v1036
        %v1104 = vpop.f32.mrf.mxu0
        %v1105 = vadd.f32 0.0, %v1104
        %v1106 = vpop.f32.mrf.mxu0
        %1107 = vdwg.mxu0
        %1108 = vrot.lane.b32.xlu0 %v433, 96
        %v1109 = vpop.permute.xlu0 %1108
        %v1112 = vsel %vm599, %v953, 0
        %1114 = vmatprep.subr.mxu0 0.0
        %1115 = vmatpush1.msra.mxu0 0.0
        %1116 = vmatprep.subr.mxu0 0.0
        %1117 = vmatpush1.msra.mxu0 0.0
        %1118 = vmatprep.subr.mxu0 0.0
        %1119 = vmatpush1.msra.mxu0 0.0
        %1120 = vmatprep.subr.mxu0 0.0
        %1121 = vmatpush1.msra.mxu0 0.0
        %1122 = vmatprep.subr.mxu0 0.0
        %1123 = vmatpush1.msra.mxu0 0.0
        %1124 = vmatprep.subr.mxu0 0.0
        %1125 = vmatpush1.msra.mxu0 0.0
        %1126 = vmatprep.subr.mxu0 0.0
        %1127 = vmatpush1.msra.mxu0 0.0
        %1128 = vmatprep.subr.mxu0 0.0
        %1129 = vmatpush1.msra.mxu0 0.0
        %1130 = vmatprep.subr.mxu0 0.0
        %1131 = vmatpush1.msra.mxu0 0.0
        %1132 = vmatprep.subr.mxu0 0.0
        %1133 = vmatpush1.msra.mxu0 0.0
        %1134 = vmatprep.subr.mxu0 0.0
        %1135 = vmatpush1.msra.mxu0 0.0
        %1136 = vmatprep.subr.mxu0 0.0
        %1137 = vmatpush1.msra.mxu0 0.0
        %1138 = vmatprep.subr.mxu0 0.0
        %1139 = vmatpush1.msra.mxu0 0.0
        %1140 = vmatprep.subr.mxu0 0.0
        %1141 = vmatpush1.msra.mxu0 0.0
        %1142 = vmatprep.subr.mxu0 0.0
        %1143 = vmatpush1.msra.mxu0 0.0
        %1144 = vmatprep.subr.mxu0 0.0
        %1145 = vmatpush1.msra.mxu0 %v1109
        %1146 = vmatprep.subr.mxu0 0.0
        %1147 = vmatpush2.msra.mxu0 0.0
        %1148 = vmatprep.subr.mxu0 0.0
        %1149 = vmatpush2.msra.mxu0 0.0
        %1150 = vmatprep.subr.mxu0 0.0
        %1151 = vmatpush2.msra.mxu0 0.0
        %1152 = vmatprep.subr.mxu0 0.0
        %1153 = vmatpush2.msra.mxu0 0.0
        %1154 = vmatprep.subr.mxu0 0.0
        %1155 = vmatpush2.msra.mxu0 0.0
        %1156 = vmatprep.subr.mxu0 0.0
        %1157 = vmatpush2.msra.mxu0 0.0
        %1158 = vmatprep.subr.mxu0 0.0
        %1159 = vmatpush2.msra.mxu0 0.0
        %1160 = vmatprep.subr.mxu0 0.0
        %1161 = vmatpush2.msra.mxu0 0.0
        %1162 = vmatprep.subr.mxu0 0.0
        %1163 = vmatpush2.msra.mxu0 0.0
        %1164 = vmatprep.subr.mxu0 0.0
        %1165 = vmatpush2.msra.mxu0 0.0
        %1166 = vmatprep.subr.mxu0 0.0
        %1167 = vmatpush2.msra.mxu0 0.0
        %1168 = vmatprep.subr.mxu0 0.0
        %1169 = vmatpush2.msra.mxu0 0.0
        %1170 = vmatprep.subr.mxu0 0.0
        %1171 = vmatpush2.msra.mxu0 0.0
        %1172 = vmatprep.subr.mxu0 0.0
        %1173 = vmatpush2.msra.mxu0 0.0
        %1174 = vmatprep.subr.mxu0 0.0
        %1175 = vmatpush2.msra.mxu0 0.0
        %1176 = vmatprep.subr.mxu0 0.0
        %1177 = vmatpush2.msra.mxu0 0.0
        %1178 = vmatprep.mubr.f32.mxu0 0.0
        %1179 = vmatmul.mubr.f32.gmra.mxu0 %v1112
        %v1180 = vpop.f32.mrf.mxu0
        %v1181 = vadd.f32 0.0, %v1180
        %v1182 = vpop.f32.mrf.mxu0
        %1183 = vdwg.mxu0
        %1184 = vrot.lane.b32.xlu0 %v438, 96
        %v1185 = vpop.permute.xlu0 %1184
        %v1188 = vsel %vm599, %v955, 0
        %1190 = vmatprep.subr.mxu0 0.0
        %1191 = vmatpush1.msra.mxu0 0.0
        %1192 = vmatprep.subr.mxu0 0.0
        %1193 = vmatpush1.msra.mxu0 0.0
        %1194 = vmatprep.subr.mxu0 0.0
        %1195 = vmatpush1.msra.mxu0 0.0
        %1196 = vmatprep.subr.mxu0 0.0
        %1197 = vmatpush1.msra.mxu0 0.0
        %1198 = vmatprep.subr.mxu0 0.0
        %1199 = vmatpush1.msra.mxu0 0.0
        %1200 = vmatprep.subr.mxu0 0.0
        %1201 = vmatpush1.msra.mxu0 0.0
        %1202 = vmatprep.subr.mxu0 0.0
        %1203 = vmatpush1.msra.mxu0 0.0
        %1204 = vmatprep.subr.mxu0 0.0
        %1205 = vmatpush1.msra.mxu0 0.0
        %1206 = vmatprep.subr.mxu0 0.0
        %1207 = vmatpush1.msra.mxu0 0.0
        %1208 = vmatprep.subr.mxu0 0.0
        %1209 = vmatpush1.msra.mxu0 0.0
        %1210 = vmatprep.subr.mxu0 0.0
        %1211 = vmatpush1.msra.mxu0 0.0
        %1212 = vmatprep.subr.mxu0 0.0
        %1213 = vmatpush1.msra.mxu0 0.0
        %1214 = vmatprep.subr.mxu0 0.0
        %1215 = vmatpush1.msra.mxu0 0.0
        %1216 = vmatprep.subr.mxu0 0.0
        %1217 = vmatpush1.msra.mxu0 0.0
        %1218 = vmatprep.subr.mxu0 0.0
        %1219 = vmatpush1.msra.mxu0 0.0
        %1220 = vmatprep.subr.mxu0 0.0
        %1221 = vmatpush1.msra.mxu0 %v1185
        %1222 = vmatprep.subr.mxu0 0.0
        %1223 = vmatpush2.msra.mxu0 0.0
        %1224 = vmatprep.subr.mxu0 0.0
        %1225 = vmatpush2.msra.mxu0 0.0
        %1226 = vmatprep.subr.mxu0 0.0
        %1227 = vmatpush2.msra.mxu0 0.0
        %1228 = vmatprep.subr.mxu0 0.0
        %1229 = vmatpush2.msra.mxu0 0.0
        %1230 = vmatprep.subr.mxu0 0.0
        %1231 = vmatpush2.msra.mxu0 0.0
        %1232 = vmatprep.subr.mxu0 0.0
        %1233 = vmatpush2.msra.mxu0 0.0
        %1234 = vmatprep.subr.mxu0 0.0
        %1235 = vmatpush2.msra.mxu0 0.0
        %1236 = vmatprep.subr.mxu0 0.0
        %1237 = vmatpush2.msra.mxu0 0.0
        %1238 = vmatprep.subr.mxu0 0.0
        %1239 = vmatpush2.msra.mxu0 0.0
        %1240 = vmatprep.subr.mxu0 0.0
        %1241 = vmatpush2.msra.mxu0 0.0
        %1242 = vmatprep.subr.mxu0 0.0
        %1243 = vmatpush2.msra.mxu0 0.0
        %1244 = vmatprep.subr.mxu0 0.0
        %1245 = vmatpush2.msra.mxu0 0.0
        %1246 = vmatprep.subr.mxu0 0.0
        %1247 = vmatpush2.msra.mxu0 0.0
        %1248 = vmatprep.subr.mxu0 0.0
        %1249 = vmatpush2.msra.mxu0 0.0
        %1250 = vmatprep.subr.mxu0 0.0
        %1251 = vmatpush2.msra.mxu0 0.0
        %1252 = vmatprep.subr.mxu0 0.0
        %1253 = vmatpush2.msra.mxu0 0.0
        %1254 = vmatprep.mubr.f32.mxu0 0.0
        %1255 = vmatmul.mubr.f32.gmra.mxu0 %v1188
        %v1256 = vpop.f32.mrf.mxu0
        %v1257 = vadd.f32 0.0, %v1256
        %v1258 = vpop.f32.mrf.mxu0
        %1259 = vdwg.mxu0
        %1260 = vrot.lane.b32.xlu0 %v581, 120
        %v1261 = vpop.permute.xlu0 %1260
        %1262 = vrot.lane.b32.xlu0 %v423, 120
        %v1263 = vpop.permute.xlu0 %1262
        %v1264 = vsel %vm599, %v1261, 0
        %v1266 = vsel %vm599, %v1263, 0
        %1268 = vmatprep.subr.mxu0 0.0
        %1269 = vmatpush1.xpose.msra.mxu0 0.0
        %1270 = vmatprep.subr.mxu0 0.0
        %1271 = vmatpush1.xpose.msra.mxu0 0.0
        %1272 = vmatprep.subr.mxu0 0.0
        %1273 = vmatpush1.xpose.msra.mxu0 0.0
        %1274 = vmatprep.subr.mxu0 0.0
        %1275 = vmatpush1.xpose.msra.mxu0 0.0
        %1276 = vmatprep.subr.mxu0 0.0
        %1277 = vmatpush1.xpose.msra.mxu0 0.0
        %1278 = vmatprep.subr.mxu0 0.0
        %1279 = vmatpush1.xpose.msra.mxu0 0.0
        %1280 = vmatprep.subr.mxu0 0.0
        %1281 = vmatpush1.xpose.msra.mxu0 0.0
        %1282 = vmatprep.subr.mxu0 0.0
        %1283 = vmatpush1.xpose.msra.mxu0 0.0
        %1284 = vmatprep.subr.mxu0 0.0
        %1285 = vmatpush1.xpose.msra.mxu0 0.0
        %1286 = vmatprep.subr.mxu0 0.0
        %1287 = vmatpush1.xpose.msra.mxu0 0.0
        %1288 = vmatprep.subr.mxu0 0.0
        %1289 = vmatpush1.xpose.msra.mxu0 0.0
        %1290 = vmatprep.subr.mxu0 0.0
        %1291 = vmatpush1.xpose.msra.mxu0 0.0
        %1292 = vmatprep.subr.mxu0 0.0
        %1293 = vmatpush1.xpose.msra.mxu0 0.0
        %1294 = vmatprep.subr.mxu0 0.0
        %1295 = vmatpush1.xpose.msra.mxu0 0.0
        %1296 = vmatprep.subr.mxu0 0.0
        %1297 = vmatpush1.xpose.msra.mxu0 0.0
        %1298 = vmatprep.subr.mxu0 0.0
        %1299 = vmatpush1.xpose.msra.mxu0 %v1266
        %1300 = vmatprep.subr.mxu0 0.0
        %1301 = vmatpush2.xpose.msra.mxu0 0.0
        %1302 = vmatprep.subr.mxu0 0.0
        %1303 = vmatpush2.xpose.msra.mxu0 0.0
        %1304 = vmatprep.subr.mxu0 0.0
        %1305 = vmatpush2.xpose.msra.mxu0 0.0
        %1306 = vmatprep.subr.mxu0 0.0
        %1307 = vmatpush2.xpose.msra.mxu0 0.0
        %1308 = vmatprep.subr.mxu0 0.0
        %1309 = vmatpush2.xpose.msra.mxu0 0.0
        %1310 = vmatprep.subr.mxu0 0.0
        %1311 = vmatpush2.xpose.msra.mxu0 0.0
        %1312 = vmatprep.subr.mxu0 0.0
        %1313 = vmatpush2.xpose.msra.mxu0 0.0
        %1314 = vmatprep.subr.mxu0 0.0
        %1315 = vmatpush2.xpose.msra.mxu0 0.0
        %1316 = vmatprep.subr.mxu0 0.0
        %1317 = vmatpush2.xpose.msra.mxu0 0.0
        %1318 = vmatprep.subr.mxu0 0.0
        %1319 = vmatpush2.xpose.msra.mxu0 0.0
        %1320 = vmatprep.subr.mxu0 0.0
        %1321 = vmatpush2.xpose.msra.mxu0 0.0
        %1322 = vmatprep.subr.mxu0 0.0
        %1323 = vmatpush2.xpose.msra.mxu0 0.0
        %1324 = vmatprep.subr.mxu0 0.0
        %1325 = vmatpush2.xpose.msra.mxu0 0.0
        %1326 = vmatprep.subr.mxu0 0.0
        %1327 = vmatpush2.xpose.msra.mxu0 0.0
        %1328 = vmatprep.subr.mxu0 0.0
        %1329 = vmatpush2.xpose.msra.mxu0 0.0
        %1330 = vmatprep.subr.mxu0 0.0
        %1331 = vmatpush2.xpose.msra.mxu0 0.0
        %1332 = vmatprep.mubr.f32.mxu0 0.0
        %1333 = vmatmul.mubr.f32.gmra.mxu0 %v1264
        %v1334 = vpop.f32.mrf.mxu0
        %v1335 = vadd.f32 0.0, %v1334
        %v1336 = vpop.f32.mrf.mxu0
        %1337 = vdwg.mxu0
        %1338 = vrot.lane.b32.xlu0 %v586, 120
        %v1339 = vpop.permute.xlu0 %1338
        %1340 = vrot.lane.b32.xlu0 %v428, 120
        %v1341 = vpop.permute.xlu0 %1340
        %v1342 = vsel %vm599, %v1339, 0
        %v1344 = vsel %vm599, %v1341, 0
        %1346 = vmatprep.subr.mxu0 0.0
        %1347 = vmatpush1.xpose.msra.mxu0 0.0
        %1348 = vmatprep.subr.mxu0 0.0
        %1349 = vmatpush1.xpose.msra.mxu0 0.0
        %1350 = vmatprep.subr.mxu0 0.0
        %1351 = vmatpush1.xpose.msra.mxu0 0.0
        %1352 = vmatprep.subr.mxu0 0.0
        %1353 = vmatpush1.xpose.msra.mxu0 0.0
        %1354 = vmatprep.subr.mxu0 0.0
        %1355 = vmatpush1.xpose.msra.mxu0 0.0
        %1356 = vmatprep.subr.mxu0 0.0
        %1357 = vmatpush1.xpose.msra.mxu0 0.0
        %1358 = vmatprep.subr.mxu0 0.0
        %1359 = vmatpush1.xpose.msra.mxu0 0.0
        %1360 = vmatprep.subr.mxu0 0.0
        %1361 = vmatpush1.xpose.msra.mxu0 0.0
        %1362 = vmatprep.subr.mxu0 0.0
        %1363 = vmatpush1.xpose.msra.mxu0 0.0
        %1364 = vmatprep.subr.mxu0 0.0
        %1365 = vmatpush1.xpose.msra.mxu0 0.0
        %1366 = vmatprep.subr.mxu0 0.0
        %1367 = vmatpush1.xpose.msra.mxu0 0.0
        %1368 = vmatprep.subr.mxu0 0.0
        %1369 = vmatpush1.xpose.msra.mxu0 0.0
        %1370 = vmatprep.subr.mxu0 0.0
        %1371 = vmatpush1.xpose.msra.mxu0 0.0
        %1372 = vmatprep.subr.mxu0 0.0
        %1373 = vmatpush1.xpose.msra.mxu0 0.0
        %1374 = vmatprep.subr.mxu0 0.0
        %1375 = vmatpush1.xpose.msra.mxu0 0.0
        %1376 = vmatprep.subr.mxu0 0.0
        %1377 = vmatpush1.xpose.msra.mxu0 %v1344
        %1378 = vmatprep.subr.mxu0 0.0
        %1379 = vmatpush2.xpose.msra.mxu0 0.0
        %1380 = vmatprep.subr.mxu0 0.0
        %1381 = vmatpush2.xpose.msra.mxu0 0.0
        %1382 = vmatprep.subr.mxu0 0.0
        %1383 = vmatpush2.xpose.msra.mxu0 0.0
        %1384 = vmatprep.subr.mxu0 0.0
        %1385 = vmatpush2.xpose.msra.mxu0 0.0
        %1386 = vmatprep.subr.mxu0 0.0
        %1387 = vmatpush2.xpose.msra.mxu0 0.0
        %1388 = vmatprep.subr.mxu0 0.0
        %1389 = vmatpush2.xpose.msra.mxu0 0.0
        %1390 = vmatprep.subr.mxu0 0.0
        %1391 = vmatpush2.xpose.msra.mxu0 0.0
        %1392 = vmatprep.subr.mxu0 0.0
        %1393 = vmatpush2.xpose.msra.mxu0 0.0
        %1394 = vmatprep.subr.mxu0 0.0
        %1395 = vmatpush2.xpose.msra.mxu0 0.0
        %1396 = vmatprep.subr.mxu0 0.0
        %1397 = vmatpush2.xpose.msra.mxu0 0.0
        %1398 = vmatprep.subr.mxu0 0.0
        %1399 = vmatpush2.xpose.msra.mxu0 0.0
        %1400 = vmatprep.subr.mxu0 0.0
        %1401 = vmatpush2.xpose.msra.mxu0 0.0
        %1402 = vmatprep.subr.mxu0 0.0
        %1403 = vmatpush2.xpose.msra.mxu0 0.0
        %1404 = vmatprep.subr.mxu0 0.0
        %1405 = vmatpush2.xpose.msra.mxu0 0.0
        %1406 = vmatprep.subr.mxu0 0.0
        %1407 = vmatpush2.xpose.msra.mxu0 0.0
        %1408 = vmatprep.subr.mxu0 0.0
        %1409 = vmatpush2.xpose.msra.mxu0 0.0
        %1410 = vmatprep.mubr.f32.mxu0 0.0
        %1411 = vmatmul.mubr.f32.gmra.mxu0 %v1342
        %v1412 = vpop.f32.mrf.mxu0
        %v1413 = vadd.f32 0.0, %v1412
        %v1414 = vpop.f32.mrf.mxu0
        %1415 = vdwg.mxu0
        %1416 = vrot.lane.b32.xlu0 %v591, 120
        %v1417 = vpop.permute.xlu0 %1416
        %1418 = vrot.lane.b32.xlu0 %v433, 120
        %v1419 = vpop.permute.xlu0 %1418
        %v1420 = vsel %vm599, %v1417, 0
        %v1422 = vsel %vm599, %v1419, 0
        %1424 = vmatprep.subr.mxu0 0.0
        %1425 = vmatpush1.xpose.msra.mxu0 0.0
        %1426 = vmatprep.subr.mxu0 0.0
        %1427 = vmatpush1.xpose.msra.mxu0 0.0
        %1428 = vmatprep.subr.mxu0 0.0
        %1429 = vmatpush1.xpose.msra.mxu0 0.0
        %1430 = vmatprep.subr.mxu0 0.0
        %1431 = vmatpush1.xpose.msra.mxu0 0.0
        %1432 = vmatprep.subr.mxu0 0.0
        %1433 = vmatpush1.xpose.msra.mxu0 0.0
        %1434 = vmatprep.subr.mxu0 0.0
        %1435 = vmatpush1.xpose.msra.mxu0 0.0
        %1436 = vmatprep.subr.mxu0 0.0
        %1437 = vmatpush1.xpose.msra.mxu0 0.0
        %1438 = vmatprep.subr.mxu0 0.0
        %1439 = vmatpush1.xpose.msra.mxu0 0.0
        %1440 = vmatprep.subr.mxu0 0.0
        %1441 = vmatpush1.xpose.msra.mxu0 0.0
        %1442 = vmatprep.subr.mxu0 0.0
        %1443 = vmatpush1.xpose.msra.mxu0 0.0
        %1444 = vmatprep.subr.mxu0 0.0
        %1445 = vmatpush1.xpose.msra.mxu0 0.0
        %1446 = vmatprep.subr.mxu0 0.0
        %1447 = vmatpush1.xpose.msra.mxu0 0.0
        %1448 = vmatprep.subr.mxu0 0.0
        %1449 = vmatpush1.xpose.msra.mxu0 0.0
        %1450 = vmatprep.subr.mxu0 0.0
        %1451 = vmatpush1.xpose.msra.mxu0 0.0
        %1452 = vmatprep.subr.mxu0 0.0
        %1453 = vmatpush1.xpose.msra.mxu0 0.0
        %1454 = vmatprep.subr.mxu0 0.0
        %1455 = vmatpush1.xpose.msra.mxu0 %v1422
        %1456 = vmatprep.subr.mxu0 0.0
        %1457 = vmatpush2.xpose.msra.mxu0 0.0
        %1458 = vmatprep.subr.mxu0 0.0
        %1459 = vmatpush2.xpose.msra.mxu0 0.0
        %1460 = vmatprep.subr.mxu0 0.0
        %1461 = vmatpush2.xpose.msra.mxu0 0.0
        %1462 = vmatprep.subr.mxu0 0.0
        %1463 = vmatpush2.xpose.msra.mxu0 0.0
        %1464 = vmatprep.subr.mxu0 0.0
        %1465 = vmatpush2.xpose.msra.mxu0 0.0
        %1466 = vmatprep.subr.mxu0 0.0
        %1467 = vmatpush2.xpose.msra.mxu0 0.0
        %1468 = vmatprep.subr.mxu0 0.0
        %1469 = vmatpush2.xpose.msra.mxu0 0.0
        %1470 = vmatprep.subr.mxu0 0.0
        %1471 = vmatpush2.xpose.msra.mxu0 0.0
        %1472 = vmatprep.subr.mxu0 0.0
        %1473 = vmatpush2.xpose.msra.mxu0 0.0
        %1474 = vmatprep.subr.mxu0 0.0
        %1475 = vmatpush2.xpose.msra.mxu0 0.0
        %1476 = vmatprep.subr.mxu0 0.0
        %1477 = vmatpush2.xpose.msra.mxu0 0.0
        %1478 = vmatprep.subr.mxu0 0.0
        %1479 = vmatpush2.xpose.msra.mxu0 0.0
        %1480 = vmatprep.subr.mxu0 0.0
        %1481 = vmatpush2.xpose.msra.mxu0 0.0
        %1482 = vmatprep.subr.mxu0 0.0
        %1483 = vmatpush2.xpose.msra.mxu0 0.0
        %1484 = vmatprep.subr.mxu0 0.0
        %1485 = vmatpush2.xpose.msra.mxu0 0.0
        %1486 = vmatprep.subr.mxu0 0.0
        %1487 = vmatpush2.xpose.msra.mxu0 0.0
        %1488 = vmatprep.mubr.f32.mxu0 0.0
        %1489 = vmatmul.mubr.f32.gmra.mxu0 %v1420
        %v1490 = vpop.f32.mrf.mxu0
        %v1491 = vadd.f32 0.0, %v1490
        %v1492 = vpop.f32.mrf.mxu0
        %1493 = vdwg.mxu0
        %1494 = vrot.lane.b32.xlu0 %v596, 120
        %v1495 = vpop.permute.xlu0 %1494
        %1496 = vrot.lane.b32.xlu0 %v438, 120
        %v1497 = vpop.permute.xlu0 %1496
        %v1498 = vsel %vm599, %v1495, 0
        %v1500 = vsel %vm599, %v1497, 0
        %1502 = vmatprep.subr.mxu0 0.0
        %1503 = vmatpush1.xpose.msra.mxu0 0.0
        %1504 = vmatprep.subr.mxu0 0.0
        %1505 = vmatpush1.xpose.msra.mxu0 0.0
        %1506 = vmatprep.subr.mxu0 0.0
        %1507 = vmatpush1.xpose.msra.mxu0 0.0
        %1508 = vmatprep.subr.mxu0 0.0
        %1509 = vmatpush1.xpose.msra.mxu0 0.0
        %1510 = vmatprep.subr.mxu0 0.0
        %1511 = vmatpush1.xpose.msra.mxu0 0.0
        %1512 = vmatprep.subr.mxu0 0.0
        %1513 = vmatpush1.xpose.msra.mxu0 0.0
        %1514 = vmatprep.subr.mxu0 0.0
        %1515 = vmatpush1.xpose.msra.mxu0 0.0
        %1516 = vmatprep.subr.mxu0 0.0
        %1517 = vmatpush1.xpose.msra.mxu0 0.0
        %1518 = vmatprep.subr.mxu0 0.0
        %1519 = vmatpush1.xpose.msra.mxu0 0.0
        %1520 = vmatprep.subr.mxu0 0.0
        %1521 = vmatpush1.xpose.msra.mxu0 0.0
        %1522 = vmatprep.subr.mxu0 0.0
        %1523 = vmatpush1.xpose.msra.mxu0 0.0
        %1524 = vmatprep.subr.mxu0 0.0
        %1525 = vmatpush1.xpose.msra.mxu0 0.0
        %1526 = vmatprep.subr.mxu0 0.0
        %1527 = vmatpush1.xpose.msra.mxu0 0.0
        %1528 = vmatprep.subr.mxu0 0.0
        %1529 = vmatpush1.xpose.msra.mxu0 0.0
        %1530 = vmatprep.subr.mxu0 0.0
        %1531 = vmatpush1.xpose.msra.mxu0 0.0
        %1532 = vmatprep.subr.mxu0 0.0
        %1533 = vmatpush1.xpose.msra.mxu0 %v1500
        %1534 = vmatprep.subr.mxu0 0.0
        %1535 = vmatpush2.xpose.msra.mxu0 0.0
        %1536 = vmatprep.subr.mxu0 0.0
        %1537 = vmatpush2.xpose.msra.mxu0 0.0
        %1538 = vmatprep.subr.mxu0 0.0
        %1539 = vmatpush2.xpose.msra.mxu0 0.0
        %1540 = vmatprep.subr.mxu0 0.0
        %1541 = vmatpush2.xpose.msra.mxu0 0.0
        %1542 = vmatprep.subr.mxu0 0.0
        %1543 = vmatpush2.xpose.msra.mxu0 0.0
        %1544 = vmatprep.subr.mxu0 0.0
        %1545 = vmatpush2.xpose.msra.mxu0 0.0
        %1546 = vmatprep.subr.mxu0 0.0
        %1547 = vmatpush2.xpose.msra.mxu0 0.0
        %1548 = vmatprep.subr.mxu0 0.0
        %1549 = vmatpush2.xpose.msra.mxu0 0.0
        %1550 = vmatprep.subr.mxu0 0.0
        %1551 = vmatpush2.xpose.msra.mxu0 0.0
        %1552 = vmatprep.subr.mxu0 0.0
        %1553 = vmatpush2.xpose.msra.mxu0 0.0
        %1554 = vmatprep.subr.mxu0 0.0
        %1555 = vmatpush2.xpose.msra.mxu0 0.0
        %1556 = vmatprep.subr.mxu0 0.0
        %1557 = vmatpush2.xpose.msra.mxu0 0.0
        %1558 = vmatprep.subr.mxu0 0.0
        %1559 = vmatpush2.xpose.msra.mxu0 0.0
        %1560 = vmatprep.subr.mxu0 0.0
        %1561 = vmatpush2.xpose.msra.mxu0 0.0
        %1562 = vmatprep.subr.mxu0 0.0
        %1563 = vmatpush2.xpose.msra.mxu0 0.0
        %1564 = vmatprep.subr.mxu0 0.0
        %1565 = vmatpush2.xpose.msra.mxu0 0.0
        %1566 = vmatprep.mubr.f32.mxu0 0.0
        %1567 = vmatmul.mubr.f32.gmra.mxu0 %v1498
        %v1568 = vpop.f32.mrf.mxu0
        %v1569 = vadd.f32 0.0, %v1568
        %v1570 = vpop.f32.mrf.mxu0
        %1571 = vdwg.mxu0
        %v1572 = vmul.f32 %v1335, 0.35355338
        %v1573 = vmul.f32 %v1413, 0.35355338
        %v1574 = vmul.f32 %v1491, 0.35355338
        %v1575 = vmul.f32 %v1569, 0.35355338
        %v1576 = vadd.f32 %v1572, %v451
        %v1577 = vadd.f32 %v1573, %v457
        %v1578 = vadd.f32 %v1574, %v463
        %v1579 = vadd.f32 %v1575, %v469
        %v1580 = vsel %vm599, %v1576, -inf
        %1581 = vmax.xlane.f32.xlu0 %v1580
        %v1582 = vpop.xlane.xlu0 %1581
        %v1583 = vsel %vm599, %v1577, -inf
        %1584 = vmax.xlane.f32.xlu0 %v1583
        %v1585 = vpop.xlane.xlu0 %1584
        %v1586 = vsel %vm599, %v1578, -inf
        %1587 = vmax.xlane.f32.xlu0 %v1586
        %v1588 = vpop.xlane.xlu0 %1587
        %v1589 = vsel %vm599, %v1579, -inf
        %1590 = vmax.xlane.f32.xlu0 %v1589
        %v1591 = vpop.xlane.xlu0 %1590
        %v1592 = vsub.f32 %v1576, %v1582
        %v1593 = vsub.f32 %v1577, %v1585
        %v1594 = vsub.f32 %v1578, %v1588
        %v1595 = vsub.f32 %v1579, %v1591
        %v1596 = vmul.f32 %v1592, 1.442695
        %v1597 = vpow.pop %v1596
        %v1598 = vmul.f32 %v1593, 1.442695
        %v1599 = vpow.pop %v1598
        %v1600 = vmul.f32 %v1594, 1.442695
        %v1601 = vpow.pop %v1600
        %v1602 = vmul.f32 %v1595, 1.442695
        %v1603 = vpow.pop %v1602
        %v1604 = vsel %vm599, %v1597, 0.0
        %1605 = vadd.xlane.f32.xlu0 %v1604
        %v1606 = vpop.xlane.xlu0 %1605
        %v1607 = vsel %vm599, %v1599, 0.0
        %1608 = vadd.xlane.f32.xlu0 %v1607
        %v1609 = vpop.xlane.xlu0 %1608
        %v1610 = vsel %vm599, %v1601, 0.0
        %1611 = vadd.xlane.f32.xlu0 %v1610
        %v1612 = vpop.xlane.xlu0 %1611
        %v1613 = vsel %vm599, %v1603, 0.0
        %1614 = vadd.xlane.f32.xlu0 %v1613
        %v1615 = vpop.xlane.xlu0 %1614
        %v1616 = vrcp.pop %v1606
        %v1617 = vmul.f32 %v1597, %v1616
        %v1618 = vrcp.pop %v1609
        %v1619 = vmul.f32 %v1599, %v1618
        %v1620 = vrcp.pop %v1612
        %v1621 = vmul.f32 %v1601, %v1620
        %v1622 = vrcp.pop %v1615
        %v1623 = vmul.f32 %v1603, %v1622
        %1624 = vrot.lane.b32.xlu0 %v423, 88
        %v1625 = vpop.permute.xlu0 %1624
        %v1628 = vsel %vm599, %v1617, 0
        %1630 = vmatprep.subr.mxu0 0.0
        %1631 = vmatpush1.msra.mxu0 0.0
        %1632 = vmatprep.subr.mxu0 0.0
        %1633 = vmatpush1.msra.mxu0 0.0
        %1634 = vmatprep.subr.mxu0 0.0
        %1635 = vmatpush1.msra.mxu0 0.0
        %1636 = vmatprep.subr.mxu0 0.0
        %1637 = vmatpush1.msra.mxu0 0.0
        %1638 = vmatprep.subr.mxu0 0.0
        %1639 = vmatpush1.msra.mxu0 0.0
        %1640 = vmatprep.subr.mxu0 0.0
        %1641 = vmatpush1.msra.mxu0 0.0
        %1642 = vmatprep.subr.mxu0 0.0
        %1643 = vmatpush1.msra.mxu0 0.0
        %1644 = vmatprep.subr.mxu0 0.0
        %1645 = vmatpush1.msra.mxu0 0.0
        %1646 = vmatprep.subr.mxu0 0.0
        %1647 = vmatpush1.msra.mxu0 0.0
        %1648 = vmatprep.subr.mxu0 0.0
        %1649 = vmatpush1.msra.mxu0 0.0
        %1650 = vmatprep.subr.mxu0 0.0
        %1651 = vmatpush1.msra.mxu0 0.0
        %1652 = vmatprep.subr.mxu0 0.0
        %1653 = vmatpush1.msra.mxu0 0.0
        %1654 = vmatprep.subr.mxu0 0.0
        %1655 = vmatpush1.msra.mxu0 0.0
        %1656 = vmatprep.subr.mxu0 0.0
        %1657 = vmatpush1.msra.mxu0 0.0
        %1658 = vmatprep.subr.mxu0 0.0
        %1659 = vmatpush1.msra.mxu0 0.0
        %1660 = vmatprep.subr.mxu0 0.0
        %1661 = vmatpush1.msra.mxu0 %v1625
        %1662 = vmatprep.subr.mxu0 0.0
        %1663 = vmatpush2.msra.mxu0 0.0
        %1664 = vmatprep.subr.mxu0 0.0
        %1665 = vmatpush2.msra.mxu0 0.0
        %1666 = vmatprep.subr.mxu0 0.0
        %1667 = vmatpush2.msra.mxu0 0.0
        %1668 = vmatprep.subr.mxu0 0.0
        %1669 = vmatpush2.msra.mxu0 0.0
        %1670 = vmatprep.subr.mxu0 0.0
        %1671 = vmatpush2.msra.mxu0 0.0
        %1672 = vmatprep.subr.mxu0 0.0
        %1673 = vmatpush2.msra.mxu0 0.0
        %1674 = vmatprep.subr.mxu0 0.0
        %1675 = vmatpush2.msra.mxu0 0.0
        %1676 = vmatprep.subr.mxu0 0.0
        %1677 = vmatpush2.msra.mxu0 0.0
        %1678 = vmatprep.subr.mxu0 0.0
        %1679 = vmatpush2.msra.mxu0 0.0
        %1680 = vmatprep.subr.mxu0 0.0
        %1681 = vmatpush2.msra.mxu0 0.0
        %1682 = vmatprep.subr.mxu0 0.0
        %1683 = vmatpush2.msra.mxu0 0.0
        %1684 = vmatprep.subr.mxu0 0.0
        %1685 = vmatpush2.msra.mxu0 0.0
        %1686 = vmatprep.subr.mxu0 0.0
        %1687 = vmatpush2.msra.mxu0 0.0
        %1688 = vmatprep.subr.mxu0 0.0
        %1689 = vmatpush2.msra.mxu0 0.0
        %1690 = vmatprep.subr.mxu0 0.0
        %1691 = vmatpush2.msra.mxu0 0.0
        %1692 = vmatprep.subr.mxu0 0.0
        %1693 = vmatpush2.msra.mxu0 0.0
        %1694 = vmatprep.mubr.f32.mxu0 0.0
        %1695 = vmatmul.mubr.f32.gmra.mxu0 %v1628
        %v1696 = vpop.f32.mrf.mxu0
        %v1697 = vadd.f32 0.0, %v1696
        %v1698 = vpop.f32.mrf.mxu0
        %1699 = vdwg.mxu0
        %1700 = vrot.lane.b32.xlu0 %v428, 88
        %v1701 = vpop.permute.xlu0 %1700
        %v1704 = vsel %vm599, %v1619, 0
        %1706 = vmatprep.subr.mxu0 0.0
        %1707 = vmatpush1.msra.mxu0 0.0
        %1708 = vmatprep.subr.mxu0 0.0
        %1709 = vmatpush1.msra.mxu0 0.0
        %1710 = vmatprep.subr.mxu0 0.0
        %1711 = vmatpush1.msra.mxu0 0.0
        %1712 = vmatprep.subr.mxu0 0.0
        %1713 = vmatpush1.msra.mxu0 0.0
        %1714 = vmatprep.subr.mxu0 0.0
        %1715 = vmatpush1.msra.mxu0 0.0
        %1716 = vmatprep.subr.mxu0 0.0
        %1717 = vmatpush1.msra.mxu0 0.0
        %1718 = vmatprep.subr.mxu0 0.0
        %1719 = vmatpush1.msra.mxu0 0.0
        %1720 = vmatprep.subr.mxu0 0.0
        %1721 = vmatpush1.msra.mxu0 0.0
        %1722 = vmatprep.subr.mxu0 0.0
        %1723 = vmatpush1.msra.mxu0 0.0
        %1724 = vmatprep.subr.mxu0 0.0
        %1725 = vmatpush1.msra.mxu0 0.0
        %1726 = vmatprep.subr.mxu0 0.0
        %1727 = vmatpush1.msra.mxu0 0.0
        %1728 = vmatprep.subr.mxu0 0.0
        %1729 = vmatpush1.msra.mxu0 0.0
        %1730 = vmatprep.subr.mxu0 0.0
        %1731 = vmatpush1.msra.mxu0 0.0
        %1732 = vmatprep.subr.mxu0 0.0
        %1733 = vmatpush1.msra.mxu0 0.0
        %1734 = vmatprep.subr.mxu0 0.0
        %1735 = vmatpush1.msra.mxu0 0.0
        %1736 = vmatprep.subr.mxu0 0.0
        %1737 = vmatpush1.msra.mxu0 %v1701
        %1738 = vmatprep.subr.mxu0 0.0
        %1739 = vmatpush2.msra.mxu0 0.0
        %1740 = vmatprep.subr.mxu0 0.0
        %1741 = vmatpush2.msra.mxu0 0.0
        %1742 = vmatprep.subr.mxu0 0.0
        %1743 = vmatpush2.msra.mxu0 0.0
        %1744 = vmatprep.subr.mxu0 0.0
        %1745 = vmatpush2.msra.mxu0 0.0
        %1746 = vmatprep.subr.mxu0 0.0
        %1747 = vmatpush2.msra.mxu0 0.0
        %1748 = vmatprep.subr.mxu0 0.0
        %1749 = vmatpush2.msra.mxu0 0.0
        %1750 = vmatprep.subr.mxu0 0.0
        %1751 = vmatpush2.msra.mxu0 0.0
        %1752 = vmatprep.subr.mxu0 0.0
        %1753 = vmatpush2.msra.mxu0 0.0
        %1754 = vmatprep.subr.mxu0 0.0
        %1755 = vmatpush2.msra.mxu0 0.0
        %1756 = vmatprep.subr.mxu0 0.0
        %1757 = vmatpush2.msra.mxu0 0.0
        %1758 = vmatprep.subr.mxu0 0.0
        %1759 = vmatpush2.msra.mxu0 0.0
        %1760 = vmatprep.subr.mxu0 0.0
        %1761 = vmatpush2.msra.mxu0 0.0
        %1762 = vmatprep.subr.mxu0 0.0
        %1763 = vmatpush2.msra.mxu0 0.0
        %1764 = vmatprep.subr.mxu0 0.0
        %1765 = vmatpush2.msra.mxu0 0.0
        %1766 = vmatprep.subr.mxu0 0.0
        %1767 = vmatpush2.msra.mxu0 0.0
        %1768 = vmatprep.subr.mxu0 0.0
        %1769 = vmatpush2.msra.mxu0 0.0
        %1770 = vmatprep.mubr.f32.mxu0 0.0
        %1771 = vmatmul.mubr.f32.gmra.mxu0 %v1704
        %v1772 = vpop.f32.mrf.mxu0
        %v1773 = vadd.f32 0.0, %v1772
        %v1774 = vpop.f32.mrf.mxu0
        %1775 = vdwg.mxu0
        %1776 = vrot.lane.b32.xlu0 %v433, 88
        %v1777 = vpop.permute.xlu0 %1776
        %v1780 = vsel %vm599, %v1621, 0
        %1782 = vmatprep.subr.mxu0 0.0
        %1783 = vmatpush1.msra.mxu0 0.0
        %1784 = vmatprep.subr.mxu0 0.0
        %1785 = vmatpush1.msra.mxu0 0.0
        %1786 = vmatprep.subr.mxu0 0.0
        %1787 = vmatpush1.msra.mxu0 0.0
        %1788 = vmatprep.subr.mxu0 0.0
        %1789 = vmatpush1.msra.mxu0 0.0
        %1790 = vmatprep.subr.mxu0 0.0
        %1791 = vmatpush1.msra.mxu0 0.0
        %1792 = vmatprep.subr.mxu0 0.0
        %1793 = vmatpush1.msra.mxu0 0.0
        %1794 = vmatprep.subr.mxu0 0.0
        %1795 = vmatpush1.msra.mxu0 0.0
        %1796 = vmatprep.subr.mxu0 0.0
        %1797 = vmatpush1.msra.mxu0 0.0
        %1798 = vmatprep.subr.mxu0 0.0
        %1799 = vmatpush1.msra.mxu0 0.0
        %1800 = vmatprep.subr.mxu0 0.0
        %1801 = vmatpush1.msra.mxu0 0.0
        %1802 = vmatprep.subr.mxu0 0.0
        %1803 = vmatpush1.msra.mxu0 0.0
        %1804 = vmatprep.subr.mxu0 0.0
        %1805 = vmatpush1.msra.mxu0 0.0
        %1806 = vmatprep.subr.mxu0 0.0
        %1807 = vmatpush1.msra.mxu0 0.0
        %1808 = vmatprep.subr.mxu0 0.0
        %1809 = vmatpush1.msra.mxu0 0.0
        %1810 = vmatprep.subr.mxu0 0.0
        %1811 = vmatpush1.msra.mxu0 0.0
        %1812 = vmatprep.subr.mxu0 0.0
        %1813 = vmatpush1.msra.mxu0 %v1777
        %1814 = vmatprep.subr.mxu0 0.0
        %1815 = vmatpush2.msra.mxu0 0.0
        %1816 = vmatprep.subr.mxu0 0.0
        %1817 = vmatpush2.msra.mxu0 0.0
        %1818 = vmatprep.subr.mxu0 0.0
        %1819 = vmatpush2.msra.mxu0 0.0
        %1820 = vmatprep.subr.mxu0 0.0
        %1821 = vmatpush2.msra.mxu0 0.0
        %1822 = vmatprep.subr.mxu0 0.0
        %1823 = vmatpush2.msra.mxu0 0.0
        %1824 = vmatprep.subr.mxu0 0.0
        %1825 = vmatpush2.msra.mxu0 0.0
        %1826 = vmatprep.subr.mxu0 0.0
        %1827 = vmatpush2.msra.mxu0 0.0
        %1828 = vmatprep.subr.mxu0 0.0
        %1829 = vmatpush2.msra.mxu0 0.0
        %1830 = vmatprep.subr.mxu0 0.0
        %1831 = vmatpush2.msra.mxu0 0.0
        %1832 = vmatprep.subr.mxu0 0.0
        %1833 = vmatpush2.msra.mxu0 0.0
        %1834 = vmatprep.subr.mxu0 0.0
        %1835 = vmatpush2.msra.mxu0 0.0
        %1836 = vmatprep.subr.mxu0 0.0
        %1837 = vmatpush2.msra.mxu0 0.0
        %1838 = vmatprep.subr.mxu0 0.0
        %1839 = vmatpush2.msra.mxu0 0.0
        %1840 = vmatprep.subr.mxu0 0.0
        %1841 = vmatpush2.msra.mxu0 0.0
        %1842 = vmatprep.subr.mxu0 0.0
        %1843 = vmatpush2.msra.mxu0 0.0
        %1844 = vmatprep.subr.mxu0 0.0
        %1845 = vmatpush2.msra.mxu0 0.0
        %1846 = vmatprep.mubr.f32.mxu0 0.0
        %1847 = vmatmul.mubr.f32.gmra.mxu0 %v1780
        %v1848 = vpop.f32.mrf.mxu0
        %v1849 = vadd.f32 0.0, %v1848
        %v1850 = vpop.f32.mrf.mxu0
        %1851 = vdwg.mxu0
        %1852 = vrot.lane.b32.xlu0 %v438, 88
        %v1853 = vpop.permute.xlu0 %1852
        %v1856 = vsel %vm599, %v1623, 0
        %1858 = vmatprep.subr.mxu0 0.0
        %1859 = vmatpush1.msra.mxu0 0.0
        %1860 = vmatprep.subr.mxu0 0.0
        %1861 = vmatpush1.msra.mxu0 0.0
        %1862 = vmatprep.subr.mxu0 0.0
        %1863 = vmatpush1.msra.mxu0 0.0
        %1864 = vmatprep.subr.mxu0 0.0
        %1865 = vmatpush1.msra.mxu0 0.0
        %1866 = vmatprep.subr.mxu0 0.0
        %1867 = vmatpush1.msra.mxu0 0.0
        %1868 = vmatprep.subr.mxu0 0.0
        %1869 = vmatpush1.msra.mxu0 0.0
        %1870 = vmatprep.subr.mxu0 0.0
        %1871 = vmatpush1.msra.mxu0 0.0
        %1872 = vmatprep.subr.mxu0 0.0
        %1873 = vmatpush1.msra.mxu0 0.0
        %1874 = vmatprep.subr.mxu0 0.0
        %1875 = vmatpush1.msra.mxu0 0.0
        %1876 = vmatprep.subr.mxu0 0.0
        %1877 = vmatpush1.msra.mxu0 0.0
        %1878 = vmatprep.subr.mxu0 0.0
        %1879 = vmatpush1.msra.mxu0 0.0
        %1880 = vmatprep.subr.mxu0 0.0
        %1881 = vmatpush1.msra.mxu0 0.0
        %1882 = vmatprep.subr.mxu0 0.0
        %1883 = vmatpush1.msra.mxu0 0.0
        %1884 = vmatprep.subr.mxu0 0.0
        %1885 = vmatpush1.msra.mxu0 0.0
        %1886 = vmatprep.subr.mxu0 0.0
        %1887 = vmatpush1.msra.mxu0 0.0
        %1888 = vmatprep.subr.mxu0 0.0
        %1889 = vmatpush1.msra.mxu0 %v1853
        %1890 = vmatprep.subr.mxu0 0.0
        %1891 = vmatpush2.msra.mxu0 0.0
        %1892 = vmatprep.subr.mxu0 0.0
        %1893 = vmatpush2.msra.mxu0 0.0
        %1894 = vmatprep.subr.mxu0 0.0
        %1895 = vmatpush2.msra.mxu0 0.0
        %1896 = vmatprep.subr.mxu0 0.0
        %1897 = vmatpush2.msra.mxu0 0.0
        %1898 = vmatprep.subr.mxu0 0.0
        %1899 = vmatpush2.msra.mxu0 0.0
        %1900 = vmatprep.subr.mxu0 0.0
        %1901 = vmatpush2.msra.mxu0 0.0
        %1902 = vmatprep.subr.mxu0 0.0
        %1903 = vmatpush2.msra.mxu0 0.0
        %1904 = vmatprep.subr.mxu0 0.0
        %1905 = vmatpush2.msra.mxu0 0.0
        %1906 = vmatprep.subr.mxu0 0.0
        %1907 = vmatpush2.msra.mxu0 0.0
        %1908 = vmatprep.subr.mxu0 0.0
        %1909 = vmatpush2.msra.mxu0 0.0
        %1910 = vmatprep.subr.mxu0 0.0
        %1911 = vmatpush2.msra.mxu0 0.0
        %1912 = vmatprep.subr.mxu0 0.0
        %1913 = vmatpush2.msra.mxu0 0.0
        %1914 = vmatprep.subr.mxu0 0.0
        %1915 = vmatpush2.msra.mxu0 0.0
        %1916 = vmatprep.subr.mxu0 0.0
        %1917 = vmatpush2.msra.mxu0 0.0
        %1918 = vmatprep.subr.mxu0 0.0
        %1919 = vmatpush2.msra.mxu0 0.0
        %1920 = vmatprep.subr.mxu0 0.0
        %1921 = vmatpush2.msra.mxu0 0.0
        %1922 = vmatprep.mubr.f32.mxu0 0.0
        %1923 = vmatmul.mubr.f32.gmra.mxu0 %v1856
        %v1924 = vpop.f32.mrf.mxu0
        %v1925 = vadd.f32 0.0, %v1924
        %v1926 = vpop.f32.mrf.mxu0
        %1927 = vdwg.mxu0
        %v1929 = vsel %vm599, %v1697, 0
        %v1932 = vsel %vm599, %v1773, 0
        %v1935 = vsel %vm599, %v1849, 0
        %v1938 = vsel %vm599, %v1925, 0
        %1940 = vmatprep.subr.mxu0 0.0
        %1941 = vmatpush1.msra.mxu0 0.0
        %1942 = vmatprep.subr.mxu0 0.0
        %1943 = vmatpush1.msra.mxu0 0.0
        %1944 = vmatprep.subr.mxu0 0.0
        %1945 = vmatpush1.msra.mxu0 0.0
        %1946 = vmatprep.subr.mxu0 0.0
        %1947 = vmatpush1.msra.mxu0 0.0
        %1948 = vmatprep.subr.mxu0 0.0
        %1949 = vmatpush1.msra.mxu0 0.0
        %1950 = vmatprep.subr.mxu0 0.0
        %1951 = vmatpush1.msra.mxu0 0.0
        %1952 = vmatprep.subr.mxu0 0.0
        %1953 = vmatpush1.msra.mxu0 0.0
        %1954 = vmatprep.subr.mxu0 0.0
        %1955 = vmatpush1.msra.mxu0 0.0
        %1956 = vmatprep.subr.mxu0 0.0
        %1957 = vmatpush1.msra.mxu0 0.0
        %1958 = vmatprep.subr.mxu0 0.0
        %1959 = vmatpush1.msra.mxu0 0.0
        %1960 = vmatprep.subr.mxu0 0.0
        %1961 = vmatpush1.msra.mxu0 0.0
        %1962 = vmatprep.subr.mxu0 0.0
        %1963 = vmatpush1.msra.mxu0 0.0
        %1964 = vmatprep.subr.mxu0 0.0
        %1965 = vmatpush1.msra.mxu0 0.0
        %1966 = vmatprep.subr.mxu0 0.0
        %1967 = vmatpush1.msra.mxu0 0.0
        %1968 = vmatprep.subr.mxu0 0.0
        %1969 = vmatpush1.msra.mxu0 0.0
        %1970 = vmatprep.subr.mxu0 0.0
        %1971 = vmatpush1.msra.mxu0 %v475
        %1972 = vmatprep.subr.mxu0 0.0
        %1973 = vmatpush2.msra.mxu0 0.0
        %1974 = vmatprep.subr.mxu0 0.0
        %1975 = vmatpush2.msra.mxu0 0.0
        %1976 = vmatprep.subr.mxu0 0.0
        %1977 = vmatpush2.msra.mxu0 0.0
        %1978 = vmatprep.subr.mxu0 0.0
        %1979 = vmatpush2.msra.mxu0 0.0
        %1980 = vmatprep.subr.mxu0 0.0
        %1981 = vmatpush2.msra.mxu0 0.0
        %1982 = vmatprep.subr.mxu0 0.0
        %1983 = vmatpush2.msra.mxu0 0.0
        %1984 = vmatprep.subr.mxu0 0.0
        %1985 = vmatpush2.msra.mxu0 0.0
        %1986 = vmatprep.subr.mxu0 0.0
        %1987 = vmatpush2.msra.mxu0 0.0
        %1988 = vmatprep.subr.mxu0 0.0
        %1989 = vmatpush2.msra.mxu0 0.0
        %1990 = vmatprep.subr.mxu0 0.0
        %1991 = vmatpush2.msra.mxu0 0.0
        %1992 = vmatprep.subr.mxu0 0.0
        %1993 = vmatpush2.msra.mxu0 0.0
        %1994 = vmatprep.subr.mxu0 0.0
        %1995 = vmatpush2.msra.mxu0 0.0
        %1996 = vmatprep.subr.mxu0 0.0
        %1997 = vmatpush2.msra.mxu0 0.0
        %1998 = vmatprep.subr.mxu0 0.0
        %1999 = vmatpush2.msra.mxu0 0.0
        %2000 = vmatprep.subr.mxu0 0.0
        %2001 = vmatpush2.msra.mxu0 0.0
        %2002 = vmatprep.subr.mxu0 0.0
        %2003 = vmatpush2.msra.mxu0 0.0
        %2004 = vmatprep.mubr.f32.mxu0 0.0
        %2005 = vmatmul.mubr.f32.gmra.mxu0 %v1929
        %v2006 = vpop.f32.mrf.mxu0
        %v2007 = vadd.f32 0.0, %v2006
        %v2008 = vpop.f32.mrf.mxu0
        %2009 = vmatprep.mubr.f32.mxu0 0.0
        %2010 = vmatmul.mubr.f32.gmra.mxu0 %v1932
        %v2011 = vpop.f32.mrf.mxu0
        %v2012 = vadd.f32 0.0, %v2011
        %v2013 = vpop.f32.mrf.mxu0
        %2014 = vmatprep.mubr.f32.mxu0 0.0
        %2015 = vmatmul.mubr.f32.gmra.mxu0 %v1935
        %v2016 = vpop.f32.mrf.mxu0
        %v2017 = vadd.f32 0.0, %v2016
        %v2018 = vpop.f32.mrf.mxu0
        %2019 = vmatprep.mubr.f32.mxu0 0.0
        %2020 = vmatmul.mubr.f32.gmra.mxu0 %v1938
        %v2021 = vpop.f32.mrf.mxu0
        %v2022 = vadd.f32 0.0, %v2021
        %v2023 = vpop.f32.mrf.mxu0
        %2024 = vdwg.mxu0
        %v2026 = vsel %vm599, %v1029, 0
        %v2029 = vsel %vm599, %v1105, 0
        %v2032 = vsel %vm599, %v1181, 0
        %v2035 = vsel %vm599, %v1257, 0
        %2037 = vmatprep.subr.mxu0 0.0
        %2038 = vmatpush1.msra.mxu0 0.0
        %2039 = vmatprep.subr.mxu0 0.0
        %2040 = vmatpush1.msra.mxu0 0.0
        %2041 = vmatprep.subr.mxu0 0.0
        %2042 = vmatpush1.msra.mxu0 0.0
        %2043 = vmatprep.subr.mxu0 0.0
        %2044 = vmatpush1.msra.mxu0 0.0
        %2045 = vmatprep.subr.mxu0 0.0
        %2046 = vmatpush1.msra.mxu0 0.0
        %2047 = vmatprep.subr.mxu0 0.0
        %2048 = vmatpush1.msra.mxu0 0.0
        %2049 = vmatprep.subr.mxu0 0.0
        %2050 = vmatpush1.msra.mxu0 0.0
        %2051 = vmatprep.subr.mxu0 0.0
        %2052 = vmatpush1.msra.mxu0 0.0
        %2053 = vmatprep.subr.mxu0 0.0
        %2054 = vmatpush1.msra.mxu0 0.0
        %2055 = vmatprep.subr.mxu0 0.0
        %2056 = vmatpush1.msra.mxu0 0.0
        %2057 = vmatprep.subr.mxu0 0.0
        %2058 = vmatpush1.msra.mxu0 0.0
        %2059 = vmatprep.subr.mxu0 0.0
        %2060 = vmatpush1.msra.mxu0 0.0
        %2061 = vmatprep.subr.mxu0 0.0
        %2062 = vmatpush1.msra.mxu0 0.0
        %2063 = vmatprep.subr.mxu0 0.0
        %2064 = vmatpush1.msra.mxu0 0.0
        %2065 = vmatprep.subr.mxu0 0.0
        %2066 = vmatpush1.msra.mxu0 0.0
        %2067 = vmatprep.subr.mxu0 0.0
        %2068 = vmatpush1.msra.mxu0 %v474
        %2069 = vmatprep.subr.mxu0 0.0
        %2070 = vmatpush2.msra.mxu0 0.0
        %2071 = vmatprep.subr.mxu0 0.0
        %2072 = vmatpush2.msra.mxu0 0.0
        %2073 = vmatprep.subr.mxu0 0.0
        %2074 = vmatpush2.msra.mxu0 0.0
        %2075 = vmatprep.subr.mxu0 0.0
        %2076 = vmatpush2.msra.mxu0 0.0
        %2077 = vmatprep.subr.mxu0 0.0
        %2078 = vmatpush2.msra.mxu0 0.0
        %2079 = vmatprep.subr.mxu0 0.0
        %2080 = vmatpush2.msra.mxu0 0.0
        %2081 = vmatprep.subr.mxu0 0.0
        %2082 = vmatpush2.msra.mxu0 0.0
        %2083 = vmatprep.subr.mxu0 0.0
        %2084 = vmatpush2.msra.mxu0 0.0
        %2085 = vmatprep.subr.mxu0 0.0
        %2086 = vmatpush2.msra.mxu0 0.0
        %2087 = vmatprep.subr.mxu0 0.0
        %2088 = vmatpush2.msra.mxu0 0.0
        %2089 = vmatprep.subr.mxu0 0.0
        %2090 = vmatpush2.msra.mxu0 0.0
        %2091 = vmatprep.subr.mxu0 0.0
        %2092 = vmatpush2.msra.mxu0 0.0
        %2093 = vmatprep.subr.mxu0 0.0
        %2094 = vmatpush2.msra.mxu0 0.0
        %2095 = vmatprep.subr.mxu0 0.0
        %2096 = vmatpush2.msra.mxu0 0.0
        %2097 = vmatprep.subr.mxu0 0.0
        %2098 = vmatpush2.msra.mxu0 0.0
        %2099 = vmatprep.subr.mxu0 0.0
        %2100 = vmatpush2.msra.mxu0 0.0
        %2101 = vmatprep.mubr.f32.mxu0 0.0
        %2102 = vmatmul.mubr.f32.gmra.mxu0 %v2026
        %v2103 = vpop.f32.mrf.mxu0
        %v2104 = vadd.f32 %v2007, %v2103
        %v2105 = vpop.f32.mrf.mxu0
        %2106 = vmatprep.mubr.f32.mxu0 0.0
        %2107 = vmatmul.mubr.f32.gmra.mxu0 %v2029
        %v2108 = vpop.f32.mrf.mxu0
        %v2109 = vadd.f32 %v2012, %v2108
        %v2110 = vpop.f32.mrf.mxu0
        %2111 = vmatprep.mubr.f32.mxu0 0.0
        %2112 = vmatmul.mubr.f32.gmra.mxu0 %v2032
        %v2113 = vpop.f32.mrf.mxu0
        %v2114 = vadd.f32 %v2017, %v2113
        %v2115 = vpop.f32.mrf.mxu0
        %2116 = vmatprep.mubr.f32.mxu0 0.0
        %2117 = vmatmul.mubr.f32.gmra.mxu0 %v2035
        %v2118 = vpop.f32.mrf.mxu0
        %v2119 = vadd.f32 %v2022, %v2118
        %v2120 = vpop.f32.mrf.mxu0
        %2121 = vdwg.mxu0
        %2122 = vrot.lane.b32.xlu0 %v581, 112
        %v2123 = vpop.permute.xlu0 %2122
        %2124 = vrot.lane.b32.xlu0 %v423, 112
        %v2125 = vpop.permute.xlu0 %2124
        %v2126 = vsel %vm599, %v2123, 0
        %v2128 = vsel %vm599, %v2125, 0
        %2130 = vmatprep.subr.mxu0 0.0
        %2131 = vmatpush1.xpose.msra.mxu0 0.0
        %2132 = vmatprep.subr.mxu0 0.0
        %2133 = vmatpush1.xpose.msra.mxu0 0.0
        %2134 = vmatprep.subr.mxu0 0.0
        %2135 = vmatpush1.xpose.msra.mxu0 0.0
        %2136 = vmatprep.subr.mxu0 0.0
        %2137 = vmatpush1.xpose.msra.mxu0 0.0
        %2138 = vmatprep.subr.mxu0 0.0
        %2139 = vmatpush1.xpose.msra.mxu0 0.0
        %2140 = vmatprep.subr.mxu0 0.0
        %2141 = vmatpush1.xpose.msra.mxu0 0.0
        %2142 = vmatprep.subr.mxu0 0.0
        %2143 = vmatpush1.xpose.msra.mxu0 0.0
        %2144 = vmatprep.subr.mxu0 0.0
        %2145 = vmatpush1.xpose.msra.mxu0 0.0
        %2146 = vmatprep.subr.mxu0 0.0
        %2147 = vmatpush1.xpose.msra.mxu0 0.0
        %2148 = vmatprep.subr.mxu0 0.0
        %2149 = vmatpush1.xpose.msra.mxu0 0.0
        %2150 = vmatprep.subr.mxu0 0.0
        %2151 = vmatpush1.xpose.msra.mxu0 0.0
        %2152 = vmatprep.subr.mxu0 0.0
        %2153 = vmatpush1.xpose.msra.mxu0 0.0
        %2154 = vmatprep.subr.mxu0 0.0
        %2155 = vmatpush1.xpose.msra.mxu0 0.0
        %2156 = vmatprep.subr.mxu0 0.0
        %2157 = vmatpush1.xpose.msra.mxu0 0.0
        %2158 = vmatprep.subr.mxu0 0.0
        %2159 = vmatpush1.xpose.msra.mxu0 0.0
        %2160 = vmatprep.subr.mxu0 0.0
        %2161 = vmatpush1.xpose.msra.mxu0 %v2128
        %2162 = vmatprep.subr.mxu0 0.0
        %2163 = vmatpush2.xpose.msra.mxu0 0.0
        %2164 = vmatprep.subr.mxu0 0.0
        %2165 = vmatpush2.xpose.msra.mxu0 0.0
        %2166 = vmatprep.subr.mxu0 0.0
        %2167 = vmatpush2.xpose.msra.mxu0 0.0
        %2168 = vmatprep.subr.mxu0 0.0
        %2169 = vmatpush2.xpose.msra.mxu0 0.0
        %2170 = vmatprep.subr.mxu0 0.0
        %2171 = vmatpush2.xpose.msra.mxu0 0.0
        %2172 = vmatprep.subr.mxu0 0.0
        %2173 = vmatpush2.xpose.msra.mxu0 0.0
        %2174 = vmatprep.subr.mxu0 0.0
        %2175 = vmatpush2.xpose.msra.mxu0 0.0
        %2176 = vmatprep.subr.mxu0 0.0
        %2177 = vmatpush2.xpose.msra.mxu0 0.0
        %2178 = vmatprep.subr.mxu0 0.0
        %2179 = vmatpush2.xpose.msra.mxu0 0.0
        %2180 = vmatprep.subr.mxu0 0.0
        %2181 = vmatpush2.xpose.msra.mxu0 0.0
        %2182 = vmatprep.subr.mxu0 0.0
        %2183 = vmatpush2.xpose.msra.mxu0 0.0
        %2184 = vmatprep.subr.mxu0 0.0
        %2185 = vmatpush2.xpose.msra.mxu0 0.0
        %2186 = vmatprep.subr.mxu0 0.0
        %2187 = vmatpush2.xpose.msra.mxu0 0.0
        %2188 = vmatprep.subr.mxu0 0.0
        %2189 = vmatpush2.xpose.msra.mxu0 0.0
        %2190 = vmatprep.subr.mxu0 0.0
        %2191 = vmatpush2.xpose.msra.mxu0 0.0
        %2192 = vmatprep.subr.mxu0 0.0
        %2193 = vmatpush2.xpose.msra.mxu0 0.0
        %2194 = vmatprep.mubr.f32.mxu0 0.0
        %2195 = vmatmul.mubr.f32.gmra.mxu0 %v2126
        %v2196 = vpop.f32.mrf.mxu0
        %v2197 = vadd.f32 0.0, %v2196
        %v2198 = vpop.f32.mrf.mxu0
        %2199 = vdwg.mxu0
        %2200 = vrot.lane.b32.xlu0 %v586, 112
        %v2201 = vpop.permute.xlu0 %2200
        %2202 = vrot.lane.b32.xlu0 %v428, 112
        %v2203 = vpop.permute.xlu0 %2202
        %v2204 = vsel %vm599, %v2201, 0
        %v2206 = vsel %vm599, %v2203, 0
        %2208 = vmatprep.subr.mxu0 0.0
        %2209 = vmatpush1.xpose.msra.mxu0 0.0
        %2210 = vmatprep.subr.mxu0 0.0
        %2211 = vmatpush1.xpose.msra.mxu0 0.0
        %2212 = vmatprep.subr.mxu0 0.0
        %2213 = vmatpush1.xpose.msra.mxu0 0.0
        %2214 = vmatprep.subr.mxu0 0.0
        %2215 = vmatpush1.xpose.msra.mxu0 0.0
        %2216 = vmatprep.subr.mxu0 0.0
        %2217 = vmatpush1.xpose.msra.mxu0 0.0
        %2218 = vmatprep.subr.mxu0 0.0
        %2219 = vmatpush1.xpose.msra.mxu0 0.0
        %2220 = vmatprep.subr.mxu0 0.0
        %2221 = vmatpush1.xpose.msra.mxu0 0.0
        %2222 = vmatprep.subr.mxu0 0.0
        %2223 = vmatpush1.xpose.msra.mxu0 0.0
        %2224 = vmatprep.subr.mxu0 0.0
        %2225 = vmatpush1.xpose.msra.mxu0 0.0
        %2226 = vmatprep.subr.mxu0 0.0
        %2227 = vmatpush1.xpose.msra.mxu0 0.0
        %2228 = vmatprep.subr.mxu0 0.0
        %2229 = vmatpush1.xpose.msra.mxu0 0.0
        %2230 = vmatprep.subr.mxu0 0.0
        %2231 = vmatpush1.xpose.msra.mxu0 0.0
        %2232 = vmatprep.subr.mxu0 0.0
        %2233 = vmatpush1.xpose.msra.mxu0 0.0
        %2234 = vmatprep.subr.mxu0 0.0
        %2235 = vmatpush1.xpose.msra.mxu0 0.0
        %2236 = vmatprep.subr.mxu0 0.0
        %2237 = vmatpush1.xpose.msra.mxu0 0.0
        %2238 = vmatprep.subr.mxu0 0.0
        %2239 = vmatpush1.xpose.msra.mxu0 %v2206
        %2240 = vmatprep.subr.mxu0 0.0
        %2241 = vmatpush2.xpose.msra.mxu0 0.0
        %2242 = vmatprep.subr.mxu0 0.0
        %2243 = vmatpush2.xpose.msra.mxu0 0.0
        %2244 = vmatprep.subr.mxu0 0.0
        %2245 = vmatpush2.xpose.msra.mxu0 0.0
        %2246 = vmatprep.subr.mxu0 0.0
        %2247 = vmatpush2.xpose.msra.mxu0 0.0
        %2248 = vmatprep.subr.mxu0 0.0
        %2249 = vmatpush2.xpose.msra.mxu0 0.0
        %2250 = vmatprep.subr.mxu0 0.0
        %2251 = vmatpush2.xpose.msra.mxu0 0.0
        %2252 = vmatprep.subr.mxu0 0.0
        %2253 = vmatpush2.xpose.msra.mxu0 0.0
        %2254 = vmatprep.subr.mxu0 0.0
        %2255 = vmatpush2.xpose.msra.mxu0 0.0
        %2256 = vmatprep.subr.mxu0 0.0
        %2257 = vmatpush2.xpose.msra.mxu0 0.0
        %2258 = vmatprep.subr.mxu0 0.0
        %2259 = vmatpush2.xpose.msra.mxu0 0.0
        %2260 = vmatprep.subr.mxu0 0.0
        %2261 = vmatpush2.xpose.msra.mxu0 0.0
        %2262 = vmatprep.subr.mxu0 0.0
        %2263 = vmatpush2.xpose.msra.mxu0 0.0
        %2264 = vmatprep.subr.mxu0 0.0
        %2265 = vmatpush2.xpose.msra.mxu0 0.0
        %2266 = vmatprep.subr.mxu0 0.0
        %2267 = vmatpush2.xpose.msra.mxu0 0.0
        %2268 = vmatprep.subr.mxu0 0.0
        %2269 = vmatpush2.xpose.msra.mxu0 0.0
        %2270 = vmatprep.subr.mxu0 0.0
        %2271 = vmatpush2.xpose.msra.mxu0 0.0
        %2272 = vmatprep.mubr.f32.mxu0 0.0
        %2273 = vmatmul.mubr.f32.gmra.mxu0 %v2204
        %v2274 = vpop.f32.mrf.mxu0
        %v2275 = vadd.f32 0.0, %v2274
        %v2276 = vpop.f32.mrf.mxu0
        %2277 = vdwg.mxu0
        %2278 = vrot.lane.b32.xlu0 %v591, 112
        %v2279 = vpop.permute.xlu0 %2278
        %2280 = vrot.lane.b32.xlu0 %v433, 112
        %v2281 = vpop.permute.xlu0 %2280
        %v2282 = vsel %vm599, %v2279, 0
        %v2284 = vsel %vm599, %v2281, 0
        %2286 = vmatprep.subr.mxu0 0.0
        %2287 = vmatpush1.xpose.msra.mxu0 0.0
        %2288 = vmatprep.subr.mxu0 0.0
        %2289 = vmatpush1.xpose.msra.mxu0 0.0
        %2290 = vmatprep.subr.mxu0 0.0
        %2291 = vmatpush1.xpose.msra.mxu0 0.0
        %2292 = vmatprep.subr.mxu0 0.0
        %2293 = vmatpush1.xpose.msra.mxu0 0.0
        %2294 = vmatprep.subr.mxu0 0.0
        %2295 = vmatpush1.xpose.msra.mxu0 0.0
        %2296 = vmatprep.subr.mxu0 0.0
        %2297 = vmatpush1.xpose.msra.mxu0 0.0
        %2298 = vmatprep.subr.mxu0 0.0
        %2299 = vmatpush1.xpose.msra.mxu0 0.0
        %2300 = vmatprep.subr.mxu0 0.0
        %2301 = vmatpush1.xpose.msra.mxu0 0.0
        %2302 = vmatprep.subr.mxu0 0.0
        %2303 = vmatpush1.xpose.msra.mxu0 0.0
        %2304 = vmatprep.subr.mxu0 0.0
        %2305 = vmatpush1.xpose.msra.mxu0 0.0
        %2306 = vmatprep.subr.mxu0 0.0
        %2307 = vmatpush1.xpose.msra.mxu0 0.0
        %2308 = vmatprep.subr.mxu0 0.0
        %2309 = vmatpush1.xpose.msra.mxu0 0.0
        %2310 = vmatprep.subr.mxu0 0.0
        %2311 = vmatpush1.xpose.msra.mxu0 0.0
        %2312 = vmatprep.subr.mxu0 0.0
        %2313 = vmatpush1.xpose.msra.mxu0 0.0
        %2314 = vmatprep.subr.mxu0 0.0
        %2315 = vmatpush1.xpose.msra.mxu0 0.0
        %2316 = vmatprep.subr.mxu0 0.0
        %2317 = vmatpush1.xpose.msra.mxu0 %v2284
        %2318 = vmatprep.subr.mxu0 0.0
        %2319 = vmatpush2.xpose.msra.mxu0 0.0
        %2320 = vmatprep.subr.mxu0 0.0
        %2321 = vmatpush2.xpose.msra.mxu0 0.0
        %2322 = vmatprep.subr.mxu0 0.0
        %2323 = vmatpush2.xpose.msra.mxu0 0.0
        %2324 = vmatprep.subr.mxu0 0.0
        %2325 = vmatpush2.xpose.msra.mxu0 0.0
        %2326 = vmatprep.subr.mxu0 0.0
        %2327 = vmatpush2.xpose.msra.mxu0 0.0
        %2328 = vmatprep.subr.mxu0 0.0
        %2329 = vmatpush2.xpose.msra.mxu0 0.0
        %2330 = vmatprep.subr.mxu0 0.0
        %2331 = vmatpush2.xpose.msra.mxu0 0.0
        %2332 = vmatprep.subr.mxu0 0.0
        %2333 = vmatpush2.xpose.msra.mxu0 0.0
        %2334 = vmatprep.subr.mxu0 0.0
        %2335 = vmatpush2.xpose.msra.mxu0 0.0
        %2336 = vmatprep.subr.mxu0 0.0
        %2337 = vmatpush2.xpose.msra.mxu0 0.0
        %2338 = vmatprep.subr.mxu0 0.0
        %2339 = vmatpush2.xpose.msra.mxu0 0.0
        %2340 = vmatprep.subr.mxu0 0.0
        %2341 = vmatpush2.xpose.msra.mxu0 0.0
        %2342 = vmatprep.subr.mxu0 0.0
        %2343 = vmatpush2.xpose.msra.mxu0 0.0
        %2344 = vmatprep.subr.mxu0 0.0
        %2345 = vmatpush2.xpose.msra.mxu0 0.0
        %2346 = vmatprep.subr.mxu0 0.0
        %2347 = vmatpush2.xpose.msra.mxu0 0.0
        %2348 = vmatprep.subr.mxu0 0.0
        %2349 = vmatpush2.xpose.msra.mxu0 0.0
        %2350 = vmatprep.mubr.f32.mxu0 0.0
        %2351 = vmatmul.mubr.f32.gmra.mxu0 %v2282
        %v2352 = vpop.f32.mrf.mxu0
        %v2353 = vadd.f32 0.0, %v2352
        %v2354 = vpop.f32.mrf.mxu0
        %2355 = vdwg.mxu0
        %2356 = vrot.lane.b32.xlu0 %v596, 112
        %v2357 = vpop.permute.xlu0 %2356
        %2358 = vrot.lane.b32.xlu0 %v438, 112
        %v2359 = vpop.permute.xlu0 %2358
        %v2360 = vsel %vm599, %v2357, 0
        %v2362 = vsel %vm599, %v2359, 0
        %2364 = vmatprep.subr.mxu0 0.0
        %2365 = vmatpush1.xpose.msra.mxu0 0.0
        %2366 = vmatprep.subr.mxu0 0.0
        %2367 = vmatpush1.xpose.msra.mxu0 0.0
        %2368 = vmatprep.subr.mxu0 0.0
        %2369 = vmatpush1.xpose.msra.mxu0 0.0
        %2370 = vmatprep.subr.mxu0 0.0
        %2371 = vmatpush1.xpose.msra.mxu0 0.0
        %2372 = vmatprep.subr.mxu0 0.0
        %2373 = vmatpush1.xpose.msra.mxu0 0.0
        %2374 = vmatprep.subr.mxu0 0.0
        %2375 = vmatpush1.xpose.msra.mxu0 0.0
        %2376 = vmatprep.subr.mxu0 0.0
        %2377 = vmatpush1.xpose.msra.mxu0 0.0
        %2378 = vmatprep.subr.mxu0 0.0
        %2379 = vmatpush1.xpose.msra.mxu0 0.0
        %2380 = vmatprep.subr.mxu0 0.0
        %2381 = vmatpush1.xpose.msra.mxu0 0.0
        %2382 = vmatprep.subr.mxu0 0.0
        %2383 = vmatpush1.xpose.msra.mxu0 0.0
        %2384 = vmatprep.subr.mxu0 0.0
        %2385 = vmatpush1.xpose.msra.mxu0 0.0
        %2386 = vmatprep.subr.mxu0 0.0
        %2387 = vmatpush1.xpose.msra.mxu0 0.0
        %2388 = vmatprep.subr.mxu0 0.0
        %2389 = vmatpush1.xpose.msra.mxu0 0.0
        %2390 = vmatprep.subr.mxu0 0.0
        %2391 = vmatpush1.xpose.msra.mxu0 0.0
        %2392 = vmatprep.subr.mxu0 0.0
        %2393 = vmatpush1.xpose.msra.mxu0 0.0
        %2394 = vmatprep.subr.mxu0 0.0
        %2395 = vmatpush1.xpose.msra.mxu0 %v2362
        %2396 = vmatprep.subr.mxu0 0.0
        %2397 = vmatpush2.xpose.msra.mxu0 0.0
        %2398 = vmatprep.subr.mxu0 0.0
        %2399 = vmatpush2.xpose.msra.mxu0 0.0
        %2400 = vmatprep.subr.mxu0 0.0
        %2401 = vmatpush2.xpose.msra.mxu0 0.0
        %2402 = vmatprep.subr.mxu0 0.0
        %2403 = vmatpush2.xpose.msra.mxu0 0.0
        %2404 = vmatprep.subr.mxu0 0.0
        %2405 = vmatpush2.xpose.msra.mxu0 0.0
        %2406 = vmatprep.subr.mxu0 0.0
        %2407 = vmatpush2.xpose.msra.mxu0 0.0
        %2408 = vmatprep.subr.mxu0 0.0
        %2409 = vmatpush2.xpose.msra.mxu0 0.0
        %2410 = vmatprep.subr.mxu0 0.0
        %2411 = vmatpush2.xpose.msra.mxu0 0.0
        %2412 = vmatprep.subr.mxu0 0.0
        %2413 = vmatpush2.xpose.msra.mxu0 0.0
        %2414 = vmatprep.subr.mxu0 0.0
        %2415 = vmatpush2.xpose.msra.mxu0 0.0
        %2416 = vmatprep.subr.mxu0 0.0
        %2417 = vmatpush2.xpose.msra.mxu0 0.0
        %2418 = vmatprep.subr.mxu0 0.0
        %2419 = vmatpush2.xpose.msra.mxu0 0.0
        %2420 = vmatprep.subr.mxu0 0.0
        %2421 = vmatpush2.xpose.msra.mxu0 0.0
        %2422 = vmatprep.subr.mxu0 0.0
        %2423 = vmatpush2.xpose.msra.mxu0 0.0
        %2424 = vmatprep.subr.mxu0 0.0
        %2425 = vmatpush2.xpose.msra.mxu0 0.0
        %2426 = vmatprep.subr.mxu0 0.0
        %2427 = vmatpush2.xpose.msra.mxu0 0.0
        %2428 = vmatprep.mubr.f32.mxu0 0.0
        %2429 = vmatmul.mubr.f32.gmra.mxu0 %v2360
        %v2430 = vpop.f32.mrf.mxu0
        %v2431 = vadd.f32 0.0, %v2430
        %v2432 = vpop.f32.mrf.mxu0
        %2433 = vdwg.mxu0
        %v2434 = vmul.f32 %v2197, 0.35355338
        %v2435 = vmul.f32 %v2275, 0.35355338
        %v2436 = vmul.f32 %v2353, 0.35355338
        %v2437 = vmul.f32 %v2431, 0.35355338
        %v2438 = vadd.f32 %v2434, %v451
        %v2439 = vadd.f32 %v2435, %v457
        %v2440 = vadd.f32 %v2436, %v463
        %v2441 = vadd.f32 %v2437, %v469
        %v2442 = vsel %vm599, %v2438, -inf
        %2443 = vmax.xlane.f32.xlu0 %v2442
        %v2444 = vpop.xlane.xlu0 %2443
        %v2445 = vsel %vm599, %v2439, -inf
        %2446 = vmax.xlane.f32.xlu0 %v2445
        %v2447 = vpop.xlane.xlu0 %2446
        %v2448 = vsel %vm599, %v2440, -inf
        %2449 = vmax.xlane.f32.xlu0 %v2448
        %v2450 = vpop.xlane.xlu0 %2449
        %v2451 = vsel %vm599, %v2441, -inf
        %2452 = vmax.xlane.f32.xlu0 %v2451
        %v2453 = vpop.xlane.xlu0 %2452
        %v2454 = vsub.f32 %v2438, %v2444
        %v2455 = vsub.f32 %v2439, %v2447
        %v2456 = vsub.f32 %v2440, %v2450
        %v2457 = vsub.f32 %v2441, %v2453
        %v2458 = vmul.f32 %v2454, 1.442695
        %v2459 = vpow.pop %v2458
        %v2460 = vmul.f32 %v2455, 1.442695
        %v2461 = vpow.pop %v2460
        %v2462 = vmul.f32 %v2456, 1.442695
        %v2463 = vpow.pop %v2462
        %v2464 = vmul.f32 %v2457, 1.442695
        %v2465 = vpow.pop %v2464
        %v2466 = vsel %vm599, %v2459, 0.0
        %2467 = vadd.xlane.f32.xlu0 %v2466
        %v2468 = vpop.xlane.xlu0 %2467
        %v2469 = vsel %vm599, %v2461, 0.0
        %2470 = vadd.xlane.f32.xlu0 %v2469
        %v2471 = vpop.xlane.xlu0 %2470
        %v2472 = vsel %vm599, %v2463, 0.0
        %2473 = vadd.xlane.f32.xlu0 %v2472
        %v2474 = vpop.xlane.xlu0 %2473
        %v2475 = vsel %vm599, %v2465, 0.0
        %2476 = vadd.xlane.f32.xlu0 %v2475
        %v2477 = vpop.xlane.xlu0 %2476
        %v2478 = vrcp.pop %v2468
        %v2479 = vmul.f32 %v2459, %v2478
        %v2480 = vrcp.pop %v2471
        %v2481 = vmul.f32 %v2461, %v2480
        %v2482 = vrcp.pop %v2474
        %v2483 = vmul.f32 %v2463, %v2482
        %v2484 = vrcp.pop %v2477
        %v2485 = vmul.f32 %v2465, %v2484
        %2486 = vrot.lane.b32.xlu0 %v423, 80
        %v2487 = vpop.permute.xlu0 %2486
        %v2490 = vsel %vm599, %v2479, 0
        %2492 = vmatprep.subr.mxu0 0.0
        %2493 = vmatpush1.msra.mxu0 0.0
        %2494 = vmatprep.subr.mxu0 0.0
        %2495 = vmatpush1.msra.mxu0 0.0
        %2496 = vmatprep.subr.mxu0 0.0
        %2497 = vmatpush1.msra.mxu0 0.0
        %2498 = vmatprep.subr.mxu0 0.0
        %2499 = vmatpush1.msra.mxu0 0.0
        %2500 = vmatprep.subr.mxu0 0.0
        %2501 = vmatpush1.msra.mxu0 0.0
        %2502 = vmatprep.subr.mxu0 0.0
        %2503 = vmatpush1.msra.mxu0 0.0
        %2504 = vmatprep.subr.mxu0 0.0
        %2505 = vmatpush1.msra.mxu0 0.0
        %2506 = vmatprep.subr.mxu0 0.0
        %2507 = vmatpush1.msra.mxu0 0.0
        %2508 = vmatprep.subr.mxu0 0.0
        %2509 = vmatpush1.msra.mxu0 0.0
        %2510 = vmatprep.subr.mxu0 0.0
        %2511 = vmatpush1.msra.mxu0 0.0
        %2512 = vmatprep.subr.mxu0 0.0
        %2513 = vmatpush1.msra.mxu0 0.0
        %2514 = vmatprep.subr.mxu0 0.0
        %2515 = vmatpush1.msra.mxu0 0.0
        %2516 = vmatprep.subr.mxu0 0.0
        %2517 = vmatpush1.msra.mxu0 0.0
        %2518 = vmatprep.subr.mxu0 0.0
        %2519 = vmatpush1.msra.mxu0 0.0
        %2520 = vmatprep.subr.mxu0 0.0
        %2521 = vmatpush1.msra.mxu0 0.0
        %2522 = vmatprep.subr.mxu0 0.0
        %2523 = vmatpush1.msra.mxu0 %v2487
        %2524 = vmatprep.subr.mxu0 0.0
        %2525 = vmatpush2.msra.mxu0 0.0
        %2526 = vmatprep.subr.mxu0 0.0
        %2527 = vmatpush2.msra.mxu0 0.0
        %2528 = vmatprep.subr.mxu0 0.0
        %2529 = vmatpush2.msra.mxu0 0.0
        %2530 = vmatprep.subr.mxu0 0.0
        %2531 = vmatpush2.msra.mxu0 0.0
        %2532 = vmatprep.subr.mxu0 0.0
        %2533 = vmatpush2.msra.mxu0 0.0
        %2534 = vmatprep.subr.mxu0 0.0
        %2535 = vmatpush2.msra.mxu0 0.0
        %2536 = vmatprep.subr.mxu0 0.0
        %2537 = vmatpush2.msra.mxu0 0.0
        %2538 = vmatprep.subr.mxu0 0.0
        %2539 = vmatpush2.msra.mxu0 0.0
        %2540 = vmatprep.subr.mxu0 0.0
        %2541 = vmatpush2.msra.mxu0 0.0
        %2542 = vmatprep.subr.mxu0 0.0
        %2543 = vmatpush2.msra.mxu0 0.0
        %2544 = vmatprep.subr.mxu0 0.0
        %2545 = vmatpush2.msra.mxu0 0.0
        %2546 = vmatprep.subr.mxu0 0.0
        %2547 = vmatpush2.msra.mxu0 0.0
        %2548 = vmatprep.subr.mxu0 0.0
        %2549 = vmatpush2.msra.mxu0 0.0
        %2550 = vmatprep.subr.mxu0 0.0
        %2551 = vmatpush2.msra.mxu0 0.0
        %2552 = vmatprep.subr.mxu0 0.0
        %2553 = vmatpush2.msra.mxu0 0.0
        %2554 = vmatprep.subr.mxu0 0.0
        %2555 = vmatpush2.msra.mxu0 0.0
        %2556 = vmatprep.mubr.f32.mxu0 0.0
        %2557 = vmatmul.mubr.f32.gmra.mxu0 %v2490
        %v2558 = vpop.f32.mrf.mxu0
        %v2559 = vadd.f32 0.0, %v2558
        %v2560 = vpop.f32.mrf.mxu0
        %2561 = vdwg.mxu0
        %2562 = vrot.lane.b32.xlu0 %v428, 80
        %v2563 = vpop.permute.xlu0 %2562
        %v2566 = vsel %vm599, %v2481, 0
        %2568 = vmatprep.subr.mxu0 0.0
        %2569 = vmatpush1.msra.mxu0 0.0
        %2570 = vmatprep.subr.mxu0 0.0
        %2571 = vmatpush1.msra.mxu0 0.0
        %2572 = vmatprep.subr.mxu0 0.0
        %2573 = vmatpush1.msra.mxu0 0.0
        %2574 = vmatprep.subr.mxu0 0.0
        %2575 = vmatpush1.msra.mxu0 0.0
        %2576 = vmatprep.subr.mxu0 0.0
        %2577 = vmatpush1.msra.mxu0 0.0
        %2578 = vmatprep.subr.mxu0 0.0
        %2579 = vmatpush1.msra.mxu0 0.0
        %2580 = vmatprep.subr.mxu0 0.0
        %2581 = vmatpush1.msra.mxu0 0.0
        %2582 = vmatprep.subr.mxu0 0.0
        %2583 = vmatpush1.msra.mxu0 0.0
        %2584 = vmatprep.subr.mxu0 0.0
        %2585 = vmatpush1.msra.mxu0 0.0
        %2586 = vmatprep.subr.mxu0 0.0
        %2587 = vmatpush1.msra.mxu0 0.0
        %2588 = vmatprep.subr.mxu0 0.0
        %2589 = vmatpush1.msra.mxu0 0.0
        %2590 = vmatprep.subr.mxu0 0.0
        %2591 = vmatpush1.msra.mxu0 0.0
        %2592 = vmatprep.subr.mxu0 0.0
        %2593 = vmatpush1.msra.mxu0 0.0
        %2594 = vmatprep.subr.mxu0 0.0
        %2595 = vmatpush1.msra.mxu0 0.0
        %2596 = vmatprep.subr.mxu0 0.0
        %2597 = vmatpush1.msra.mxu0 0.0
        %2598 = vmatprep.subr.mxu0 0.0
        %2599 = vmatpush1.msra.mxu0 %v2563
        %2600 = vmatprep.subr.mxu0 0.0
        %2601 = vmatpush2.msra.mxu0 0.0
        %2602 = vmatprep.subr.mxu0 0.0
        %2603 = vmatpush2.msra.mxu0 0.0
        %2604 = vmatprep.subr.mxu0 0.0
        %2605 = vmatpush2.msra.mxu0 0.0
        %2606 = vmatprep.subr.mxu0 0.0
        %2607 = vmatpush2.msra.mxu0 0.0
        %2608 = vmatprep.subr.mxu0 0.0
        %2609 = vmatpush2.msra.mxu0 0.0
        %2610 = vmatprep.subr.mxu0 0.0
        %2611 = vmatpush2.msra.mxu0 0.0
        %2612 = vmatprep.subr.mxu0 0.0
        %2613 = vmatpush2.msra.mxu0 0.0
        %2614 = vmatprep.subr.mxu0 0.0
        %2615 = vmatpush2.msra.mxu0 0.0
        %2616 = vmatprep.subr.mxu0 0.0
        %2617 = vmatpush2.msra.mxu0 0.0
        %2618 = vmatprep.subr.mxu0 0.0
        %2619 = vmatpush2.msra.mxu0 0.0
        %2620 = vmatprep.subr.mxu0 0.0
        %2621 = vmatpush2.msra.mxu0 0.0
        %2622 = vmatprep.subr.mxu0 0.0
        %2623 = vmatpush2.msra.mxu0 0.0
        %2624 = vmatprep.subr.mxu0 0.0
        %2625 = vmatpush2.msra.mxu0 0.0
        %2626 = vmatprep.subr.mxu0 0.0
        %2627 = vmatpush2.msra.mxu0 0.0
        %2628 = vmatprep.subr.mxu0 0.0
        %2629 = vmatpush2.msra.mxu0 0.0
        %2630 = vmatprep.subr.mxu0 0.0
        %2631 = vmatpush2.msra.mxu0 0.0
        %2632 = vmatprep.mubr.f32.mxu0 0.0
        %2633 = vmatmul.mubr.f32.gmra.mxu0 %v2566
        %v2634 = vpop.f32.mrf.mxu0
        %v2635 = vadd.f32 0.0, %v2634
        %v2636 = vpop.f32.mrf.mxu0
        %2637 = vdwg.mxu0
        %2638 = vrot.lane.b32.xlu0 %v433, 80
        %v2639 = vpop.permute.xlu0 %2638
        %v2642 = vsel %vm599, %v2483, 0
        %2644 = vmatprep.subr.mxu0 0.0
        %2645 = vmatpush1.msra.mxu0 0.0
        %2646 = vmatprep.subr.mxu0 0.0
        %2647 = vmatpush1.msra.mxu0 0.0
        %2648 = vmatprep.subr.mxu0 0.0
        %2649 = vmatpush1.msra.mxu0 0.0
        %2650 = vmatprep.subr.mxu0 0.0
        %2651 = vmatpush1.msra.mxu0 0.0
        %2652 = vmatprep.subr.mxu0 0.0
        %2653 = vmatpush1.msra.mxu0 0.0
        %2654 = vmatprep.subr.mxu0 0.0
        %2655 = vmatpush1.msra.mxu0 0.0
        %2656 = vmatprep.subr.mxu0 0.0
        %2657 = vmatpush1.msra.mxu0 0.0
        %2658 = vmatprep.subr.mxu0 0.0
        %2659 = vmatpush1.msra.mxu0 0.0
        %2660 = vmatprep.subr.mxu0 0.0
        %2661 = vmatpush1.msra.mxu0 0.0
        %2662 = vmatprep.subr.mxu0 0.0
        %2663 = vmatpush1.msra.mxu0 0.0
        %2664 = vmatprep.subr.mxu0 0.0
        %2665 = vmatpush1.msra.mxu0 0.0
        %2666 = vmatprep.subr.mxu0 0.0
        %2667 = vmatpush1.msra.mxu0 0.0
        %2668 = vmatprep.subr.mxu0 0.0
        %2669 = vmatpush1.msra.mxu0 0.0
        %2670 = vmatprep.subr.mxu0 0.0
        %2671 = vmatpush1.msra.mxu0 0.0
        %2672 = vmatprep.subr.mxu0 0.0
        %2673 = vmatpush1.msra.mxu0 0.0
        %2674 = vmatprep.subr.mxu0 0.0
        %2675 = vmatpush1.msra.mxu0 %v2639
        %2676 = vmatprep.subr.mxu0 0.0
        %2677 = vmatpush2.msra.mxu0 0.0
        %2678 = vmatprep.subr.mxu0 0.0
        %2679 = vmatpush2.msra.mxu0 0.0
        %2680 = vmatprep.subr.mxu0 0.0
        %2681 = vmatpush2.msra.mxu0 0.0
        %2682 = vmatprep.subr.mxu0 0.0
        %2683 = vmatpush2.msra.mxu0 0.0
        %2684 = vmatprep.subr.mxu0 0.0
        %2685 = vmatpush2.msra.mxu0 0.0
        %2686 = vmatprep.subr.mxu0 0.0
        %2687 = vmatpush2.msra.mxu0 0.0
        %2688 = vmatprep.subr.mxu0 0.0
        %2689 = vmatpush2.msra.mxu0 0.0
        %2690 = vmatprep.subr.mxu0 0.0
        %2691 = vmatpush2.msra.mxu0 0.0
        %2692 = vmatprep.subr.mxu0 0.0
        %2693 = vmatpush2.msra.mxu0 0.0
        %2694 = vmatprep.subr.mxu0 0.0
        %2695 = vmatpush2.msra.mxu0 0.0
        %2696 = vmatprep.subr.mxu0 0.0
        %2697 = vmatpush2.msra.mxu0 0.0
        %2698 = vmatprep.subr.mxu0 0.0
        %2699 = vmatpush2.msra.mxu0 0.0
        %2700 = vmatprep.subr.mxu0 0.0
        %2701 = vmatpush2.msra.mxu0 0.0
        %2702 = vmatprep.subr.mxu0 0.0
        %2703 = vmatpush2.msra.mxu0 0.0
        %2704 = vmatprep.subr.mxu0 0.0
        %2705 = vmatpush2.msra.mxu0 0.0
        %2706 = vmatprep.subr.mxu0 0.0
        %2707 = vmatpush2.msra.mxu0 0.0
        %2708 = vmatprep.mubr.f32.mxu0 0.0
        %2709 = vmatmul.mubr.f32.gmra.mxu0 %v2642
        %v2710 = vpop.f32.mrf.mxu0
        %v2711 = vadd.f32 0.0, %v2710
        %v2712 = vpop.f32.mrf.mxu0
        %2713 = vdwg.mxu0
        %2714 = vrot.lane.b32.xlu0 %v438, 80
        %v2715 = vpop.permute.xlu0 %2714
        %v2718 = vsel %vm599, %v2485, 0
        %2720 = vmatprep.subr.mxu0 0.0
        %2721 = vmatpush1.msra.mxu0 0.0
        %2722 = vmatprep.subr.mxu0 0.0
        %2723 = vmatpush1.msra.mxu0 0.0
        %2724 = vmatprep.subr.mxu0 0.0
        %2725 = vmatpush1.msra.mxu0 0.0
        %2726 = vmatprep.subr.mxu0 0.0
        %2727 = vmatpush1.msra.mxu0 0.0
        %2728 = vmatprep.subr.mxu0 0.0
        %2729 = vmatpush1.msra.mxu0 0.0
        %2730 = vmatprep.subr.mxu0 0.0
        %2731 = vmatpush1.msra.mxu0 0.0
        %2732 = vmatprep.subr.mxu0 0.0
        %2733 = vmatpush1.msra.mxu0 0.0
        %2734 = vmatprep.subr.mxu0 0.0
        %2735 = vmatpush1.msra.mxu0 0.0
        %2736 = vmatprep.subr.mxu0 0.0
        %2737 = vmatpush1.msra.mxu0 0.0
        %2738 = vmatprep.subr.mxu0 0.0
        %2739 = vmatpush1.msra.mxu0 0.0
        %2740 = vmatprep.subr.mxu0 0.0
        %2741 = vmatpush1.msra.mxu0 0.0
        %2742 = vmatprep.subr.mxu0 0.0
        %2743 = vmatpush1.msra.mxu0 0.0
        %2744 = vmatprep.subr.mxu0 0.0
        %2745 = vmatpush1.msra.mxu0 0.0
        %2746 = vmatprep.subr.mxu0 0.0
        %2747 = vmatpush1.msra.mxu0 0.0
        %2748 = vmatprep.subr.mxu0 0.0
        %2749 = vmatpush1.msra.mxu0 0.0
        %2750 = vmatprep.subr.mxu0 0.0
        %2751 = vmatpush1.msra.mxu0 %v2715
        %2752 = vmatprep.subr.mxu0 0.0
        %2753 = vmatpush2.msra.mxu0 0.0
        %2754 = vmatprep.subr.mxu0 0.0
        %2755 = vmatpush2.msra.mxu0 0.0
        %2756 = vmatprep.subr.mxu0 0.0
        %2757 = vmatpush2.msra.mxu0 0.0
        %2758 = vmatprep.subr.mxu0 0.0
        %2759 = vmatpush2.msra.mxu0 0.0
        %2760 = vmatprep.subr.mxu0 0.0
        %2761 = vmatpush2.msra.mxu0 0.0
        %2762 = vmatprep.subr.mxu0 0.0
        %2763 = vmatpush2.msra.mxu0 0.0
        %2764 = vmatprep.subr.mxu0 0.0
        %2765 = vmatpush2.msra.mxu0 0.0
        %2766 = vmatprep.subr.mxu0 0.0
        %2767 = vmatpush2.msra.mxu0 0.0
        %2768 = vmatprep.subr.mxu0 0.0
        %2769 = vmatpush2.msra.mxu0 0.0
        %2770 = vmatprep.subr.mxu0 0.0
        %2771 = vmatpush2.msra.mxu0 0.0
        %2772 = vmatprep.subr.mxu0 0.0
        %2773 = vmatpush2.msra.mxu0 0.0
        %2774 = vmatprep.subr.mxu0 0.0
        %2775 = vmatpush2.msra.mxu0 0.0
        %2776 = vmatprep.subr.mxu0 0.0
        %2777 = vmatpush2.msra.mxu0 0.0
        %2778 = vmatprep.subr.mxu0 0.0
        %2779 = vmatpush2.msra.mxu0 0.0
        %2780 = vmatprep.subr.mxu0 0.0
        %2781 = vmatpush2.msra.mxu0 0.0
        %2782 = vmatprep.subr.mxu0 0.0
        %2783 = vmatpush2.msra.mxu0 0.0
        %2784 = vmatprep.mubr.f32.mxu0 0.0
        %2785 = vmatmul.mubr.f32.gmra.mxu0 %v2718
        %v2786 = vpop.f32.mrf.mxu0
        %v2787 = vadd.f32 0.0, %v2786
        %v2788 = vpop.f32.mrf.mxu0
        %2789 = vdwg.mxu0
        %v2791 = vsel %vm599, %v2559, 0
        %v2794 = vsel %vm599, %v2635, 0
        %v2797 = vsel %vm599, %v2711, 0
        %v2800 = vsel %vm599, %v2787, 0
        %2802 = vmatprep.subr.mxu0 0.0
        %2803 = vmatpush1.msra.mxu0 0.0
        %2804 = vmatprep.subr.mxu0 0.0
        %2805 = vmatpush1.msra.mxu0 0.0
        %2806 = vmatprep.subr.mxu0 0.0
        %2807 = vmatpush1.msra.mxu0 0.0
        %2808 = vmatprep.subr.mxu0 0.0
        %2809 = vmatpush1.msra.mxu0 0.0
        %2810 = vmatprep.subr.mxu0 0.0
        %2811 = vmatpush1.msra.mxu0 0.0
        %2812 = vmatprep.subr.mxu0 0.0
        %2813 = vmatpush1.msra.mxu0 0.0
        %2814 = vmatprep.subr.mxu0 0.0
        %2815 = vmatpush1.msra.mxu0 0.0
        %2816 = vmatprep.subr.mxu0 0.0
        %2817 = vmatpush1.msra.mxu0 0.0
        %2818 = vmatprep.subr.mxu0 0.0
        %2819 = vmatpush1.msra.mxu0 0.0
        %2820 = vmatprep.subr.mxu0 0.0
        %2821 = vmatpush1.msra.mxu0 0.0
        %2822 = vmatprep.subr.mxu0 0.0
        %2823 = vmatpush1.msra.mxu0 0.0
        %2824 = vmatprep.subr.mxu0 0.0
        %2825 = vmatpush1.msra.mxu0 0.0
        %2826 = vmatprep.subr.mxu0 0.0
        %2827 = vmatpush1.msra.mxu0 0.0
        %2828 = vmatprep.subr.mxu0 0.0
        %2829 = vmatpush1.msra.mxu0 0.0
        %2830 = vmatprep.subr.mxu0 0.0
        %2831 = vmatpush1.msra.mxu0 0.0
        %2832 = vmatprep.subr.mxu0 0.0
        %2833 = vmatpush1.msra.mxu0 %v476
        %2834 = vmatprep.subr.mxu0 0.0
        %2835 = vmatpush2.msra.mxu0 0.0
        %2836 = vmatprep.subr.mxu0 0.0
        %2837 = vmatpush2.msra.mxu0 0.0
        %2838 = vmatprep.subr.mxu0 0.0
        %2839 = vmatpush2.msra.mxu0 0.0
        %2840 = vmatprep.subr.mxu0 0.0
        %2841 = vmatpush2.msra.mxu0 0.0
        %2842 = vmatprep.subr.mxu0 0.0
        %2843 = vmatpush2.msra.mxu0 0.0
        %2844 = vmatprep.subr.mxu0 0.0
        %2845 = vmatpush2.msra.mxu0 0.0
        %2846 = vmatprep.subr.mxu0 0.0
        %2847 = vmatpush2.msra.mxu0 0.0
        %2848 = vmatprep.subr.mxu0 0.0
        %2849 = vmatpush2.msra.mxu0 0.0
        %2850 = vmatprep.subr.mxu0 0.0
        %2851 = vmatpush2.msra.mxu0 0.0
        %2852 = vmatprep.subr.mxu0 0.0
        %2853 = vmatpush2.msra.mxu0 0.0
        %2854 = vmatprep.subr.mxu0 0.0
        %2855 = vmatpush2.msra.mxu0 0.0
        %2856 = vmatprep.subr.mxu0 0.0
        %2857 = vmatpush2.msra.mxu0 0.0
        %2858 = vmatprep.subr.mxu0 0.0
        %2859 = vmatpush2.msra.mxu0 0.0
        %2860 = vmatprep.subr.mxu0 0.0
        %2861 = vmatpush2.msra.mxu0 0.0
        %2862 = vmatprep.subr.mxu0 0.0
        %2863 = vmatpush2.msra.mxu0 0.0
        %2864 = vmatprep.subr.mxu0 0.0
        %2865 = vmatpush2.msra.mxu0 0.0
        %2866 = vmatprep.mubr.f32.mxu0 0.0
        %2867 = vmatmul.mubr.f32.gmra.mxu0 %v2791
        %v2868 = vpop.f32.mrf.mxu0
        %v2869 = vadd.f32 0.0, %v2868
        %v2870 = vpop.f32.mrf.mxu0
        %2871 = vmatprep.mubr.f32.mxu0 0.0
        %2872 = vmatmul.mubr.f32.gmra.mxu0 %v2794
        %v2873 = vpop.f32.mrf.mxu0
        %v2874 = vadd.f32 0.0, %v2873
        %v2875 = vpop.f32.mrf.mxu0
        %2876 = vmatprep.mubr.f32.mxu0 0.0
        %2877 = vmatmul.mubr.f32.gmra.mxu0 %v2797
        %v2878 = vpop.f32.mrf.mxu0
        %v2879 = vadd.f32 0.0, %v2878
        %v2880 = vpop.f32.mrf.mxu0
        %2881 = vmatprep.mubr.f32.mxu0 0.0
        %2882 = vmatmul.mubr.f32.gmra.mxu0 %v2800
        %v2883 = vpop.f32.mrf.mxu0
        %v2884 = vadd.f32 0.0, %v2883
        %v2885 = vpop.f32.mrf.mxu0
        %2886 = vdwg.mxu0
        %v2887 = vadd.f32 %v2104, %v2869
        %v2888 = vadd.f32 %v2109, %v2874
        %v2889 = vadd.f32 %v2114, %v2879
        %v2890 = vadd.f32 %v2119, %v2884
        %2891 = vrot.lane.b32.xlu0 %v581, 104
        %v2892 = vpop.permute.xlu0 %2891
        %2893 = vrot.lane.b32.xlu0 %v423, 104
        %v2894 = vpop.permute.xlu0 %2893
        %v2895 = vsel %vm599, %v2892, 0
        %v2897 = vsel %vm599, %v2894, 0
        %2899 = vmatprep.subr.mxu0 0.0
        %2900 = vmatpush1.xpose.msra.mxu0 0.0
        %2901 = vmatprep.subr.mxu0 0.0
        %2902 = vmatpush1.xpose.msra.mxu0 0.0
        %2903 = vmatprep.subr.mxu0 0.0
        %2904 = vmatpush1.xpose.msra.mxu0 0.0
        %2905 = vmatprep.subr.mxu0 0.0
        %2906 = vmatpush1.xpose.msra.mxu0 0.0
        %2907 = vmatprep.subr.mxu0 0.0
        %2908 = vmatpush1.xpose.msra.mxu0 0.0
        %2909 = vmatprep.subr.mxu0 0.0
        %2910 = vmatpush1.xpose.msra.mxu0 0.0
        %2911 = vmatprep.subr.mxu0 0.0
        %2912 = vmatpush1.xpose.msra.mxu0 0.0
        %2913 = vmatprep.subr.mxu0 0.0
        %2914 = vmatpush1.xpose.msra.mxu0 0.0
        %2915 = vmatprep.subr.mxu0 0.0
        %2916 = vmatpush1.xpose.msra.mxu0 0.0
        %2917 = vmatprep.subr.mxu0 0.0
        %2918 = vmatpush1.xpose.msra.mxu0 0.0
        %2919 = vmatprep.subr.mxu0 0.0
        %2920 = vmatpush1.xpose.msra.mxu0 0.0
        %2921 = vmatprep.subr.mxu0 0.0
        %2922 = vmatpush1.xpose.msra.mxu0 0.0
        %2923 = vmatprep.subr.mxu0 0.0
        %2924 = vmatpush1.xpose.msra.mxu0 0.0
        %2925 = vmatprep.subr.mxu0 0.0
        %2926 = vmatpush1.xpose.msra.mxu0 0.0
        %2927 = vmatprep.subr.mxu0 0.0
        %2928 = vmatpush1.xpose.msra.mxu0 0.0
        %2929 = vmatprep.subr.mxu0 0.0
        %2930 = vmatpush1.xpose.msra.mxu0 %v2897
        %2931 = vmatprep.subr.mxu0 0.0
        %2932 = vmatpush2.xpose.msra.mxu0 0.0
        %2933 = vmatprep.subr.mxu0 0.0
        %2934 = vmatpush2.xpose.msra.mxu0 0.0
        %2935 = vmatprep.subr.mxu0 0.0
        %2936 = vmatpush2.xpose.msra.mxu0 0.0
        %2937 = vmatprep.subr.mxu0 0.0
        %2938 = vmatpush2.xpose.msra.mxu0 0.0
        %2939 = vmatprep.subr.mxu0 0.0
        %2940 = vmatpush2.xpose.msra.mxu0 0.0
        %2941 = vmatprep.subr.mxu0 0.0
        %2942 = vmatpush2.xpose.msra.mxu0 0.0
        %2943 = vmatprep.subr.mxu0 0.0
        %2944 = vmatpush2.xpose.msra.mxu0 0.0
        %2945 = vmatprep.subr.mxu0 0.0
        %2946 = vmatpush2.xpose.msra.mxu0 0.0
        %2947 = vmatprep.subr.mxu0 0.0
        %2948 = vmatpush2.xpose.msra.mxu0 0.0
        %2949 = vmatprep.subr.mxu0 0.0
        %2950 = vmatpush2.xpose.msra.mxu0 0.0
        %2951 = vmatprep.subr.mxu0 0.0
        %2952 = vmatpush2.xpose.msra.mxu0 0.0
        %2953 = vmatprep.subr.mxu0 0.0
        %2954 = vmatpush2.xpose.msra.mxu0 0.0
        %2955 = vmatprep.subr.mxu0 0.0
        %2956 = vmatpush2.xpose.msra.mxu0 0.0
        %2957 = vmatprep.subr.mxu0 0.0
        %2958 = vmatpush2.xpose.msra.mxu0 0.0
        %2959 = vmatprep.subr.mxu0 0.0
        %2960 = vmatpush2.xpose.msra.mxu0 0.0
        %2961 = vmatprep.subr.mxu0 0.0
        %2962 = vmatpush2.xpose.msra.mxu0 0.0
        %2963 = vmatprep.mubr.f32.mxu0 0.0
        %2964 = vmatmul.mubr.f32.gmra.mxu0 %v2895
        %v2965 = vpop.f32.mrf.mxu0
        %v2966 = vadd.f32 0.0, %v2965
        %v2967 = vpop.f32.mrf.mxu0
        %2968 = vdwg.mxu0
        %2969 = vrot.lane.b32.xlu0 %v586, 104
        %v2970 = vpop.permute.xlu0 %2969
        %2971 = vrot.lane.b32.xlu0 %v428, 104
        %v2972 = vpop.permute.xlu0 %2971
        %v2973 = vsel %vm599, %v2970, 0
        %v2975 = vsel %vm599, %v2972, 0
        %2977 = vmatprep.subr.mxu0 0.0
        %2978 = vmatpush1.xpose.msra.mxu0 0.0
        %2979 = vmatprep.subr.mxu0 0.0
        %2980 = vmatpush1.xpose.msra.mxu0 0.0
        %2981 = vmatprep.subr.mxu0 0.0
        %2982 = vmatpush1.xpose.msra.mxu0 0.0
        %2983 = vmatprep.subr.mxu0 0.0
        %2984 = vmatpush1.xpose.msra.mxu0 0.0
        %2985 = vmatprep.subr.mxu0 0.0
        %2986 = vmatpush1.xpose.msra.mxu0 0.0
        %2987 = vmatprep.subr.mxu0 0.0
        %2988 = vmatpush1.xpose.msra.mxu0 0.0
        %2989 = vmatprep.subr.mxu0 0.0
        %2990 = vmatpush1.xpose.msra.mxu0 0.0
        %2991 = vmatprep.subr.mxu0 0.0
        %2992 = vmatpush1.xpose.msra.mxu0 0.0
        %2993 = vmatprep.subr.mxu0 0.0
        %2994 = vmatpush1.xpose.msra.mxu0 0.0
        %2995 = vmatprep.subr.mxu0 0.0
        %2996 = vmatpush1.xpose.msra.mxu0 0.0
        %2997 = vmatprep.subr.mxu0 0.0
        %2998 = vmatpush1.xpose.msra.mxu0 0.0
        %2999 = vmatprep.subr.mxu0 0.0
        %3000 = vmatpush1.xpose.msra.mxu0 0.0
        %3001 = vmatprep.subr.mxu0 0.0
        %3002 = vmatpush1.xpose.msra.mxu0 0.0
        %3003 = vmatprep.subr.mxu0 0.0
        %3004 = vmatpush1.xpose.msra.mxu0 0.0
        %3005 = vmatprep.subr.mxu0 0.0
        %3006 = vmatpush1.xpose.msra.mxu0 0.0
        %3007 = vmatprep.subr.mxu0 0.0
        %3008 = vmatpush1.xpose.msra.mxu0 %v2975
        %3009 = vmatprep.subr.mxu0 0.0
        %3010 = vmatpush2.xpose.msra.mxu0 0.0
        %3011 = vmatprep.subr.mxu0 0.0
        %3012 = vmatpush2.xpose.msra.mxu0 0.0
        %3013 = vmatprep.subr.mxu0 0.0
        %3014 = vmatpush2.xpose.msra.mxu0 0.0
        %3015 = vmatprep.subr.mxu0 0.0
        %3016 = vmatpush2.xpose.msra.mxu0 0.0
        %3017 = vmatprep.subr.mxu0 0.0
        %3018 = vmatpush2.xpose.msra.mxu0 0.0
        %3019 = vmatprep.subr.mxu0 0.0
        %3020 = vmatpush2.xpose.msra.mxu0 0.0
        %3021 = vmatprep.subr.mxu0 0.0
        %3022 = vmatpush2.xpose.msra.mxu0 0.0
        %3023 = vmatprep.subr.mxu0 0.0
        %3024 = vmatpush2.xpose.msra.mxu0 0.0
        %3025 = vmatprep.subr.mxu0 0.0
        %3026 = vmatpush2.xpose.msra.mxu0 0.0
        %3027 = vmatprep.subr.mxu0 0.0
        %3028 = vmatpush2.xpose.msra.mxu0 0.0
        %3029 = vmatprep.subr.mxu0 0.0
        %3030 = vmatpush2.xpose.msra.mxu0 0.0
        %3031 = vmatprep.subr.mxu0 0.0
        %3032 = vmatpush2.xpose.msra.mxu0 0.0
        %3033 = vmatprep.subr.mxu0 0.0
        %3034 = vmatpush2.xpose.msra.mxu0 0.0
        %3035 = vmatprep.subr.mxu0 0.0
        %3036 = vmatpush2.xpose.msra.mxu0 0.0
        %3037 = vmatprep.subr.mxu0 0.0
        %3038 = vmatpush2.xpose.msra.mxu0 0.0
        %3039 = vmatprep.subr.mxu0 0.0
        %3040 = vmatpush2.xpose.msra.mxu0 0.0
        %3041 = vmatprep.mubr.f32.mxu0 0.0
        %3042 = vmatmul.mubr.f32.gmra.mxu0 %v2973
        %v3043 = vpop.f32.mrf.mxu0
        %v3044 = vadd.f32 0.0, %v3043
        %v3045 = vpop.f32.mrf.mxu0
        %3046 = vdwg.mxu0
        %3047 = vrot.lane.b32.xlu0 %v591, 104
        %v3048 = vpop.permute.xlu0 %3047
        %3049 = vrot.lane.b32.xlu0 %v433, 104
        %v3050 = vpop.permute.xlu0 %3049
        %v3051 = vsel %vm599, %v3048, 0
        %v3053 = vsel %vm599, %v3050, 0
        %3055 = vmatprep.subr.mxu0 0.0
        %3056 = vmatpush1.xpose.msra.mxu0 0.0
        %3057 = vmatprep.subr.mxu0 0.0
        %3058 = vmatpush1.xpose.msra.mxu0 0.0
        %3059 = vmatprep.subr.mxu0 0.0
        %3060 = vmatpush1.xpose.msra.mxu0 0.0
        %3061 = vmatprep.subr.mxu0 0.0
        %3062 = vmatpush1.xpose.msra.mxu0 0.0
        %3063 = vmatprep.subr.mxu0 0.0
        %3064 = vmatpush1.xpose.msra.mxu0 0.0
        %3065 = vmatprep.subr.mxu0 0.0
        %3066 = vmatpush1.xpose.msra.mxu0 0.0
        %3067 = vmatprep.subr.mxu0 0.0
        %3068 = vmatpush1.xpose.msra.mxu0 0.0
        %3069 = vmatprep.subr.mxu0 0.0
        %3070 = vmatpush1.xpose.msra.mxu0 0.0
        %3071 = vmatprep.subr.mxu0 0.0
        %3072 = vmatpush1.xpose.msra.mxu0 0.0
        %3073 = vmatprep.subr.mxu0 0.0
        %3074 = vmatpush1.xpose.msra.mxu0 0.0
        %3075 = vmatprep.subr.mxu0 0.0
        %3076 = vmatpush1.xpose.msra.mxu0 0.0
        %3077 = vmatprep.subr.mxu0 0.0
        %3078 = vmatpush1.xpose.msra.mxu0 0.0
        %3079 = vmatprep.subr.mxu0 0.0
        %3080 = vmatpush1.xpose.msra.mxu0 0.0
        %3081 = vmatprep.subr.mxu0 0.0
        %3082 = vmatpush1.xpose.msra.mxu0 0.0
        %3083 = vmatprep.subr.mxu0 0.0
        %3084 = vmatpush1.xpose.msra.mxu0 0.0
        %3085 = vmatprep.subr.mxu0 0.0
        %3086 = vmatpush1.xpose.msra.mxu0 %v3053
        %3087 = vmatprep.subr.mxu0 0.0
        %3088 = vmatpush2.xpose.msra.mxu0 0.0
        %3089 = vmatprep.subr.mxu0 0.0
        %3090 = vmatpush2.xpose.msra.mxu0 0.0
        %3091 = vmatprep.subr.mxu0 0.0
        %3092 = vmatpush2.xpose.msra.mxu0 0.0
        %3093 = vmatprep.subr.mxu0 0.0
        %3094 = vmatpush2.xpose.msra.mxu0 0.0
        %3095 = vmatprep.subr.mxu0 0.0
        %3096 = vmatpush2.xpose.msra.mxu0 0.0
        %3097 = vmatprep.subr.mxu0 0.0
        %3098 = vmatpush2.xpose.msra.mxu0 0.0
        %3099 = vmatprep.subr.mxu0 0.0
        %3100 = vmatpush2.xpose.msra.mxu0 0.0
        %3101 = vmatprep.subr.mxu0 0.0
        %3102 = vmatpush2.xpose.msra.mxu0 0.0
        %3103 = vmatprep.subr.mxu0 0.0
        %3104 = vmatpush2.xpose.msra.mxu0 0.0
        %3105 = vmatprep.subr.mxu0 0.0
        %3106 = vmatpush2.xpose.msra.mxu0 0.0
        %3107 = vmatprep.subr.mxu0 0.0
        %3108 = vmatpush2.xpose.msra.mxu0 0.0
        %3109 = vmatprep.subr.mxu0 0.0
        %3110 = vmatpush2.xpose.msra.mxu0 0.0
        %3111 = vmatprep.subr.mxu0 0.0
        %3112 = vmatpush2.xpose.msra.mxu0 0.0
        %3113 = vmatprep.subr.mxu0 0.0
        %3114 = vmatpush2.xpose.msra.mxu0 0.0
        %3115 = vmatprep.subr.mxu0 0.0
        %3116 = vmatpush2.xpose.msra.mxu0 0.0
        %3117 = vmatprep.subr.mxu0 0.0
        %3118 = vmatpush2.xpose.msra.mxu0 0.0
        %3119 = vmatprep.mubr.f32.mxu0 0.0
        %3120 = vmatmul.mubr.f32.gmra.mxu0 %v3051
        %v3121 = vpop.f32.mrf.mxu0
        %v3122 = vadd.f32 0.0, %v3121
        %v3123 = vpop.f32.mrf.mxu0
        %3124 = vdwg.mxu0
        %3125 = vrot.lane.b32.xlu0 %v596, 104
        %v3126 = vpop.permute.xlu0 %3125
        %3127 = vrot.lane.b32.xlu0 %v438, 104
        %v3128 = vpop.permute.xlu0 %3127
        %v3129 = vsel %vm599, %v3126, 0
        %v3131 = vsel %vm599, %v3128, 0
        %3133 = vmatprep.subr.mxu0 0.0
        %3134 = vmatpush1.xpose.msra.mxu0 0.0
        %3135 = vmatprep.subr.mxu0 0.0
        %3136 = vmatpush1.xpose.msra.mxu0 0.0
        %3137 = vmatprep.subr.mxu0 0.0
        %3138 = vmatpush1.xpose.msra.mxu0 0.0
        %3139 = vmatprep.subr.mxu0 0.0
        %3140 = vmatpush1.xpose.msra.mxu0 0.0
        %3141 = vmatprep.subr.mxu0 0.0
        %3142 = vmatpush1.xpose.msra.mxu0 0.0
        %3143 = vmatprep.subr.mxu0 0.0
        %3144 = vmatpush1.xpose.msra.mxu0 0.0
        %3145 = vmatprep.subr.mxu0 0.0
        %3146 = vmatpush1.xpose.msra.mxu0 0.0
        %3147 = vmatprep.subr.mxu0 0.0
        %3148 = vmatpush1.xpose.msra.mxu0 0.0
        %3149 = vmatprep.subr.mxu0 0.0
        %3150 = vmatpush1.xpose.msra.mxu0 0.0
        %3151 = vmatprep.subr.mxu0 0.0
        %3152 = vmatpush1.xpose.msra.mxu0 0.0
        %3153 = vmatprep.subr.mxu0 0.0
        %3154 = vmatpush1.xpose.msra.mxu0 0.0
        %3155 = vmatprep.subr.mxu0 0.0
        %3156 = vmatpush1.xpose.msra.mxu0 0.0
        %3157 = vmatprep.subr.mxu0 0.0
        %3158 = vmatpush1.xpose.msra.mxu0 0.0
        %3159 = vmatprep.subr.mxu0 0.0
        %3160 = vmatpush1.xpose.msra.mxu0 0.0
        %3161 = vmatprep.subr.mxu0 0.0
        %3162 = vmatpush1.xpose.msra.mxu0 0.0
        %3163 = vmatprep.subr.mxu0 0.0
        %3164 = vmatpush1.xpose.msra.mxu0 %v3131
        %3165 = vmatprep.subr.mxu0 0.0
        %3166 = vmatpush2.xpose.msra.mxu0 0.0
        %3167 = vmatprep.subr.mxu0 0.0
        %3168 = vmatpush2.xpose.msra.mxu0 0.0
        %3169 = vmatprep.subr.mxu0 0.0
        %3170 = vmatpush2.xpose.msra.mxu0 0.0
        %3171 = vmatprep.subr.mxu0 0.0
        %3172 = vmatpush2.xpose.msra.mxu0 0.0
        %3173 = vmatprep.subr.mxu0 0.0
        %3174 = vmatpush2.xpose.msra.mxu0 0.0
        %3175 = vmatprep.subr.mxu0 0.0
        %3176 = vmatpush2.xpose.msra.mxu0 0.0
        %3177 = vmatprep.subr.mxu0 0.0
        %3178 = vmatpush2.xpose.msra.mxu0 0.0
        %3179 = vmatprep.subr.mxu0 0.0
        %3180 = vmatpush2.xpose.msra.mxu0 0.0
        %3181 = vmatprep.subr.mxu0 0.0
        %3182 = vmatpush2.xpose.msra.mxu0 0.0
        %3183 = vmatprep.subr.mxu0 0.0
        %3184 = vmatpush2.xpose.msra.mxu0 0.0
        %3185 = vmatprep.subr.mxu0 0.0
        %3186 = vmatpush2.xpose.msra.mxu0 0.0
        %3187 = vmatprep.subr.mxu0 0.0
        %3188 = vmatpush2.xpose.msra.mxu0 0.0
        %3189 = vmatprep.subr.mxu0 0.0
        %3190 = vmatpush2.xpose.msra.mxu0 0.0
        %3191 = vmatprep.subr.mxu0 0.0
        %3192 = vmatpush2.xpose.msra.mxu0 0.0
        %3193 = vmatprep.subr.mxu0 0.0
        %3194 = vmatpush2.xpose.msra.mxu0 0.0
        %3195 = vmatprep.subr.mxu0 0.0
        %3196 = vmatpush2.xpose.msra.mxu0 0.0
        %3197 = vmatprep.mubr.f32.mxu0 0.0
        %3198 = vmatmul.mubr.f32.gmra.mxu0 %v3129
        %v3199 = vpop.f32.mrf.mxu0
        %v3200 = vadd.f32 0.0, %v3199
        %v3201 = vpop.f32.mrf.mxu0
        %3202 = vdwg.mxu0
        %v3203 = vmul.f32 %v2966, 0.35355338
        %v3204 = vmul.f32 %v3044, 0.35355338
        %v3205 = vmul.f32 %v3122, 0.35355338
        %v3206 = vmul.f32 %v3200, 0.35355338
        %v3207 = vadd.f32 %v3203, %v451
        %v3208 = vadd.f32 %v3204, %v457
        %v3209 = vadd.f32 %v3205, %v463
        %v3210 = vadd.f32 %v3206, %v469
        %v3211 = vsel %vm599, %v3207, -inf
        %3212 = vmax.xlane.f32.xlu0 %v3211
        %v3213 = vpop.xlane.xlu0 %3212
        %v3214 = vsel %vm599, %v3208, -inf
        %3215 = vmax.xlane.f32.xlu0 %v3214
        %v3216 = vpop.xlane.xlu0 %3215
        %v3217 = vsel %vm599, %v3209, -inf
        %3218 = vmax.xlane.f32.xlu0 %v3217
        %v3219 = vpop.xlane.xlu0 %3218
        %v3220 = vsel %vm599, %v3210, -inf
        %3221 = vmax.xlane.f32.xlu0 %v3220
        %v3222 = vpop.xlane.xlu0 %3221
        %v3223 = vsub.f32 %v3207, %v3213
        %v3224 = vsub.f32 %v3208, %v3216
        %v3225 = vsub.f32 %v3209, %v3219
        %v3226 = vsub.f32 %v3210, %v3222
        %v3227 = vmul.f32 %v3223, 1.442695
        %v3228 = vpow.pop %v3227
        %v3229 = vmul.f32 %v3224, 1.442695
        %v3230 = vpow.pop %v3229
        %v3231 = vmul.f32 %v3225, 1.442695
        %v3232 = vpow.pop %v3231
        %v3233 = vmul.f32 %v3226, 1.442695
        %v3234 = vpow.pop %v3233
        %v3235 = vsel %vm599, %v3228, 0.0
        %3236 = vadd.xlane.f32.xlu0 %v3235
        %v3237 = vpop.xlane.xlu0 %3236
        %v3238 = vsel %vm599, %v3230, 0.0
        %3239 = vadd.xlane.f32.xlu0 %v3238
        %v3240 = vpop.xlane.xlu0 %3239
        %v3241 = vsel %vm599, %v3232, 0.0
        %3242 = vadd.xlane.f32.xlu0 %v3241
        %v3243 = vpop.xlane.xlu0 %3242
        %v3244 = vsel %vm599, %v3234, 0.0
        %3245 = vadd.xlane.f32.xlu0 %v3244
        %v3246 = vpop.xlane.xlu0 %3245
        %v3247 = vrcp.pop %v3237
        %v3248 = vmul.f32 %v3228, %v3247
        %v3249 = vrcp.pop %v3240
        %v3250 = vmul.f32 %v3230, %v3249
        %v3251 = vrcp.pop %v3243
        %v3252 = vmul.f32 %v3232, %v3251
        %v3253 = vrcp.pop %v3246
        %v3254 = vmul.f32 %v3234, %v3253
        %3255 = vrot.lane.b32.xlu0 %v423, 72
        %v3256 = vpop.permute.xlu0 %3255
        %v3259 = vsel %vm599, %v3248, 0
        %3261 = vmatprep.subr.mxu0 0.0
        %3262 = vmatpush1.msra.mxu0 0.0
        %3263 = vmatprep.subr.mxu0 0.0
        %3264 = vmatpush1.msra.mxu0 0.0
        %3265 = vmatprep.subr.mxu0 0.0
        %3266 = vmatpush1.msra.mxu0 0.0
        %3267 = vmatprep.subr.mxu0 0.0
        %3268 = vmatpush1.msra.mxu0 0.0
        %3269 = vmatprep.subr.mxu0 0.0
        %3270 = vmatpush1.msra.mxu0 0.0
        %3271 = vmatprep.subr.mxu0 0.0
        %3272 = vmatpush1.msra.mxu0 0.0
        %3273 = vmatprep.subr.mxu0 0.0
        %3274 = vmatpush1.msra.mxu0 0.0
        %3275 = vmatprep.subr.mxu0 0.0
        %3276 = vmatpush1.msra.mxu0 0.0
        %3277 = vmatprep.subr.mxu0 0.0
        %3278 = vmatpush1.msra.mxu0 0.0
        %3279 = vmatprep.subr.mxu0 0.0
        %3280 = vmatpush1.msra.mxu0 0.0
        %3281 = vmatprep.subr.mxu0 0.0
        %3282 = vmatpush1.msra.mxu0 0.0
        %3283 = vmatprep.subr.mxu0 0.0
        %3284 = vmatpush1.msra.mxu0 0.0
        %3285 = vmatprep.subr.mxu0 0.0
        %3286 = vmatpush1.msra.mxu0 0.0
        %3287 = vmatprep.subr.mxu0 0.0
        %3288 = vmatpush1.msra.mxu0 0.0
        %3289 = vmatprep.subr.mxu0 0.0
        %3290 = vmatpush1.msra.mxu0 0.0
        %3291 = vmatprep.subr.mxu0 0.0
        %3292 = vmatpush1.msra.mxu0 %v3256
        %3293 = vmatprep.subr.mxu0 0.0
        %3294 = vmatpush2.msra.mxu0 0.0
        %3295 = vmatprep.subr.mxu0 0.0
        %3296 = vmatpush2.msra.mxu0 0.0
        %3297 = vmatprep.subr.mxu0 0.0
        %3298 = vmatpush2.msra.mxu0 0.0
        %3299 = vmatprep.subr.mxu0 0.0
        %3300 = vmatpush2.msra.mxu0 0.0
        %3301 = vmatprep.subr.mxu0 0.0
        %3302 = vmatpush2.msra.mxu0 0.0
        %3303 = vmatprep.subr.mxu0 0.0
        %3304 = vmatpush2.msra.mxu0 0.0
        %3305 = vmatprep.subr.mxu0 0.0
        %3306 = vmatpush2.msra.mxu0 0.0
        %3307 = vmatprep.subr.mxu0 0.0
        %3308 = vmatpush2.msra.mxu0 0.0
        %3309 = vmatprep.subr.mxu0 0.0
        %3310 = vmatpush2.msra.mxu0 0.0
        %3311 = vmatprep.subr.mxu0 0.0
        %3312 = vmatpush2.msra.mxu0 0.0
        %3313 = vmatprep.subr.mxu0 0.0
        %3314 = vmatpush2.msra.mxu0 0.0
        %3315 = vmatprep.subr.mxu0 0.0
        %3316 = vmatpush2.msra.mxu0 0.0
        %3317 = vmatprep.subr.mxu0 0.0
        %3318 = vmatpush2.msra.mxu0 0.0
        %3319 = vmatprep.subr.mxu0 0.0
        %3320 = vmatpush2.msra.mxu0 0.0
        %3321 = vmatprep.subr.mxu0 0.0
        %3322 = vmatpush2.msra.mxu0 0.0
        %3323 = vmatprep.subr.mxu0 0.0
        %3324 = vmatpush2.msra.mxu0 0.0
        %3325 = vmatprep.mubr.f32.mxu0 0.0
        %3326 = vmatmul.mubr.f32.gmra.mxu0 %v3259
        %v3327 = vpop.f32.mrf.mxu0
        %v3328 = vadd.f32 0.0, %v3327
        %v3329 = vpop.f32.mrf.mxu0
        %3330 = vdwg.mxu0
        %3331 = vrot.lane.b32.xlu0 %v428, 72
        %v3332 = vpop.permute.xlu0 %3331
        %v3335 = vsel %vm599, %v3250, 0
        %3337 = vmatprep.subr.mxu0 0.0
        %3338 = vmatpush1.msra.mxu0 0.0
        %3339 = vmatprep.subr.mxu0 0.0
        %3340 = vmatpush1.msra.mxu0 0.0
        %3341 = vmatprep.subr.mxu0 0.0
        %3342 = vmatpush1.msra.mxu0 0.0
        %3343 = vmatprep.subr.mxu0 0.0
        %3344 = vmatpush1.msra.mxu0 0.0
        %3345 = vmatprep.subr.mxu0 0.0
        %3346 = vmatpush1.msra.mxu0 0.0
        %3347 = vmatprep.subr.mxu0 0.0
        %3348 = vmatpush1.msra.mxu0 0.0
        %3349 = vmatprep.subr.mxu0 0.0
        %3350 = vmatpush1.msra.mxu0 0.0
        %3351 = vmatprep.subr.mxu0 0.0
        %3352 = vmatpush1.msra.mxu0 0.0
        %3353 = vmatprep.subr.mxu0 0.0
        %3354 = vmatpush1.msra.mxu0 0.0
        %3355 = vmatprep.subr.mxu0 0.0
        %3356 = vmatpush1.msra.mxu0 0.0
        %3357 = vmatprep.subr.mxu0 0.0
        %3358 = vmatpush1.msra.mxu0 0.0
        %3359 = vmatprep.subr.mxu0 0.0
        %3360 = vmatpush1.msra.mxu0 0.0
        %3361 = vmatprep.subr.mxu0 0.0
        %3362 = vmatpush1.msra.mxu0 0.0
        %3363 = vmatprep.subr.mxu0 0.0
        %3364 = vmatpush1.msra.mxu0 0.0
        %3365 = vmatprep.subr.mxu0 0.0
        %3366 = vmatpush1.msra.mxu0 0.0
        %3367 = vmatprep.subr.mxu0 0.0
        %3368 = vmatpush1.msra.mxu0 %v3332
        %3369 = vmatprep.subr.mxu0 0.0
        %3370 = vmatpush2.msra.mxu0 0.0
        %3371 = vmatprep.subr.mxu0 0.0
        %3372 = vmatpush2.msra.mxu0 0.0
        %3373 = vmatprep.subr.mxu0 0.0
        %3374 = vmatpush2.msra.mxu0 0.0
        %3375 = vmatprep.subr.mxu0 0.0
        %3376 = vmatpush2.msra.mxu0 0.0
        %3377 = vmatprep.subr.mxu0 0.0
        %3378 = vmatpush2.msra.mxu0 0.0
        %3379 = vmatprep.subr.mxu0 0.0
        %3380 = vmatpush2.msra.mxu0 0.0
        %3381 = vmatprep.subr.mxu0 0.0
        %3382 = vmatpush2.msra.mxu0 0.0
        %3383 = vmatprep.subr.mxu0 0.0
        %3384 = vmatpush2.msra.mxu0 0.0
        %3385 = vmatprep.subr.mxu0 0.0
        %3386 = vmatpush2.msra.mxu0 0.0
        %3387 = vmatprep.subr.mxu0 0.0
        %3388 = vmatpush2.msra.mxu0 0.0
        %3389 = vmatprep.subr.mxu0 0.0
        %3390 = vmatpush2.msra.mxu0 0.0
        %3391 = vmatprep.subr.mxu0 0.0
        %3392 = vmatpush2.msra.mxu0 0.0
        %3393 = vmatprep.subr.mxu0 0.0
        %3394 = vmatpush2.msra.mxu0 0.0
        %3395 = vmatprep.subr.mxu0 0.0
        %3396 = vmatpush2.msra.mxu0 0.0
        %3397 = vmatprep.subr.mxu0 0.0
        %3398 = vmatpush2.msra.mxu0 0.0
        %3399 = vmatprep.subr.mxu0 0.0
        %3400 = vmatpush2.msra.mxu0 0.0
        %3401 = vmatprep.mubr.f32.mxu0 0.0
        %3402 = vmatmul.mubr.f32.gmra.mxu0 %v3335
        %v3403 = vpop.f32.mrf.mxu0
        %v3404 = vadd.f32 0.0, %v3403
        %v3405 = vpop.f32.mrf.mxu0
        %3406 = vdwg.mxu0
        %3407 = vrot.lane.b32.xlu0 %v433, 72
        %v3408 = vpop.permute.xlu0 %3407
        %v3411 = vsel %vm599, %v3252, 0
        %3413 = vmatprep.subr.mxu0 0.0
        %3414 = vmatpush1.msra.mxu0 0.0
        %3415 = vmatprep.subr.mxu0 0.0
        %3416 = vmatpush1.msra.mxu0 0.0
        %3417 = vmatprep.subr.mxu0 0.0
        %3418 = vmatpush1.msra.mxu0 0.0
        %3419 = vmatprep.subr.mxu0 0.0
        %3420 = vmatpush1.msra.mxu0 0.0
        %3421 = vmatprep.subr.mxu0 0.0
        %3422 = vmatpush1.msra.mxu0 0.0
        %3423 = vmatprep.subr.mxu0 0.0
        %3424 = vmatpush1.msra.mxu0 0.0
        %3425 = vmatprep.subr.mxu0 0.0
        %3426 = vmatpush1.msra.mxu0 0.0
        %3427 = vmatprep.subr.mxu0 0.0
        %3428 = vmatpush1.msra.mxu0 0.0
        %3429 = vmatprep.subr.mxu0 0.0
        %3430 = vmatpush1.msra.mxu0 0.0
        %3431 = vmatprep.subr.mxu0 0.0
        %3432 = vmatpush1.msra.mxu0 0.0
        %3433 = vmatprep.subr.mxu0 0.0
        %3434 = vmatpush1.msra.mxu0 0.0
        %3435 = vmatprep.subr.mxu0 0.0
        %3436 = vmatpush1.msra.mxu0 0.0
        %3437 = vmatprep.subr.mxu0 0.0
        %3438 = vmatpush1.msra.mxu0 0.0
        %3439 = vmatprep.subr.mxu0 0.0
        %3440 = vmatpush1.msra.mxu0 0.0
        %3441 = vmatprep.subr.mxu0 0.0
        %3442 = vmatpush1.msra.mxu0 0.0
        %3443 = vmatprep.subr.mxu0 0.0
        %3444 = vmatpush1.msra.mxu0 %v3408
        %3445 = vmatprep.subr.mxu0 0.0
        %3446 = vmatpush2.msra.mxu0 0.0
        %3447 = vmatprep.subr.mxu0 0.0
        %3448 = vmatpush2.msra.mxu0 0.0
        %3449 = vmatprep.subr.mxu0 0.0
        %3450 = vmatpush2.msra.mxu0 0.0
        %3451 = vmatprep.subr.mxu0 0.0
        %3452 = vmatpush2.msra.mxu0 0.0
        %3453 = vmatprep.subr.mxu0 0.0
        %3454 = vmatpush2.msra.mxu0 0.0
        %3455 = vmatprep.subr.mxu0 0.0
        %3456 = vmatpush2.msra.mxu0 0.0
        %3457 = vmatprep.subr.mxu0 0.0
        %3458 = vmatpush2.msra.mxu0 0.0
        %3459 = vmatprep.subr.mxu0 0.0
        %3460 = vmatpush2.msra.mxu0 0.0
        %3461 = vmatprep.subr.mxu0 0.0
        %3462 = vmatpush2.msra.mxu0 0.0
        %3463 = vmatprep.subr.mxu0 0.0
        %3464 = vmatpush2.msra.mxu0 0.0
        %3465 = vmatprep.subr.mxu0 0.0
        %3466 = vmatpush2.msra.mxu0 0.0
        %3467 = vmatprep.subr.mxu0 0.0
        %3468 = vmatpush2.msra.mxu0 0.0
        %3469 = vmatprep.subr.mxu0 0.0
        %3470 = vmatpush2.msra.mxu0 0.0
        %3471 = vmatprep.subr.mxu0 0.0
        %3472 = vmatpush2.msra.mxu0 0.0
        %3473 = vmatprep.subr.mxu0 0.0
        %3474 = vmatpush2.msra.mxu0 0.0
        %3475 = vmatprep.subr.mxu0 0.0
        %3476 = vmatpush2.msra.mxu0 0.0
        %3477 = vmatprep.mubr.f32.mxu0 0.0
        %3478 = vmatmul.mubr.f32.gmra.mxu0 %v3411
        %v3479 = vpop.f32.mrf.mxu0
        %v3480 = vadd.f32 0.0, %v3479
        %v3481 = vpop.f32.mrf.mxu0
        %3482 = vdwg.mxu0
        %3483 = vrot.lane.b32.xlu0 %v438, 72
        %v3484 = vpop.permute.xlu0 %3483
        %v3487 = vsel %vm599, %v3254, 0
        %3489 = vmatprep.subr.mxu0 0.0
        %3490 = vmatpush1.msra.mxu0 0.0
        %3491 = vmatprep.subr.mxu0 0.0
        %3492 = vmatpush1.msra.mxu0 0.0
        %3493 = vmatprep.subr.mxu0 0.0
        %3494 = vmatpush1.msra.mxu0 0.0
        %3495 = vmatprep.subr.mxu0 0.0
        %3496 = vmatpush1.msra.mxu0 0.0
        %3497 = vmatprep.subr.mxu0 0.0
        %3498 = vmatpush1.msra.mxu0 0.0
        %3499 = vmatprep.subr.mxu0 0.0
        %3500 = vmatpush1.msra.mxu0 0.0
        %3501 = vmatprep.subr.mxu0 0.0
        %3502 = vmatpush1.msra.mxu0 0.0
        %3503 = vmatprep.subr.mxu0 0.0
        %3504 = vmatpush1.msra.mxu0 0.0
        %3505 = vmatprep.subr.mxu0 0.0
        %3506 = vmatpush1.msra.mxu0 0.0
        %3507 = vmatprep.subr.mxu0 0.0
        %3508 = vmatpush1.msra.mxu0 0.0
        %3509 = vmatprep.subr.mxu0 0.0
        %3510 = vmatpush1.msra.mxu0 0.0
        %3511 = vmatprep.subr.mxu0 0.0
        %3512 = vmatpush1.msra.mxu0 0.0
        %3513 = vmatprep.subr.mxu0 0.0
        %3514 = vmatpush1.msra.mxu0 0.0
        %3515 = vmatprep.subr.mxu0 0.0
        %3516 = vmatpush1.msra.mxu0 0.0
        %3517 = vmatprep.subr.mxu0 0.0
        %3518 = vmatpush1.msra.mxu0 0.0
        %3519 = vmatprep.subr.mxu0 0.0
        %3520 = vmatpush1.msra.mxu0 %v3484
        %3521 = vmatprep.subr.mxu0 0.0
        %3522 = vmatpush2.msra.mxu0 0.0
        %3523 = vmatprep.subr.mxu0 0.0
        %3524 = vmatpush2.msra.mxu0 0.0
        %3525 = vmatprep.subr.mxu0 0.0
        %3526 = vmatpush2.msra.mxu0 0.0
        %3527 = vmatprep.subr.mxu0 0.0
        %3528 = vmatpush2.msra.mxu0 0.0
        %3529 = vmatprep.subr.mxu0 0.0
        %3530 = vmatpush2.msra.mxu0 0.0
        %3531 = vmatprep.subr.mxu0 0.0
        %3532 = vmatpush2.msra.mxu0 0.0
        %3533 = vmatprep.subr.mxu0 0.0
        %3534 = vmatpush2.msra.mxu0 0.0
        %3535 = vmatprep.subr.mxu0 0.0
        %3536 = vmatpush2.msra.mxu0 0.0
        %3537 = vmatprep.subr.mxu0 0.0
        %3538 = vmatpush2.msra.mxu0 0.0
        %3539 = vmatprep.subr.mxu0 0.0
        %3540 = vmatpush2.msra.mxu0 0.0
        %3541 = vmatprep.subr.mxu0 0.0
        %3542 = vmatpush2.msra.mxu0 0.0
        %3543 = vmatprep.subr.mxu0 0.0
        %3544 = vmatpush2.msra.mxu0 0.0
        %3545 = vmatprep.subr.mxu0 0.0
        %3546 = vmatpush2.msra.mxu0 0.0
        %3547 = vmatprep.subr.mxu0 0.0
        %3548 = vmatpush2.msra.mxu0 0.0
        %3549 = vmatprep.subr.mxu0 0.0
        %3550 = vmatpush2.msra.mxu0 0.0
        %3551 = vmatprep.subr.mxu0 0.0
        %3552 = vmatpush2.msra.mxu0 0.0
        %3553 = vmatprep.mubr.f32.mxu0 0.0
        %3554 = vmatmul.mubr.f32.gmra.mxu0 %v3487
        %v3555 = vpop.f32.mrf.mxu0
        %v3556 = vadd.f32 0.0, %v3555
        %v3557 = vpop.f32.mrf.mxu0
        %3558 = vdwg.mxu0
        %v3560 = vsel %vm599, %v3328, 0
        %v3563 = vsel %vm599, %v3404, 0
        %v3566 = vsel %vm599, %v3480, 0
        %v3569 = vsel %vm599, %v3556, 0
        %3571 = vmatprep.subr.mxu0 0.0
        %3572 = vmatpush1.msra.mxu0 0.0
        %3573 = vmatprep.subr.mxu0 0.0
        %3574 = vmatpush1.msra.mxu0 0.0
        %3575 = vmatprep.subr.mxu0 0.0
        %3576 = vmatpush1.msra.mxu0 0.0
        %3577 = vmatprep.subr.mxu0 0.0
        %3578 = vmatpush1.msra.mxu0 0.0
        %3579 = vmatprep.subr.mxu0 0.0
        %3580 = vmatpush1.msra.mxu0 0.0
        %3581 = vmatprep.subr.mxu0 0.0
        %3582 = vmatpush1.msra.mxu0 0.0
        %3583 = vmatprep.subr.mxu0 0.0
        %3584 = vmatpush1.msra.mxu0 0.0
        %3585 = vmatprep.subr.mxu0 0.0
        %3586 = vmatpush1.msra.mxu0 0.0
        %3587 = vmatprep.subr.mxu0 0.0
        %3588 = vmatpush1.msra.mxu0 0.0
        %3589 = vmatprep.subr.mxu0 0.0
        %3590 = vmatpush1.msra.mxu0 0.0
        %3591 = vmatprep.subr.mxu0 0.0
        %3592 = vmatpush1.msra.mxu0 0.0
        %3593 = vmatprep.subr.mxu0 0.0
        %3594 = vmatpush1.msra.mxu0 0.0
        %3595 = vmatprep.subr.mxu0 0.0
        %3596 = vmatpush1.msra.mxu0 0.0
        %3597 = vmatprep.subr.mxu0 0.0
        %3598 = vmatpush1.msra.mxu0 0.0
        %3599 = vmatprep.subr.mxu0 0.0
        %3600 = vmatpush1.msra.mxu0 0.0
        %3601 = vmatprep.subr.mxu0 0.0
        %3602 = vmatpush1.msra.mxu0 %v477
        %3603 = vmatprep.subr.mxu0 0.0
        %3604 = vmatpush2.msra.mxu0 0.0
        %3605 = vmatprep.subr.mxu0 0.0
        %3606 = vmatpush2.msra.mxu0 0.0
        %3607 = vmatprep.subr.mxu0 0.0
        %3608 = vmatpush2.msra.mxu0 0.0
        %3609 = vmatprep.subr.mxu0 0.0
        %3610 = vmatpush2.msra.mxu0 0.0
        %3611 = vmatprep.subr.mxu0 0.0
        %3612 = vmatpush2.msra.mxu0 0.0
        %3613 = vmatprep.subr.mxu0 0.0
        %3614 = vmatpush2.msra.mxu0 0.0
        %3615 = vmatprep.subr.mxu0 0.0
        %3616 = vmatpush2.msra.mxu0 0.0
        %3617 = vmatprep.subr.mxu0 0.0
        %3618 = vmatpush2.msra.mxu0 0.0
        %3619 = vmatprep.subr.mxu0 0.0
        %3620 = vmatpush2.msra.mxu0 0.0
        %3621 = vmatprep.subr.mxu0 0.0
        %3622 = vmatpush2.msra.mxu0 0.0
        %3623 = vmatprep.subr.mxu0 0.0
        %3624 = vmatpush2.msra.mxu0 0.0
        %3625 = vmatprep.subr.mxu0 0.0
        %3626 = vmatpush2.msra.mxu0 0.0
        %3627 = vmatprep.subr.mxu0 0.0
        %3628 = vmatpush2.msra.mxu0 0.0
        %3629 = vmatprep.subr.mxu0 0.0
        %3630 = vmatpush2.msra.mxu0 0.0
        %3631 = vmatprep.subr.mxu0 0.0
        %3632 = vmatpush2.msra.mxu0 0.0
        %3633 = vmatprep.subr.mxu0 0.0
        %3634 = vmatpush2.msra.mxu0 0.0
        %3635 = vmatprep.mubr.f32.mxu0 0.0
        %3636 = vmatmul.mubr.f32.gmra.mxu0 %v3560
        %v3637 = vpop.f32.mrf.mxu0
        %v3638 = vadd.f32 0.0, %v3637
        %v3639 = vpop.f32.mrf.mxu0
        %3640 = vmatprep.mubr.f32.mxu0 0.0
        %3641 = vmatmul.mubr.f32.gmra.mxu0 %v3563
        %v3642 = vpop.f32.mrf.mxu0
        %v3643 = vadd.f32 0.0, %v3642
        %v3644 = vpop.f32.mrf.mxu0
        %3645 = vmatprep.mubr.f32.mxu0 0.0
        %3646 = vmatmul.mubr.f32.gmra.mxu0 %v3566
        %v3647 = vpop.f32.mrf.mxu0
        %v3648 = vadd.f32 0.0, %v3647
        %v3649 = vpop.f32.mrf.mxu0
        %3650 = vmatprep.mubr.f32.mxu0 0.0
        %3651 = vmatmul.mubr.f32.gmra.mxu0 %v3569
        %v3652 = vpop.f32.mrf.mxu0
        %v3653 = vadd.f32 0.0, %v3652
        %v3654 = vpop.f32.mrf.mxu0
        %3655 = vdwg.mxu0
        %v3656 = vadd.f32 %v2887, %v3638
        %v3657 = vadd.f32 %v2888, %v3643
        %v3658 = vadd.f32 %v2889, %v3648
        %v3659 = vadd.f32 %v2890, %v3653
        %v3660 = vlaneseq
        %v3661 = vshrl.u32 %v3660, 7
        %v3662 = vsub.s32 0, %v3661
        %v3663 = vrot.slane %v491, %v3662
        %v3664 = vadd.f32 %v3656, %v3663
        %v3665 = vadd.f32 %v3657, %v3663
        %v3666 = vadd.f32 %v3658, %v3663
        %v3667 = vadd.f32 %v3659, %v3663
        %v3668 = vadd.f32 %v245, %v3664
        %v3669 = vadd.f32 %v246, %v3665
        %v3670 = vadd.f32 %v247, %v3666
        %v3671 = vadd.f32 %v248, %v3667
        %v3672 = vsel %vm343, %v3668, 0.0
        %3673 = vadd.xlane.f32.xlu0 %v3672
        %v3674 = vpop.xlane.xlu0 %3673
        %v3675 = vsel %vm343, %v3669, 0.0
        %3676 = vadd.xlane.f32.xlu0 %v3675
        %v3677 = vpop.xlane.xlu0 %3676
        %v3678 = vsel %vm343, %v3670, 0.0
        %3679 = vadd.xlane.f32.xlu0 %v3678
        %v3680 = vpop.xlane.xlu0 %3679
        %v3681 = vsel %vm343, %v3671, 0.0
        %3682 = vadd.xlane.f32.xlu0 %v3681
        %v3683 = vpop.xlane.xlu0 %3682
        %v3684 = vrcp.pop 32.0
        %v3685 = vmul.f32 %v3674, %v3684
        %v3686 = vmul.f32 %v3677, %v3684
        %v3687 = vmul.f32 %v3680, %v3684
        %v3688 = vmul.f32 %v3683, %v3684
        %v3689 = vsub.f32 %v3668, %v3685
        %v3690 = vsub.f32 %v3669, %v3686
        %v3691 = vsub.f32 %v3670, %v3687
        %v3692 = vsub.f32 %v3671, %v3688
        %v3693 = vmul.f32 %v3689, %v3689
        %v3694 = vmul.f32 %v3690, %v3690
        %v3695 = vmul.f32 %v3691, %v3691
        %v3696 = vmul.f32 %v3692, %v3692
        %v3697 = vsel %vm343, %v3693, 0.0
        %3698 = vadd.xlane.f32.xlu0 %v3697
        %v3699 = vpop.xlane.xlu0 %3698
        %v3700 = vsel %vm343, %v3694, 0.0
        %3701 = vadd.xlane.f32.xlu0 %v3700
        %v3702 = vpop.xlane.xlu0 %3701
        %v3703 = vsel %vm343, %v3695, 0.0
        %3704 = vadd.xlane.f32.xlu0 %v3703
        %v3705 = vpop.xlane.xlu0 %3704
        %v3706 = vsel %vm343, %v3696, 0.0
        %3707 = vadd.xlane.f32.xlu0 %v3706
        %v3708 = vpop.xlane.xlu0 %3707
        %v3709 = vmul.f32 %v3699, %v3684
        %v3710 = vmul.f32 %v3702, %v3684
        %v3711 = vmul.f32 %v3705, %v3684
        %v3712 = vmul.f32 %v3708, %v3684
        %v3713 = vadd.f32 %v3709, 1e-05
        %v3714 = vadd.f32 %v3710, 1e-05
        %v3715 = vadd.f32 %v3711, 1e-05
        %v3716 = vadd.f32 %v3712, 1e-05
        %v3717 = vrsqrt.pop %v3713
        %v3718 = vrsqrt.pop %v3714
        %v3719 = vrsqrt.pop %v3715
        %v3720 = vrsqrt.pop %v3716
        %v3721 = vmul.f32 %v3689, %v3717
        %v3722 = vmul.f32 %v3690, %v3718
        %v3723 = vmul.f32 %v3691, %v3719
        %v3724 = vmul.f32 %v3692, %v3720
        %v3725 = vlaneseq
        %v3726 = vshrl.u32 %v3725, 7
        %v3727 = vsub.s32 0, %v3726
        %v3728 = vrot.slane %v492, %v3727
        %v3729 = vmul.f32 %v3721, %v3728
        %v3730 = vmul.f32 %v3722, %v3728
        %v3731 = vmul.f32 %v3723, %v3728
        %v3732 = vmul.f32 %v3724, %v3728
        %v3733 = vlaneseq
        %v3734 = vshrl.u32 %v3733, 7
        %v3735 = vsub.s32 0, %v3734
        %v3736 = vrot.slane %v493, %v3735
        %v3737 = vadd.f32 %v3729, %v3736
        %v3738 = vadd.f32 %v3730, %v3736
        %v3739 = vadd.f32 %v3731, %v3736
        %v3740 = vadd.f32 %v3732, %v3736
        %v3741 = vlaneseq
        %v3742 = vshrl.u32 %v3741, 7
        %v3743 = vsub.s32 0, %v3742
        %v3744 = vrot.slane %v494, %v3743
        %v3746 = vsel %vm343, %v3737, 0
        %v3749 = vsel %vm343, %v3738, 0
        %v3752 = vsel %vm343, %v3739, 0
        %v3755 = vsel %vm343, %v3740, 0
        %3757 = vmatprep.subr.mxu0 0.0
        %3758 = vmatpush1.msra.mxu0 0.0
        %3759 = vmatprep.subr.mxu0 0.0
        %3760 = vmatpush1.msra.mxu0 0.0
        %3761 = vmatprep.subr.mxu0 0.0
        %3762 = vmatpush1.msra.mxu0 0.0
        %3763 = vmatprep.subr.mxu0 0.0
        %3764 = vmatpush1.msra.mxu0 0.0
        %3765 = vmatprep.subr.mxu0 0.0
        %3766 = vmatpush1.msra.mxu0 0.0
        %3767 = vmatprep.subr.mxu0 0.0
        %3768 = vmatpush1.msra.mxu0 0.0
        %3769 = vmatprep.subr.mxu0 0.0
        %3770 = vmatpush1.msra.mxu0 0.0
        %3771 = vmatprep.subr.mxu0 0.0
        %3772 = vmatpush1.msra.mxu0 0.0
        %3773 = vmatprep.subr.mxu0 0.0
        %3774 = vmatpush1.msra.mxu0 0.0
        %3775 = vmatprep.subr.mxu0 0.0
        %3776 = vmatpush1.msra.mxu0 0.0
        %3777 = vmatprep.subr.mxu0 0.0
        %3778 = vmatpush1.msra.mxu0 0.0
        %3779 = vmatprep.subr.mxu0 0.0
        %3780 = vmatpush1.msra.mxu0 0.0
        %3781 = vmatprep.subr.mxu0 0.0
        %3782 = vmatpush1.msra.mxu0 %v481
        %3783 = vmatprep.subr.mxu0 0.0
        %3784 = vmatpush1.msra.mxu0 %v480
        %3785 = vmatprep.subr.mxu0 0.0
        %3786 = vmatpush1.msra.mxu0 %v479
        %3787 = vmatprep.subr.mxu0 0.0
        %3788 = vmatpush1.msra.mxu0 %v478
        %3789 = vmatprep.subr.mxu0 0.0
        %3790 = vmatpush2.msra.mxu0 0.0
        %3791 = vmatprep.subr.mxu0 0.0
        %3792 = vmatpush2.msra.mxu0 0.0
        %3793 = vmatprep.subr.mxu0 0.0
        %3794 = vmatpush2.msra.mxu0 0.0
        %3795 = vmatprep.subr.mxu0 0.0
        %3796 = vmatpush2.msra.mxu0 0.0
        %3797 = vmatprep.subr.mxu0 0.0
        %3798 = vmatpush2.msra.mxu0 0.0
        %3799 = vmatprep.subr.mxu0 0.0
        %3800 = vmatpush2.msra.mxu0 0.0
        %3801 = vmatprep.subr.mxu0 0.0
        %3802 = vmatpush2.msra.mxu0 0.0
        %3803 = vmatprep.subr.mxu0 0.0
        %3804 = vmatpush2.msra.mxu0 0.0
        %3805 = vmatprep.subr.mxu0 0.0
        %3806 = vmatpush2.msra.mxu0 0.0
        %3807 = vmatprep.subr.mxu0 0.0
        %3808 = vmatpush2.msra.mxu0 0.0
        %3809 = vmatprep.subr.mxu0 0.0
        %3810 = vmatpush2.msra.mxu0 0.0
        %3811 = vmatprep.subr.mxu0 0.0
        %3812 = vmatpush2.msra.mxu0 0.0
        %3813 = vmatprep.subr.mxu0 0.0
        %3814 = vmatpush2.msra.mxu0 0.0
        %3815 = vmatprep.subr.mxu0 0.0
        %3816 = vmatpush2.msra.mxu0 0.0
        %3817 = vmatprep.subr.mxu0 0.0
        %3818 = vmatpush2.msra.mxu0 0.0
        %3819 = vmatprep.subr.mxu0 0.0
        %3820 = vmatpush2.msra.mxu0 0.0
        %3821 = vmatprep.mubr.f32.mxu0 0.0
        %3822 = vmatmul.mubr.f32.gmra.mxu0 %v3746
        %v3823 = vpop.f32.mrf.mxu0
        %v3824 = vadd.f32 %v3744, %v3823
        %v3825 = vpop.f32.mrf.mxu0
        %3826 = vmatprep.mubr.f32.mxu0 0.0
        %3827 = vmatmul.mubr.f32.gmra.mxu0 %v3749
        %v3828 = vpop.f32.mrf.mxu0
        %v3829 = vadd.f32 %v3744, %v3828
        %v3830 = vpop.f32.mrf.mxu0
        %3831 = vmatprep.mubr.f32.mxu0 0.0
        %3832 = vmatmul.mubr.f32.gmra.mxu0 %v3752
        %v3833 = vpop.f32.mrf.mxu0
        %v3834 = vadd.f32 %v3744, %v3833
        %v3835 = vpop.f32.mrf.mxu0
        %3836 = vmatprep.mubr.f32.mxu0 0.0
        %3837 = vmatmul.mubr.f32.gmra.mxu0 %v3755
        %v3838 = vpop.f32.mrf.mxu0
        %v3839 = vadd.f32 %v3744, %v3838
        %v3840 = vpop.f32.mrf.mxu0
        %3841 = vdwg.mxu0
        %v3842 = vmax.f32 %v3824, 0.0
        %v3843 = vmax.f32 %v3829, 0.0
        %v3844 = vmax.f32 %v3834, 0.0
        %v3845 = vmax.f32 %v3839, 0.0
        %v3846 = vlaneseq
        %v3847 = vshrl.u32 %v3846, 7
        %v3848 = vsub.s32 0, %v3847
        %v3849 = vrot.slane %v495, %v3848
        %vm3850 = vcmask 523264
        %v3852 = vsel %vm3850, %v3842, 0
        %v3855 = vsel %vm3850, %v3843, 0
        %v3858 = vsel %vm3850, %v3844, 0
        %v3861 = vsel %vm3850, %v3845, 0
        %3863 = vmatprep.subr.mxu0 0.0
        %3864 = vmatpush1.msra.mxu0 0.0
        %3865 = vmatprep.subr.mxu0 0.0
        %3866 = vmatpush1.msra.mxu0 0.0
        %3867 = vmatprep.subr.mxu0 0.0
        %3868 = vmatpush1.msra.mxu0 0.0
        %3869 = vmatprep.subr.mxu0 0.0
        %3870 = vmatpush1.msra.mxu0 0.0
        %3871 = vmatprep.subr.mxu0 0.0
        %3872 = vmatpush1.msra.mxu0 0.0
        %3873 = vmatprep.subr.mxu0 0.0
        %3874 = vmatpush1.msra.mxu0 0.0
        %3875 = vmatprep.subr.mxu0 0.0
        %3876 = vmatpush1.msra.mxu0 0.0
        %3877 = vmatprep.subr.mxu0 0.0
        %3878 = vmatpush1.msra.mxu0 0.0
        %3879 = vmatprep.subr.mxu0 0.0
        %3880 = vmatpush1.msra.mxu0 %v489
        %3881 = vmatprep.subr.mxu0 0.0
        %3882 = vmatpush1.msra.mxu0 %v488
        %3883 = vmatprep.subr.mxu0 0.0
        %3884 = vmatpush1.msra.mxu0 %v487
        %3885 = vmatprep.subr.mxu0 0.0
        %3886 = vmatpush1.msra.mxu0 %v486
        %3887 = vmatprep.subr.mxu0 0.0
        %3888 = vmatpush1.msra.mxu0 %v485
        %3889 = vmatprep.subr.mxu0 0.0
        %3890 = vmatpush1.msra.mxu0 %v484
        %3891 = vmatprep.subr.mxu0 0.0
        %3892 = vmatpush1.msra.mxu0 %v483
        %3893 = vmatprep.subr.mxu0 0.0
        %3894 = vmatpush1.msra.mxu0 %v482
        %3895 = vmatprep.subr.mxu0 0.0
        %3896 = vmatpush2.msra.mxu0 0.0
        %3897 = vmatprep.subr.mxu0 0.0
        %3898 = vmatpush2.msra.mxu0 0.0
        %3899 = vmatprep.subr.mxu0 0.0
        %3900 = vmatpush2.msra.mxu0 0.0
        %3901 = vmatprep.subr.mxu0 0.0
        %3902 = vmatpush2.msra.mxu0 0.0
        %3903 = vmatprep.subr.mxu0 0.0
        %3904 = vmatpush2.msra.mxu0 0.0
        %3905 = vmatprep.subr.mxu0 0.0
        %3906 = vmatpush2.msra.mxu0 0.0
        %3907 = vmatprep.subr.mxu0 0.0
        %3908 = vmatpush2.msra.mxu0 0.0
        %3909 = vmatprep.subr.mxu0 0.0
        %3910 = vmatpush2.msra.mxu0 0.0
        %3911 = vmatprep.subr.mxu0 0.0
        %3912 = vmatpush2.msra.mxu0 0.0
        %3913 = vmatprep.subr.mxu0 0.0
        %3914 = vmatpush2.msra.mxu0 0.0
        %3915 = vmatprep.subr.mxu0 0.0
        %3916 = vmatpush2.msra.mxu0 0.0
        %3917 = vmatprep.subr.mxu0 0.0
        %3918 = vmatpush2.msra.mxu0 0.0
        %3919 = vmatprep.subr.mxu0 0.0
        %3920 = vmatpush2.msra.mxu0 0.0
        %3921 = vmatprep.subr.mxu0 0.0
        %3922 = vmatpush2.msra.mxu0 0.0
        %3923 = vmatprep.subr.mxu0 0.0
        %3924 = vmatpush2.msra.mxu0 0.0
        %3925 = vmatprep.subr.mxu0 0.0
        %3926 = vmatpush2.msra.mxu0 0.0
        %3927 = vmatprep.mubr.f32.mxu0 0.0
        %3928 = vmatmul.mubr.f32.gmra.mxu0 %v3852
        %v3929 = vpop.f32.mrf.mxu0
        %v3930 = vadd.f32 %v3849, %v3929
        %v3931 = vpop.f32.mrf.mxu0
        %3932 = vmatprep.mubr.f32.mxu0 0.0
        %3933 = vmatmul.mubr.f32.gmra.mxu0 %v3855
        %v3934 = vpop.f32.mrf.mxu0
        %v3935 = vadd.f32 %v3849, %v3934
        %v3936 = vpop.f32.mrf.mxu0
        %3937 = vmatprep.mubr.f32.mxu0 0.0
        %3938 = vmatmul.mubr.f32.gmra.mxu0 %v3858
        %v3939 = vpop.f32.mrf.mxu0
        %v3940 = vadd.f32 %v3849, %v3939
        %v3941 = vpop.f32.mrf.mxu0
        %3942 = vmatprep.mubr.f32.mxu0 0.0
        %3943 = vmatmul.mubr.f32.gmra.mxu0 %v3861
        %v3944 = vpop.f32.mrf.mxu0
        %v3945 = vadd.f32 %v3849, %v3944
        %v3946 = vpop.f32.mrf.mxu0
        %3947 = vdwg.mxu0
        %v3948 = vadd.f32 %v3737, %v3930
        %v3949 = vadd.f32 %v3738, %v3935
        %v3950 = vadd.f32 %v3739, %v3940
        %v3951 = vadd.f32 %v3740, %v3945
        %v3952 = vsel %vm343, %v3948, 0.0
        %3953 = vadd.xlane.f32.xlu0 %v3952
        %v3954 = vpop.xlane.xlu0 %3953
        %v3955 = vsel %vm343, %v3949, 0.0
        %3956 = vadd.xlane.f32.xlu0 %v3955
        %v3957 = vpop.xlane.xlu0 %3956
        %v3958 = vsel %vm343, %v3950, 0.0
        %3959 = vadd.xlane.f32.xlu0 %v3958
        %v3960 = vpop.xlane.xlu0 %3959
        %v3961 = vsel %vm343, %v3951, 0.0
        %3962 = vadd.xlane.f32.xlu0 %v3961
        %v3963 = vpop.xlane.xlu0 %3962
        %v3964 = vmul.f32 %v3954, %v3684
        %v3965 = vmul.f32 %v3957, %v3684
        %v3966 = vmul.f32 %v3960, %v3684
        %v3967 = vmul.f32 %v3963, %v3684
        %v3968 = vsub.f32 %v3948, %v3964
        %v3969 = vsub.f32 %v3949, %v3965
        %v3970 = vsub.f32 %v3950, %v3966
        %v3971 = vsub.f32 %v3951, %v3967
        %v3972 = vmul.f32 %v3968, %v3968
        %v3973 = vmul.f32 %v3969, %v3969
        %v3974 = vmul.f32 %v3970, %v3970
        %v3975 = vmul.f32 %v3971, %v3971
        %v3976 = vsel %vm343, %v3972, 0.0
        %3977 = vadd.xlane.f32.xlu0 %v3976
        %v3978 = vpop.xlane.xlu0 %3977
        %v3979 = vsel %vm343, %v3973, 0.0
        %3980 = vadd.xlane.f32.xlu0 %v3979
        %v3981 = vpop.xlane.xlu0 %3980
        %v3982 = vsel %vm343, %v3974, 0.0
        %3983 = vadd.xlane.f32.xlu0 %v3982
        %v3984 = vpop.xlane.xlu0 %3983
        %v3985 = vsel %vm343, %v3975, 0.0
        %3986 = vadd.xlane.f32.xlu0 %v3985
        %v3987 = vpop.xlane.xlu0 %3986
        %v3988 = vmul.f32 %v3978, %v3684
        %v3989 = vmul.f32 %v3981, %v3684
        %v3990 = vmul.f32 %v3984, %v3684
        %v3991 = vmul.f32 %v3987, %v3684
        %v3992 = vadd.f32 %v3988, 1e-05
        %v3993 = vadd.f32 %v3989, 1e-05
        %v3994 = vadd.f32 %v3990, 1e-05
        %v3995 = vadd.f32 %v3991, 1e-05
        %v3996 = vrsqrt.pop %v3992
        %v3997 = vrsqrt.pop %v3993
        %v3998 = vrsqrt.pop %v3994
        %v3999 = vrsqrt.pop %v3995
        %v4000 = vmul.f32 %v3968, %v3996
        %v4001 = vmul.f32 %v3969, %v3997
        %v4002 = vmul.f32 %v3970, %v3998
        %v4003 = vmul.f32 %v3971, %v3999
        %v4004 = vlaneseq
        %v4005 = vshrl.u32 %v4004, 7
        %v4006 = vsub.s32 0, %v4005
        %v4007 = vrot.slane %v496, %v4006
        %v4008 = vmul.f32 %v4000, %v4007
        %v4009 = vmul.f32 %v4001, %v4007
        %v4010 = vmul.f32 %v4002, %v4007
        %v4011 = vmul.f32 %v4003, %v4007
        %v4012 = vlaneseq
        %v4013 = vshrl.u32 %v4012, 7
        %v4014 = vsub.s32 0, %v4013
        %v4015 = vrot.slane %v497, %v4014
        %v4016 = vadd.f32 %v4008, %v4015
        %v4017 = vadd.f32 %v4009, %v4015
        %v4018 = vadd.f32 %v4010, %v4015
        %v4019 = vadd.f32 %v4011, %v4015
        %v4020 = vld [vmem:[#allocation7 + $0x160] sm:$0xff]
        %v4021 = vld [vmem:[#allocation7 + $0x168] sm:$0xff]
        %v4022 = vld [vmem:[#allocation7 + $0x170] sm:$0xff]
        %v4023 = vld [vmem:[#allocation7 + $0x178] sm:$0xff]
        %v4024 = vld [vmem:[#allocation7 + $0x180] sm:$0xff]
        %v4025 = vld [vmem:[#allocation7 + $0x188] sm:$0xff]
        %v4026 = vld [vmem:[#allocation7 + $0x190] sm:$0xff]
        %v4027 = vld [vmem:[#allocation7 + $0x198] sm:$0xff]
        %v4028 = vld [vmem:[#allocation7 + $0x1a0] sm:$0xff]
        %v4029 = vld [vmem:[#allocation7 + $0x1a8] sm:$0xff]
        %v4030 = vld [vmem:[#allocation7 + $0x1b0] sm:$0xff]
        %v4031 = vld [vmem:[#allocation7 + $0x1b8] sm:$0xff]
        %v4032 = vld [vmem:[#allocation7 + $0x1c0] sm:$0xff]
        %v4033 = vld [vmem:[#allocation7 + $0x1c8] sm:$0xff]
        %v4034 = vld [vmem:[#allocation7 + $0x1d0] sm:$0xff]
        %v4035 = vld [vmem:[#allocation7 + $0x1d8] sm:$0xff]
        %v4036 = vld [vmem:[#allocation7 + $0x1e0] sm:$0xff]
        %v4037 = vld [vmem:[#allocation7 + $0x1e8] sm:$0xff]
        %v4038 = vld [vmem:[#allocation7 + $0x1f0] sm:$0xff]
        %v4039 = vld [vmem:[#allocation7 + $0x1f8] sm:$0xff]
        %v4040 = vld [vmem:[#allocation9 + $0xa] sm:$0x1]
        %v4041 = vld [vmem:[#allocation9 + $0xb] sm:$0x1]
        %v4042 = vld [vmem:[#allocation9 + $0xc] sm:$0x1]
        %v4043 = vld [vmem:[#allocation9 + $0xd] sm:$0x1]
        %v4044 = vld [vmem:[#allocation9 + $0xe] sm:$0x1]
        %v4045 = vld [vmem:[#allocation9 + $0xf] sm:$0x1]
        %v4046 = vld [vmem:[#allocation9 + $0x10] sm:$0x1]
        %v4047 = vld [vmem:[#allocation9 + $0x11] sm:$0x1]
        %v4048 = vlaneseq
        %v4049 = vshrl.u32 %v4048, 7
        %v4050 = vsub.s32 0, %v4049
        %v4051 = vrot.slane %v4040, %v4050
        %v4053 = vsel %vm343, %v4016, 0
        %v4056 = vsel %vm343, %v4017, 0
        %v4059 = vsel %vm343, %v4018, 0
        %v4062 = vsel %vm343, %v4019, 0
        %4064 = vmatprep.subr.mxu0 0.0
        %4065 = vmatpush1.msra.mxu0 0.0
        %4066 = vmatprep.subr.mxu0 0.0
        %4067 = vmatpush1.msra.mxu0 0.0
        %4068 = vmatprep.subr.mxu0 0.0
        %4069 = vmatpush1.msra.mxu0 0.0
        %4070 = vmatprep.subr.mxu0 0.0
        %4071 = vmatpush1.msra.mxu0 0.0
        %4072 = vmatprep.subr.mxu0 0.0
        %4073 = vmatpush1.msra.mxu0 0.0
        %4074 = vmatprep.subr.mxu0 0.0
        %4075 = vmatpush1.msra.mxu0 0.0
        %4076 = vmatprep.subr.mxu0 0.0
        %4077 = vmatpush1.msra.mxu0 0.0
        %4078 = vmatprep.subr.mxu0 0.0
        %4079 = vmatpush1.msra.mxu0 0.0
        %4080 = vmatprep.subr.mxu0 0.0
        %4081 = vmatpush1.msra.mxu0 0.0
        %4082 = vmatprep.subr.mxu0 0.0
        %4083 = vmatpush1.msra.mxu0 0.0
        %4084 = vmatprep.subr.mxu0 0.0
        %4085 = vmatpush1.msra.mxu0 0.0
        %4086 = vmatprep.subr.mxu0 0.0
        %4087 = vmatpush1.msra.mxu0 0.0
        %4088 = vmatprep.subr.mxu0 0.0
        %4089 = vmatpush1.msra.mxu0 %v4023
        %4090 = vmatprep.subr.mxu0 0.0
        %4091 = vmatpush1.msra.mxu0 %v4022
        %4092 = vmatprep.subr.mxu0 0.0
        %4093 = vmatpush1.msra.mxu0 %v4021
        %4094 = vmatprep.subr.mxu0 0.0
        %4095 = vmatpush1.msra.mxu0 %v4020
        %4096 = vmatprep.subr.mxu0 0.0
        %4097 = vmatpush2.msra.mxu0 0.0
        %4098 = vmatprep.subr.mxu0 0.0
        %4099 = vmatpush2.msra.mxu0 0.0
        %4100 = vmatprep.subr.mxu0 0.0
        %4101 = vmatpush2.msra.mxu0 0.0
        %4102 = vmatprep.subr.mxu0 0.0
        %4103 = vmatpush2.msra.mxu0 0.0
        %4104 = vmatprep.subr.mxu0 0.0
        %4105 = vmatpush2.msra.mxu0 0.0
        %4106 = vmatprep.subr.mxu0 0.0
        %4107 = vmatpush2.msra.mxu0 0.0
        %4108 = vmatprep.subr.mxu0 0.0
        %4109 = vmatpush2.msra.mxu0 0.0
        %4110 = vmatprep.subr.mxu0 0.0
        %4111 = vmatpush2.msra.mxu0 0.0
        %4112 = vmatprep.subr.mxu0 0.0
        %4113 = vmatpush2.msra.mxu0 0.0
        %4114 = vmatprep.subr.mxu0 0.0
        %4115 = vmatpush2.msra.mxu0 0.0
        %4116 = vmatprep.subr.mxu0 0.0
        %4117 = vmatpush2.msra.mxu0 0.0
        %4118 = vmatprep.subr.mxu0 0.0
        %4119 = vmatpush2.msra.mxu0 0.0
        %4120 = vmatprep.subr.mxu0 0.0
        %4121 = vmatpush2.msra.mxu0 0.0
        %4122 = vmatprep.subr.mxu0 0.0
        %4123 = vmatpush2.msra.mxu0 0.0
        %4124 = vmatprep.subr.mxu0 0.0
        %4125 = vmatpush2.msra.mxu0 0.0
        %4126 = vmatprep.subr.mxu0 0.0
        %4127 = vmatpush2.msra.mxu0 0.0
        %4128 = vmatprep.mubr.f32.mxu0 0.0
        %4129 = vmatmul.mubr.f32.gmra.mxu0 %v4053
        %v4130 = vpop.f32.mrf.mxu0
        %v4131 = vadd.f32 %v4051, %v4130
        %v4132 = vpop.f32.mrf.mxu0
        %4133 = vmatprep.mubr.f32.mxu0 0.0
        %4134 = vmatmul.mubr.f32.gmra.mxu0 %v4056
        %v4135 = vpop.f32.mrf.mxu0
        %v4136 = vadd.f32 %v4051, %v4135
        %v4137 = vpop.f32.mrf.mxu0
        %4138 = vmatprep.mubr.f32.mxu0 0.0
        %4139 = vmatmul.mubr.f32.gmra.mxu0 %v4059
        %v4140 = vpop.f32.mrf.mxu0
        %v4141 = vadd.f32 %v4051, %v4140
        %v4142 = vpop.f32.mrf.mxu0
        %4143 = vmatprep.mubr.f32.mxu0 0.0
        %4144 = vmatmul.mubr.f32.gmra.mxu0 %v4062
        %v4145 = vpop.f32.mrf.mxu0
        %v4146 = vadd.f32 %v4051, %v4145
        %v4147 = vpop.f32.mrf.mxu0
        %4148 = vdwg.mxu0
        %4149 = vrot.lane.b32.xlu0 %v423, 64
        %v4150 = vpop.permute.xlu0 %4149
        %v4152 = vsel %vm599, %v4131, 0
        %v4154 = vsel %vm599, %v4150, 0
        %4156 = vmatprep.subr.mxu0 0.0
        %4157 = vmatpush1.xpose.msra.mxu0 0.0
        %4158 = vmatprep.subr.mxu0 0.0
        %4159 = vmatpush1.xpose.msra.mxu0 0.0
        %4160 = vmatprep.subr.mxu0 0.0
        %4161 = vmatpush1.xpose.msra.mxu0 0.0
        %4162 = vmatprep.subr.mxu0 0.0
        %4163 = vmatpush1.xpose.msra.mxu0 0.0
        %4164 = vmatprep.subr.mxu0 0.0
        %4165 = vmatpush1.xpose.msra.mxu0 0.0
        %4166 = vmatprep.subr.mxu0 0.0
        %4167 = vmatpush1.xpose.msra.mxu0 0.0
        %4168 = vmatprep.subr.mxu0 0.0
        %4169 = vmatpush1.xpose.msra.mxu0 0.0
        %4170 = vmatprep.subr.mxu0 0.0
        %4171 = vmatpush1.xpose.msra.mxu0 0.0
        %4172 = vmatprep.subr.mxu0 0.0
        %4173 = vmatpush1.xpose.msra.mxu0 0.0
        %4174 = vmatprep.subr.mxu0 0.0
        %4175 = vmatpush1.xpose.msra.mxu0 0.0
        %4176 = vmatprep.subr.mxu0 0.0
        %4177 = vmatpush1.xpose.msra.mxu0 0.0
        %4178 = vmatprep.subr.mxu0 0.0
        %4179 = vmatpush1.xpose.msra.mxu0 0.0
        %4180 = vmatprep.subr.mxu0 0.0
        %4181 = vmatpush1.xpose.msra.mxu0 0.0
        %4182 = vmatprep.subr.mxu0 0.0
        %4183 = vmatpush1.xpose.msra.mxu0 0.0
        %4184 = vmatprep.subr.mxu0 0.0
        %4185 = vmatpush1.xpose.msra.mxu0 0.0
        %4186 = vmatprep.subr.mxu0 0.0
        %4187 = vmatpush1.xpose.msra.mxu0 %v4154
        %4188 = vmatprep.subr.mxu0 0.0
        %4189 = vmatpush2.xpose.msra.mxu0 0.0
        %4190 = vmatprep.subr.mxu0 0.0
        %4191 = vmatpush2.xpose.msra.mxu0 0.0
        %4192 = vmatprep.subr.mxu0 0.0
        %4193 = vmatpush2.xpose.msra.mxu0 0.0
        %4194 = vmatprep.subr.mxu0 0.0
        %4195 = vmatpush2.xpose.msra.mxu0 0.0
        %4196 = vmatprep.subr.mxu0 0.0
        %4197 = vmatpush2.xpose.msra.mxu0 0.0
        %4198 = vmatprep.subr.mxu0 0.0
        %4199 = vmatpush2.xpose.msra.mxu0 0.0
        %4200 = vmatprep.subr.mxu0 0.0
        %4201 = vmatpush2.xpose.msra.mxu0 0.0
        %4202 = vmatprep.subr.mxu0 0.0
        %4203 = vmatpush2.xpose.msra.mxu0 0.0
        %4204 = vmatprep.subr.mxu0 0.0
        %4205 = vmatpush2.xpose.msra.mxu0 0.0
        %4206 = vmatprep.subr.mxu0 0.0
        %4207 = vmatpush2.xpose.msra.mxu0 0.0
        %4208 = vmatprep.subr.mxu0 0.0
        %4209 = vmatpush2.xpose.msra.mxu0 0.0
        %4210 = vmatprep.subr.mxu0 0.0
        %4211 = vmatpush2.xpose.msra.mxu0 0.0
        %4212 = vmatprep.subr.mxu0 0.0
        %4213 = vmatpush2.xpose.msra.mxu0 0.0
        %4214 = vmatprep.subr.mxu0 0.0
        %4215 = vmatpush2.xpose.msra.mxu0 0.0
        %4216 = vmatprep.subr.mxu0 0.0
        %4217 = vmatpush2.xpose.msra.mxu0 0.0
        %4218 = vmatprep.subr.mxu0 0.0
        %4219 = vmatpush2.xpose.msra.mxu0 0.0
        %4220 = vmatprep.mubr.f32.mxu0 0.0
        %4221 = vmatmul.mubr.f32.gmra.mxu0 %v4152
        %v4222 = vpop.f32.mrf.mxu0
        %v4223 = vadd.f32 0.0, %v4222
        %v4224 = vpop.f32.mrf.mxu0
        %4225 = vdwg.mxu0
        %4226 = vrot.lane.b32.xlu0 %v428, 64
        %v4227 = vpop.permute.xlu0 %4226
        %v4229 = vsel %vm599, %v4136, 0
        %v4231 = vsel %vm599, %v4227, 0
        %4233 = vmatprep.subr.mxu0 0.0
        %4234 = vmatpush1.xpose.msra.mxu0 0.0
        %4235 = vmatprep.subr.mxu0 0.0
        %4236 = vmatpush1.xpose.msra.mxu0 0.0
        %4237 = vmatprep.subr.mxu0 0.0
        %4238 = vmatpush1.xpose.msra.mxu0 0.0
        %4239 = vmatprep.subr.mxu0 0.0
        %4240 = vmatpush1.xpose.msra.mxu0 0.0
        %4241 = vmatprep.subr.mxu0 0.0
        %4242 = vmatpush1.xpose.msra.mxu0 0.0
        %4243 = vmatprep.subr.mxu0 0.0
        %4244 = vmatpush1.xpose.msra.mxu0 0.0
        %4245 = vmatprep.subr.mxu0 0.0
        %4246 = vmatpush1.xpose.msra.mxu0 0.0
        %4247 = vmatprep.subr.mxu0 0.0
        %4248 = vmatpush1.xpose.msra.mxu0 0.0
        %4249 = vmatprep.subr.mxu0 0.0
        %4250 = vmatpush1.xpose.msra.mxu0 0.0
        %4251 = vmatprep.subr.mxu0 0.0
        %4252 = vmatpush1.xpose.msra.mxu0 0.0
        %4253 = vmatprep.subr.mxu0 0.0
        %4254 = vmatpush1.xpose.msra.mxu0 0.0
        %4255 = vmatprep.subr.mxu0 0.0
        %4256 = vmatpush1.xpose.msra.mxu0 0.0
        %4257 = vmatprep.subr.mxu0 0.0
        %4258 = vmatpush1.xpose.msra.mxu0 0.0
        %4259 = vmatprep.subr.mxu0 0.0
        %4260 = vmatpush1.xpose.msra.mxu0 0.0
        %4261 = vmatprep.subr.mxu0 0.0
        %4262 = vmatpush1.xpose.msra.mxu0 0.0
        %4263 = vmatprep.subr.mxu0 0.0
        %4264 = vmatpush1.xpose.msra.mxu0 %v4231
        %4265 = vmatprep.subr.mxu0 0.0
        %4266 = vmatpush2.xpose.msra.mxu0 0.0
        %4267 = vmatprep.subr.mxu0 0.0
        %4268 = vmatpush2.xpose.msra.mxu0 0.0
        %4269 = vmatprep.subr.mxu0 0.0
        %4270 = vmatpush2.xpose.msra.mxu0 0.0
        %4271 = vmatprep.subr.mxu0 0.0
        %4272 = vmatpush2.xpose.msra.mxu0 0.0
        %4273 = vmatprep.subr.mxu0 0.0
        %4274 = vmatpush2.xpose.msra.mxu0 0.0
        %4275 = vmatprep.subr.mxu0 0.0
        %4276 = vmatpush2.xpose.msra.mxu0 0.0
        %4277 = vmatprep.subr.mxu0 0.0
        %4278 = vmatpush2.xpose.msra.mxu0 0.0
        %4279 = vmatprep.subr.mxu0 0.0
        %4280 = vmatpush2.xpose.msra.mxu0 0.0
        %4281 = vmatprep.subr.mxu0 0.0
        %4282 = vmatpush2.xpose.msra.mxu0 0.0
        %4283 = vmatprep.subr.mxu0 0.0
        %4284 = vmatpush2.xpose.msra.mxu0 0.0
        %4285 = vmatprep.subr.mxu0 0.0
        %4286 = vmatpush2.xpose.msra.mxu0 0.0
        %4287 = vmatprep.subr.mxu0 0.0
        %4288 = vmatpush2.xpose.msra.mxu0 0.0
        %4289 = vmatprep.subr.mxu0 0.0
        %4290 = vmatpush2.xpose.msra.mxu0 0.0
        %4291 = vmatprep.subr.mxu0 0.0
        %4292 = vmatpush2.xpose.msra.mxu0 0.0
        %4293 = vmatprep.subr.mxu0 0.0
        %4294 = vmatpush2.xpose.msra.mxu0 0.0
        %4295 = vmatprep.subr.mxu0 0.0
        %4296 = vmatpush2.xpose.msra.mxu0 0.0
        %4297 = vmatprep.mubr.f32.mxu0 0.0
        %4298 = vmatmul.mubr.f32.gmra.mxu0 %v4229
        %v4299 = vpop.f32.mrf.mxu0
        %v4300 = vadd.f32 0.0, %v4299
        %v4301 = vpop.f32.mrf.mxu0
        %4302 = vdwg.mxu0
        %4303 = vrot.lane.b32.xlu0 %v433, 64
        %v4304 = vpop.permute.xlu0 %4303
        %v4306 = vsel %vm599, %v4141, 0
        %v4308 = vsel %vm599, %v4304, 0
        %4310 = vmatprep.subr.mxu0 0.0
        %4311 = vmatpush1.xpose.msra.mxu0 0.0
        %4312 = vmatprep.subr.mxu0 0.0
        %4313 = vmatpush1.xpose.msra.mxu0 0.0
        %4314 = vmatprep.subr.mxu0 0.0
        %4315 = vmatpush1.xpose.msra.mxu0 0.0
        %4316 = vmatprep.subr.mxu0 0.0
        %4317 = vmatpush1.xpose.msra.mxu0 0.0
        %4318 = vmatprep.subr.mxu0 0.0
        %4319 = vmatpush1.xpose.msra.mxu0 0.0
        %4320 = vmatprep.subr.mxu0 0.0
        %4321 = vmatpush1.xpose.msra.mxu0 0.0
        %4322 = vmatprep.subr.mxu0 0.0
        %4323 = vmatpush1.xpose.msra.mxu0 0.0
        %4324 = vmatprep.subr.mxu0 0.0
        %4325 = vmatpush1.xpose.msra.mxu0 0.0
        %4326 = vmatprep.subr.mxu0 0.0
        %4327 = vmatpush1.xpose.msra.mxu0 0.0
        %4328 = vmatprep.subr.mxu0 0.0
        %4329 = vmatpush1.xpose.msra.mxu0 0.0
        %4330 = vmatprep.subr.mxu0 0.0
        %4331 = vmatpush1.xpose.msra.mxu0 0.0
        %4332 = vmatprep.subr.mxu0 0.0
        %4333 = vmatpush1.xpose.msra.mxu0 0.0
        %4334 = vmatprep.subr.mxu0 0.0
        %4335 = vmatpush1.xpose.msra.mxu0 0.0
        %4336 = vmatprep.subr.mxu0 0.0
        %4337 = vmatpush1.xpose.msra.mxu0 0.0
        %4338 = vmatprep.subr.mxu0 0.0
        %4339 = vmatpush1.xpose.msra.mxu0 0.0
        %4340 = vmatprep.subr.mxu0 0.0
        %4341 = vmatpush1.xpose.msra.mxu0 %v4308
        %4342 = vmatprep.subr.mxu0 0.0
        %4343 = vmatpush2.xpose.msra.mxu0 0.0
        %4344 = vmatprep.subr.mxu0 0.0
        %4345 = vmatpush2.xpose.msra.mxu0 0.0
        %4346 = vmatprep.subr.mxu0 0.0
        %4347 = vmatpush2.xpose.msra.mxu0 0.0
        %4348 = vmatprep.subr.mxu0 0.0
        %4349 = vmatpush2.xpose.msra.mxu0 0.0
        %4350 = vmatprep.subr.mxu0 0.0
        %4351 = vmatpush2.xpose.msra.mxu0 0.0
        %4352 = vmatprep.subr.mxu0 0.0
        %4353 = vmatpush2.xpose.msra.mxu0 0.0
        %4354 = vmatprep.subr.mxu0 0.0
        %4355 = vmatpush2.xpose.msra.mxu0 0.0
        %4356 = vmatprep.subr.mxu0 0.0
        %4357 = vmatpush2.xpose.msra.mxu0 0.0
        %4358 = vmatprep.subr.mxu0 0.0
        %4359 = vmatpush2.xpose.msra.mxu0 0.0
        %4360 = vmatprep.subr.mxu0 0.0
        %4361 = vmatpush2.xpose.msra.mxu0 0.0
        %4362 = vmatprep.subr.mxu0 0.0
        %4363 = vmatpush2.xpose.msra.mxu0 0.0
        %4364 = vmatprep.subr.mxu0 0.0
        %4365 = vmatpush2.xpose.msra.mxu0 0.0
        %4366 = vmatprep.subr.mxu0 0.0
        %4367 = vmatpush2.xpose.msra.mxu0 0.0
        %4368 = vmatprep.subr.mxu0 0.0
        %4369 = vmatpush2.xpose.msra.mxu0 0.0
        %4370 = vmatprep.subr.mxu0 0.0
        %4371 = vmatpush2.xpose.msra.mxu0 0.0
        %4372 = vmatprep.subr.mxu0 0.0
        %4373 = vmatpush2.xpose.msra.mxu0 0.0
        %4374 = vmatprep.mubr.f32.mxu0 0.0
        %4375 = vmatmul.mubr.f32.gmra.mxu0 %v4306
        %v4376 = vpop.f32.mrf.mxu0
        %v4377 = vadd.f32 0.0, %v4376
        %v4378 = vpop.f32.mrf.mxu0
        %4379 = vdwg.mxu0
        %4380 = vrot.lane.b32.xlu0 %v438, 64
        %v4381 = vpop.permute.xlu0 %4380
        %v4383 = vsel %vm599, %v4146, 0
        %v4385 = vsel %vm599, %v4381, 0
        %4387 = vmatprep.subr.mxu0 0.0
        %4388 = vmatpush1.xpose.msra.mxu0 0.0
        %4389 = vmatprep.subr.mxu0 0.0
        %4390 = vmatpush1.xpose.msra.mxu0 0.0
        %4391 = vmatprep.subr.mxu0 0.0
        %4392 = vmatpush1.xpose.msra.mxu0 0.0
        %4393 = vmatprep.subr.mxu0 0.0
        %4394 = vmatpush1.xpose.msra.mxu0 0.0
        %4395 = vmatprep.subr.mxu0 0.0
        %4396 = vmatpush1.xpose.msra.mxu0 0.0
        %4397 = vmatprep.subr.mxu0 0.0
        %4398 = vmatpush1.xpose.msra.mxu0 0.0
        %4399 = vmatprep.subr.mxu0 0.0
        %4400 = vmatpush1.xpose.msra.mxu0 0.0
        %4401 = vmatprep.subr.mxu0 0.0
        %4402 = vmatpush1.xpose.msra.mxu0 0.0
        %4403 = vmatprep.subr.mxu0 0.0
        %4404 = vmatpush1.xpose.msra.mxu0 0.0
        %4405 = vmatprep.subr.mxu0 0.0
        %4406 = vmatpush1.xpose.msra.mxu0 0.0
        %4407 = vmatprep.subr.mxu0 0.0
        %4408 = vmatpush1.xpose.msra.mxu0 0.0
        %4409 = vmatprep.subr.mxu0 0.0
        %4410 = vmatpush1.xpose.msra.mxu0 0.0
        %4411 = vmatprep.subr.mxu0 0.0
        %4412 = vmatpush1.xpose.msra.mxu0 0.0
        %4413 = vmatprep.subr.mxu0 0.0
        %4414 = vmatpush1.xpose.msra.mxu0 0.0
        %4415 = vmatprep.subr.mxu0 0.0
        %4416 = vmatpush1.xpose.msra.mxu0 0.0
        %4417 = vmatprep.subr.mxu0 0.0
        %4418 = vmatpush1.xpose.msra.mxu0 %v4385
        %4419 = vmatprep.subr.mxu0 0.0
        %4420 = vmatpush2.xpose.msra.mxu0 0.0
        %4421 = vmatprep.subr.mxu0 0.0
        %4422 = vmatpush2.xpose.msra.mxu0 0.0
        %4423 = vmatprep.subr.mxu0 0.0
        %4424 = vmatpush2.xpose.msra.mxu0 0.0
        %4425 = vmatprep.subr.mxu0 0.0
        %4426 = vmatpush2.xpose.msra.mxu0 0.0
        %4427 = vmatprep.subr.mxu0 0.0
        %4428 = vmatpush2.xpose.msra.mxu0 0.0
        %4429 = vmatprep.subr.mxu0 0.0
        %4430 = vmatpush2.xpose.msra.mxu0 0.0
        %4431 = vmatprep.subr.mxu0 0.0
        %4432 = vmatpush2.xpose.msra.mxu0 0.0
        %4433 = vmatprep.subr.mxu0 0.0
        %4434 = vmatpush2.xpose.msra.mxu0 0.0
        %4435 = vmatprep.subr.mxu0 0.0
        %4436 = vmatpush2.xpose.msra.mxu0 0.0
        %4437 = vmatprep.subr.mxu0 0.0
        %4438 = vmatpush2.xpose.msra.mxu0 0.0
        %4439 = vmatprep.subr.mxu0 0.0
        %4440 = vmatpush2.xpose.msra.mxu0 0.0
        %4441 = vmatprep.subr.mxu0 0.0
        %4442 = vmatpush2.xpose.msra.mxu0 0.0
        %4443 = vmatprep.subr.mxu0 0.0
        %4444 = vmatpush2.xpose.msra.mxu0 0.0
        %4445 = vmatprep.subr.mxu0 0.0
        %4446 = vmatpush2.xpose.msra.mxu0 0.0
        %4447 = vmatprep.subr.mxu0 0.0
        %4448 = vmatpush2.xpose.msra.mxu0 0.0
        %4449 = vmatprep.subr.mxu0 0.0
        %4450 = vmatpush2.xpose.msra.mxu0 0.0
        %4451 = vmatprep.mubr.f32.mxu0 0.0
        %4452 = vmatmul.mubr.f32.gmra.mxu0 %v4383
        %v4453 = vpop.f32.mrf.mxu0
        %v4454 = vadd.f32 0.0, %v4453
        %v4455 = vpop.f32.mrf.mxu0
        %4456 = vdwg.mxu0
        %v4457 = vmul.f32 %v4223, 0.35355338
        %v4458 = vmul.f32 %v4300, 0.35355338
        %v4459 = vmul.f32 %v4377, 0.35355338
        %v4460 = vmul.f32 %v4454, 0.35355338
        %v4461 = vadd.f32 %v4457, %v451
        %v4462 = vadd.f32 %v4458, %v457
        %v4463 = vadd.f32 %v4459, %v463
        %v4464 = vadd.f32 %v4460, %v469
        %v4465 = vsel %vm599, %v4461, -inf
        %4466 = vmax.xlane.f32.xlu0 %v4465
        %v4467 = vpop.xlane.xlu0 %4466
        %v4468 = vsel %vm599, %v4462, -inf
        %4469 = vmax.xlane.f32.xlu0 %v4468
        %v4470 = vpop.xlane.xlu0 %4469
        %v4471 = vsel %vm599, %v4463, -inf
        %4472 = vmax.xlane.f32.xlu0 %v4471
        %v4473 = vpop.xlane.xlu0 %4472
        %v4474 = vsel %vm599, %v4464, -inf
        %4475 = vmax.xlane.f32.xlu0 %v4474
        %v4476 = vpop.xlane.xlu0 %4475
        %v4477 = vsub.f32 %v4461, %v4467
        %v4478 = vsub.f32 %v4462, %v4470
        %v4479 = vsub.f32 %v4463, %v4473
        %v4480 = vsub.f32 %v4464, %v4476
        %v4481 = vmul.f32 %v4477, 1.442695
        %v4482 = vpow.pop %v4481
        %v4483 = vmul.f32 %v4478, 1.442695
        %v4484 = vpow.pop %v4483
        %v4485 = vmul.f32 %v4479, 1.442695
        %v4486 = vpow.pop %v4485
        %v4487 = vmul.f32 %v4480, 1.442695
        %v4488 = vpow.pop %v4487
        %v4489 = vsel %vm599, %v4482, 0.0
        %4490 = vadd.xlane.f32.xlu0 %v4489
        %v4491 = vpop.xlane.xlu0 %4490
        %v4492 = vsel %vm599, %v4484, 0.0
        %4493 = vadd.xlane.f32.xlu0 %v4492
        %v4494 = vpop.xlane.xlu0 %4493
        %v4495 = vsel %vm599, %v4486, 0.0
        %4496 = vadd.xlane.f32.xlu0 %v4495
        %v4497 = vpop.xlane.xlu0 %4496
        %v4498 = vsel %vm599, %v4488, 0.0
        %4499 = vadd.xlane.f32.xlu0 %v4498
        %v4500 = vpop.xlane.xlu0 %4499
        %v4501 = vrcp.pop %v4491
        %v4502 = vmul.f32 %v4482, %v4501
        %v4503 = vrcp.pop %v4494
        %v4504 = vmul.f32 %v4484, %v4503
        %v4505 = vrcp.pop %v4497
        %v4506 = vmul.f32 %v4486, %v4505
        %v4507 = vrcp.pop %v4500
        %v4508 = vmul.f32 %v4488, %v4507
        %4509 = vrot.lane.b32.xlu0 %v423, 32
        %v4510 = vpop.permute.xlu0 %4509
        %v4513 = vsel %vm599, %v4502, 0
        %4515 = vmatprep.subr.mxu0 0.0
        %4516 = vmatpush1.msra.mxu0 0.0
        %4517 = vmatprep.subr.mxu0 0.0
        %4518 = vmatpush1.msra.mxu0 0.0
        %4519 = vmatprep.subr.mxu0 0.0
        %4520 = vmatpush1.msra.mxu0 0.0
        %4521 = vmatprep.subr.mxu0 0.0
        %4522 = vmatpush1.msra.mxu0 0.0
        %4523 = vmatprep.subr.mxu0 0.0
        %4524 = vmatpush1.msra.mxu0 0.0
        %4525 = vmatprep.subr.mxu0 0.0
        %4526 = vmatpush1.msra.mxu0 0.0
        %4527 = vmatprep.subr.mxu0 0.0
        %4528 = vmatpush1.msra.mxu0 0.0
        %4529 = vmatprep.subr.mxu0 0.0
        %4530 = vmatpush1.msra.mxu0 0.0
        %4531 = vmatprep.subr.mxu0 0.0
        %4532 = vmatpush1.msra.mxu0 0.0
        %4533 = vmatprep.subr.mxu0 0.0
        %4534 = vmatpush1.msra.mxu0 0.0
        %4535 = vmatprep.subr.mxu0 0.0
        %4536 = vmatpush1.msra.mxu0 0.0
        %4537 = vmatprep.subr.mxu0 0.0
        %4538 = vmatpush1.msra.mxu0 0.0
        %4539 = vmatprep.subr.mxu0 0.0
        %4540 = vmatpush1.msra.mxu0 0.0
        %4541 = vmatprep.subr.mxu0 0.0
        %4542 = vmatpush1.msra.mxu0 0.0
        %4543 = vmatprep.subr.mxu0 0.0
        %4544 = vmatpush1.msra.mxu0 0.0
        %4545 = vmatprep.subr.mxu0 0.0
        %4546 = vmatpush1.msra.mxu0 %v4510
        %4547 = vmatprep.subr.mxu0 0.0
        %4548 = vmatpush2.msra.mxu0 0.0
        %4549 = vmatprep.subr.mxu0 0.0
        %4550 = vmatpush2.msra.mxu0 0.0
        %4551 = vmatprep.subr.mxu0 0.0
        %4552 = vmatpush2.msra.mxu0 0.0
        %4553 = vmatprep.subr.mxu0 0.0
        %4554 = vmatpush2.msra.mxu0 0.0
        %4555 = vmatprep.subr.mxu0 0.0
        %4556 = vmatpush2.msra.mxu0 0.0
        %4557 = vmatprep.subr.mxu0 0.0
        %4558 = vmatpush2.msra.mxu0 0.0
        %4559 = vmatprep.subr.mxu0 0.0
        %4560 = vmatpush2.msra.mxu0 0.0
        %4561 = vmatprep.subr.mxu0 0.0
        %4562 = vmatpush2.msra.mxu0 0.0
        %4563 = vmatprep.subr.mxu0 0.0
        %4564 = vmatpush2.msra.mxu0 0.0
        %4565 = vmatprep.subr.mxu0 0.0
        %4566 = vmatpush2.msra.mxu0 0.0
        %4567 = vmatprep.subr.mxu0 0.0
        %4568 = vmatpush2.msra.mxu0 0.0
        %4569 = vmatprep.subr.mxu0 0.0
        %4570 = vmatpush2.msra.mxu0 0.0
        %4571 = vmatprep.subr.mxu0 0.0
        %4572 = vmatpush2.msra.mxu0 0.0
        %4573 = vmatprep.subr.mxu0 0.0
        %4574 = vmatpush2.msra.mxu0 0.0
        %4575 = vmatprep.subr.mxu0 0.0
        %4576 = vmatpush2.msra.mxu0 0.0
        %4577 = vmatprep.subr.mxu0 0.0
        %4578 = vmatpush2.msra.mxu0 0.0
        %4579 = vmatprep.mubr.f32.mxu0 0.0
        %4580 = vmatmul.mubr.f32.gmra.mxu0 %v4513
        %v4581 = vpop.f32.mrf.mxu0
        %v4582 = vadd.f32 0.0, %v4581
        %v4583 = vpop.f32.mrf.mxu0
        %4584 = vdwg.mxu0
        %4585 = vrot.lane.b32.xlu0 %v428, 32
        %v4586 = vpop.permute.xlu0 %4585
        %v4589 = vsel %vm599, %v4504, 0
        %4591 = vmatprep.subr.mxu0 0.0
        %4592 = vmatpush1.msra.mxu0 0.0
        %4593 = vmatprep.subr.mxu0 0.0
        %4594 = vmatpush1.msra.mxu0 0.0
        %4595 = vmatprep.subr.mxu0 0.0
        %4596 = vmatpush1.msra.mxu0 0.0
        %4597 = vmatprep.subr.mxu0 0.0
        %4598 = vmatpush1.msra.mxu0 0.0
        %4599 = vmatprep.subr.mxu0 0.0
        %4600 = vmatpush1.msra.mxu0 0.0
        %4601 = vmatprep.subr.mxu0 0.0
        %4602 = vmatpush1.msra.mxu0 0.0
        %4603 = vmatprep.subr.mxu0 0.0
        %4604 = vmatpush1.msra.mxu0 0.0
        %4605 = vmatprep.subr.mxu0 0.0
        %4606 = vmatpush1.msra.mxu0 0.0
        %4607 = vmatprep.subr.mxu0 0.0
        %4608 = vmatpush1.msra.mxu0 0.0
        %4609 = vmatprep.subr.mxu0 0.0
        %4610 = vmatpush1.msra.mxu0 0.0
        %4611 = vmatprep.subr.mxu0 0.0
        %4612 = vmatpush1.msra.mxu0 0.0
        %4613 = vmatprep.subr.mxu0 0.0
        %4614 = vmatpush1.msra.mxu0 0.0
        %4615 = vmatprep.subr.mxu0 0.0
        %4616 = vmatpush1.msra.mxu0 0.0
        %4617 = vmatprep.subr.mxu0 0.0
        %4618 = vmatpush1.msra.mxu0 0.0
        %4619 = vmatprep.subr.mxu0 0.0
        %4620 = vmatpush1.msra.mxu0 0.0
        %4621 = vmatprep.subr.mxu0 0.0
        %4622 = vmatpush1.msra.mxu0 %v4586
        %4623 = vmatprep.subr.mxu0 0.0
        %4624 = vmatpush2.msra.mxu0 0.0
        %4625 = vmatprep.subr.mxu0 0.0
        %4626 = vmatpush2.msra.mxu0 0.0
        %4627 = vmatprep.subr.mxu0 0.0
        %4628 = vmatpush2.msra.mxu0 0.0
        %4629 = vmatprep.subr.mxu0 0.0
        %4630 = vmatpush2.msra.mxu0 0.0
        %4631 = vmatprep.subr.mxu0 0.0
        %4632 = vmatpush2.msra.mxu0 0.0
        %4633 = vmatprep.subr.mxu0 0.0
        %4634 = vmatpush2.msra.mxu0 0.0
        %4635 = vmatprep.subr.mxu0 0.0
        %4636 = vmatpush2.msra.mxu0 0.0
        %4637 = vmatprep.subr.mxu0 0.0
        %4638 = vmatpush2.msra.mxu0 0.0
        %4639 = vmatprep.subr.mxu0 0.0
        %4640 = vmatpush2.msra.mxu0 0.0
        %4641 = vmatprep.subr.mxu0 0.0
        %4642 = vmatpush2.msra.mxu0 0.0
        %4643 = vmatprep.subr.mxu0 0.0
        %4644 = vmatpush2.msra.mxu0 0.0
        %4645 = vmatprep.subr.mxu0 0.0
        %4646 = vmatpush2.msra.mxu0 0.0
        %4647 = vmatprep.subr.mxu0 0.0
        %4648 = vmatpush2.msra.mxu0 0.0
        %4649 = vmatprep.subr.mxu0 0.0
        %4650 = vmatpush2.msra.mxu0 0.0
        %4651 = vmatprep.subr.mxu0 0.0
        %4652 = vmatpush2.msra.mxu0 0.0
        %4653 = vmatprep.subr.mxu0 0.0
        %4654 = vmatpush2.msra.mxu0 0.0
        %4655 = vmatprep.mubr.f32.mxu0 0.0
        %4656 = vmatmul.mubr.f32.gmra.mxu0 %v4589
        %v4657 = vpop.f32.mrf.mxu0
        %v4658 = vadd.f32 0.0, %v4657
        %v4659 = vpop.f32.mrf.mxu0
        %4660 = vdwg.mxu0
        %4661 = vrot.lane.b32.xlu0 %v433, 32
        %v4662 = vpop.permute.xlu0 %4661
        %v4665 = vsel %vm599, %v4506, 0
        %4667 = vmatprep.subr.mxu0 0.0
        %4668 = vmatpush1.msra.mxu0 0.0
        %4669 = vmatprep.subr.mxu0 0.0
        %4670 = vmatpush1.msra.mxu0 0.0
        %4671 = vmatprep.subr.mxu0 0.0
        %4672 = vmatpush1.msra.mxu0 0.0
        %4673 = vmatprep.subr.mxu0 0.0
        %4674 = vmatpush1.msra.mxu0 0.0
        %4675 = vmatprep.subr.mxu0 0.0
        %4676 = vmatpush1.msra.mxu0 0.0
        %4677 = vmatprep.subr.mxu0 0.0
        %4678 = vmatpush1.msra.mxu0 0.0
        %4679 = vmatprep.subr.mxu0 0.0
        %4680 = vmatpush1.msra.mxu0 0.0
        %4681 = vmatprep.subr.mxu0 0.0
        %4682 = vmatpush1.msra.mxu0 0.0
        %4683 = vmatprep.subr.mxu0 0.0
        %4684 = vmatpush1.msra.mxu0 0.0
        %4685 = vmatprep.subr.mxu0 0.0
        %4686 = vmatpush1.msra.mxu0 0.0
        %4687 = vmatprep.subr.mxu0 0.0
        %4688 = vmatpush1.msra.mxu0 0.0
        %4689 = vmatprep.subr.mxu0 0.0
        %4690 = vmatpush1.msra.mxu0 0.0
        %4691 = vmatprep.subr.mxu0 0.0
        %4692 = vmatpush1.msra.mxu0 0.0
        %4693 = vmatprep.subr.mxu0 0.0
        %4694 = vmatpush1.msra.mxu0 0.0
        %4695 = vmatprep.subr.mxu0 0.0
        %4696 = vmatpush1.msra.mxu0 0.0
        %4697 = vmatprep.subr.mxu0 0.0
        %4698 = vmatpush1.msra.mxu0 %v4662
        %4699 = vmatprep.subr.mxu0 0.0
        %4700 = vmatpush2.msra.mxu0 0.0
        %4701 = vmatprep.subr.mxu0 0.0
        %4702 = vmatpush2.msra.mxu0 0.0
        %4703 = vmatprep.subr.mxu0 0.0
        %4704 = vmatpush2.msra.mxu0 0.0
        %4705 = vmatprep.subr.mxu0 0.0
        %4706 = vmatpush2.msra.mxu0 0.0
        %4707 = vmatprep.subr.mxu0 0.0
        %4708 = vmatpush2.msra.mxu0 0.0
        %4709 = vmatprep.subr.mxu0 0.0
        %4710 = vmatpush2.msra.mxu0 0.0
        %4711 = vmatprep.subr.mxu0 0.0
        %4712 = vmatpush2.msra.mxu0 0.0
        %4713 = vmatprep.subr.mxu0 0.0
        %4714 = vmatpush2.msra.mxu0 0.0
        %4715 = vmatprep.subr.mxu0 0.0
        %4716 = vmatpush2.msra.mxu0 0.0
        %4717 = vmatprep.subr.mxu0 0.0
        %4718 = vmatpush2.msra.mxu0 0.0
        %4719 = vmatprep.subr.mxu0 0.0
        %4720 = vmatpush2.msra.mxu0 0.0
        %4721 = vmatprep.subr.mxu0 0.0
        %4722 = vmatpush2.msra.mxu0 0.0
        %4723 = vmatprep.subr.mxu0 0.0
        %4724 = vmatpush2.msra.mxu0 0.0
        %4725 = vmatprep.subr.mxu0 0.0
        %4726 = vmatpush2.msra.mxu0 0.0
        %4727 = vmatprep.subr.mxu0 0.0
        %4728 = vmatpush2.msra.mxu0 0.0
        %4729 = vmatprep.subr.mxu0 0.0
        %4730 = vmatpush2.msra.mxu0 0.0
        %4731 = vmatprep.mubr.f32.mxu0 0.0
        %4732 = vmatmul.mubr.f32.gmra.mxu0 %v4665
        %v4733 = vpop.f32.mrf.mxu0
        %v4734 = vadd.f32 0.0, %v4733
        %v4735 = vpop.f32.mrf.mxu0
        %4736 = vdwg.mxu0
        %4737 = vrot.lane.b32.xlu0 %v438, 32
        %v4738 = vpop.permute.xlu0 %4737
        %v4741 = vsel %vm599, %v4508, 0
        %4743 = vmatprep.subr.mxu0 0.0
        %4744 = vmatpush1.msra.mxu0 0.0
        %4745 = vmatprep.subr.mxu0 0.0
        %4746 = vmatpush1.msra.mxu0 0.0
        %4747 = vmatprep.subr.mxu0 0.0
        %4748 = vmatpush1.msra.mxu0 0.0
        %4749 = vmatprep.subr.mxu0 0.0
        %4750 = vmatpush1.msra.mxu0 0.0
        %4751 = vmatprep.subr.mxu0 0.0
        %4752 = vmatpush1.msra.mxu0 0.0
        %4753 = vmatprep.subr.mxu0 0.0
        %4754 = vmatpush1.msra.mxu0 0.0
        %4755 = vmatprep.subr.mxu0 0.0
        %4756 = vmatpush1.msra.mxu0 0.0
        %4757 = vmatprep.subr.mxu0 0.0
        %4758 = vmatpush1.msra.mxu0 0.0
        %4759 = vmatprep.subr.mxu0 0.0
        %4760 = vmatpush1.msra.mxu0 0.0
        %4761 = vmatprep.subr.mxu0 0.0
        %4762 = vmatpush1.msra.mxu0 0.0
        %4763 = vmatprep.subr.mxu0 0.0
        %4764 = vmatpush1.msra.mxu0 0.0
        %4765 = vmatprep.subr.mxu0 0.0
        %4766 = vmatpush1.msra.mxu0 0.0
        %4767 = vmatprep.subr.mxu0 0.0
        %4768 = vmatpush1.msra.mxu0 0.0
        %4769 = vmatprep.subr.mxu0 0.0
        %4770 = vmatpush1.msra.mxu0 0.0
        %4771 = vmatprep.subr.mxu0 0.0
        %4772 = vmatpush1.msra.mxu0 0.0
        %4773 = vmatprep.subr.mxu0 0.0
        %4774 = vmatpush1.msra.mxu0 %v4738
        %4775 = vmatprep.subr.mxu0 0.0
        %4776 = vmatpush2.msra.mxu0 0.0
        %4777 = vmatprep.subr.mxu0 0.0
        %4778 = vmatpush2.msra.mxu0 0.0
        %4779 = vmatprep.subr.mxu0 0.0
        %4780 = vmatpush2.msra.mxu0 0.0
        %4781 = vmatprep.subr.mxu0 0.0
        %4782 = vmatpush2.msra.mxu0 0.0
        %4783 = vmatprep.subr.mxu0 0.0
        %4784 = vmatpush2.msra.mxu0 0.0
        %4785 = vmatprep.subr.mxu0 0.0
        %4786 = vmatpush2.msra.mxu0 0.0
        %4787 = vmatprep.subr.mxu0 0.0
        %4788 = vmatpush2.msra.mxu0 0.0
        %4789 = vmatprep.subr.mxu0 0.0
        %4790 = vmatpush2.msra.mxu0 0.0
        %4791 = vmatprep.subr.mxu0 0.0
        %4792 = vmatpush2.msra.mxu0 0.0
        %4793 = vmatprep.subr.mxu0 0.0
        %4794 = vmatpush2.msra.mxu0 0.0
        %4795 = vmatprep.subr.mxu0 0.0
        %4796 = vmatpush2.msra.mxu0 0.0
        %4797 = vmatprep.subr.mxu0 0.0
        %4798 = vmatpush2.msra.mxu0 0.0
        %4799 = vmatprep.subr.mxu0 0.0
        %4800 = vmatpush2.msra.mxu0 0.0
        %4801 = vmatprep.subr.mxu0 0.0
        %4802 = vmatpush2.msra.mxu0 0.0
        %4803 = vmatprep.subr.mxu0 0.0
        %4804 = vmatpush2.msra.mxu0 0.0
        %4805 = vmatprep.subr.mxu0 0.0
        %4806 = vmatpush2.msra.mxu0 0.0
        %4807 = vmatprep.mubr.f32.mxu0 0.0
        %4808 = vmatmul.mubr.f32.gmra.mxu0 %v4741
        %v4809 = vpop.f32.mrf.mxu0
        %v4810 = vadd.f32 0.0, %v4809
        %v4811 = vpop.f32.mrf.mxu0
        %4812 = vdwg.mxu0
        %4813 = vrot.lane.b32.xlu0 %v4131, 120
        %v4814 = vpop.permute.xlu0 %4813
        %4815 = vrot.lane.b32.xlu0 %v423, 56
        %v4816 = vpop.permute.xlu0 %4815
        %v4817 = vsel %vm599, %v4814, 0
        %v4819 = vsel %vm599, %v4816, 0
        %4821 = vmatprep.subr.mxu0 0.0
        %4822 = vmatpush1.xpose.msra.mxu0 0.0
        %4823 = vmatprep.subr.mxu0 0.0
        %4824 = vmatpush1.xpose.msra.mxu0 0.0
        %4825 = vmatprep.subr.mxu0 0.0
        %4826 = vmatpush1.xpose.msra.mxu0 0.0
        %4827 = vmatprep.subr.mxu0 0.0
        %4828 = vmatpush1.xpose.msra.mxu0 0.0
        %4829 = vmatprep.subr.mxu0 0.0
        %4830 = vmatpush1.xpose.msra.mxu0 0.0
        %4831 = vmatprep.subr.mxu0 0.0
        %4832 = vmatpush1.xpose.msra.mxu0 0.0
        %4833 = vmatprep.subr.mxu0 0.0
        %4834 = vmatpush1.xpose.msra.mxu0 0.0
        %4835 = vmatprep.subr.mxu0 0.0
        %4836 = vmatpush1.xpose.msra.mxu0 0.0
        %4837 = vmatprep.subr.mxu0 0.0
        %4838 = vmatpush1.xpose.msra.mxu0 0.0
        %4839 = vmatprep.subr.mxu0 0.0
        %4840 = vmatpush1.xpose.msra.mxu0 0.0
        %4841 = vmatprep.subr.mxu0 0.0
        %4842 = vmatpush1.xpose.msra.mxu0 0.0
        %4843 = vmatprep.subr.mxu0 0.0
        %4844 = vmatpush1.xpose.msra.mxu0 0.0
        %4845 = vmatprep.subr.mxu0 0.0
        %4846 = vmatpush1.xpose.msra.mxu0 0.0
        %4847 = vmatprep.subr.mxu0 0.0
        %4848 = vmatpush1.xpose.msra.mxu0 0.0
        %4849 = vmatprep.subr.mxu0 0.0
        %4850 = vmatpush1.xpose.msra.mxu0 0.0
        %4851 = vmatprep.subr.mxu0 0.0
        %4852 = vmatpush1.xpose.msra.mxu0 %v4819
        %4853 = vmatprep.subr.mxu0 0.0
        %4854 = vmatpush2.xpose.msra.mxu0 0.0
        %4855 = vmatprep.subr.mxu0 0.0
        %4856 = vmatpush2.xpose.msra.mxu0 0.0
        %4857 = vmatprep.subr.mxu0 0.0
        %4858 = vmatpush2.xpose.msra.mxu0 0.0
        %4859 = vmatprep.subr.mxu0 0.0
        %4860 = vmatpush2.xpose.msra.mxu0 0.0
        %4861 = vmatprep.subr.mxu0 0.0
        %4862 = vmatpush2.xpose.msra.mxu0 0.0
        %4863 = vmatprep.subr.mxu0 0.0
        %4864 = vmatpush2.xpose.msra.mxu0 0.0
        %4865 = vmatprep.subr.mxu0 0.0
        %4866 = vmatpush2.xpose.msra.mxu0 0.0
        %4867 = vmatprep.subr.mxu0 0.0
        %4868 = vmatpush2.xpose.msra.mxu0 0.0
        %4869 = vmatprep.subr.mxu0 0.0
        %4870 = vmatpush2.xpose.msra.mxu0 0.0
        %4871 = vmatprep.subr.mxu0 0.0
        %4872 = vmatpush2.xpose.msra.mxu0 0.0
        %4873 = vmatprep.subr.mxu0 0.0
        %4874 = vmatpush2.xpose.msra.mxu0 0.0
        %4875 = vmatprep.subr.mxu0 0.0
        %4876 = vmatpush2.xpose.msra.mxu0 0.0
        %4877 = vmatprep.subr.mxu0 0.0
        %4878 = vmatpush2.xpose.msra.mxu0 0.0
        %4879 = vmatprep.subr.mxu0 0.0
        %4880 = vmatpush2.xpose.msra.mxu0 0.0
        %4881 = vmatprep.subr.mxu0 0.0
        %4882 = vmatpush2.xpose.msra.mxu0 0.0
        %4883 = vmatprep.subr.mxu0 0.0
        %4884 = vmatpush2.xpose.msra.mxu0 0.0
        %4885 = vmatprep.mubr.f32.mxu0 0.0
        %4886 = vmatmul.mubr.f32.gmra.mxu0 %v4817
        %v4887 = vpop.f32.mrf.mxu0
        %v4888 = vadd.f32 0.0, %v4887
        %v4889 = vpop.f32.mrf.mxu0
        %4890 = vdwg.mxu0
        %4891 = vrot.lane.b32.xlu0 %v4136, 120
        %v4892 = vpop.permute.xlu0 %4891
        %4893 = vrot.lane.b32.xlu0 %v428, 56
        %v4894 = vpop.permute.xlu0 %4893
        %v4895 = vsel %vm599, %v4892, 0
        %v4897 = vsel %vm599, %v4894, 0
        %4899 = vmatprep.subr.mxu0 0.0
        %4900 = vmatpush1.xpose.msra.mxu0 0.0
        %4901 = vmatprep.subr.mxu0 0.0
        %4902 = vmatpush1.xpose.msra.mxu0 0.0
        %4903 = vmatprep.subr.mxu0 0.0
        %4904 = vmatpush1.xpose.msra.mxu0 0.0
        %4905 = vmatprep.subr.mxu0 0.0
        %4906 = vmatpush1.xpose.msra.mxu0 0.0
        %4907 = vmatprep.subr.mxu0 0.0
        %4908 = vmatpush1.xpose.msra.mxu0 0.0
        %4909 = vmatprep.subr.mxu0 0.0
        %4910 = vmatpush1.xpose.msra.mxu0 0.0
        %4911 = vmatprep.subr.mxu0 0.0
        %4912 = vmatpush1.xpose.msra.mxu0 0.0
        %4913 = vmatprep.subr.mxu0 0.0
        %4914 = vmatpush1.xpose.msra.mxu0 0.0
        %4915 = vmatprep.subr.mxu0 0.0
        %4916 = vmatpush1.xpose.msra.mxu0 0.0
        %4917 = vmatprep.subr.mxu0 0.0
        %4918 = vmatpush1.xpose.msra.mxu0 0.0
        %4919 = vmatprep.subr.mxu0 0.0
        %4920 = vmatpush1.xpose.msra.mxu0 0.0
        %4921 = vmatprep.subr.mxu0 0.0
        %4922 = vmatpush1.xpose.msra.mxu0 0.0
        %4923 = vmatprep.subr.mxu0 0.0
        %4924 = vmatpush1.xpose.msra.mxu0 0.0
        %4925 = vmatprep.subr.mxu0 0.0
        %4926 = vmatpush1.xpose.msra.mxu0 0.0
        %4927 = vmatprep.subr.mxu0 0.0
        %4928 = vmatpush1.xpose.msra.mxu0 0.0
        %4929 = vmatprep.subr.mxu0 0.0
        %4930 = vmatpush1.xpose.msra.mxu0 %v4897
        %4931 = vmatprep.subr.mxu0 0.0
        %4932 = vmatpush2.xpose.msra.mxu0 0.0
        %4933 = vmatprep.subr.mxu0 0.0
        %4934 = vmatpush2.xpose.msra.mxu0 0.0
        %4935 = vmatprep.subr.mxu0 0.0
        %4936 = vmatpush2.xpose.msra.mxu0 0.0
        %4937 = vmatprep.subr.mxu0 0.0
        %4938 = vmatpush2.xpose.msra.mxu0 0.0
        %4939 = vmatprep.subr.mxu0 0.0
        %4940 = vmatpush2.xpose.msra.mxu0 0.0
        %4941 = vmatprep.subr.mxu0 0.0
        %4942 = vmatpush2.xpose.msra.mxu0 0.0
        %4943 = vmatprep.subr.mxu0 0.0
        %4944 = vmatpush2.xpose.msra.mxu0 0.0
        %4945 = vmatprep.subr.mxu0 0.0
        %4946 = vmatpush2.xpose.msra.mxu0 0.0
        %4947 = vmatprep.subr.mxu0 0.0
        %4948 = vmatpush2.xpose.msra.mxu0 0.0
        %4949 = vmatprep.subr.mxu0 0.0
        %4950 = vmatpush2.xpose.msra.mxu0 0.0
        %4951 = vmatprep.subr.mxu0 0.0
        %4952 = vmatpush2.xpose.msra.mxu0 0.0
        %4953 = vmatprep.subr.mxu0 0.0
        %4954 = vmatpush2.xpose.msra.mxu0 0.0
        %4955 = vmatprep.subr.mxu0 0.0
        %4956 = vmatpush2.xpose.msra.mxu0 0.0
        %4957 = vmatprep.subr.mxu0 0.0
        %4958 = vmatpush2.xpose.msra.mxu0 0.0
        %4959 = vmatprep.subr.mxu0 0.0
        %4960 = vmatpush2.xpose.msra.mxu0 0.0
        %4961 = vmatprep.subr.mxu0 0.0
        %4962 = vmatpush2.xpose.msra.mxu0 0.0
        %4963 = vmatprep.mubr.f32.mxu0 0.0
        %4964 = vmatmul.mubr.f32.gmra.mxu0 %v4895
        %v4965 = vpop.f32.mrf.mxu0
        %v4966 = vadd.f32 0.0, %v4965
        %v4967 = vpop.f32.mrf.mxu0
        %4968 = vdwg.mxu0
        %4969 = vrot.lane.b32.xlu0 %v4141, 120
        %v4970 = vpop.permute.xlu0 %4969
        %4971 = vrot.lane.b32.xlu0 %v433, 56
        %v4972 = vpop.permute.xlu0 %4971
        %v4973 = vsel %vm599, %v4970, 0
        %v4975 = vsel %vm599, %v4972, 0
        %4977 = vmatprep.subr.mxu0 0.0
        %4978 = vmatpush1.xpose.msra.mxu0 0.0
        %4979 = vmatprep.subr.mxu0 0.0
        %4980 = vmatpush1.xpose.msra.mxu0 0.0
        %4981 = vmatprep.subr.mxu0 0.0
        %4982 = vmatpush1.xpose.msra.mxu0 0.0
        %4983 = vmatprep.subr.mxu0 0.0
        %4984 = vmatpush1.xpose.msra.mxu0 0.0
        %4985 = vmatprep.subr.mxu0 0.0
        %4986 = vmatpush1.xpose.msra.mxu0 0.0
        %4987 = vmatprep.subr.mxu0 0.0
        %4988 = vmatpush1.xpose.msra.mxu0 0.0
        %4989 = vmatprep.subr.mxu0 0.0
        %4990 = vmatpush1.xpose.msra.mxu0 0.0
        %4991 = vmatprep.subr.mxu0 0.0
        %4992 = vmatpush1.xpose.msra.mxu0 0.0
        %4993 = vmatprep.subr.mxu0 0.0
        %4994 = vmatpush1.xpose.msra.mxu0 0.0
        %4995 = vmatprep.subr.mxu0 0.0
        %4996 = vmatpush1.xpose.msra.mxu0 0.0
        %4997 = vmatprep.subr.mxu0 0.0
        %4998 = vmatpush1.xpose.msra.mxu0 0.0
        %4999 = vmatprep.subr.mxu0 0.0
        %5000 = vmatpush1.xpose.msra.mxu0 0.0
        %5001 = vmatprep.subr.mxu0 0.0
        %5002 = vmatpush1.xpose.msra.mxu0 0.0
        %5003 = vmatprep.subr.mxu0 0.0
        %5004 = vmatpush1.xpose.msra.mxu0 0.0
        %5005 = vmatprep.subr.mxu0 0.0
        %5006 = vmatpush1.xpose.msra.mxu0 0.0
        %5007 = vmatprep.subr.mxu0 0.0
        %5008 = vmatpush1.xpose.msra.mxu0 %v4975
        %5009 = vmatprep.subr.mxu0 0.0
        %5010 = vmatpush2.xpose.msra.mxu0 0.0
        %5011 = vmatprep.subr.mxu0 0.0
        %5012 = vmatpush2.xpose.msra.mxu0 0.0
        %5013 = vmatprep.subr.mxu0 0.0
        %5014 = vmatpush2.xpose.msra.mxu0 0.0
        %5015 = vmatprep.subr.mxu0 0.0
        %5016 = vmatpush2.xpose.msra.mxu0 0.0
        %5017 = vmatprep.subr.mxu0 0.0
        %5018 = vmatpush2.xpose.msra.mxu0 0.0
        %5019 = vmatprep.subr.mxu0 0.0
        %5020 = vmatpush2.xpose.msra.mxu0 0.0
        %5021 = vmatprep.subr.mxu0 0.0
        %5022 = vmatpush2.xpose.msra.mxu0 0.0
        %5023 = vmatprep.subr.mxu0 0.0
        %5024 = vmatpush2.xpose.msra.mxu0 0.0
        %5025 = vmatprep.subr.mxu0 0.0
        %5026 = vmatpush2.xpose.msra.mxu0 0.0
        %5027 = vmatprep.subr.mxu0 0.0
        %5028 = vmatpush2.xpose.msra.mxu0 0.0
        %5029 = vmatprep.subr.mxu0 0.0
        %5030 = vmatpush2.xpose.msra.mxu0 0.0
        %5031 = vmatprep.subr.mxu0 0.0
        %5032 = vmatpush2.xpose.msra.mxu0 0.0
        %5033 = vmatprep.subr.mxu0 0.0
        %5034 = vmatpush2.xpose.msra.mxu0 0.0
        %5035 = vmatprep.subr.mxu0 0.0
        %5036 = vmatpush2.xpose.msra.mxu0 0.0
        %5037 = vmatprep.subr.mxu0 0.0
        %5038 = vmatpush2.xpose.msra.mxu0 0.0
        %5039 = vmatprep.subr.mxu0 0.0
        %5040 = vmatpush2.xpose.msra.mxu0 0.0
        %5041 = vmatprep.mubr.f32.mxu0 0.0
        %5042 = vmatmul.mubr.f32.gmra.mxu0 %v4973
        %v5043 = vpop.f32.mrf.mxu0
        %v5044 = vadd.f32 0.0, %v5043
        %v5045 = vpop.f32.mrf.mxu0
        %5046 = vdwg.mxu0
        %5047 = vrot.lane.b32.xlu0 %v4146, 120
        %v5048 = vpop.permute.xlu0 %5047
        %5049 = vrot.lane.b32.xlu0 %v438, 56
        %v5050 = vpop.permute.xlu0 %5049
        %v5051 = vsel %vm599, %v5048, 0
        %v5053 = vsel %vm599, %v5050, 0
        %5055 = vmatprep.subr.mxu0 0.0
        %5056 = vmatpush1.xpose.msra.mxu0 0.0
        %5057 = vmatprep.subr.mxu0 0.0
        %5058 = vmatpush1.xpose.msra.mxu0 0.0
        %5059 = vmatprep.subr.mxu0 0.0
        %5060 = vmatpush1.xpose.msra.mxu0 0.0
        %5061 = vmatprep.subr.mxu0 0.0
        %5062 = vmatpush1.xpose.msra.mxu0 0.0
        %5063 = vmatprep.subr.mxu0 0.0
        %5064 = vmatpush1.xpose.msra.mxu0 0.0
        %5065 = vmatprep.subr.mxu0 0.0
        %5066 = vmatpush1.xpose.msra.mxu0 0.0
        %5067 = vmatprep.subr.mxu0 0.0
        %5068 = vmatpush1.xpose.msra.mxu0 0.0
        %5069 = vmatprep.subr.mxu0 0.0
        %5070 = vmatpush1.xpose.msra.mxu0 0.0
        %5071 = vmatprep.subr.mxu0 0.0
        %5072 = vmatpush1.xpose.msra.mxu0 0.0
        %5073 = vmatprep.subr.mxu0 0.0
        %5074 = vmatpush1.xpose.msra.mxu0 0.0
        %5075 = vmatprep.subr.mxu0 0.0
        %5076 = vmatpush1.xpose.msra.mxu0 0.0
        %5077 = vmatprep.subr.mxu0 0.0
        %5078 = vmatpush1.xpose.msra.mxu0 0.0
        %5079 = vmatprep.subr.mxu0 0.0
        %5080 = vmatpush1.xpose.msra.mxu0 0.0
        %5081 = vmatprep.subr.mxu0 0.0
        %5082 = vmatpush1.xpose.msra.mxu0 0.0
        %5083 = vmatprep.subr.mxu0 0.0
        %5084 = vmatpush1.xpose.msra.mxu0 0.0
        %5085 = vmatprep.subr.mxu0 0.0
        %5086 = vmatpush1.xpose.msra.mxu0 %v5053
        %5087 = vmatprep.subr.mxu0 0.0
        %5088 = vmatpush2.xpose.msra.mxu0 0.0
        %5089 = vmatprep.subr.mxu0 0.0
        %5090 = vmatpush2.xpose.msra.mxu0 0.0
        %5091 = vmatprep.subr.mxu0 0.0
        %5092 = vmatpush2.xpose.msra.mxu0 0.0
        %5093 = vmatprep.subr.mxu0 0.0
        %5094 = vmatpush2.xpose.msra.mxu0 0.0
        %5095 = vmatprep.subr.mxu0 0.0
        %5096 = vmatpush2.xpose.msra.mxu0 0.0
        %5097 = vmatprep.subr.mxu0 0.0
        %5098 = vmatpush2.xpose.msra.mxu0 0.0
        %5099 = vmatprep.subr.mxu0 0.0
        %5100 = vmatpush2.xpose.msra.mxu0 0.0
        %5101 = vmatprep.subr.mxu0 0.0
        %5102 = vmatpush2.xpose.msra.mxu0 0.0
        %5103 = vmatprep.subr.mxu0 0.0
        %5104 = vmatpush2.xpose.msra.mxu0 0.0
        %5105 = vmatprep.subr.mxu0 0.0
        %5106 = vmatpush2.xpose.msra.mxu0 0.0
        %5107 = vmatprep.subr.mxu0 0.0
        %5108 = vmatpush2.xpose.msra.mxu0 0.0
        %5109 = vmatprep.subr.mxu0 0.0
        %5110 = vmatpush2.xpose.msra.mxu0 0.0
        %5111 = vmatprep.subr.mxu0 0.0
        %5112 = vmatpush2.xpose.msra.mxu0 0.0
        %5113 = vmatprep.subr.mxu0 0.0
        %5114 = vmatpush2.xpose.msra.mxu0 0.0
        %5115 = vmatprep.subr.mxu0 0.0
        %5116 = vmatpush2.xpose.msra.mxu0 0.0
        %5117 = vmatprep.subr.mxu0 0.0
        %5118 = vmatpush2.xpose.msra.mxu0 0.0
        %5119 = vmatprep.mubr.f32.mxu0 0.0
        %5120 = vmatmul.mubr.f32.gmra.mxu0 %v5051
        %v5121 = vpop.f32.mrf.mxu0
        %v5122 = vadd.f32 0.0, %v5121
        %v5123 = vpop.f32.mrf.mxu0
        %5124 = vdwg.mxu0
        %v5125 = vmul.f32 %v4888, 0.35355338
        %v5126 = vmul.f32 %v4966, 0.35355338
        %v5127 = vmul.f32 %v5044, 0.35355338
        %v5128 = vmul.f32 %v5122, 0.35355338
        %v5129 = vadd.f32 %v5125, %v451
        %v5130 = vadd.f32 %v5126, %v457
        %v5131 = vadd.f32 %v5127, %v463
        %v5132 = vadd.f32 %v5128, %v469
        %v5133 = vsel %vm599, %v5129, -inf
        %5134 = vmax.xlane.f32.xlu0 %v5133
        %v5135 = vpop.xlane.xlu0 %5134
        %v5136 = vsel %vm599, %v5130, -inf
        %5137 = vmax.xlane.f32.xlu0 %v5136
        %v5138 = vpop.xlane.xlu0 %5137
        %v5139 = vsel %vm599, %v5131, -inf
        %5140 = vmax.xlane.f32.xlu0 %v5139
        %v5141 = vpop.xlane.xlu0 %5140
        %v5142 = vsel %vm599, %v5132, -inf
        %5143 = vmax.xlane.f32.xlu0 %v5142
        %v5144 = vpop.xlane.xlu0 %5143
        %v5145 = vsub.f32 %v5129, %v5135
        %v5146 = vsub.f32 %v5130, %v5138
        %v5147 = vsub.f32 %v5131, %v5141
        %v5148 = vsub.f32 %v5132, %v5144
        %v5149 = vmul.f32 %v5145, 1.442695
        %v5150 = vpow.pop %v5149
        %v5151 = vmul.f32 %v5146, 1.442695
        %v5152 = vpow.pop %v5151
        %v5153 = vmul.f32 %v5147, 1.442695
        %v5154 = vpow.pop %v5153
        %v5155 = vmul.f32 %v5148, 1.442695
        %v5156 = vpow.pop %v5155
        %v5157 = vsel %vm599, %v5150, 0.0
        %5158 = vadd.xlane.f32.xlu0 %v5157
        %v5159 = vpop.xlane.xlu0 %5158
        %v5160 = vsel %vm599, %v5152, 0.0
        %5161 = vadd.xlane.f32.xlu0 %v5160
        %v5162 = vpop.xlane.xlu0 %5161
        %v5163 = vsel %vm599, %v5154, 0.0
        %5164 = vadd.xlane.f32.xlu0 %v5163
        %v5165 = vpop.xlane.xlu0 %5164
        %v5166 = vsel %vm599, %v5156, 0.0
        %5167 = vadd.xlane.f32.xlu0 %v5166
        %v5168 = vpop.xlane.xlu0 %5167
        %v5169 = vrcp.pop %v5159
        %v5170 = vmul.f32 %v5150, %v5169
        %v5171 = vrcp.pop %v5162
        %v5172 = vmul.f32 %v5152, %v5171
        %v5173 = vrcp.pop %v5165
        %v5174 = vmul.f32 %v5154, %v5173
        %v5175 = vrcp.pop %v5168
        %v5176 = vmul.f32 %v5156, %v5175
        %5177 = vrot.lane.b32.xlu0 %v423, 24
        %v5178 = vpop.permute.xlu0 %5177
        %v5181 = vsel %vm599, %v5170, 0
        %5183 = vmatprep.subr.mxu0 0.0
        %5184 = vmatpush1.msra.mxu0 0.0
        %5185 = vmatprep.subr.mxu0 0.0
        %5186 = vmatpush1.msra.mxu0 0.0
        %5187 = vmatprep.subr.mxu0 0.0
        %5188 = vmatpush1.msra.mxu0 0.0
        %5189 = vmatprep.subr.mxu0 0.0
        %5190 = vmatpush1.msra.mxu0 0.0
        %5191 = vmatprep.subr.mxu0 0.0
        %5192 = vmatpush1.msra.mxu0 0.0
        %5193 = vmatprep.subr.mxu0 0.0
        %5194 = vmatpush1.msra.mxu0 0.0
        %5195 = vmatprep.subr.mxu0 0.0
        %5196 = vmatpush1.msra.mxu0 0.0
        %5197 = vmatprep.subr.mxu0 0.0
        %5198 = vmatpush1.msra.mxu0 0.0
        %5199 = vmatprep.subr.mxu0 0.0
        %5200 = vmatpush1.msra.mxu0 0.0
        %5201 = vmatprep.subr.mxu0 0.0
        %5202 = vmatpush1.msra.mxu0 0.0
        %5203 = vmatprep.subr.mxu0 0.0
        %5204 = vmatpush1.msra.mxu0 0.0
        %5205 = vmatprep.subr.mxu0 0.0
        %5206 = vmatpush1.msra.mxu0 0.0
        %5207 = vmatprep.subr.mxu0 0.0
        %5208 = vmatpush1.msra.mxu0 0.0
        %5209 = vmatprep.subr.mxu0 0.0
        %5210 = vmatpush1.msra.mxu0 0.0
        %5211 = vmatprep.subr.mxu0 0.0
        %5212 = vmatpush1.msra.mxu0 0.0
        %5213 = vmatprep.subr.mxu0 0.0
        %5214 = vmatpush1.msra.mxu0 %v5178
        %5215 = vmatprep.subr.mxu0 0.0
        %5216 = vmatpush2.msra.mxu0 0.0
        %5217 = vmatprep.subr.mxu0 0.0
        %5218 = vmatpush2.msra.mxu0 0.0
        %5219 = vmatprep.subr.mxu0 0.0
        %5220 = vmatpush2.msra.mxu0 0.0
        %5221 = vmatprep.subr.mxu0 0.0
        %5222 = vmatpush2.msra.mxu0 0.0
        %5223 = vmatprep.subr.mxu0 0.0
        %5224 = vmatpush2.msra.mxu0 0.0
        %5225 = vmatprep.subr.mxu0 0.0
        %5226 = vmatpush2.msra.mxu0 0.0
        %5227 = vmatprep.subr.mxu0 0.0
        %5228 = vmatpush2.msra.mxu0 0.0
        %5229 = vmatprep.subr.mxu0 0.0
        %5230 = vmatpush2.msra.mxu0 0.0
        %5231 = vmatprep.subr.mxu0 0.0
        %5232 = vmatpush2.msra.mxu0 0.0
        %5233 = vmatprep.subr.mxu0 0.0
        %5234 = vmatpush2.msra.mxu0 0.0
        %5235 = vmatprep.subr.mxu0 0.0
        %5236 = vmatpush2.msra.mxu0 0.0
        %5237 = vmatprep.subr.mxu0 0.0
        %5238 = vmatpush2.msra.mxu0 0.0
        %5239 = vmatprep.subr.mxu0 0.0
        %5240 = vmatpush2.msra.mxu0 0.0
        %5241 = vmatprep.subr.mxu0 0.0
        %5242 = vmatpush2.msra.mxu0 0.0
        %5243 = vmatprep.subr.mxu0 0.0
        %5244 = vmatpush2.msra.mxu0 0.0
        %5245 = vmatprep.subr.mxu0 0.0
        %5246 = vmatpush2.msra.mxu0 0.0
        %5247 = vmatprep.mubr.f32.mxu0 0.0
        %5248 = vmatmul.mubr.f32.gmra.mxu0 %v5181
        %v5249 = vpop.f32.mrf.mxu0
        %v5250 = vadd.f32 0.0, %v5249
        %v5251 = vpop.f32.mrf.mxu0
        %5252 = vdwg.mxu0
        %5253 = vrot.lane.b32.xlu0 %v428, 24
        %v5254 = vpop.permute.xlu0 %5253
        %v5257 = vsel %vm599, %v5172, 0
        %5259 = vmatprep.subr.mxu0 0.0
        %5260 = vmatpush1.msra.mxu0 0.0
        %5261 = vmatprep.subr.mxu0 0.0
        %5262 = vmatpush1.msra.mxu0 0.0
        %5263 = vmatprep.subr.mxu0 0.0
        %5264 = vmatpush1.msra.mxu0 0.0
        %5265 = vmatprep.subr.mxu0 0.0
        %5266 = vmatpush1.msra.mxu0 0.0
        %5267 = vmatprep.subr.mxu0 0.0
        %5268 = vmatpush1.msra.mxu0 0.0
        %5269 = vmatprep.subr.mxu0 0.0
        %5270 = vmatpush1.msra.mxu0 0.0
        %5271 = vmatprep.subr.mxu0 0.0
        %5272 = vmatpush1.msra.mxu0 0.0
        %5273 = vmatprep.subr.mxu0 0.0
        %5274 = vmatpush1.msra.mxu0 0.0
        %5275 = vmatprep.subr.mxu0 0.0
        %5276 = vmatpush1.msra.mxu0 0.0
        %5277 = vmatprep.subr.mxu0 0.0
        %5278 = vmatpush1.msra.mxu0 0.0
        %5279 = vmatprep.subr.mxu0 0.0
        %5280 = vmatpush1.msra.mxu0 0.0
        %5281 = vmatprep.subr.mxu0 0.0
        %5282 = vmatpush1.msra.mxu0 0.0
        %5283 = vmatprep.subr.mxu0 0.0
        %5284 = vmatpush1.msra.mxu0 0.0
        %5285 = vmatprep.subr.mxu0 0.0
        %5286 = vmatpush1.msra.mxu0 0.0
        %5287 = vmatprep.subr.mxu0 0.0
        %5288 = vmatpush1.msra.mxu0 0.0
        %5289 = vmatprep.subr.mxu0 0.0
        %5290 = vmatpush1.msra.mxu0 %v5254
        %5291 = vmatprep.subr.mxu0 0.0
        %5292 = vmatpush2.msra.mxu0 0.0
        %5293 = vmatprep.subr.mxu0 0.0
        %5294 = vmatpush2.msra.mxu0 0.0
        %5295 = vmatprep.subr.mxu0 0.0
        %5296 = vmatpush2.msra.mxu0 0.0
        %5297 = vmatprep.subr.mxu0 0.0
        %5298 = vmatpush2.msra.mxu0 0.0
        %5299 = vmatprep.subr.mxu0 0.0
        %5300 = vmatpush2.msra.mxu0 0.0
        %5301 = vmatprep.subr.mxu0 0.0
        %5302 = vmatpush2.msra.mxu0 0.0
        %5303 = vmatprep.subr.mxu0 0.0
        %5304 = vmatpush2.msra.mxu0 0.0
        %5305 = vmatprep.subr.mxu0 0.0
        %5306 = vmatpush2.msra.mxu0 0.0
        %5307 = vmatprep.subr.mxu0 0.0
        %5308 = vmatpush2.msra.mxu0 0.0
        %5309 = vmatprep.subr.mxu0 0.0
        %5310 = vmatpush2.msra.mxu0 0.0
        %5311 = vmatprep.subr.mxu0 0.0
        %5312 = vmatpush2.msra.mxu0 0.0
        %5313 = vmatprep.subr.mxu0 0.0
        %5314 = vmatpush2.msra.mxu0 0.0
        %5315 = vmatprep.subr.mxu0 0.0
        %5316 = vmatpush2.msra.mxu0 0.0
        %5317 = vmatprep.subr.mxu0 0.0
        %5318 = vmatpush2.msra.mxu0 0.0
        %5319 = vmatprep.subr.mxu0 0.0
        %5320 = vmatpush2.msra.mxu0 0.0
        %5321 = vmatprep.subr.mxu0 0.0
        %5322 = vmatpush2.msra.mxu0 0.0
        %5323 = vmatprep.mubr.f32.mxu0 0.0
        %5324 = vmatmul.mubr.f32.gmra.mxu0 %v5257
        %v5325 = vpop.f32.mrf.mxu0
        %v5326 = vadd.f32 0.0, %v5325
        %v5327 = vpop.f32.mrf.mxu0
        %5328 = vdwg.mxu0
        %5329 = vrot.lane.b32.xlu0 %v433, 24
        %v5330 = vpop.permute.xlu0 %5329
        %v5333 = vsel %vm599, %v5174, 0
        %5335 = vmatprep.subr.mxu0 0.0
        %5336 = vmatpush1.msra.mxu0 0.0
        %5337 = vmatprep.subr.mxu0 0.0
        %5338 = vmatpush1.msra.mxu0 0.0
        %5339 = vmatprep.subr.mxu0 0.0
        %5340 = vmatpush1.msra.mxu0 0.0
        %5341 = vmatprep.subr.mxu0 0.0
        %5342 = vmatpush1.msra.mxu0 0.0
        %5343 = vmatprep.subr.mxu0 0.0
        %5344 = vmatpush1.msra.mxu0 0.0
        %5345 = vmatprep.subr.mxu0 0.0
        %5346 = vmatpush1.msra.mxu0 0.0
        %5347 = vmatprep.subr.mxu0 0.0
        %5348 = vmatpush1.msra.mxu0 0.0
        %5349 = vmatprep.subr.mxu0 0.0
        %5350 = vmatpush1.msra.mxu0 0.0
        %5351 = vmatprep.subr.mxu0 0.0
        %5352 = vmatpush1.msra.mxu0 0.0
        %5353 = vmatprep.subr.mxu0 0.0
        %5354 = vmatpush1.msra.mxu0 0.0
        %5355 = vmatprep.subr.mxu0 0.0
        %5356 = vmatpush1.msra.mxu0 0.0
        %5357 = vmatprep.subr.mxu0 0.0
        %5358 = vmatpush1.msra.mxu0 0.0
        %5359 = vmatprep.subr.mxu0 0.0
        %5360 = vmatpush1.msra.mxu0 0.0
        %5361 = vmatprep.subr.mxu0 0.0
        %5362 = vmatpush1.msra.mxu0 0.0
        %5363 = vmatprep.subr.mxu0 0.0
        %5364 = vmatpush1.msra.mxu0 0.0
        %5365 = vmatprep.subr.mxu0 0.0
        %5366 = vmatpush1.msra.mxu0 %v5330
        %5367 = vmatprep.subr.mxu0 0.0
        %5368 = vmatpush2.msra.mxu0 0.0
        %5369 = vmatprep.subr.mxu0 0.0
        %5370 = vmatpush2.msra.mxu0 0.0
        %5371 = vmatprep.subr.mxu0 0.0
        %5372 = vmatpush2.msra.mxu0 0.0
        %5373 = vmatprep.subr.mxu0 0.0
        %5374 = vmatpush2.msra.mxu0 0.0
        %5375 = vmatprep.subr.mxu0 0.0
        %5376 = vmatpush2.msra.mxu0 0.0
        %5377 = vmatprep.subr.mxu0 0.0
        %5378 = vmatpush2.msra.mxu0 0.0
        %5379 = vmatprep.subr.mxu0 0.0
        %5380 = vmatpush2.msra.mxu0 0.0
        %5381 = vmatprep.subr.mxu0 0.0
        %5382 = vmatpush2.msra.mxu0 0.0
        %5383 = vmatprep.subr.mxu0 0.0
        %5384 = vmatpush2.msra.mxu0 0.0
        %5385 = vmatprep.subr.mxu0 0.0
        %5386 = vmatpush2.msra.mxu0 0.0
        %5387 = vmatprep.subr.mxu0 0.0
        %5388 = vmatpush2.msra.mxu0 0.0
        %5389 = vmatprep.subr.mxu0 0.0
        %5390 = vmatpush2.msra.mxu0 0.0
        %5391 = vmatprep.subr.mxu0 0.0
        %5392 = vmatpush2.msra.mxu0 0.0
        %5393 = vmatprep.subr.mxu0 0.0
        %5394 = vmatpush2.msra.mxu0 0.0
        %5395 = vmatprep.subr.mxu0 0.0
        %5396 = vmatpush2.msra.mxu0 0.0
        %5397 = vmatprep.subr.mxu0 0.0
        %5398 = vmatpush2.msra.mxu0 0.0
        %5399 = vmatprep.mubr.f32.mxu0 0.0
        %5400 = vmatmul.mubr.f32.gmra.mxu0 %v5333
        %v5401 = vpop.f32.mrf.mxu0
        %v5402 = vadd.f32 0.0, %v5401
        %v5403 = vpop.f32.mrf.mxu0
        %5404 = vdwg.mxu0
        %5405 = vrot.lane.b32.xlu0 %v438, 24
        %v5406 = vpop.permute.xlu0 %5405
        %v5409 = vsel %vm599, %v5176, 0
        %5411 = vmatprep.subr.mxu0 0.0
        %5412 = vmatpush1.msra.mxu0 0.0
        %5413 = vmatprep.subr.mxu0 0.0
        %5414 = vmatpush1.msra.mxu0 0.0
        %5415 = vmatprep.subr.mxu0 0.0
        %5416 = vmatpush1.msra.mxu0 0.0
        %5417 = vmatprep.subr.mxu0 0.0
        %5418 = vmatpush1.msra.mxu0 0.0
        %5419 = vmatprep.subr.mxu0 0.0
        %5420 = vmatpush1.msra.mxu0 0.0
        %5421 = vmatprep.subr.mxu0 0.0
        %5422 = vmatpush1.msra.mxu0 0.0
        %5423 = vmatprep.subr.mxu0 0.0
        %5424 = vmatpush1.msra.mxu0 0.0
        %5425 = vmatprep.subr.mxu0 0.0
        %5426 = vmatpush1.msra.mxu0 0.0
        %5427 = vmatprep.subr.mxu0 0.0
        %5428 = vmatpush1.msra.mxu0 0.0
        %5429 = vmatprep.subr.mxu0 0.0
        %5430 = vmatpush1.msra.mxu0 0.0
        %5431 = vmatprep.subr.mxu0 0.0
        %5432 = vmatpush1.msra.mxu0 0.0
        %5433 = vmatprep.subr.mxu0 0.0
        %5434 = vmatpush1.msra.mxu0 0.0
        %5435 = vmatprep.subr.mxu0 0.0
        %5436 = vmatpush1.msra.mxu0 0.0
        %5437 = vmatprep.subr.mxu0 0.0
        %5438 = vmatpush1.msra.mxu0 0.0
        %5439 = vmatprep.subr.mxu0 0.0
        %5440 = vmatpush1.msra.mxu0 0.0
        %5441 = vmatprep.subr.mxu0 0.0
        %5442 = vmatpush1.msra.mxu0 %v5406
        %5443 = vmatprep.subr.mxu0 0.0
        %5444 = vmatpush2.msra.mxu0 0.0
        %5445 = vmatprep.subr.mxu0 0.0
        %5446 = vmatpush2.msra.mxu0 0.0
        %5447 = vmatprep.subr.mxu0 0.0
        %5448 = vmatpush2.msra.mxu0 0.0
        %5449 = vmatprep.subr.mxu0 0.0
        %5450 = vmatpush2.msra.mxu0 0.0
        %5451 = vmatprep.subr.mxu0 0.0
        %5452 = vmatpush2.msra.mxu0 0.0
        %5453 = vmatprep.subr.mxu0 0.0
        %5454 = vmatpush2.msra.mxu0 0.0
        %5455 = vmatprep.subr.mxu0 0.0
        %5456 = vmatpush2.msra.mxu0 0.0
        %5457 = vmatprep.subr.mxu0 0.0
        %5458 = vmatpush2.msra.mxu0 0.0
        %5459 = vmatprep.subr.mxu0 0.0
        %5460 = vmatpush2.msra.mxu0 0.0
        %5461 = vmatprep.subr.mxu0 0.0
        %5462 = vmatpush2.msra.mxu0 0.0
        %5463 = vmatprep.subr.mxu0 0.0
        %5464 = vmatpush2.msra.mxu0 0.0
        %5465 = vmatprep.subr.mxu0 0.0
        %5466 = vmatpush2.msra.mxu0 0.0
        %5467 = vmatprep.subr.mxu0 0.0
        %5468 = vmatpush2.msra.mxu0 0.0
        %5469 = vmatprep.subr.mxu0 0.0
        %5470 = vmatpush2.msra.mxu0 0.0
        %5471 = vmatprep.subr.mxu0 0.0
        %5472 = vmatpush2.msra.mxu0 0.0
        %5473 = vmatprep.subr.mxu0 0.0
        %5474 = vmatpush2.msra.mxu0 0.0
        %5475 = vmatprep.mubr.f32.mxu0 0.0
        %5476 = vmatmul.mubr.f32.gmra.mxu0 %v5409
        %v5477 = vpop.f32.mrf.mxu0
        %v5478 = vadd.f32 0.0, %v5477
        %v5479 = vpop.f32.mrf.mxu0
        %5480 = vdwg.mxu0
        %v5482 = vsel %vm599, %v5250, 0
        %v5485 = vsel %vm599, %v5326, 0
        %v5488 = vsel %vm599, %v5402, 0
        %v5491 = vsel %vm599, %v5478, 0
        %5493 = vmatprep.subr.mxu0 0.0
        %5494 = vmatpush1.msra.mxu0 0.0
        %5495 = vmatprep.subr.mxu0 0.0
        %5496 = vmatpush1.msra.mxu0 0.0
        %5497 = vmatprep.subr.mxu0 0.0
        %5498 = vmatpush1.msra.mxu0 0.0
        %5499 = vmatprep.subr.mxu0 0.0
        %5500 = vmatpush1.msra.mxu0 0.0
        %5501 = vmatprep.subr.mxu0 0.0
        %5502 = vmatpush1.msra.mxu0 0.0
        %5503 = vmatprep.subr.mxu0 0.0
        %5504 = vmatpush1.msra.mxu0 0.0
        %5505 = vmatprep.subr.mxu0 0.0
        %5506 = vmatpush1.msra.mxu0 0.0
        %5507 = vmatprep.subr.mxu0 0.0
        %5508 = vmatpush1.msra.mxu0 0.0
        %5509 = vmatprep.subr.mxu0 0.0
        %5510 = vmatpush1.msra.mxu0 0.0
        %5511 = vmatprep.subr.mxu0 0.0
        %5512 = vmatpush1.msra.mxu0 0.0
        %5513 = vmatprep.subr.mxu0 0.0
        %5514 = vmatpush1.msra.mxu0 0.0
        %5515 = vmatprep.subr.mxu0 0.0
        %5516 = vmatpush1.msra.mxu0 0.0
        %5517 = vmatprep.subr.mxu0 0.0
        %5518 = vmatpush1.msra.mxu0 0.0
        %5519 = vmatprep.subr.mxu0 0.0
        %5520 = vmatpush1.msra.mxu0 0.0
        %5521 = vmatprep.subr.mxu0 0.0
        %5522 = vmatpush1.msra.mxu0 0.0
        %5523 = vmatprep.subr.mxu0 0.0
        %5524 = vmatpush1.msra.mxu0 %v4025
        %5525 = vmatprep.subr.mxu0 0.0
        %5526 = vmatpush2.msra.mxu0 0.0
        %5527 = vmatprep.subr.mxu0 0.0
        %5528 = vmatpush2.msra.mxu0 0.0
        %5529 = vmatprep.subr.mxu0 0.0
        %5530 = vmatpush2.msra.mxu0 0.0
        %5531 = vmatprep.subr.mxu0 0.0
        %5532 = vmatpush2.msra.mxu0 0.0
        %5533 = vmatprep.subr.mxu0 0.0
        %5534 = vmatpush2.msra.mxu0 0.0
        %5535 = vmatprep.subr.mxu0 0.0
        %5536 = vmatpush2.msra.mxu0 0.0
        %5537 = vmatprep.subr.mxu0 0.0
        %5538 = vmatpush2.msra.mxu0 0.0
        %5539 = vmatprep.subr.mxu0 0.0
        %5540 = vmatpush2.msra.mxu0 0.0
        %5541 = vmatprep.subr.mxu0 0.0
        %5542 = vmatpush2.msra.mxu0 0.0
        %5543 = vmatprep.subr.mxu0 0.0
        %5544 = vmatpush2.msra.mxu0 0.0
        %5545 = vmatprep.subr.mxu0 0.0
        %5546 = vmatpush2.msra.mxu0 0.0
        %5547 = vmatprep.subr.mxu0 0.0
        %5548 = vmatpush2.msra.mxu0 0.0
        %5549 = vmatprep.subr.mxu0 0.0
        %5550 = vmatpush2.msra.mxu0 0.0
        %5551 = vmatprep.subr.mxu0 0.0
        %5552 = vmatpush2.msra.mxu0 0.0
        %5553 = vmatprep.subr.mxu0 0.0
        %5554 = vmatpush2.msra.mxu0 0.0
        %5555 = vmatprep.subr.mxu0 0.0
        %5556 = vmatpush2.msra.mxu0 0.0
        %5557 = vmatprep.mubr.f32.mxu0 0.0
        %5558 = vmatmul.mubr.f32.gmra.mxu0 %v5482
        %v5559 = vpop.f32.mrf.mxu0
        %v5560 = vadd.f32 0.0, %v5559
        %v5561 = vpop.f32.mrf.mxu0
        %5562 = vmatprep.mubr.f32.mxu0 0.0
        %5563 = vmatmul.mubr.f32.gmra.mxu0 %v5485
        %v5564 = vpop.f32.mrf.mxu0
        %v5565 = vadd.f32 0.0, %v5564
        %v5566 = vpop.f32.mrf.mxu0
        %5567 = vmatprep.mubr.f32.mxu0 0.0
        %5568 = vmatmul.mubr.f32.gmra.mxu0 %v5488
        %v5569 = vpop.f32.mrf.mxu0
        %v5570 = vadd.f32 0.0, %v5569
        %v5571 = vpop.f32.mrf.mxu0
        %5572 = vmatprep.mubr.f32.mxu0 0.0
        %5573 = vmatmul.mubr.f32.gmra.mxu0 %v5491
        %v5574 = vpop.f32.mrf.mxu0
        %v5575 = vadd.f32 0.0, %v5574
        %v5576 = vpop.f32.mrf.mxu0
        %5577 = vdwg.mxu0
        %v5579 = vsel %vm599, %v4582, 0
        %v5582 = vsel %vm599, %v4658, 0
        %v5585 = vsel %vm599, %v4734, 0
        %v5588 = vsel %vm599, %v4810, 0
        %5590 = vmatprep.subr.mxu0 0.0
        %5591 = vmatpush1.msra.mxu0 0.0
        %5592 = vmatprep.subr.mxu0 0.0
        %5593 = vmatpush1.msra.mxu0 0.0
        %5594 = vmatprep.subr.mxu0 0.0
        %5595 = vmatpush1.msra.mxu0 0.0
        %5596 = vmatprep.subr.mxu0 0.0
        %5597 = vmatpush1.msra.mxu0 0.0
        %5598 = vmatprep.subr.mxu0 0.0
        %5599 = vmatpush1.msra.mxu0 0.0
        %5600 = vmatprep.subr.mxu0 0.0
        %5601 = vmatpush1.msra.mxu0 0.0
        %5602 = vmatprep.subr.mxu0 0.0
        %5603 = vmatpush1.msra.mxu0 0.0
        %5604 = vmatprep.subr.mxu0 0.0
        %5605 = vmatpush1.msra.mxu0 0.0
        %5606 = vmatprep.subr.mxu0 0.0
        %5607 = vmatpush1.msra.mxu0 0.0
        %5608 = vmatprep.subr.mxu0 0.0
        %5609 = vmatpush1.msra.mxu0 0.0
        %5610 = vmatprep.subr.mxu0 0.0
        %5611 = vmatpush1.msra.mxu0 0.0
        %5612 = vmatprep.subr.mxu0 0.0
        %5613 = vmatpush1.msra.mxu0 0.0
        %5614 = vmatprep.subr.mxu0 0.0
        %5615 = vmatpush1.msra.mxu0 0.0
        %5616 = vmatprep.subr.mxu0 0.0
        %5617 = vmatpush1.msra.mxu0 0.0
        %5618 = vmatprep.subr.mxu0 0.0
        %5619 = vmatpush1.msra.mxu0 0.0
        %5620 = vmatprep.subr.mxu0 0.0
        %5621 = vmatpush1.msra.mxu0 %v4024
        %5622 = vmatprep.subr.mxu0 0.0
        %5623 = vmatpush2.msra.mxu0 0.0
        %5624 = vmatprep.subr.mxu0 0.0
        %5625 = vmatpush2.msra.mxu0 0.0
        %5626 = vmatprep.subr.mxu0 0.0
        %5627 = vmatpush2.msra.mxu0 0.0
        %5628 = vmatprep.subr.mxu0 0.0
        %5629 = vmatpush2.msra.mxu0 0.0
        %5630 = vmatprep.subr.mxu0 0.0
        %5631 = vmatpush2.msra.mxu0 0.0
        %5632 = vmatprep.subr.mxu0 0.0
        %5633 = vmatpush2.msra.mxu0 0.0
        %5634 = vmatprep.subr.mxu0 0.0
        %5635 = vmatpush2.msra.mxu0 0.0
        %5636 = vmatprep.subr.mxu0 0.0
        %5637 = vmatpush2.msra.mxu0 0.0
        %5638 = vmatprep.subr.mxu0 0.0
        %5639 = vmatpush2.msra.mxu0 0.0
        %5640 = vmatprep.subr.mxu0 0.0
        %5641 = vmatpush2.msra.mxu0 0.0
        %5642 = vmatprep.subr.mxu0 0.0
        %5643 = vmatpush2.msra.mxu0 0.0
        %5644 = vmatprep.subr.mxu0 0.0
        %5645 = vmatpush2.msra.mxu0 0.0
        %5646 = vmatprep.subr.mxu0 0.0
        %5647 = vmatpush2.msra.mxu0 0.0
        %5648 = vmatprep.subr.mxu0 0.0
        %5649 = vmatpush2.msra.mxu0 0.0
        %5650 = vmatprep.subr.mxu0 0.0
        %5651 = vmatpush2.msra.mxu0 0.0
        %5652 = vmatprep.subr.mxu0 0.0
        %5653 = vmatpush2.msra.mxu0 0.0
        %5654 = vmatprep.mubr.f32.mxu0 0.0
        %5655 = vmatmul.mubr.f32.gmra.mxu0 %v5579
        %v5656 = vpop.f32.mrf.mxu0
        %v5657 = vadd.f32 %v5560, %v5656
        %v5658 = vpop.f32.mrf.mxu0
        %5659 = vmatprep.mubr.f32.mxu0 0.0
        %5660 = vmatmul.mubr.f32.gmra.mxu0 %v5582
        %v5661 = vpop.f32.mrf.mxu0
        %v5662 = vadd.f32 %v5565, %v5661
        %v5663 = vpop.f32.mrf.mxu0
        %5664 = vmatprep.mubr.f32.mxu0 0.0
        %5665 = vmatmul.mubr.f32.gmra.mxu0 %v5585
        %v5666 = vpop.f32.mrf.mxu0
        %v5667 = vadd.f32 %v5570, %v5666
        %v5668 = vpop.f32.mrf.mxu0
        %5669 = vmatprep.mubr.f32.mxu0 0.0
        %5670 = vmatmul.mubr.f32.gmra.mxu0 %v5588
        %v5671 = vpop.f32.mrf.mxu0
        %v5672 = vadd.f32 %v5575, %v5671
        %v5673 = vpop.f32.mrf.mxu0
        %5674 = vdwg.mxu0
        %5675 = vrot.lane.b32.xlu0 %v4131, 112
        %v5676 = vpop.permute.xlu0 %5675
        %5677 = vrot.lane.b32.xlu0 %v423, 48
        %v5678 = vpop.permute.xlu0 %5677
        %v5679 = vsel %vm599, %v5676, 0
        %v5681 = vsel %vm599, %v5678, 0
        %5683 = vmatprep.subr.mxu0 0.0
        %5684 = vmatpush1.xpose.msra.mxu0 0.0
        %5685 = vmatprep.subr.mxu0 0.0
        %5686 = vmatpush1.xpose.msra.mxu0 0.0
        %5687 = vmatprep.subr.mxu0 0.0
        %5688 = vmatpush1.xpose.msra.mxu0 0.0
        %5689 = vmatprep.subr.mxu0 0.0
        %5690 = vmatpush1.xpose.msra.mxu0 0.0
        %5691 = vmatprep.subr.mxu0 0.0
        %5692 = vmatpush1.xpose.msra.mxu0 0.0
        %5693 = vmatprep.subr.mxu0 0.0
        %5694 = vmatpush1.xpose.msra.mxu0 0.0
        %5695 = vmatprep.subr.mxu0 0.0
        %5696 = vmatpush1.xpose.msra.mxu0 0.0
        %5697 = vmatprep.subr.mxu0 0.0
        %5698 = vmatpush1.xpose.msra.mxu0 0.0
        %5699 = vmatprep.subr.mxu0 0.0
        %5700 = vmatpush1.xpose.msra.mxu0 0.0
        %5701 = vmatprep.subr.mxu0 0.0
        %5702 = vmatpush1.xpose.msra.mxu0 0.0
        %5703 = vmatprep.subr.mxu0 0.0
        %5704 = vmatpush1.xpose.msra.mxu0 0.0
        %5705 = vmatprep.subr.mxu0 0.0
        %5706 = vmatpush1.xpose.msra.mxu0 0.0
        %5707 = vmatprep.subr.mxu0 0.0
        %5708 = vmatpush1.xpose.msra.mxu0 0.0
        %5709 = vmatprep.subr.mxu0 0.0
        %5710 = vmatpush1.xpose.msra.mxu0 0.0
        %5711 = vmatprep.subr.mxu0 0.0
        %5712 = vmatpush1.xpose.msra.mxu0 0.0
        %5713 = vmatprep.subr.mxu0 0.0
        %5714 = vmatpush1.xpose.msra.mxu0 %v5681
        %5715 = vmatprep.subr.mxu0 0.0
        %5716 = vmatpush2.xpose.msra.mxu0 0.0
        %5717 = vmatprep.subr.mxu0 0.0
        %5718 = vmatpush2.xpose.msra.mxu0 0.0
        %5719 = vmatprep.subr.mxu0 0.0
        %5720 = vmatpush2.xpose.msra.mxu0 0.0
        %5721 = vmatprep.subr.mxu0 0.0
        %5722 = vmatpush2.xpose.msra.mxu0 0.0
        %5723 = vmatprep.subr.mxu0 0.0
        %5724 = vmatpush2.xpose.msra.mxu0 0.0
        %5725 = vmatprep.subr.mxu0 0.0
        %5726 = vmatpush2.xpose.msra.mxu0 0.0
        %5727 = vmatprep.subr.mxu0 0.0
        %5728 = vmatpush2.xpose.msra.mxu0 0.0
        %5729 = vmatprep.subr.mxu0 0.0
        %5730 = vmatpush2.xpose.msra.mxu0 0.0
        %5731 = vmatprep.subr.mxu0 0.0
        %5732 = vmatpush2.xpose.msra.mxu0 0.0
        %5733 = vmatprep.subr.mxu0 0.0
        %5734 = vmatpush2.xpose.msra.mxu0 0.0
        %5735 = vmatprep.subr.mxu0 0.0
        %5736 = vmatpush2.xpose.msra.mxu0 0.0
        %5737 = vmatprep.subr.mxu0 0.0
        %5738 = vmatpush2.xpose.msra.mxu0 0.0
        %5739 = vmatprep.subr.mxu0 0.0
        %5740 = vmatpush2.xpose.msra.mxu0 0.0
        %5741 = vmatprep.subr.mxu0 0.0
        %5742 = vmatpush2.xpose.msra.mxu0 0.0
        %5743 = vmatprep.subr.mxu0 0.0
        %5744 = vmatpush2.xpose.msra.mxu0 0.0
        %5745 = vmatprep.subr.mxu0 0.0
        %5746 = vmatpush2.xpose.msra.mxu0 0.0
        %5747 = vmatprep.mubr.f32.mxu0 0.0
        %5748 = vmatmul.mubr.f32.gmra.mxu0 %v5679
        %v5749 = vpop.f32.mrf.mxu0
        %v5750 = vadd.f32 0.0, %v5749
        %v5751 = vpop.f32.mrf.mxu0
        %5752 = vdwg.mxu0
        %5753 = vrot.lane.b32.xlu0 %v4136, 112
        %v5754 = vpop.permute.xlu0 %5753
        %5755 = vrot.lane.b32.xlu0 %v428, 48
        %v5756 = vpop.permute.xlu0 %5755
        %v5757 = vsel %vm599, %v5754, 0
        %v5759 = vsel %vm599, %v5756, 0
        %5761 = vmatprep.subr.mxu0 0.0
        %5762 = vmatpush1.xpose.msra.mxu0 0.0
        %5763 = vmatprep.subr.mxu0 0.0
        %5764 = vmatpush1.xpose.msra.mxu0 0.0
        %5765 = vmatprep.subr.mxu0 0.0
        %5766 = vmatpush1.xpose.msra.mxu0 0.0
        %5767 = vmatprep.subr.mxu0 0.0
        %5768 = vmatpush1.xpose.msra.mxu0 0.0
        %5769 = vmatprep.subr.mxu0 0.0
        %5770 = vmatpush1.xpose.msra.mxu0 0.0
        %5771 = vmatprep.subr.mxu0 0.0
        %5772 = vmatpush1.xpose.msra.mxu0 0.0
        %5773 = vmatprep.subr.mxu0 0.0
        %5774 = vmatpush1.xpose.msra.mxu0 0.0
        %5775 = vmatprep.subr.mxu0 0.0
        %5776 = vmatpush1.xpose.msra.mxu0 0.0
        %5777 = vmatprep.subr.mxu0 0.0
        %5778 = vmatpush1.xpose.msra.mxu0 0.0
        %5779 = vmatprep.subr.mxu0 0.0
        %5780 = vmatpush1.xpose.msra.mxu0 0.0
        %5781 = vmatprep.subr.mxu0 0.0
        %5782 = vmatpush1.xpose.msra.mxu0 0.0
        %5783 = vmatprep.subr.mxu0 0.0
        %5784 = vmatpush1.xpose.msra.mxu0 0.0
        %5785 = vmatprep.subr.mxu0 0.0
        %5786 = vmatpush1.xpose.msra.mxu0 0.0
        %5787 = vmatprep.subr.mxu0 0.0
        %5788 = vmatpush1.xpose.msra.mxu0 0.0
        %5789 = vmatprep.subr.mxu0 0.0
        %5790 = vmatpush1.xpose.msra.mxu0 0.0
        %5791 = vmatprep.subr.mxu0 0.0
        %5792 = vmatpush1.xpose.msra.mxu0 %v5759
        %5793 = vmatprep.subr.mxu0 0.0
        %5794 = vmatpush2.xpose.msra.mxu0 0.0
        %5795 = vmatprep.subr.mxu0 0.0
        %5796 = vmatpush2.xpose.msra.mxu0 0.0
        %5797 = vmatprep.subr.mxu0 0.0
        %5798 = vmatpush2.xpose.msra.mxu0 0.0
        %5799 = vmatprep.subr.mxu0 0.0
        %5800 = vmatpush2.xpose.msra.mxu0 0.0
        %5801 = vmatprep.subr.mxu0 0.0
        %5802 = vmatpush2.xpose.msra.mxu0 0.0
        %5803 = vmatprep.subr.mxu0 0.0
        %5804 = vmatpush2.xpose.msra.mxu0 0.0
        %5805 = vmatprep.subr.mxu0 0.0
        %5806 = vmatpush2.xpose.msra.mxu0 0.0
        %5807 = vmatprep.subr.mxu0 0.0
        %5808 = vmatpush2.xpose.msra.mxu0 0.0
        %5809 = vmatprep.subr.mxu0 0.0
        %5810 = vmatpush2.xpose.msra.mxu0 0.0
        %5811 = vmatprep.subr.mxu0 0.0
        %5812 = vmatpush2.xpose.msra.mxu0 0.0
        %5813 = vmatprep.subr.mxu0 0.0
        %5814 = vmatpush2.xpose.msra.mxu0 0.0
        %5815 = vmatprep.subr.mxu0 0.0
        %5816 = vmatpush2.xpose.msra.mxu0 0.0
        %5817 = vmatprep.subr.mxu0 0.0
        %5818 = vmatpush2.xpose.msra.mxu0 0.0
        %5819 = vmatprep.subr.mxu0 0.0
        %5820 = vmatpush2.xpose.msra.mxu0 0.0
        %5821 = vmatprep.subr.mxu0 0.0
        %5822 = vmatpush2.xpose.msra.mxu0 0.0
        %5823 = vmatprep.subr.mxu0 0.0
        %5824 = vmatpush2.xpose.msra.mxu0 0.0
        %5825 = vmatprep.mubr.f32.mxu0 0.0
        %5826 = vmatmul.mubr.f32.gmra.mxu0 %v5757
        %v5827 = vpop.f32.mrf.mxu0
        %v5828 = vadd.f32 0.0, %v5827
        %v5829 = vpop.f32.mrf.mxu0
        %5830 = vdwg.mxu0
        %5831 = vrot.lane.b32.xlu0 %v4141, 112
        %v5832 = vpop.permute.xlu0 %5831
        %5833 = vrot.lane.b32.xlu0 %v433, 48
        %v5834 = vpop.permute.xlu0 %5833
        %v5835 = vsel %vm599, %v5832, 0
        %v5837 = vsel %vm599, %v5834, 0
        %5839 = vmatprep.subr.mxu0 0.0
        %5840 = vmatpush1.xpose.msra.mxu0 0.0
        %5841 = vmatprep.subr.mxu0 0.0
        %5842 = vmatpush1.xpose.msra.mxu0 0.0
        %5843 = vmatprep.subr.mxu0 0.0
        %5844 = vmatpush1.xpose.msra.mxu0 0.0
        %5845 = vmatprep.subr.mxu0 0.0
        %5846 = vmatpush1.xpose.msra.mxu0 0.0
        %5847 = vmatprep.subr.mxu0 0.0
        %5848 = vmatpush1.xpose.msra.mxu0 0.0
        %5849 = vmatprep.subr.mxu0 0.0
        %5850 = vmatpush1.xpose.msra.mxu0 0.0
        %5851 = vmatprep.subr.mxu0 0.0
        %5852 = vmatpush1.xpose.msra.mxu0 0.0
        %5853 = vmatprep.subr.mxu0 0.0
        %5854 = vmatpush1.xpose.msra.mxu0 0.0
        %5855 = vmatprep.subr.mxu0 0.0
        %5856 = vmatpush1.xpose.msra.mxu0 0.0
        %5857 = vmatprep.subr.mxu0 0.0
        %5858 = vmatpush1.xpose.msra.mxu0 0.0
        %5859 = vmatprep.subr.mxu0 0.0
        %5860 = vmatpush1.xpose.msra.mxu0 0.0
        %5861 = vmatprep.subr.mxu0 0.0
        %5862 = vmatpush1.xpose.msra.mxu0 0.0
        %5863 = vmatprep.subr.mxu0 0.0
        %5864 = vmatpush1.xpose.msra.mxu0 0.0
        %5865 = vmatprep.subr.mxu0 0.0
        %5866 = vmatpush1.xpose.msra.mxu0 0.0
        %5867 = vmatprep.subr.mxu0 0.0
        %5868 = vmatpush1.xpose.msra.mxu0 0.0
        %5869 = vmatprep.subr.mxu0 0.0
        %5870 = vmatpush1.xpose.msra.mxu0 %v5837
        %5871 = vmatprep.subr.mxu0 0.0
        %5872 = vmatpush2.xpose.msra.mxu0 0.0
        %5873 = vmatprep.subr.mxu0 0.0
        %5874 = vmatpush2.xpose.msra.mxu0 0.0
        %5875 = vmatprep.subr.mxu0 0.0
        %5876 = vmatpush2.xpose.msra.mxu0 0.0
        %5877 = vmatprep.subr.mxu0 0.0
        %5878 = vmatpush2.xpose.msra.mxu0 0.0
        %5879 = vmatprep.subr.mxu0 0.0
        %5880 = vmatpush2.xpose.msra.mxu0 0.0
        %5881 = vmatprep.subr.mxu0 0.0
        %5882 = vmatpush2.xpose.msra.mxu0 0.0
        %5883 = vmatprep.subr.mxu0 0.0
        %5884 = vmatpush2.xpose.msra.mxu0 0.0
        %5885 = vmatprep.subr.mxu0 0.0
        %5886 = vmatpush2.xpose.msra.mxu0 0.0
        %5887 = vmatprep.subr.mxu0 0.0
        %5888 = vmatpush2.xpose.msra.mxu0 0.0
        %5889 = vmatprep.subr.mxu0 0.0
        %5890 = vmatpush2.xpose.msra.mxu0 0.0
        %5891 = vmatprep.subr.mxu0 0.0
        %5892 = vmatpush2.xpose.msra.mxu0 0.0
        %5893 = vmatprep.subr.mxu0 0.0
        %5894 = vmatpush2.xpose.msra.mxu0 0.0
        %5895 = vmatprep.subr.mxu0 0.0
        %5896 = vmatpush2.xpose.msra.mxu0 0.0
        %5897 = vmatprep.subr.mxu0 0.0
        %5898 = vmatpush2.xpose.msra.mxu0 0.0
        %5899 = vmatprep.subr.mxu0 0.0
        %5900 = vmatpush2.xpose.msra.mxu0 0.0
        %5901 = vmatprep.subr.mxu0 0.0
        %5902 = vmatpush2.xpose.msra.mxu0 0.0
        %5903 = vmatprep.mubr.f32.mxu0 0.0
        %5904 = vmatmul.mubr.f32.gmra.mxu0 %v5835
        %v5905 = vpop.f32.mrf.mxu0
        %v5906 = vadd.f32 0.0, %v5905
        %v5907 = vpop.f32.mrf.mxu0
        %5908 = vdwg.mxu0
        %5909 = vrot.lane.b32.xlu0 %v4146, 112
        %v5910 = vpop.permute.xlu0 %5909
        %5911 = vrot.lane.b32.xlu0 %v438, 48
        %v5912 = vpop.permute.xlu0 %5911
        %v5913 = vsel %vm599, %v5910, 0
        %v5915 = vsel %vm599, %v5912, 0
        %5917 = vmatprep.subr.mxu0 0.0
        %5918 = vmatpush1.xpose.msra.mxu0 0.0
        %5919 = vmatprep.subr.mxu0 0.0
        %5920 = vmatpush1.xpose.msra.mxu0 0.0
        %5921 = vmatprep.subr.mxu0 0.0
        %5922 = vmatpush1.xpose.msra.mxu0 0.0
        %5923 = vmatprep.subr.mxu0 0.0
        %5924 = vmatpush1.xpose.msra.mxu0 0.0
        %5925 = vmatprep.subr.mxu0 0.0
        %5926 = vmatpush1.xpose.msra.mxu0 0.0
        %5927 = vmatprep.subr.mxu0 0.0
        %5928 = vmatpush1.xpose.msra.mxu0 0.0
        %5929 = vmatprep.subr.mxu0 0.0
        %5930 = vmatpush1.xpose.msra.mxu0 0.0
        %5931 = vmatprep.subr.mxu0 0.0
        %5932 = vmatpush1.xpose.msra.mxu0 0.0
        %5933 = vmatprep.subr.mxu0 0.0
        %5934 = vmatpush1.xpose.msra.mxu0 0.0
        %5935 = vmatprep.subr.mxu0 0.0
        %5936 = vmatpush1.xpose.msra.mxu0 0.0
        %5937 = vmatprep.subr.mxu0 0.0
        %5938 = vmatpush1.xpose.msra.mxu0 0.0
        %5939 = vmatprep.subr.mxu0 0.0
        %5940 = vmatpush1.xpose.msra.mxu0 0.0
        %5941 = vmatprep.subr.mxu0 0.0
        %5942 = vmatpush1.xpose.msra.mxu0 0.0
        %5943 = vmatprep.subr.mxu0 0.0
        %5944 = vmatpush1.xpose.msra.mxu0 0.0
        %5945 = vmatprep.subr.mxu0 0.0
        %5946 = vmatpush1.xpose.msra.mxu0 0.0
        %5947 = vmatprep.subr.mxu0 0.0
        %5948 = vmatpush1.xpose.msra.mxu0 %v5915
        %5949 = vmatprep.subr.mxu0 0.0
        %5950 = vmatpush2.xpose.msra.mxu0 0.0
        %5951 = vmatprep.subr.mxu0 0.0
        %5952 = vmatpush2.xpose.msra.mxu0 0.0
        %5953 = vmatprep.subr.mxu0 0.0
        %5954 = vmatpush2.xpose.msra.mxu0 0.0
        %5955 = vmatprep.subr.mxu0 0.0
        %5956 = vmatpush2.xpose.msra.mxu0 0.0
        %5957 = vmatprep.subr.mxu0 0.0
        %5958 = vmatpush2.xpose.msra.mxu0 0.0
        %5959 = vmatprep.subr.mxu0 0.0
        %5960 = vmatpush2.xpose.msra.mxu0 0.0
        %5961 = vmatprep.subr.mxu0 0.0
        %5962 = vmatpush2.xpose.msra.mxu0 0.0
        %5963 = vmatprep.subr.mxu0 0.0
        %5964 = vmatpush2.xpose.msra.mxu0 0.0
        %5965 = vmatprep.subr.mxu0 0.0
        %5966 = vmatpush2.xpose.msra.mxu0 0.0
        %5967 = vmatprep.subr.mxu0 0.0
        %5968 = vmatpush2.xpose.msra.mxu0 0.0
        %5969 = vmatprep.subr.mxu0 0.0
        %5970 = vmatpush2.xpose.msra.mxu0 0.0
        %5971 = vmatprep.subr.mxu0 0.0
        %5972 = vmatpush2.xpose.msra.mxu0 0.0
        %5973 = vmatprep.subr.mxu0 0.0
        %5974 = vmatpush2.xpose.msra.mxu0 0.0
        %5975 = vmatprep.subr.mxu0 0.0
        %5976 = vmatpush2.xpose.msra.mxu0 0.0
        %5977 = vmatprep.subr.mxu0 0.0
        %5978 = vmatpush2.xpose.msra.mxu0 0.0
        %5979 = vmatprep.subr.mxu0 0.0
        %5980 = vmatpush2.xpose.msra.mxu0 0.0
        %5981 = vmatprep.mubr.f32.mxu0 0.0
        %5982 = vmatmul.mubr.f32.gmra.mxu0 %v5913
        %v5983 = vpop.f32.mrf.mxu0
        %v5984 = vadd.f32 0.0, %v5983
        %v5985 = vpop.f32.mrf.mxu0
        %5986 = vdwg.mxu0
        %v5987 = vmul.f32 %v5750, 0.35355338
        %v5988 = vmul.f32 %v5828, 0.35355338
        %v5989 = vmul.f32 %v5906, 0.35355338
        %v5990 = vmul.f32 %v5984, 0.35355338
        %v5991 = vadd.f32 %v5987, %v451
        %v5992 = vadd.f32 %v5988, %v457
        %v5993 = vadd.f32 %v5989, %v463
        %v5994 = vadd.f32 %v5990, %v469
        %v5995 = vsel %vm599, %v5991, -inf
        %5996 = vmax.xlane.f32.xlu0 %v5995
        %v5997 = vpop.xlane.xlu0 %5996
        %v5998 = vsel %vm599, %v5992, -inf
        %5999 = vmax.xlane.f32.xlu0 %v5998
        %v6000 = vpop.xlane.xlu0 %5999
        %v6001 = vsel %vm599, %v5993, -inf
        %6002 = vmax.xlane.f32.xlu0 %v6001
        %v6003 = vpop.xlane.xlu0 %6002
        %v6004 = vsel %vm599, %v5994, -inf
        %6005 = vmax.xlane.f32.xlu0 %v6004
        %v6006 = vpop.xlane.xlu0 %6005
        %v6007 = vsub.f32 %v5991, %v5997
        %v6008 = vsub.f32 %v5992, %v6000
        %v6009 = vsub.f32 %v5993, %v6003
        %v6010 = vsub.f32 %v5994, %v6006
        %v6011 = vmul.f32 %v6007, 1.442695
        %v6012 = vpow.pop %v6011
        %v6013 = vmul.f32 %v6008, 1.442695
        %v6014 = vpow.pop %v6013
        %v6015 = vmul.f32 %v6009, 1.442695
        %v6016 = vpow.pop %v6015
        %v6017 = vmul.f32 %v6010, 1.442695
        %v6018 = vpow.pop %v6017
        %v6019 = vsel %vm599, %v6012, 0.0
        %6020 = vadd.xlane.f32.xlu0 %v6019
        %v6021 = vpop.xlane.xlu0 %6020
        %v6022 = vsel %vm599, %v6014, 0.0
        %6023 = vadd.xlane.f32.xlu0 %v6022
        %v6024 = vpop.xlane.xlu0 %6023
        %v6025 = vsel %vm599, %v6016, 0.0
        %6026 = vadd.xlane.f32.xlu0 %v6025
        %v6027 = vpop.xlane.xlu0 %6026
        %v6028 = vsel %vm599, %v6018, 0.0
        %6029 = vadd.xlane.f32.xlu0 %v6028
        %v6030 = vpop.xlane.xlu0 %6029
        %v6031 = vrcp.pop %v6021
        %v6032 = vmul.f32 %v6012, %v6031
        %v6033 = vrcp.pop %v6024
        %v6034 = vmul.f32 %v6014, %v6033
        %v6035 = vrcp.pop %v6027
        %v6036 = vmul.f32 %v6016, %v6035
        %v6037 = vrcp.pop %v6030
        %v6038 = vmul.f32 %v6018, %v6037
        %6039 = vrot.lane.b32.xlu0 %v423, 16
        %v6040 = vpop.permute.xlu0 %6039
        %v6043 = vsel %vm599, %v6032, 0
        %6045 = vmatprep.subr.mxu0 0.0
        %6046 = vmatpush1.msra.mxu0 0.0
        %6047 = vmatprep.subr.mxu0 0.0
        %6048 = vmatpush1.msra.mxu0 0.0
        %6049 = vmatprep.subr.mxu0 0.0
        %6050 = vmatpush1.msra.mxu0 0.0
        %6051 = vmatprep.subr.mxu0 0.0
        %6052 = vmatpush1.msra.mxu0 0.0
        %6053 = vmatprep.subr.mxu0 0.0
        %6054 = vmatpush1.msra.mxu0 0.0
        %6055 = vmatprep.subr.mxu0 0.0
        %6056 = vmatpush1.msra.mxu0 0.0
        %6057 = vmatprep.subr.mxu0 0.0
        %6058 = vmatpush1.msra.mxu0 0.0
        %6059 = vmatprep.subr.mxu0 0.0
        %6060 = vmatpush1.msra.mxu0 0.0
        %6061 = vmatprep.subr.mxu0 0.0
        %6062 = vmatpush1.msra.mxu0 0.0
        %6063 = vmatprep.subr.mxu0 0.0
        %6064 = vmatpush1.msra.mxu0 0.0
        %6065 = vmatprep.subr.mxu0 0.0
        %6066 = vmatpush1.msra.mxu0 0.0
        %6067 = vmatprep.subr.mxu0 0.0
        %6068 = vmatpush1.msra.mxu0 0.0
        %6069 = vmatprep.subr.mxu0 0.0
        %6070 = vmatpush1.msra.mxu0 0.0
        %6071 = vmatprep.subr.mxu0 0.0
        %6072 = vmatpush1.msra.mxu0 0.0
        %6073 = vmatprep.subr.mxu0 0.0
        %6074 = vmatpush1.msra.mxu0 0.0
        %6075 = vmatprep.subr.mxu0 0.0
        %6076 = vmatpush1.msra.mxu0 %v6040
        %6077 = vmatprep.subr.mxu0 0.0
        %6078 = vmatpush2.msra.mxu0 0.0
        %6079 = vmatprep.subr.mxu0 0.0
        %6080 = vmatpush2.msra.mxu0 0.0
        %6081 = vmatprep.subr.mxu0 0.0
        %6082 = vmatpush2.msra.mxu0 0.0
        %6083 = vmatprep.subr.mxu0 0.0
        %6084 = vmatpush2.msra.mxu0 0.0
        %6085 = vmatprep.subr.mxu0 0.0
        %6086 = vmatpush2.msra.mxu0 0.0
        %6087 = vmatprep.subr.mxu0 0.0
        %6088 = vmatpush2.msra.mxu0 0.0
        %6089 = vmatprep.subr.mxu0 0.0
        %6090 = vmatpush2.msra.mxu0 0.0
        %6091 = vmatprep.subr.mxu0 0.0
        %6092 = vmatpush2.msra.mxu0 0.0
        %6093 = vmatprep.subr.mxu0 0.0
        %6094 = vmatpush2.msra.mxu0 0.0
        %6095 = vmatprep.subr.mxu0 0.0
        %6096 = vmatpush2.msra.mxu0 0.0
        %6097 = vmatprep.subr.mxu0 0.0
        %6098 = vmatpush2.msra.mxu0 0.0
        %6099 = vmatprep.subr.mxu0 0.0
        %6100 = vmatpush2.msra.mxu0 0.0
        %6101 = vmatprep.subr.mxu0 0.0
        %6102 = vmatpush2.msra.mxu0 0.0
        %6103 = vmatprep.subr.mxu0 0.0
        %6104 = vmatpush2.msra.mxu0 0.0
        %6105 = vmatprep.subr.mxu0 0.0
        %6106 = vmatpush2.msra.mxu0 0.0
        %6107 = vmatprep.subr.mxu0 0.0
        %6108 = vmatpush2.msra.mxu0 0.0
        %6109 = vmatprep.mubr.f32.mxu0 0.0
        %6110 = vmatmul.mubr.f32.gmra.mxu0 %v6043
        %v6111 = vpop.f32.mrf.mxu0
        %v6112 = vadd.f32 0.0, %v6111
        %v6113 = vpop.f32.mrf.mxu0
        %6114 = vdwg.mxu0
        %6115 = vrot.lane.b32.xlu0 %v428, 16
        %v6116 = vpop.permute.xlu0 %6115
        %v6119 = vsel %vm599, %v6034, 0
        %6121 = vmatprep.subr.mxu0 0.0
        %6122 = vmatpush1.msra.mxu0 0.0
        %6123 = vmatprep.subr.mxu0 0.0
        %6124 = vmatpush1.msra.mxu0 0.0
        %6125 = vmatprep.subr.mxu0 0.0
        %6126 = vmatpush1.msra.mxu0 0.0
        %6127 = vmatprep.subr.mxu0 0.0
        %6128 = vmatpush1.msra.mxu0 0.0
        %6129 = vmatprep.subr.mxu0 0.0
        %6130 = vmatpush1.msra.mxu0 0.0
        %6131 = vmatprep.subr.mxu0 0.0
        %6132 = vmatpush1.msra.mxu0 0.0
        %6133 = vmatprep.subr.mxu0 0.0
        %6134 = vmatpush1.msra.mxu0 0.0
        %6135 = vmatprep.subr.mxu0 0.0
        %6136 = vmatpush1.msra.mxu0 0.0
        %6137 = vmatprep.subr.mxu0 0.0
        %6138 = vmatpush1.msra.mxu0 0.0
        %6139 = vmatprep.subr.mxu0 0.0
        %6140 = vmatpush1.msra.mxu0 0.0
        %6141 = vmatprep.subr.mxu0 0.0
        %6142 = vmatpush1.msra.mxu0 0.0
        %6143 = vmatprep.subr.mxu0 0.0
        %6144 = vmatpush1.msra.mxu0 0.0
        %6145 = vmatprep.subr.mxu0 0.0
        %6146 = vmatpush1.msra.mxu0 0.0
        %6147 = vmatprep.subr.mxu0 0.0
        %6148 = vmatpush1.msra.mxu0 0.0
        %6149 = vmatprep.subr.mxu0 0.0
        %6150 = vmatpush1.msra.mxu0 0.0
        %6151 = vmatprep.subr.mxu0 0.0
        %6152 = vmatpush1.msra.mxu0 %v6116
        %6153 = vmatprep.subr.mxu0 0.0
        %6154 = vmatpush2.msra.mxu0 0.0
        %6155 = vmatprep.subr.mxu0 0.0
        %6156 = vmatpush2.msra.mxu0 0.0
        %6157 = vmatprep.subr.mxu0 0.0
        %6158 = vmatpush2.msra.mxu0 0.0
        %6159 = vmatprep.subr.mxu0 0.0
        %6160 = vmatpush2.msra.mxu0 0.0
        %6161 = vmatprep.subr.mxu0 0.0
        %6162 = vmatpush2.msra.mxu0 0.0
        %6163 = vmatprep.subr.mxu0 0.0
        %6164 = vmatpush2.msra.mxu0 0.0
        %6165 = vmatprep.subr.mxu0 0.0
        %6166 = vmatpush2.msra.mxu0 0.0
        %6167 = vmatprep.subr.mxu0 0.0
        %6168 = vmatpush2.msra.mxu0 0.0
        %6169 = vmatprep.subr.mxu0 0.0
        %6170 = vmatpush2.msra.mxu0 0.0
        %6171 = vmatprep.subr.mxu0 0.0
        %6172 = vmatpush2.msra.mxu0 0.0
        %6173 = vmatprep.subr.mxu0 0.0
        %6174 = vmatpush2.msra.mxu0 0.0
        %6175 = vmatprep.subr.mxu0 0.0
        %6176 = vmatpush2.msra.mxu0 0.0
        %6177 = vmatprep.subr.mxu0 0.0
        %6178 = vmatpush2.msra.mxu0 0.0
        %6179 = vmatprep.subr.mxu0 0.0
        %6180 = vmatpush2.msra.mxu0 0.0
        %6181 = vmatprep.subr.mxu0 0.0
        %6182 = vmatpush2.msra.mxu0 0.0
        %6183 = vmatprep.subr.mxu0 0.0
        %6184 = vmatpush2.msra.mxu0 0.0
        %6185 = vmatprep.mubr.f32.mxu0 0.0
        %6186 = vmatmul.mubr.f32.gmra.mxu0 %v6119
        %v6187 = vpop.f32.mrf.mxu0
        %v6188 = vadd.f32 0.0, %v6187
        %v6189 = vpop.f32.mrf.mxu0
        %6190 = vdwg.mxu0
        %6191 = vrot.lane.b32.xlu0 %v433, 16
        %v6192 = vpop.permute.xlu0 %6191
        %v6195 = vsel %vm599, %v6036, 0
        %6197 = vmatprep.subr.mxu0 0.0
        %6198 = vmatpush1.msra.mxu0 0.0
        %6199 = vmatprep.subr.mxu0 0.0
        %6200 = vmatpush1.msra.mxu0 0.0
        %6201 = vmatprep.subr.mxu0 0.0
        %6202 = vmatpush1.msra.mxu0 0.0
        %6203 = vmatprep.subr.mxu0 0.0
        %6204 = vmatpush1.msra.mxu0 0.0
        %6205 = vmatprep.subr.mxu0 0.0
        %6206 = vmatpush1.msra.mxu0 0.0
        %6207 = vmatprep.subr.mxu0 0.0
        %6208 = vmatpush1.msra.mxu0 0.0
        %6209 = vmatprep.subr.mxu0 0.0
        %6210 = vmatpush1.msra.mxu0 0.0
        %6211 = vmatprep.subr.mxu0 0.0
        %6212 = vmatpush1.msra.mxu0 0.0
        %6213 = vmatprep.subr.mxu0 0.0
        %6214 = vmatpush1.msra.mxu0 0.0
        %6215 = vmatprep.subr.mxu0 0.0
        %6216 = vmatpush1.msra.mxu0 0.0
        %6217 = vmatprep.subr.mxu0 0.0
        %6218 = vmatpush1.msra.mxu0 0.0
        %6219 = vmatprep.subr.mxu0 0.0
        %6220 = vmatpush1.msra.mxu0 0.0
        %6221 = vmatprep.subr.mxu0 0.0
        %6222 = vmatpush1.msra.mxu0 0.0
        %6223 = vmatprep.subr.mxu0 0.0
        %6224 = vmatpush1.msra.mxu0 0.0
        %6225 = vmatprep.subr.mxu0 0.0
        %6226 = vmatpush1.msra.mxu0 0.0
        %6227 = vmatprep.subr.mxu0 0.0
        %6228 = vmatpush1.msra.mxu0 %v6192
        %6229 = vmatprep.subr.mxu0 0.0
        %6230 = vmatpush2.msra.mxu0 0.0
        %6231 = vmatprep.subr.mxu0 0.0
        %6232 = vmatpush2.msra.mxu0 0.0
        %6233 = vmatprep.subr.mxu0 0.0
        %6234 = vmatpush2.msra.mxu0 0.0
        %6235 = vmatprep.subr.mxu0 0.0
        %6236 = vmatpush2.msra.mxu0 0.0
        %6237 = vmatprep.subr.mxu0 0.0
        %6238 = vmatpush2.msra.mxu0 0.0
        %6239 = vmatprep.subr.mxu0 0.0
        %6240 = vmatpush2.msra.mxu0 0.0
        %6241 = vmatprep.subr.mxu0 0.0
        %6242 = vmatpush2.msra.mxu0 0.0
        %6243 = vmatprep.subr.mxu0 0.0
        %6244 = vmatpush2.msra.mxu0 0.0
        %6245 = vmatprep.subr.mxu0 0.0
        %6246 = vmatpush2.msra.mxu0 0.0
        %6247 = vmatprep.subr.mxu0 0.0
        %6248 = vmatpush2.msra.mxu0 0.0
        %6249 = vmatprep.subr.mxu0 0.0
        %6250 = vmatpush2.msra.mxu0 0.0
        %6251 = vmatprep.subr.mxu0 0.0
        %6252 = vmatpush2.msra.mxu0 0.0
        %6253 = vmatprep.subr.mxu0 0.0
        %6254 = vmatpush2.msra.mxu0 0.0
        %6255 = vmatprep.subr.mxu0 0.0
        %6256 = vmatpush2.msra.mxu0 0.0
        %6257 = vmatprep.subr.mxu0 0.0
        %6258 = vmatpush2.msra.mxu0 0.0
        %6259 = vmatprep.subr.mxu0 0.0
        %6260 = vmatpush2.msra.mxu0 0.0
        %6261 = vmatprep.mubr.f32.mxu0 0.0
        %6262 = vmatmul.mubr.f32.gmra.mxu0 %v6195
        %v6263 = vpop.f32.mrf.mxu0
        %v6264 = vadd.f32 0.0, %v6263
        %v6265 = vpop.f32.mrf.mxu0
        %6266 = vdwg.mxu0
        %6267 = vrot.lane.b32.xlu0 %v438, 16
        %v6268 = vpop.permute.xlu0 %6267
        %v6271 = vsel %vm599, %v6038, 0
        %6273 = vmatprep.subr.mxu0 0.0
        %6274 = vmatpush1.msra.mxu0 0.0
        %6275 = vmatprep.subr.mxu0 0.0
        %6276 = vmatpush1.msra.mxu0 0.0
        %6277 = vmatprep.subr.mxu0 0.0
        %6278 = vmatpush1.msra.mxu0 0.0
        %6279 = vmatprep.subr.mxu0 0.0
        %6280 = vmatpush1.msra.mxu0 0.0
        %6281 = vmatprep.subr.mxu0 0.0
        %6282 = vmatpush1.msra.mxu0 0.0
        %6283 = vmatprep.subr.mxu0 0.0
        %6284 = vmatpush1.msra.mxu0 0.0
        %6285 = vmatprep.subr.mxu0 0.0
        %6286 = vmatpush1.msra.mxu0 0.0
        %6287 = vmatprep.subr.mxu0 0.0
        %6288 = vmatpush1.msra.mxu0 0.0
        %6289 = vmatprep.subr.mxu0 0.0
        %6290 = vmatpush1.msra.mxu0 0.0
        %6291 = vmatprep.subr.mxu0 0.0
        %6292 = vmatpush1.msra.mxu0 0.0
        %6293 = vmatprep.subr.mxu0 0.0
        %6294 = vmatpush1.msra.mxu0 0.0
        %6295 = vmatprep.subr.mxu0 0.0
        %6296 = vmatpush1.msra.mxu0 0.0
        %6297 = vmatprep.subr.mxu0 0.0
        %6298 = vmatpush1.msra.mxu0 0.0
        %6299 = vmatprep.subr.mxu0 0.0
        %6300 = vmatpush1.msra.mxu0 0.0
        %6301 = vmatprep.subr.mxu0 0.0
        %6302 = vmatpush1.msra.mxu0 0.0
        %6303 = vmatprep.subr.mxu0 0.0
        %6304 = vmatpush1.msra.mxu0 %v6268
        %6305 = vmatprep.subr.mxu0 0.0
        %6306 = vmatpush2.msra.mxu0 0.0
        %6307 = vmatprep.subr.mxu0 0.0
        %6308 = vmatpush2.msra.mxu0 0.0
        %6309 = vmatprep.subr.mxu0 0.0
        %6310 = vmatpush2.msra.mxu0 0.0
        %6311 = vmatprep.subr.mxu0 0.0
        %6312 = vmatpush2.msra.mxu0 0.0
        %6313 = vmatprep.subr.mxu0 0.0
        %6314 = vmatpush2.msra.mxu0 0.0
        %6315 = vmatprep.subr.mxu0 0.0
        %6316 = vmatpush2.msra.mxu0 0.0
        %6317 = vmatprep.subr.mxu0 0.0
        %6318 = vmatpush2.msra.mxu0 0.0
        %6319 = vmatprep.subr.mxu0 0.0
        %6320 = vmatpush2.msra.mxu0 0.0
        %6321 = vmatprep.subr.mxu0 0.0
        %6322 = vmatpush2.msra.mxu0 0.0
        %6323 = vmatprep.subr.mxu0 0.0
        %6324 = vmatpush2.msra.mxu0 0.0
        %6325 = vmatprep.subr.mxu0 0.0
        %6326 = vmatpush2.msra.mxu0 0.0
        %6327 = vmatprep.subr.mxu0 0.0
        %6328 = vmatpush2.msra.mxu0 0.0
        %6329 = vmatprep.subr.mxu0 0.0
        %6330 = vmatpush2.msra.mxu0 0.0
        %6331 = vmatprep.subr.mxu0 0.0
        %6332 = vmatpush2.msra.mxu0 0.0
        %6333 = vmatprep.subr.mxu0 0.0
        %6334 = vmatpush2.msra.mxu0 0.0
        %6335 = vmatprep.subr.mxu0 0.0
        %6336 = vmatpush2.msra.mxu0 0.0
        %6337 = vmatprep.mubr.f32.mxu0 0.0
        %6338 = vmatmul.mubr.f32.gmra.mxu0 %v6271
        %v6339 = vpop.f32.mrf.mxu0
        %v6340 = vadd.f32 0.0, %v6339
        %v6341 = vpop.f32.mrf.mxu0
        %6342 = vdwg.mxu0
        %v6344 = vsel %vm599, %v6112, 0
        %v6347 = vsel %vm599, %v6188, 0
        %v6350 = vsel %vm599, %v6264, 0
        %v6353 = vsel %vm599, %v6340, 0
        %6355 = vmatprep.subr.mxu0 0.0
        %6356 = vmatpush1.msra.mxu0 0.0
        %6357 = vmatprep.subr.mxu0 0.0
        %6358 = vmatpush1.msra.mxu0 0.0
        %6359 = vmatprep.subr.mxu0 0.0
        %6360 = vmatpush1.msra.mxu0 0.0
        %6361 = vmatprep.subr.mxu0 0.0
        %6362 = vmatpush1.msra.mxu0 0.0
        %6363 = vmatprep.subr.mxu0 0.0
        %6364 = vmatpush1.msra.mxu0 0.0
        %6365 = vmatprep.subr.mxu0 0.0
        %6366 = vmatpush1.msra.mxu0 0.0
        %6367 = vmatprep.subr.mxu0 0.0
        %6368 = vmatpush1.msra.mxu0 0.0
        %6369 = vmatprep.subr.mxu0 0.0
        %6370 = vmatpush1.msra.mxu0 0.0
        %6371 = vmatprep.subr.mxu0 0.0
        %6372 = vmatpush1.msra.mxu0 0.0
        %6373 = vmatprep.subr.mxu0 0.0
        %6374 = vmatpush1.msra.mxu0 0.0
        %6375 = vmatprep.subr.mxu0 0.0
        %6376 = vmatpush1.msra.mxu0 0.0
        %6377 = vmatprep.subr.mxu0 0.0
        %6378 = vmatpush1.msra.mxu0 0.0
        %6379 = vmatprep.subr.mxu0 0.0
        %6380 = vmatpush1.msra.mxu0 0.0
        %6381 = vmatprep.subr.mxu0 0.0
        %6382 = vmatpush1.msra.mxu0 0.0
        %6383 = vmatprep.subr.mxu0 0.0
        %6384 = vmatpush1.msra.mxu0 0.0
        %6385 = vmatprep.subr.mxu0 0.0
        %6386 = vmatpush1.msra.mxu0 %v4026
        %6387 = vmatprep.subr.mxu0 0.0
        %6388 = vmatpush2.msra.mxu0 0.0
        %6389 = vmatprep.subr.mxu0 0.0
        %6390 = vmatpush2.msra.mxu0 0.0
        %6391 = vmatprep.subr.mxu0 0.0
        %6392 = vmatpush2.msra.mxu0 0.0
        %6393 = vmatprep.subr.mxu0 0.0
        %6394 = vmatpush2.msra.mxu0 0.0
        %6395 = vmatprep.subr.mxu0 0.0
        %6396 = vmatpush2.msra.mxu0 0.0
        %6397 = vmatprep.subr.mxu0 0.0
        %6398 = vmatpush2.msra.mxu0 0.0
        %6399 = vmatprep.subr.mxu0 0.0
        %6400 = vmatpush2.msra.mxu0 0.0
        %6401 = vmatprep.subr.mxu0 0.0
        %6402 = vmatpush2.msra.mxu0 0.0
        %6403 = vmatprep.subr.mxu0 0.0
        %6404 = vmatpush2.msra.mxu0 0.0
        %6405 = vmatprep.subr.mxu0 0.0
        %6406 = vmatpush2.msra.mxu0 0.0
        %6407 = vmatprep.subr.mxu0 0.0
        %6408 = vmatpush2.msra.mxu0 0.0
        %6409 = vmatprep.subr.mxu0 0.0
        %6410 = vmatpush2.msra.mxu0 0.0
        %6411 = vmatprep.subr.mxu0 0.0
        %6412 = vmatpush2.msra.mxu0 0.0
        %6413 = vmatprep.subr.mxu0 0.0
        %6414 = vmatpush2.msra.mxu0 0.0
        %6415 = vmatprep.subr.mxu0 0.0
        %6416 = vmatpush2.msra.mxu0 0.0
        %6417 = vmatprep.subr.mxu0 0.0
        %6418 = vmatpush2.msra.mxu0 0.0
        %6419 = vmatprep.mubr.f32.mxu0 0.0
        %6420 = vmatmul.mubr.f32.gmra.mxu0 %v6344
        %v6421 = vpop.f32.mrf.mxu0
        %v6422 = vadd.f32 0.0, %v6421
        %v6423 = vpop.f32.mrf.mxu0
        %6424 = vmatprep.mubr.f32.mxu0 0.0
        %6425 = vmatmul.mubr.f32.gmra.mxu0 %v6347
        %v6426 = vpop.f32.mrf.mxu0
        %v6427 = vadd.f32 0.0, %v6426
        %v6428 = vpop.f32.mrf.mxu0
        %6429 = vmatprep.mubr.f32.mxu0 0.0
        %6430 = vmatmul.mubr.f32.gmra.mxu0 %v6350
        %v6431 = vpop.f32.mrf.mxu0
        %v6432 = vadd.f32 0.0, %v6431
        %v6433 = vpop.f32.mrf.mxu0
        %6434 = vmatprep.mubr.f32.mxu0 0.0
        %6435 = vmatmul.mubr.f32.gmra.mxu0 %v6353
        %v6436 = vpop.f32.mrf.mxu0
        %v6437 = vadd.f32 0.0, %v6436
        %v6438 = vpop.f32.mrf.mxu0
        %6439 = vdwg.mxu0
        %v6440 = vadd.f32 %v5657, %v6422
        %v6441 = vadd.f32 %v5662, %v6427
        %v6442 = vadd.f32 %v5667, %v6432
        %v6443 = vadd.f32 %v5672, %v6437
        %6444 = vrot.lane.b32.xlu0 %v4131, 104
        %v6445 = vpop.permute.xlu0 %6444
        %6446 = vrot.lane.b32.xlu0 %v423, 40
        %v6447 = vpop.permute.xlu0 %6446
        %v6448 = vsel %vm599, %v6445, 0
        %v6450 = vsel %vm599, %v6447, 0
        %6452 = vmatprep.subr.mxu0 0.0
        %6453 = vmatpush1.xpose.msra.mxu0 0.0
        %6454 = vmatprep.subr.mxu0 0.0
        %6455 = vmatpush1.xpose.msra.mxu0 0.0
        %6456 = vmatprep.subr.mxu0 0.0
        %6457 = vmatpush1.xpose.msra.mxu0 0.0
        %6458 = vmatprep.subr.mxu0 0.0
        %6459 = vmatpush1.xpose.msra.mxu0 0.0
        %6460 = vmatprep.subr.mxu0 0.0
        %6461 = vmatpush1.xpose.msra.mxu0 0.0
        %6462 = vmatprep.subr.mxu0 0.0
        %6463 = vmatpush1.xpose.msra.mxu0 0.0
        %6464 = vmatprep.subr.mxu0 0.0
        %6465 = vmatpush1.xpose.msra.mxu0 0.0
        %6466 = vmatprep.subr.mxu0 0.0
        %6467 = vmatpush1.xpose.msra.mxu0 0.0
        %6468 = vmatprep.subr.mxu0 0.0
        %6469 = vmatpush1.xpose.msra.mxu0 0.0
        %6470 = vmatprep.subr.mxu0 0.0
        %6471 = vmatpush1.xpose.msra.mxu0 0.0
        %6472 = vmatprep.subr.mxu0 0.0
        %6473 = vmatpush1.xpose.msra.mxu0 0.0
        %6474 = vmatprep.subr.mxu0 0.0
        %6475 = vmatpush1.xpose.msra.mxu0 0.0
        %6476 = vmatprep.subr.mxu0 0.0
        %6477 = vmatpush1.xpose.msra.mxu0 0.0
        %6478 = vmatprep.subr.mxu0 0.0
        %6479 = vmatpush1.xpose.msra.mxu0 0.0
        %6480 = vmatprep.subr.mxu0 0.0
        %6481 = vmatpush1.xpose.msra.mxu0 0.0
        %6482 = vmatprep.subr.mxu0 0.0
        %6483 = vmatpush1.xpose.msra.mxu0 %v6450
        %6484 = vmatprep.subr.mxu0 0.0
        %6485 = vmatpush2.xpose.msra.mxu0 0.0
        %6486 = vmatprep.subr.mxu0 0.0
        %6487 = vmatpush2.xpose.msra.mxu0 0.0
        %6488 = vmatprep.subr.mxu0 0.0
        %6489 = vmatpush2.xpose.msra.mxu0 0.0
        %6490 = vmatprep.subr.mxu0 0.0
        %6491 = vmatpush2.xpose.msra.mxu0 0.0
        %6492 = vmatprep.subr.mxu0 0.0
        %6493 = vmatpush2.xpose.msra.mxu0 0.0
        %6494 = vmatprep.subr.mxu0 0.0
        %6495 = vmatpush2.xpose.msra.mxu0 0.0
        %6496 = vmatprep.subr.mxu0 0.0
        %6497 = vmatpush2.xpose.msra.mxu0 0.0
        %6498 = vmatprep.subr.mxu0 0.0
        %6499 = vmatpush2.xpose.msra.mxu0 0.0
        %6500 = vmatprep.subr.mxu0 0.0
        %6501 = vmatpush2.xpose.msra.mxu0 0.0
        %6502 = vmatprep.subr.mxu0 0.0
        %6503 = vmatpush2.xpose.msra.mxu0 0.0
        %6504 = vmatprep.subr.mxu0 0.0
        %6505 = vmatpush2.xpose.msra.mxu0 0.0
        %6506 = vmatprep.subr.mxu0 0.0
        %6507 = vmatpush2.xpose.msra.mxu0 0.0
        %6508 = vmatprep.subr.mxu0 0.0
        %6509 = vmatpush2.xpose.msra.mxu0 0.0
        %6510 = vmatprep.subr.mxu0 0.0
        %6511 = vmatpush2.xpose.msra.mxu0 0.0
        %6512 = vmatprep.subr.mxu0 0.0
        %6513 = vmatpush2.xpose.msra.mxu0 0.0
        %6514 = vmatprep.subr.mxu0 0.0
        %6515 = vmatpush2.xpose.msra.mxu0 0.0
        %6516 = vmatprep.mubr.f32.mxu0 0.0
        %6517 = vmatmul.mubr.f32.gmra.mxu0 %v6448
        %v6518 = vpop.f32.mrf.mxu0
        %v6519 = vadd.f32 0.0, %v6518
        %v6520 = vpop.f32.mrf.mxu0
        %6521 = vdwg.mxu0
        %6522 = vrot.lane.b32.xlu0 %v4136, 104
        %v6523 = vpop.permute.xlu0 %6522
        %6524 = vrot.lane.b32.xlu0 %v428, 40
        %v6525 = vpop.permute.xlu0 %6524
        %v6526 = vsel %vm599, %v6523, 0
        %v6528 = vsel %vm599, %v6525, 0
        %6530 = vmatprep.subr.mxu0 0.0
        %6531 = vmatpush1.xpose.msra.mxu0 0.0
        %6532 = vmatprep.subr.mxu0 0.0
        %6533 = vmatpush1.xpose.msra.mxu0 0.0
        %6534 = vmatprep.subr.mxu0 0.0
        %6535 = vmatpush1.xpose.msra.mxu0 0.0
        %6536 = vmatprep.subr.mxu0 0.0
        %6537 = vmatpush1.xpose.msra.mxu0 0.0
        %6538 = vmatprep.subr.mxu0 0.0
        %6539 = vmatpush1.xpose.msra.mxu0 0.0
        %6540 = vmatprep.subr.mxu0 0.0
        %6541 = vmatpush1.xpose.msra.mxu0 0.0
        %6542 = vmatprep.subr.mxu0 0.0
        %6543 = vmatpush1.xpose.msra.mxu0 0.0
        %6544 = vmatprep.subr.mxu0 0.0
        %6545 = vmatpush1.xpose.msra.mxu0 0.0
        %6546 = vmatprep.subr.mxu0 0.0
        %6547 = vmatpush1.xpose.msra.mxu0 0.0
        %6548 = vmatprep.subr.mxu0 0.0
        %6549 = vmatpush1.xpose.msra.mxu0 0.0
        %6550 = vmatprep.subr.mxu0 0.0
        %6551 = vmatpush1.xpose.msra.mxu0 0.0
        %6552 = vmatprep.subr.mxu0 0.0
        %6553 = vmatpush1.xpose.msra.mxu0 0.0
        %6554 = vmatprep.subr.mxu0 0.0
        %6555 = vmatpush1.xpose.msra.mxu0 0.0
        %6556 = vmatprep.subr.mxu0 0.0
        %6557 = vmatpush1.xpose.msra.mxu0 0.0
        %6558 = vmatprep.subr.mxu0 0.0
        %6559 = vmatpush1.xpose.msra.mxu0 0.0
        %6560 = vmatprep.subr.mxu0 0.0
        %6561 = vmatpush1.xpose.msra.mxu0 %v6528
        %6562 = vmatprep.subr.mxu0 0.0
        %6563 = vmatpush2.xpose.msra.mxu0 0.0
        %6564 = vmatprep.subr.mxu0 0.0
        %6565 = vmatpush2.xpose.msra.mxu0 0.0
        %6566 = vmatprep.subr.mxu0 0.0
        %6567 = vmatpush2.xpose.msra.mxu0 0.0
        %6568 = vmatprep.subr.mxu0 0.0
        %6569 = vmatpush2.xpose.msra.mxu0 0.0
        %6570 = vmatprep.subr.mxu0 0.0
        %6571 = vmatpush2.xpose.msra.mxu0 0.0
        %6572 = vmatprep.subr.mxu0 0.0
        %6573 = vmatpush2.xpose.msra.mxu0 0.0
        %6574 = vmatprep.subr.mxu0 0.0
        %6575 = vmatpush2.xpose.msra.mxu0 0.0
        %6576 = vmatprep.subr.mxu0 0.0
        %6577 = vmatpush2.xpose.msra.mxu0 0.0
        %6578 = vmatprep.subr.mxu0 0.0
        %6579 = vmatpush2.xpose.msra.mxu0 0.0
        %6580 = vmatprep.subr.mxu0 0.0
        %6581 = vmatpush2.xpose.msra.mxu0 0.0
        %6582 = vmatprep.subr.mxu0 0.0
        %6583 = vmatpush2.xpose.msra.mxu0 0.0
        %6584 = vmatprep.subr.mxu0 0.0
        %6585 = vmatpush2.xpose.msra.mxu0 0.0
        %6586 = vmatprep.subr.mxu0 0.0
        %6587 = vmatpush2.xpose.msra.mxu0 0.0
        %6588 = vmatprep.subr.mxu0 0.0
        %6589 = vmatpush2.xpose.msra.mxu0 0.0
        %6590 = vmatprep.subr.mxu0 0.0
        %6591 = vmatpush2.xpose.msra.mxu0 0.0
        %6592 = vmatprep.subr.mxu0 0.0
        %6593 = vmatpush2.xpose.msra.mxu0 0.0
        %6594 = vmatprep.mubr.f32.mxu0 0.0
        %6595 = vmatmul.mubr.f32.gmra.mxu0 %v6526
        %v6596 = vpop.f32.mrf.mxu0
        %v6597 = vadd.f32 0.0, %v6596
        %v6598 = vpop.f32.mrf.mxu0
        %6599 = vdwg.mxu0
        %6600 = vrot.lane.b32.xlu0 %v4141, 104
        %v6601 = vpop.permute.xlu0 %6600
        %6602 = vrot.lane.b32.xlu0 %v433, 40
        %v6603 = vpop.permute.xlu0 %6602
        %v6604 = vsel %vm599, %v6601, 0
        %v6606 = vsel %vm599, %v6603, 0
        %6608 = vmatprep.subr.mxu0 0.0
        %6609 = vmatpush1.xpose.msra.mxu0 0.0
        %6610 = vmatprep.subr.mxu0 0.0
        %6611 = vmatpush1.xpose.msra.mxu0 0.0
        %6612 = vmatprep.subr.mxu0 0.0
        %6613 = vmatpush1.xpose.msra.mxu0 0.0
        %6614 = vmatprep.subr.mxu0 0.0
        %6615 = vmatpush1.xpose.msra.mxu0 0.0
        %6616 = vmatprep.subr.mxu0 0.0
        %6617 = vmatpush1.xpose.msra.mxu0 0.0
        %6618 = vmatprep.subr.mxu0 0.0
        %6619 = vmatpush1.xpose.msra.mxu0 0.0
        %6620 = vmatprep.subr.mxu0 0.0
        %6621 = vmatpush1.xpose.msra.mxu0 0.0
        %6622 = vmatprep.subr.mxu0 0.0
        %6623 = vmatpush1.xpose.msra.mxu0 0.0
        %6624 = vmatprep.subr.mxu0 0.0
        %6625 = vmatpush1.xpose.msra.mxu0 0.0
        %6626 = vmatprep.subr.mxu0 0.0
        %6627 = vmatpush1.xpose.msra.mxu0 0.0
        %6628 = vmatprep.subr.mxu0 0.0
        %6629 = vmatpush1.xpose.msra.mxu0 0.0
        %6630 = vmatprep.subr.mxu0 0.0
        %6631 = vmatpush1.xpose.msra.mxu0 0.0
        %6632 = vmatprep.subr.mxu0 0.0
        %6633 = vmatpush1.xpose.msra.mxu0 0.0
        %6634 = vmatprep.subr.mxu0 0.0
        %6635 = vmatpush1.xpose.msra.mxu0 0.0
        %6636 = vmatprep.subr.mxu0 0.0
        %6637 = vmatpush1.xpose.msra.mxu0 0.0
        %6638 = vmatprep.subr.mxu0 0.0
        %6639 = vmatpush1.xpose.msra.mxu0 %v6606
        %6640 = vmatprep.subr.mxu0 0.0
        %6641 = vmatpush2.xpose.msra.mxu0 0.0
        %6642 = vmatprep.subr.mxu0 0.0
        %6643 = vmatpush2.xpose.msra.mxu0 0.0
        %6644 = vmatprep.subr.mxu0 0.0
        %6645 = vmatpush2.xpose.msra.mxu0 0.0
        %6646 = vmatprep.subr.mxu0 0.0
        %6647 = vmatpush2.xpose.msra.mxu0 0.0
        %6648 = vmatprep.subr.mxu0 0.0
        %6649 = vmatpush2.xpose.msra.mxu0 0.0
        %6650 = vmatprep.subr.mxu0 0.0
        %6651 = vmatpush2.xpose.msra.mxu0 0.0
        %6652 = vmatprep.subr.mxu0 0.0
        %6653 = vmatpush2.xpose.msra.mxu0 0.0
        %6654 = vmatprep.subr.mxu0 0.0
        %6655 = vmatpush2.xpose.msra.mxu0 0.0
        %6656 = vmatprep.subr.mxu0 0.0
        %6657 = vmatpush2.xpose.msra.mxu0 0.0
        %6658 = vmatprep.subr.mxu0 0.0
        %6659 = vmatpush2.xpose.msra.mxu0 0.0
        %6660 = vmatprep.subr.mxu0 0.0
        %6661 = vmatpush2.xpose.msra.mxu0 0.0
        %6662 = vmatprep.subr.mxu0 0.0
        %6663 = vmatpush2.xpose.msra.mxu0 0.0
        %6664 = vmatprep.subr.mxu0 0.0
        %6665 = vmatpush2.xpose.msra.mxu0 0.0
        %6666 = vmatprep.subr.mxu0 0.0
        %6667 = vmatpush2.xpose.msra.mxu0 0.0
        %6668 = vmatprep.subr.mxu0 0.0
        %6669 = vmatpush2.xpose.msra.mxu0 0.0
        %6670 = vmatprep.subr.mxu0 0.0
        %6671 = vmatpush2.xpose.msra.mxu0 0.0
        %6672 = vmatprep.mubr.f32.mxu0 0.0
        %6673 = vmatmul.mubr.f32.gmra.mxu0 %v6604
        %v6674 = vpop.f32.mrf.mxu0
        %v6675 = vadd.f32 0.0, %v6674
        %v6676 = vpop.f32.mrf.mxu0
        %6677 = vdwg.mxu0
        %6678 = vrot.lane.b32.xlu0 %v4146, 104
        %v6679 = vpop.permute.xlu0 %6678
        %6680 = vrot.lane.b32.xlu0 %v438, 40
        %v6681 = vpop.permute.xlu0 %6680
        %v6682 = vsel %vm599, %v6679, 0
        %v6684 = vsel %vm599, %v6681, 0
        %6686 = vmatprep.subr.mxu0 0.0
        %6687 = vmatpush1.xpose.msra.mxu0 0.0
        %6688 = vmatprep.subr.mxu0 0.0
        %6689 = vmatpush1.xpose.msra.mxu0 0.0
        %6690 = vmatprep.subr.mxu0 0.0
        %6691 = vmatpush1.xpose.msra.mxu0 0.0
        %6692 = vmatprep.subr.mxu0 0.0
        %6693 = vmatpush1.xpose.msra.mxu0 0.0
        %6694 = vmatprep.subr.mxu0 0.0
        %6695 = vmatpush1.xpose.msra.mxu0 0.0
        %6696 = vmatprep.subr.mxu0 0.0
        %6697 = vmatpush1.xpose.msra.mxu0 0.0
        %6698 = vmatprep.subr.mxu0 0.0
        %6699 = vmatpush1.xpose.msra.mxu0 0.0
        %6700 = vmatprep.subr.mxu0 0.0
        %6701 = vmatpush1.xpose.msra.mxu0 0.0
        %6702 = vmatprep.subr.mxu0 0.0
        %6703 = vmatpush1.xpose.msra.mxu0 0.0
        %6704 = vmatprep.subr.mxu0 0.0
        %6705 = vmatpush1.xpose.msra.mxu0 0.0
        %6706 = vmatprep.subr.mxu0 0.0
        %6707 = vmatpush1.xpose.msra.mxu0 0.0
        %6708 = vmatprep.subr.mxu0 0.0
        %6709 = vmatpush1.xpose.msra.mxu0 0.0
        %6710 = vmatprep.subr.mxu0 0.0
        %6711 = vmatpush1.xpose.msra.mxu0 0.0
        %6712 = vmatprep.subr.mxu0 0.0
        %6713 = vmatpush1.xpose.msra.mxu0 0.0
        %6714 = vmatprep.subr.mxu0 0.0
        %6715 = vmatpush1.xpose.msra.mxu0 0.0
        %6716 = vmatprep.subr.mxu0 0.0
        %6717 = vmatpush1.xpose.msra.mxu0 %v6684
        %6718 = vmatprep.subr.mxu0 0.0
        %6719 = vmatpush2.xpose.msra.mxu0 0.0
        %6720 = vmatprep.subr.mxu0 0.0
        %6721 = vmatpush2.xpose.msra.mxu0 0.0
        %6722 = vmatprep.subr.mxu0 0.0
        %6723 = vmatpush2.xpose.msra.mxu0 0.0
        %6724 = vmatprep.subr.mxu0 0.0
        %6725 = vmatpush2.xpose.msra.mxu0 0.0
        %6726 = vmatprep.subr.mxu0 0.0
        %6727 = vmatpush2.xpose.msra.mxu0 0.0
        %6728 = vmatprep.subr.mxu0 0.0
        %6729 = vmatpush2.xpose.msra.mxu0 0.0
        %6730 = vmatprep.subr.mxu0 0.0
        %6731 = vmatpush2.xpose.msra.mxu0 0.0
        %6732 = vmatprep.subr.mxu0 0.0
        %6733 = vmatpush2.xpose.msra.mxu0 0.0
        %6734 = vmatprep.subr.mxu0 0.0
        %6735 = vmatpush2.xpose.msra.mxu0 0.0
        %6736 = vmatprep.subr.mxu0 0.0
        %6737 = vmatpush2.xpose.msra.mxu0 0.0
        %6738 = vmatprep.subr.mxu0 0.0
        %6739 = vmatpush2.xpose.msra.mxu0 0.0
        %6740 = vmatprep.subr.mxu0 0.0
        %6741 = vmatpush2.xpose.msra.mxu0 0.0
        %6742 = vmatprep.subr.mxu0 0.0
        %6743 = vmatpush2.xpose.msra.mxu0 0.0
        %6744 = vmatprep.subr.mxu0 0.0
        %6745 = vmatpush2.xpose.msra.mxu0 0.0
        %6746 = vmatprep.subr.mxu0 0.0
        %6747 = vmatpush2.xpose.msra.mxu0 0.0
        %6748 = vmatprep.subr.mxu0 0.0
        %6749 = vmatpush2.xpose.msra.mxu0 0.0
        %6750 = vmatprep.mubr.f32.mxu0 0.0
        %6751 = vmatmul.mubr.f32.gmra.mxu0 %v6682
        %v6752 = vpop.f32.mrf.mxu0
        %v6753 = vadd.f32 0.0, %v6752
        %v6754 = vpop.f32.mrf.mxu0
        %6755 = vdwg.mxu0
        %v6756 = vmul.f32 %v6519, 0.35355338
        %v6757 = vmul.f32 %v6597, 0.35355338
        %v6758 = vmul.f32 %v6675, 0.35355338
        %v6759 = vmul.f32 %v6753, 0.35355338
        %v6760 = vadd.f32 %v6756, %v451
        %v6761 = vadd.f32 %v6757, %v457
        %v6762 = vadd.f32 %v6758, %v463
        %v6763 = vadd.f32 %v6759, %v469
        %v6764 = vsel %vm599, %v6760, -inf
        %6765 = vmax.xlane.f32.xlu0 %v6764
        %v6766 = vpop.xlane.xlu0 %6765
        %v6767 = vsel %vm599, %v6761, -inf
        %6768 = vmax.xlane.f32.xlu0 %v6767
        %v6769 = vpop.xlane.xlu0 %6768
        %v6770 = vsel %vm599, %v6762, -inf
        %6771 = vmax.xlane.f32.xlu0 %v6770
        %v6772 = vpop.xlane.xlu0 %6771
        %v6773 = vsel %vm599, %v6763, -inf
        %6774 = vmax.xlane.f32.xlu0 %v6773
        %v6775 = vpop.xlane.xlu0 %6774
        %v6776 = vsub.f32 %v6760, %v6766
        %v6777 = vsub.f32 %v6761, %v6769
        %v6778 = vsub.f32 %v6762, %v6772
        %v6779 = vsub.f32 %v6763, %v6775
        %v6780 = vmul.f32 %v6776, 1.442695
        %v6781 = vpow.pop %v6780
        %v6782 = vmul.f32 %v6777, 1.442695
        %v6783 = vpow.pop %v6782
        %v6784 = vmul.f32 %v6778, 1.442695
        %v6785 = vpow.pop %v6784
        %v6786 = vmul.f32 %v6779, 1.442695
        %v6787 = vpow.pop %v6786
        %v6788 = vsel %vm599, %v6781, 0.0
        %6789 = vadd.xlane.f32.xlu0 %v6788
        %v6790 = vpop.xlane.xlu0 %6789
        %v6791 = vsel %vm599, %v6783, 0.0
        %6792 = vadd.xlane.f32.xlu0 %v6791
        %v6793 = vpop.xlane.xlu0 %6792
        %v6794 = vsel %vm599, %v6785, 0.0
        %6795 = vadd.xlane.f32.xlu0 %v6794
        %v6796 = vpop.xlane.xlu0 %6795
        %v6797 = vsel %vm599, %v6787, 0.0
        %6798 = vadd.xlane.f32.xlu0 %v6797
        %v6799 = vpop.xlane.xlu0 %6798
        %v6800 = vrcp.pop %v6790
        %v6801 = vmul.f32 %v6781, %v6800
        %v6802 = vrcp.pop %v6793
        %v6803 = vmul.f32 %v6783, %v6802
        %v6804 = vrcp.pop %v6796
        %v6805 = vmul.f32 %v6785, %v6804
        %v6806 = vrcp.pop %v6799
        %v6807 = vmul.f32 %v6787, %v6806
        %6808 = vrot.lane.b32.xlu0 %v423, 8
        %v6809 = vpop.permute.xlu0 %6808
        %v6812 = vsel %vm599, %v6801, 0
        %6814 = vmatprep.subr.mxu0 0.0
        %6815 = vmatpush1.msra.mxu0 0.0
        %6816 = vmatprep.subr.mxu0 0.0
        %6817 = vmatpush1.msra.mxu0 0.0
        %6818 = vmatprep.subr.mxu0 0.0
        %6819 = vmatpush1.msra.mxu0 0.0
        %6820 = vmatprep.subr.mxu0 0.0
        %6821 = vmatpush1.msra.mxu0 0.0
        %6822 = vmatprep.subr.mxu0 0.0
        %6823 = vmatpush1.msra.mxu0 0.0
        %6824 = vmatprep.subr.mxu0 0.0
        %6825 = vmatpush1.msra.mxu0 0.0
        %6826 = vmatprep.subr.mxu0 0.0
        %6827 = vmatpush1.msra.mxu0 0.0
        %6828 = vmatprep.subr.mxu0 0.0
        %6829 = vmatpush1.msra.mxu0 0.0
        %6830 = vmatprep.subr.mxu0 0.0
        %6831 = vmatpush1.msra.mxu0 0.0
        %6832 = vmatprep.subr.mxu0 0.0
        %6833 = vmatpush1.msra.mxu0 0.0
        %6834 = vmatprep.subr.mxu0 0.0
        %6835 = vmatpush1.msra.mxu0 0.0
        %6836 = vmatprep.subr.mxu0 0.0
        %6837 = vmatpush1.msra.mxu0 0.0
        %6838 = vmatprep.subr.mxu0 0.0
        %6839 = vmatpush1.msra.mxu0 0.0
        %6840 = vmatprep.subr.mxu0 0.0
        %6841 = vmatpush1.msra.mxu0 0.0
        %6842 = vmatprep.subr.mxu0 0.0
        %6843 = vmatpush1.msra.mxu0 0.0
        %6844 = vmatprep.subr.mxu0 0.0
        %6845 = vmatpush1.msra.mxu0 %v6809
        %6846 = vmatprep.subr.mxu0 0.0
        %6847 = vmatpush2.msra.mxu0 0.0
        %6848 = vmatprep.subr.mxu0 0.0
        %6849 = vmatpush2.msra.mxu0 0.0
        %6850 = vmatprep.subr.mxu0 0.0
        %6851 = vmatpush2.msra.mxu0 0.0
        %6852 = vmatprep.subr.mxu0 0.0
        %6853 = vmatpush2.msra.mxu0 0.0
        %6854 = vmatprep.subr.mxu0 0.0
        %6855 = vmatpush2.msra.mxu0 0.0
        %6856 = vmatprep.subr.mxu0 0.0
        %6857 = vmatpush2.msra.mxu0 0.0
        %6858 = vmatprep.subr.mxu0 0.0
        %6859 = vmatpush2.msra.mxu0 0.0
        %6860 = vmatprep.subr.mxu0 0.0
        %6861 = vmatpush2.msra.mxu0 0.0
        %6862 = vmatprep.subr.mxu0 0.0
        %6863 = vmatpush2.msra.mxu0 0.0
        %6864 = vmatprep.subr.mxu0 0.0
        %6865 = vmatpush2.msra.mxu0 0.0
        %6866 = vmatprep.subr.mxu0 0.0
        %6867 = vmatpush2.msra.mxu0 0.0
        %6868 = vmatprep.subr.mxu0 0.0
        %6869 = vmatpush2.msra.mxu0 0.0
        %6870 = vmatprep.subr.mxu0 0.0
        %6871 = vmatpush2.msra.mxu0 0.0
        %6872 = vmatprep.subr.mxu0 0.0
        %6873 = vmatpush2.msra.mxu0 0.0
        %6874 = vmatprep.subr.mxu0 0.0
        %6875 = vmatpush2.msra.mxu0 0.0
        %6876 = vmatprep.subr.mxu0 0.0
        %6877 = vmatpush2.msra.mxu0 0.0
        %6878 = vmatprep.mubr.f32.mxu0 0.0
        %6879 = vmatmul.mubr.f32.gmra.mxu0 %v6812
        %v6880 = vpop.f32.mrf.mxu0
        %v6881 = vadd.f32 0.0, %v6880
        %v6882 = vpop.f32.mrf.mxu0
        %6883 = vdwg.mxu0
        %6884 = vrot.lane.b32.xlu0 %v428, 8
        %v6885 = vpop.permute.xlu0 %6884
        %v6888 = vsel %vm599, %v6803, 0
        %6890 = vmatprep.subr.mxu0 0.0
        %6891 = vmatpush1.msra.mxu0 0.0
        %6892 = vmatprep.subr.mxu0 0.0
        %6893 = vmatpush1.msra.mxu0 0.0
        %6894 = vmatprep.subr.mxu0 0.0
        %6895 = vmatpush1.msra.mxu0 0.0
        %6896 = vmatprep.subr.mxu0 0.0
        %6897 = vmatpush1.msra.mxu0 0.0
        %6898 = vmatprep.subr.mxu0 0.0
        %6899 = vmatpush1.msra.mxu0 0.0
        %6900 = vmatprep.subr.mxu0 0.0
        %6901 = vmatpush1.msra.mxu0 0.0
        %6902 = vmatprep.subr.mxu0 0.0
        %6903 = vmatpush1.msra.mxu0 0.0
        %6904 = vmatprep.subr.mxu0 0.0
        %6905 = vmatpush1.msra.mxu0 0.0
        %6906 = vmatprep.subr.mxu0 0.0
        %6907 = vmatpush1.msra.mxu0 0.0
        %6908 = vmatprep.subr.mxu0 0.0
        %6909 = vmatpush1.msra.mxu0 0.0
        %6910 = vmatprep.subr.mxu0 0.0
        %6911 = vmatpush1.msra.mxu0 0.0
        %6912 = vmatprep.subr.mxu0 0.0
        %6913 = vmatpush1.msra.mxu0 0.0
        %6914 = vmatprep.subr.mxu0 0.0
        %6915 = vmatpush1.msra.mxu0 0.0
        %6916 = vmatprep.subr.mxu0 0.0
        %6917 = vmatpush1.msra.mxu0 0.0
        %6918 = vmatprep.subr.mxu0 0.0
        %6919 = vmatpush1.msra.mxu0 0.0
        %6920 = vmatprep.subr.mxu0 0.0
        %6921 = vmatpush1.msra.mxu0 %v6885
        %6922 = vmatprep.subr.mxu0 0.0
        %6923 = vmatpush2.msra.mxu0 0.0
        %6924 = vmatprep.subr.mxu0 0.0
        %6925 = vmatpush2.msra.mxu0 0.0
        %6926 = vmatprep.subr.mxu0 0.0
        %6927 = vmatpush2.msra.mxu0 0.0
        %6928 = vmatprep.subr.mxu0 0.0
        %6929 = vmatpush2.msra.mxu0 0.0
        %6930 = vmatprep.subr.mxu0 0.0
        %6931 = vmatpush2.msra.mxu0 0.0
        %6932 = vmatprep.subr.mxu0 0.0
        %6933 = vmatpush2.msra.mxu0 0.0
        %6934 = vmatprep.subr.mxu0 0.0
        %6935 = vmatpush2.msra.mxu0 0.0
        %6936 = vmatprep.subr.mxu0 0.0
        %6937 = vmatpush2.msra.mxu0 0.0
        %6938 = vmatprep.subr.mxu0 0.0
        %6939 = vmatpush2.msra.mxu0 0.0
        %6940 = vmatprep.subr.mxu0 0.0
        %6941 = vmatpush2.msra.mxu0 0.0
        %6942 = vmatprep.subr.mxu0 0.0
        %6943 = vmatpush2.msra.mxu0 0.0
        %6944 = vmatprep.subr.mxu0 0.0
        %6945 = vmatpush2.msra.mxu0 0.0
        %6946 = vmatprep.subr.mxu0 0.0
        %6947 = vmatpush2.msra.mxu0 0.0
        %6948 = vmatprep.subr.mxu0 0.0
        %6949 = vmatpush2.msra.mxu0 0.0
        %6950 = vmatprep.subr.mxu0 0.0
        %6951 = vmatpush2.msra.mxu0 0.0
        %6952 = vmatprep.subr.mxu0 0.0
        %6953 = vmatpush2.msra.mxu0 0.0
        %6954 = vmatprep.mubr.f32.mxu0 0.0
        %6955 = vmatmul.mubr.f32.gmra.mxu0 %v6888
        %v6956 = vpop.f32.mrf.mxu0
        %v6957 = vadd.f32 0.0, %v6956
        %v6958 = vpop.f32.mrf.mxu0
        %6959 = vdwg.mxu0
        %6960 = vrot.lane.b32.xlu0 %v433, 8
        %v6961 = vpop.permute.xlu0 %6960
        %v6964 = vsel %vm599, %v6805, 0
        %6966 = vmatprep.subr.mxu0 0.0
        %6967 = vmatpush1.msra.mxu0 0.0
        %6968 = vmatprep.subr.mxu0 0.0
        %6969 = vmatpush1.msra.mxu0 0.0
        %6970 = vmatprep.subr.mxu0 0.0
        %6971 = vmatpush1.msra.mxu0 0.0
        %6972 = vmatprep.subr.mxu0 0.0
        %6973 = vmatpush1.msra.mxu0 0.0
        %6974 = vmatprep.subr.mxu0 0.0
        %6975 = vmatpush1.msra.mxu0 0.0
        %6976 = vmatprep.subr.mxu0 0.0
        %6977 = vmatpush1.msra.mxu0 0.0
        %6978 = vmatprep.subr.mxu0 0.0
        %6979 = vmatpush1.msra.mxu0 0.0
        %6980 = vmatprep.subr.mxu0 0.0
        %6981 = vmatpush1.msra.mxu0 0.0
        %6982 = vmatprep.subr.mxu0 0.0
        %6983 = vmatpush1.msra.mxu0 0.0
        %6984 = vmatprep.subr.mxu0 0.0
        %6985 = vmatpush1.msra.mxu0 0.0
        %6986 = vmatprep.subr.mxu0 0.0
        %6987 = vmatpush1.msra.mxu0 0.0
        %6988 = vmatprep.subr.mxu0 0.0
        %6989 = vmatpush1.msra.mxu0 0.0
        %6990 = vmatprep.subr.mxu0 0.0
        %6991 = vmatpush1.msra.mxu0 0.0
        %6992 = vmatprep.subr.mxu0 0.0
        %6993 = vmatpush1.msra.mxu0 0.0
        %6994 = vmatprep.subr.mxu0 0.0
        %6995 = vmatpush1.msra.mxu0 0.0
        %6996 = vmatprep.subr.mxu0 0.0
        %6997 = vmatpush1.msra.mxu0 %v6961
        %6998 = vmatprep.subr.mxu0 0.0
        %6999 = vmatpush2.msra.mxu0 0.0
        %7000 = vmatprep.subr.mxu0 0.0
        %7001 = vmatpush2.msra.mxu0 0.0
        %7002 = vmatprep.subr.mxu0 0.0
        %7003 = vmatpush2.msra.mxu0 0.0
        %7004 = vmatprep.subr.mxu0 0.0
        %7005 = vmatpush2.msra.mxu0 0.0
        %7006 = vmatprep.subr.mxu0 0.0
        %7007 = vmatpush2.msra.mxu0 0.0
        %7008 = vmatprep.subr.mxu0 0.0
        %7009 = vmatpush2.msra.mxu0 0.0
        %7010 = vmatprep.subr.mxu0 0.0
        %7011 = vmatpush2.msra.mxu0 0.0
        %7012 = vmatprep.subr.mxu0 0.0
        %7013 = vmatpush2.msra.mxu0 0.0
        %7014 = vmatprep.subr.mxu0 0.0
        %7015 = vmatpush2.msra.mxu0 0.0
        %7016 = vmatprep.subr.mxu0 0.0
        %7017 = vmatpush2.msra.mxu0 0.0
        %7018 = vmatprep.subr.mxu0 0.0
        %7019 = vmatpush2.msra.mxu0 0.0
        %7020 = vmatprep.subr.mxu0 0.0
        %7021 = vmatpush2.msra.mxu0 0.0
        %7022 = vmatprep.subr.mxu0 0.0
        %7023 = vmatpush2.msra.mxu0 0.0
        %7024 = vmatprep.subr.mxu0 0.0
        %7025 = vmatpush2.msra.mxu0 0.0
        %7026 = vmatprep.subr.mxu0 0.0
        %7027 = vmatpush2.msra.mxu0 0.0
        %7028 = vmatprep.subr.mxu0 0.0
        %7029 = vmatpush2.msra.mxu0 0.0
        %7030 = vmatprep.mubr.f32.mxu0 0.0
        %7031 = vmatmul.mubr.f32.gmra.mxu0 %v6964
        %v7032 = vpop.f32.mrf.mxu0
        %v7033 = vadd.f32 0.0, %v7032
        %v7034 = vpop.f32.mrf.mxu0
        %7035 = vdwg.mxu0
        %7036 = vrot.lane.b32.xlu0 %v438, 8
        %v7037 = vpop.permute.xlu0 %7036
        %v7040 = vsel %vm599, %v6807, 0
        %7042 = vmatprep.subr.mxu0 0.0
        %7043 = vmatpush1.msra.mxu0 0.0
        %7044 = vmatprep.subr.mxu0 0.0
        %7045 = vmatpush1.msra.mxu0 0.0
        %7046 = vmatprep.subr.mxu0 0.0
        %7047 = vmatpush1.msra.mxu0 0.0
        %7048 = vmatprep.subr.mxu0 0.0
        %7049 = vmatpush1.msra.mxu0 0.0
        %7050 = vmatprep.subr.mxu0 0.0
        %7051 = vmatpush1.msra.mxu0 0.0
        %7052 = vmatprep.subr.mxu0 0.0
        %7053 = vmatpush1.msra.mxu0 0.0
        %7054 = vmatprep.subr.mxu0 0.0
        %7055 = vmatpush1.msra.mxu0 0.0
        %7056 = vmatprep.subr.mxu0 0.0
        %7057 = vmatpush1.msra.mxu0 0.0
        %7058 = vmatprep.subr.mxu0 0.0
        %7059 = vmatpush1.msra.mxu0 0.0
        %7060 = vmatprep.subr.mxu0 0.0
        %7061 = vmatpush1.msra.mxu0 0.0
        %7062 = vmatprep.subr.mxu0 0.0
        %7063 = vmatpush1.msra.mxu0 0.0
        %7064 = vmatprep.subr.mxu0 0.0
        %7065 = vmatpush1.msra.mxu0 0.0
        %7066 = vmatprep.subr.mxu0 0.0
        %7067 = vmatpush1.msra.mxu0 0.0
        %7068 = vmatprep.subr.mxu0 0.0
        %7069 = vmatpush1.msra.mxu0 0.0
        %7070 = vmatprep.subr.mxu0 0.0
        %7071 = vmatpush1.msra.mxu0 0.0
        %7072 = vmatprep.subr.mxu0 0.0
        %7073 = vmatpush1.msra.mxu0 %v7037
        %7074 = vmatprep.subr.mxu0 0.0
        %7075 = vmatpush2.msra.mxu0 0.0
        %7076 = vmatprep.subr.mxu0 0.0
        %7077 = vmatpush2.msra.mxu0 0.0
        %7078 = vmatprep.subr.mxu0 0.0
        %7079 = vmatpush2.msra.mxu0 0.0
        %7080 = vmatprep.subr.mxu0 0.0
        %7081 = vmatpush2.msra.mxu0 0.0
        %7082 = vmatprep.subr.mxu0 0.0
        %7083 = vmatpush2.msra.mxu0 0.0
        %7084 = vmatprep.subr.mxu0 0.0
        %7085 = vmatpush2.msra.mxu0 0.0
        %7086 = vmatprep.subr.mxu0 0.0
        %7087 = vmatpush2.msra.mxu0 0.0
        %7088 = vmatprep.subr.mxu0 0.0
        %7089 = vmatpush2.msra.mxu0 0.0
        %7090 = vmatprep.subr.mxu0 0.0
        %7091 = vmatpush2.msra.mxu0 0.0
        %7092 = vmatprep.subr.mxu0 0.0
        %7093 = vmatpush2.msra.mxu0 0.0
        %7094 = vmatprep.subr.mxu0 0.0
        %7095 = vmatpush2.msra.mxu0 0.0
        %7096 = vmatprep.subr.mxu0 0.0
        %7097 = vmatpush2.msra.mxu0 0.0
        %7098 = vmatprep.subr.mxu0 0.0
        %7099 = vmatpush2.msra.mxu0 0.0
        %7100 = vmatprep.subr.mxu0 0.0
        %7101 = vmatpush2.msra.mxu0 0.0
        %7102 = vmatprep.subr.mxu0 0.0
        %7103 = vmatpush2.msra.mxu0 0.0
        %7104 = vmatprep.subr.mxu0 0.0
        %7105 = vmatpush2.msra.mxu0 0.0
        %7106 = vmatprep.mubr.f32.mxu0 0.0
        %7107 = vmatmul.mubr.f32.gmra.mxu0 %v7040
        %v7108 = vpop.f32.mrf.mxu0
        %v7109 = vadd.f32 0.0, %v7108
        %v7110 = vpop.f32.mrf.mxu0
        %7111 = vdwg.mxu0
        %v7113 = vsel %vm599, %v6881, 0
        %v7116 = vsel %vm599, %v6957, 0
        %v7119 = vsel %vm599, %v7033, 0
        %v7122 = vsel %vm599, %v7109, 0
        %7124 = vmatprep.subr.mxu0 0.0
        %7125 = vmatpush1.msra.mxu0 0.0
        %7126 = vmatprep.subr.mxu0 0.0
        %7127 = vmatpush1.msra.mxu0 0.0
        %7128 = vmatprep.subr.mxu0 0.0
        %7129 = vmatpush1.msra.mxu0 0.0
        %7130 = vmatprep.subr.mxu0 0.0
        %7131 = vmatpush1.msra.mxu0 0.0
        %7132 = vmatprep.subr.mxu0 0.0
        %7133 = vmatpush1.msra.mxu0 0.0
        %7134 = vmatprep.subr.mxu0 0.0
        %7135 = vmatpush1.msra.mxu0 0.0
        %7136 = vmatprep.subr.mxu0 0.0
        %7137 = vmatpush1.msra.mxu0 0.0
        %7138 = vmatprep.subr.mxu0 0.0
        %7139 = vmatpush1.msra.mxu0 0.0
        %7140 = vmatprep.subr.mxu0 0.0
        %7141 = vmatpush1.msra.mxu0 0.0
        %7142 = vmatprep.subr.mxu0 0.0
        %7143 = vmatpush1.msra.mxu0 0.0
        %7144 = vmatprep.subr.mxu0 0.0
        %7145 = vmatpush1.msra.mxu0 0.0
        %7146 = vmatprep.subr.mxu0 0.0
        %7147 = vmatpush1.msra.mxu0 0.0
        %7148 = vmatprep.subr.mxu0 0.0
        %7149 = vmatpush1.msra.mxu0 0.0
        %7150 = vmatprep.subr.mxu0 0.0
        %7151 = vmatpush1.msra.mxu0 0.0
        %7152 = vmatprep.subr.mxu0 0.0
        %7153 = vmatpush1.msra.mxu0 0.0
        %7154 = vmatprep.subr.mxu0 0.0
        %7155 = vmatpush1.msra.mxu0 %v4027
        %7156 = vmatprep.subr.mxu0 0.0
        %7157 = vmatpush2.msra.mxu0 0.0
        %7158 = vmatprep.subr.mxu0 0.0
        %7159 = vmatpush2.msra.mxu0 0.0
        %7160 = vmatprep.subr.mxu0 0.0
        %7161 = vmatpush2.msra.mxu0 0.0
        %7162 = vmatprep.subr.mxu0 0.0
        %7163 = vmatpush2.msra.mxu0 0.0
        %7164 = vmatprep.subr.mxu0 0.0
        %7165 = vmatpush2.msra.mxu0 0.0
        %7166 = vmatprep.subr.mxu0 0.0
        %7167 = vmatpush2.msra.mxu0 0.0
        %7168 = vmatprep.subr.mxu0 0.0
        %7169 = vmatpush2.msra.mxu0 0.0
        %7170 = vmatprep.subr.mxu0 0.0
        %7171 = vmatpush2.msra.mxu0 0.0
        %7172 = vmatprep.subr.mxu0 0.0
        %7173 = vmatpush2.msra.mxu0 0.0
        %7174 = vmatprep.subr.mxu0 0.0
        %7175 = vmatpush2.msra.mxu0 0.0
        %7176 = vmatprep.subr.mxu0 0.0
        %7177 = vmatpush2.msra.mxu0 0.0
        %7178 = vmatprep.subr.mxu0 0.0
        %7179 = vmatpush2.msra.mxu0 0.0
        %7180 = vmatprep.subr.mxu0 0.0
        %7181 = vmatpush2.msra.mxu0 0.0
        %7182 = vmatprep.subr.mxu0 0.0
        %7183 = vmatpush2.msra.mxu0 0.0
        %7184 = vmatprep.subr.mxu0 0.0
        %7185 = vmatpush2.msra.mxu0 0.0
        %7186 = vmatprep.subr.mxu0 0.0
        %7187 = vmatpush2.msra.mxu0 0.0
        %7188 = vmatprep.mubr.f32.mxu0 0.0
        %7189 = vmatmul.mubr.f32.gmra.mxu0 %v7113
        %v7190 = vpop.f32.mrf.mxu0
        %v7191 = vadd.f32 0.0, %v7190
        %v7192 = vpop.f32.mrf.mxu0
        %7193 = vmatprep.mubr.f32.mxu0 0.0
        %7194 = vmatmul.mubr.f32.gmra.mxu0 %v7116
        %v7195 = vpop.f32.mrf.mxu0
        %v7196 = vadd.f32 0.0, %v7195
        %v7197 = vpop.f32.mrf.mxu0
        %7198 = vmatprep.mubr.f32.mxu0 0.0
        %7199 = vmatmul.mubr.f32.gmra.mxu0 %v7119
        %v7200 = vpop.f32.mrf.mxu0
        %v7201 = vadd.f32 0.0, %v7200
        %v7202 = vpop.f32.mrf.mxu0
        %7203 = vmatprep.mubr.f32.mxu0 0.0
        %7204 = vmatmul.mubr.f32.gmra.mxu0 %v7122
        %v7205 = vpop.f32.mrf.mxu0
        %v7206 = vadd.f32 0.0, %v7205
        %v7207 = vpop.f32.mrf.mxu0
        %7208 = vdwg.mxu0
        %v7209 = vadd.f32 %v6440, %v7191
        %v7210 = vadd.f32 %v6441, %v7196
        %v7211 = vadd.f32 %v6442, %v7201
        %v7212 = vadd.f32 %v6443, %v7206
        %v7213 = vlaneseq
        %v7214 = vshrl.u32 %v7213, 7
        %v7215 = vsub.s32 0, %v7214
        %v7216 = vrot.slane %v4041, %v7215
        %v7217 = vadd.f32 %v7209, %v7216
        %v7218 = vadd.f32 %v7210, %v7216
        %v7219 = vadd.f32 %v7211, %v7216
        %v7220 = vadd.f32 %v7212, %v7216
        %v7221 = vadd.f32 %v4016, %v7217
        %v7222 = vadd.f32 %v4017, %v7218
        %v7223 = vadd.f32 %v4018, %v7219
        %v7224 = vadd.f32 %v4019, %v7220
        %v7225 = vsel %vm343, %v7221, 0.0
        %7226 = vadd.xlane.f32.xlu0 %v7225
        %v7227 = vpop.xlane.xlu0 %7226
        %v7228 = vsel %vm343, %v7222, 0.0
        %7229 = vadd.xlane.f32.xlu0 %v7228
        %v7230 = vpop.xlane.xlu0 %7229
        %v7231 = vsel %vm343, %v7223, 0.0
        %7232 = vadd.xlane.f32.xlu0 %v7231
        %v7233 = vpop.xlane.xlu0 %7232
        %v7234 = vsel %vm343, %v7224, 0.0
        %7235 = vadd.xlane.f32.xlu0 %v7234
        %v7236 = vpop.xlane.xlu0 %7235
        %v7237 = vmul.f32 %v7227, %v3684
        %v7238 = vmul.f32 %v7230, %v3684
        %v7239 = vmul.f32 %v7233, %v3684
        %v7240 = vmul.f32 %v7236, %v3684
        %v7241 = vsub.f32 %v7221, %v7237
        %v7242 = vsub.f32 %v7222, %v7238
        %v7243 = vsub.f32 %v7223, %v7239
        %v7244 = vsub.f32 %v7224, %v7240
        %v7245 = vmul.f32 %v7241, %v7241
        %v7246 = vmul.f32 %v7242, %v7242
        %v7247 = vmul.f32 %v7243, %v7243
        %v7248 = vmul.f32 %v7244, %v7244
        %v7249 = vsel %vm343, %v7245, 0.0
        %7250 = vadd.xlane.f32.xlu0 %v7249
        %v7251 = vpop.xlane.xlu0 %7250
        %v7252 = vsel %vm343, %v7246, 0.0
        %7253 = vadd.xlane.f32.xlu0 %v7252
        %v7254 = vpop.xlane.xlu0 %7253
        %v7255 = vsel %vm343, %v7247, 0.0
        %7256 = vadd.xlane.f32.xlu0 %v7255
        %v7257 = vpop.xlane.xlu0 %7256
        %v7258 = vsel %vm343, %v7248, 0.0
        %7259 = vadd.xlane.f32.xlu0 %v7258
        %v7260 = vpop.xlane.xlu0 %7259
        %v7261 = vmul.f32 %v7251, %v3684
        %v7262 = vmul.f32 %v7254, %v3684
        %v7263 = vmul.f32 %v7257, %v3684
        %v7264 = vmul.f32 %v7260, %v3684
        %v7265 = vadd.f32 %v7261, 1e-05
        %v7266 = vadd.f32 %v7262, 1e-05
        %v7267 = vadd.f32 %v7263, 1e-05
        %v7268 = vadd.f32 %v7264, 1e-05
        %v7269 = vrsqrt.pop %v7265
        %v7270 = vrsqrt.pop %v7266
        %v7271 = vrsqrt.pop %v7267
        %v7272 = vrsqrt.pop %v7268
        %v7273 = vmul.f32 %v7241, %v7269
        %v7274 = vmul.f32 %v7242, %v7270
        %v7275 = vmul.f32 %v7243, %v7271
        %v7276 = vmul.f32 %v7244, %v7272
        %v7277 = vlaneseq
        %v7278 = vshrl.u32 %v7277, 7
        %v7279 = vsub.s32 0, %v7278
        %v7280 = vrot.slane %v4042, %v7279
        %v7281 = vmul.f32 %v7273, %v7280
        %v7282 = vmul.f32 %v7274, %v7280
        %v7283 = vmul.f32 %v7275, %v7280
        %v7284 = vmul.f32 %v7276, %v7280
        %v7285 = vlaneseq
        %v7286 = vshrl.u32 %v7285, 7
        %v7287 = vsub.s32 0, %v7286
        %v7288 = vrot.slane %v4043, %v7287
        %v7289 = vadd.f32 %v7281, %v7288
        %v7290 = vadd.f32 %v7282, %v7288
        %v7291 = vadd.f32 %v7283, %v7288
        %v7292 = vadd.f32 %v7284, %v7288
        %v7293 = vlaneseq
        %v7294 = vshrl.u32 %v7293, 7
        %v7295 = vsub.s32 0, %v7294
        %v7296 = vrot.slane %v4044, %v7295
        %v7298 = vsel %vm343, %v7289, 0
        %v7301 = vsel %vm343, %v7290, 0
        %v7304 = vsel %vm343, %v7291, 0
        %v7307 = vsel %vm343, %v7292, 0
        %7309 = vmatprep.subr.mxu0 0.0
        %7310 = vmatpush1.msra.mxu0 0.0
        %7311 = vmatprep.subr.mxu0 0.0
        %7312 = vmatpush1.msra.mxu0 0.0
        %7313 = vmatprep.subr.mxu0 0.0
        %7314 = vmatpush1.msra.mxu0 0.0
        %7315 = vmatprep.subr.mxu0 0.0
        %7316 = vmatpush1.msra.mxu0 0.0
        %7317 = vmatprep.subr.mxu0 0.0
        %7318 = vmatpush1.msra.mxu0 0.0
        %7319 = vmatprep.subr.mxu0 0.0
        %7320 = vmatpush1.msra.mxu0 0.0
        %7321 = vmatprep.subr.mxu0 0.0
        %7322 = vmatpush1.msra.mxu0 0.0
        %7323 = vmatprep.subr.mxu0 0.0
        %7324 = vmatpush1.msra.mxu0 0.0
        %7325 = vmatprep.subr.mxu0 0.0
        %7326 = vmatpush1.msra.mxu0 0.0
        %7327 = vmatprep.subr.mxu0 0.0
        %7328 = vmatpush1.msra.mxu0 0.0
        %7329 = vmatprep.subr.mxu0 0.0
        %7330 = vmatpush1.msra.mxu0 0.0
        %7331 = vmatprep.subr.mxu0 0.0
        %7332 = vmatpush1.msra.mxu0 0.0
        %7333 = vmatprep.subr.mxu0 0.0
        %7334 = vmatpush1.msra.mxu0 %v4031
        %7335 = vmatprep.subr.mxu0 0.0
        %7336 = vmatpush1.msra.mxu0 %v4030
        %7337 = vmatprep.subr.mxu0 0.0
        %7338 = vmatpush1.msra.mxu0 %v4029
        %7339 = vmatprep.subr.mxu0 0.0
        %7340 = vmatpush1.msra.mxu0 %v4028
        %7341 = vmatprep.subr.mxu0 0.0
        %7342 = vmatpush2.msra.mxu0 0.0
        %7343 = vmatprep.subr.mxu0 0.0
        %7344 = vmatpush2.msra.mxu0 0.0
        %7345 = vmatprep.subr.mxu0 0.0
        %7346 = vmatpush2.msra.mxu0 0.0
        %7347 = vmatprep.subr.mxu0 0.0
        %7348 = vmatpush2.msra.mxu0 0.0
        %7349 = vmatprep.subr.mxu0 0.0
        %7350 = vmatpush2.msra.mxu0 0.0
        %7351 = vmatprep.subr.mxu0 0.0
        %7352 = vmatpush2.msra.mxu0 0.0
        %7353 = vmatprep.subr.mxu0 0.0
        %7354 = vmatpush2.msra.mxu0 0.0
        %7355 = vmatprep.subr.mxu0 0.0
        %7356 = vmatpush2.msra.mxu0 0.0
        %7357 = vmatprep.subr.mxu0 0.0
        %7358 = vmatpush2.msra.mxu0 0.0
        %7359 = vmatprep.subr.mxu0 0.0
        %7360 = vmatpush2.msra.mxu0 0.0
        %7361 = vmatprep.subr.mxu0 0.0
        %7362 = vmatpush2.msra.mxu0 0.0
        %7363 = vmatprep.subr.mxu0 0.0
        %7364 = vmatpush2.msra.mxu0 0.0
        %7365 = vmatprep.subr.mxu0 0.0
        %7366 = vmatpush2.msra.mxu0 0.0
        %7367 = vmatprep.subr.mxu0 0.0
        %7368 = vmatpush2.msra.mxu0 0.0
        %7369 = vmatprep.subr.mxu0 0.0
        %7370 = vmatpush2.msra.mxu0 0.0
        %7371 = vmatprep.subr.mxu0 0.0
        %7372 = vmatpush2.msra.mxu0 0.0
        %7373 = vmatprep.mubr.f32.mxu0 0.0
        %7374 = vmatmul.mubr.f32.gmra.mxu0 %v7298
        %v7375 = vpop.f32.mrf.mxu0
        %v7376 = vadd.f32 %v7296, %v7375
        %v7377 = vpop.f32.mrf.mxu0
        %7378 = vmatprep.mubr.f32.mxu0 0.0
        %7379 = vmatmul.mubr.f32.gmra.mxu0 %v7301
        %v7380 = vpop.f32.mrf.mxu0
        %v7381 = vadd.f32 %v7296, %v7380
        %v7382 = vpop.f32.mrf.mxu0
        %7383 = vmatprep.mubr.f32.mxu0 0.0
        %7384 = vmatmul.mubr.f32.gmra.mxu0 %v7304
        %v7385 = vpop.f32.mrf.mxu0
        %v7386 = vadd.f32 %v7296, %v7385
        %v7387 = vpop.f32.mrf.mxu0
        %7388 = vmatprep.mubr.f32.mxu0 0.0
        %7389 = vmatmul.mubr.f32.gmra.mxu0 %v7307
        %v7390 = vpop.f32.mrf.mxu0
        %v7391 = vadd.f32 %v7296, %v7390
        %v7392 = vpop.f32.mrf.mxu0
        %7393 = vdwg.mxu0
        %v7394 = vmax.f32 %v7376, 0.0
        %v7395 = vmax.f32 %v7381, 0.0
        %v7396 = vmax.f32 %v7386, 0.0
        %v7397 = vmax.f32 %v7391, 0.0
        %v7398 = vlaneseq
        %v7399 = vshrl.u32 %v7398, 7
        %v7400 = vsub.s32 0, %v7399
        %v7401 = vrot.slane %v4045, %v7400
        %v7403 = vsel %vm3850, %v7394, 0
        %v7406 = vsel %vm3850, %v7395, 0
        %v7409 = vsel %vm3850, %v7396, 0
        %v7412 = vsel %vm3850, %v7397, 0
        %7414 = vmatprep.subr.mxu0 0.0
        %7415 = vmatpush1.msra.mxu0 0.0
        %7416 = vmatprep.subr.mxu0 0.0
        %7417 = vmatpush1.msra.mxu0 0.0
        %7418 = vmatprep.subr.mxu0 0.0
        %7419 = vmatpush1.msra.mxu0 0.0
        %7420 = vmatprep.subr.mxu0 0.0
        %7421 = vmatpush1.msra.mxu0 0.0
        %7422 = vmatprep.subr.mxu0 0.0
        %7423 = vmatpush1.msra.mxu0 0.0
        %7424 = vmatprep.subr.mxu0 0.0
        %7425 = vmatpush1.msra.mxu0 0.0
        %7426 = vmatprep.subr.mxu0 0.0
        %7427 = vmatpush1.msra.mxu0 0.0
        %7428 = vmatprep.subr.mxu0 0.0
        %7429 = vmatpush1.msra.mxu0 0.0
        %7430 = vmatprep.subr.mxu0 0.0
        %7431 = vmatpush1.msra.mxu0 %v4039
        %7432 = vmatprep.subr.mxu0 0.0
        %7433 = vmatpush1.msra.mxu0 %v4038
        %7434 = vmatprep.subr.mxu0 0.0
        %7435 = vmatpush1.msra.mxu0 %v4037
        %7436 = vmatprep.subr.mxu0 0.0
        %7437 = vmatpush1.msra.mxu0 %v4036
        %7438 = vmatprep.subr.mxu0 0.0
        %7439 = vmatpush1.msra.mxu0 %v4035
        %7440 = vmatprep.subr.mxu0 0.0
        %7441 = vmatpush1.msra.mxu0 %v4034
        %7442 = vmatprep.subr.mxu0 0.0
        %7443 = vmatpush1.msra.mxu0 %v4033
        %7444 = vmatprep.subr.mxu0 0.0
        %7445 = vmatpush1.msra.mxu0 %v4032
        %7446 = vmatprep.subr.mxu0 0.0
        %7447 = vmatpush2.msra.mxu0 0.0
        %7448 = vmatprep.subr.mxu0 0.0
        %7449 = vmatpush2.msra.mxu0 0.0
        %7450 = vmatprep.subr.mxu0 0.0
        %7451 = vmatpush2.msra.mxu0 0.0
        %7452 = vmatprep.subr.mxu0 0.0
        %7453 = vmatpush2.msra.mxu0 0.0
        %7454 = vmatprep.subr.mxu0 0.0
        %7455 = vmatpush2.msra.mxu0 0.0
        %7456 = vmatprep.subr.mxu0 0.0
        %7457 = vmatpush2.msra.mxu0 0.0
        %7458 = vmatprep.subr.mxu0 0.0
        %7459 = vmatpush2.msra.mxu0 0.0
        %7460 = vmatprep.subr.mxu0 0.0
        %7461 = vmatpush2.msra.mxu0 0.0
        %7462 = vmatprep.subr.mxu0 0.0
        %7463 = vmatpush2.msra.mxu0 0.0
        %7464 = vmatprep.subr.mxu0 0.0
        %7465 = vmatpush2.msra.mxu0 0.0
        %7466 = vmatprep.subr.mxu0 0.0
        %7467 = vmatpush2.msra.mxu0 0.0
        %7468 = vmatprep.subr.mxu0 0.0
        %7469 = vmatpush2.msra.mxu0 0.0
        %7470 = vmatprep.subr.mxu0 0.0
        %7471 = vmatpush2.msra.mxu0 0.0
        %7472 = vmatprep.subr.mxu0 0.0
        %7473 = vmatpush2.msra.mxu0 0.0
        %7474 = vmatprep.subr.mxu0 0.0
        %7475 = vmatpush2.msra.mxu0 0.0
        %7476 = vmatprep.subr.mxu0 0.0
        %7477 = vmatpush2.msra.mxu0 0.0
        %7478 = vmatprep.mubr.f32.mxu0 0.0
        %7479 = vmatmul.mubr.f32.gmra.mxu0 %v7403
        %v7480 = vpop.f32.mrf.mxu0
        %v7481 = vadd.f32 %v7401, %v7480
        %v7482 = vpop.f32.mrf.mxu0
        %7483 = vmatprep.mubr.f32.mxu0 0.0
        %7484 = vmatmul.mubr.f32.gmra.mxu0 %v7406
        %v7485 = vpop.f32.mrf.mxu0
        %v7486 = vadd.f32 %v7401, %v7485
        %v7487 = vpop.f32.mrf.mxu0
        %7488 = vmatprep.mubr.f32.mxu0 0.0
        %7489 = vmatmul.mubr.f32.gmra.mxu0 %v7409
        %v7490 = vpop.f32.mrf.mxu0
        %v7491 = vadd.f32 %v7401, %v7490
        %v7492 = vpop.f32.mrf.mxu0
        %7493 = vmatprep.mubr.f32.mxu0 0.0
        %7494 = vmatmul.mubr.f32.gmra.mxu0 %v7412
        %v7495 = vpop.f32.mrf.mxu0
        %v7496 = vadd.f32 %v7401, %v7495
        %v7497 = vpop.f32.mrf.mxu0
        %7498 = vdwg.mxu0
        %v7499 = vadd.f32 %v7289, %v7481
        %v7500 = vadd.f32 %v7290, %v7486
        %v7501 = vadd.f32 %v7291, %v7491
        %v7502 = vadd.f32 %v7292, %v7496
        %v7503 = vsel %vm343, %v7499, 0.0
        %7504 = vadd.xlane.f32.xlu0 %v7503
        %v7505 = vpop.xlane.xlu0 %7504
        %v7506 = vsel %vm343, %v7500, 0.0
        %7507 = vadd.xlane.f32.xlu0 %v7506
        %v7508 = vpop.xlane.xlu0 %7507
        %v7509 = vsel %vm343, %v7501, 0.0
        %7510 = vadd.xlane.f32.xlu0 %v7509
        %v7511 = vpop.xlane.xlu0 %7510
        %v7512 = vsel %vm343, %v7502, 0.0
        %7513 = vadd.xlane.f32.xlu0 %v7512
        %v7514 = vpop.xlane.xlu0 %7513
        %v7515 = vmul.f32 %v7505, %v3684
        %v7516 = vmul.f32 %v7508, %v3684
        %v7517 = vmul.f32 %v7511, %v3684
        %v7518 = vmul.f32 %v7514, %v3684
        %v7519 = vsub.f32 %v7499, %v7515
        %v7520 = vsub.f32 %v7500, %v7516
        %v7521 = vsub.f32 %v7501, %v7517
        %v7522 = vsub.f32 %v7502, %v7518
        %v7523 = vmul.f32 %v7519, %v7519
        %v7524 = vmul.f32 %v7520, %v7520
        %v7525 = vmul.f32 %v7521, %v7521
        %v7526 = vmul.f32 %v7522, %v7522
        %v7527 = vsel %vm343, %v7523, 0.0
        %7528 = vadd.xlane.f32.xlu0 %v7527
        %v7529 = vpop.xlane.xlu0 %7528
        %v7530 = vsel %vm343, %v7524, 0.0
        %7531 = vadd.xlane.f32.xlu0 %v7530
        %v7532 = vpop.xlane.xlu0 %7531
        %v7533 = vsel %vm343, %v7525, 0.0
        %7534 = vadd.xlane.f32.xlu0 %v7533
        %v7535 = vpop.xlane.xlu0 %7534
        %v7536 = vsel %vm343, %v7526, 0.0
        %7537 = vadd.xlane.f32.xlu0 %v7536
        %v7538 = vpop.xlane.xlu0 %7537
        %v7539 = vmul.f32 %v7529, %v3684
        %v7540 = vmul.f32 %v7532, %v3684
        %v7541 = vmul.f32 %v7535, %v3684
        %v7542 = vmul.f32 %v7538, %v3684
        %v7543 = vadd.f32 %v7539, 1e-05
        %v7544 = vadd.f32 %v7540, 1e-05
        %v7545 = vadd.f32 %v7541, 1e-05
        %v7546 = vadd.f32 %v7542, 1e-05
        %v7547 = vrsqrt.pop %v7543
        %v7548 = vrsqrt.pop %v7544
        %v7549 = vrsqrt.pop %v7545
        %v7550 = vrsqrt.pop %v7546
        %v7551 = vmul.f32 %v7519, %v7547
        %v7552 = vmul.f32 %v7520, %v7548
        %v7553 = vmul.f32 %v7521, %v7549
        %v7554 = vmul.f32 %v7522, %v7550
        %v7555 = vlaneseq
        %v7556 = vshrl.u32 %v7555, 7
        %v7557 = vsub.s32 0, %v7556
        %v7558 = vrot.slane %v4046, %v7557
        %v7559 = vmul.f32 %v7551, %v7558
        %v7560 = vmul.f32 %v7552, %v7558
        %v7561 = vmul.f32 %v7553, %v7558
        %v7562 = vmul.f32 %v7554, %v7558
        %v7563 = vlaneseq
        %v7564 = vshrl.u32 %v7563, 7
        %v7565 = vsub.s32 0, %v7564
        %v7566 = vrot.slane %v4047, %v7565
        %v7567 = vadd.f32 %v7559, %v7566
        %v7568 = vadd.f32 %v7560, %v7566
        %v7569 = vadd.f32 %v7561, %v7566
        %v7570 = vadd.f32 %v7562, %v7566
        %v7571 = vld [vmem:[#allocation7 + $0x200] sm:$0xff]
        %v7572 = vld [vmem:[#allocation7 + $0x208] sm:$0xff]
        %v7573 = vld [vmem:[#allocation7 + $0x210] sm:$0xff]
        %v7574 = vld [vmem:[#allocation7 + $0x218] sm:$0xff]
        %v7575 = vld [vmem:[#allocation9 + $0x1] sm:$0x1]
        %v7576 = vlaneseq
        %v7577 = vshrl.u32 %v7576, 7
        %v7578 = vsub.s32 0, %v7577
        %v7579 = vrot.slane %v7575, %v7578
        %v7581 = vsel %vm343, %v7567, 0
        %v7584 = vsel %vm343, %v7568, 0
        %v7587 = vsel %vm343, %v7569, 0
        %v7590 = vsel %vm343, %v7570, 0
        %7592 = vmatprep.subr.mxu0 0.0
        %7593 = vmatpush1.msra.mxu0 0.0
        %7594 = vmatprep.subr.mxu0 0.0
        %7595 = vmatpush1.msra.mxu0 0.0
        %7596 = vmatprep.subr.mxu0 0.0
        %7597 = vmatpush1.msra.mxu0 0.0
        %7598 = vmatprep.subr.mxu0 0.0
        %7599 = vmatpush1.msra.mxu0 0.0
        %7600 = vmatprep.subr.mxu0 0.0
        %7601 = vmatpush1.msra.mxu0 0.0
        %7602 = vmatprep.subr.mxu0 0.0
        %7603 = vmatpush1.msra.mxu0 0.0
        %7604 = vmatprep.subr.mxu0 0.0
        %7605 = vmatpush1.msra.mxu0 0.0
        %7606 = vmatprep.subr.mxu0 0.0
        %7607 = vmatpush1.msra.mxu0 0.0
        %7608 = vmatprep.subr.mxu0 0.0
        %7609 = vmatpush1.msra.mxu0 0.0
        %7610 = vmatprep.subr.mxu0 0.0
        %7611 = vmatpush1.msra.mxu0 0.0
        %7612 = vmatprep.subr.mxu0 0.0
        %7613 = vmatpush1.msra.mxu0 0.0
        %7614 = vmatprep.subr.mxu0 0.0
        %7615 = vmatpush1.msra.mxu0 0.0
        %7616 = vmatprep.subr.mxu0 0.0
        %7617 = vmatpush1.msra.mxu0 %v7574
        %7618 = vmatprep.subr.mxu0 0.0
        %7619 = vmatpush1.msra.mxu0 %v7573
        %7620 = vmatprep.subr.mxu0 0.0
        %7621 = vmatpush1.msra.mxu0 %v7572
        %7622 = vmatprep.subr.mxu0 0.0
        %7623 = vmatpush1.msra.mxu0 %v7571
        %7624 = vmatprep.subr.mxu0 0.0
        %7625 = vmatpush2.msra.mxu0 0.0
        %7626 = vmatprep.subr.mxu0 0.0
        %7627 = vmatpush2.msra.mxu0 0.0
        %7628 = vmatprep.subr.mxu0 0.0
        %7629 = vmatpush2.msra.mxu0 0.0
        %7630 = vmatprep.subr.mxu0 0.0
        %7631 = vmatpush2.msra.mxu0 0.0
        %7632 = vmatprep.subr.mxu0 0.0
        %7633 = vmatpush2.msra.mxu0 0.0
        %7634 = vmatprep.subr.mxu0 0.0
        %7635 = vmatpush2.msra.mxu0 0.0
        %7636 = vmatprep.subr.mxu0 0.0
        %7637 = vmatpush2.msra.mxu0 0.0
        %7638 = vmatprep.subr.mxu0 0.0
        %7639 = vmatpush2.msra.mxu0 0.0
        %7640 = vmatprep.subr.mxu0 0.0
        %7641 = vmatpush2.msra.mxu0 0.0
        %7642 = vmatprep.subr.mxu0 0.0
        %7643 = vmatpush2.msra.mxu0 0.0
        %7644 = vmatprep.subr.mxu0 0.0
        %7645 = vmatpush2.msra.mxu0 0.0
        %7646 = vmatprep.subr.mxu0 0.0
        %7647 = vmatpush2.msra.mxu0 0.0
        %7648 = vmatprep.subr.mxu0 0.0
        %7649 = vmatpush2.msra.mxu0 0.0
        %7650 = vmatprep.subr.mxu0 0.0
        %7651 = vmatpush2.msra.mxu0 0.0
        %7652 = vmatprep.subr.mxu0 0.0
        %7653 = vmatpush2.msra.mxu0 0.0
        %7654 = vmatprep.subr.mxu0 0.0
        %7655 = vmatpush2.msra.mxu0 0.0
        %7656 = vmatprep.mubr.f32.mxu0 0.0
        %7657 = vmatmul.mubr.f32.gmra.mxu0 %v7581
        %v7658 = vpop.f32.mrf.mxu0
        %v7659 = vadd.f32 %v7579, %v7658
        %v7660 = vpop.f32.mrf.mxu0
        %7661 = vmatprep.mubr.f32.mxu0 0.0
        %7662 = vmatmul.mubr.f32.gmra.mxu0 %v7584
        %v7663 = vpop.f32.mrf.mxu0
        %v7664 = vadd.f32 %v7579, %v7663
        %v7665 = vpop.f32.mrf.mxu0
        %7666 = vmatprep.mubr.f32.mxu0 0.0
        %7667 = vmatmul.mubr.f32.gmra.mxu0 %v7587
        %v7668 = vpop.f32.mrf.mxu0
        %v7669 = vadd.f32 %v7579, %v7668
        %v7670 = vpop.f32.mrf.mxu0
        %7671 = vmatprep.mubr.f32.mxu0 0.0
        %7672 = vmatmul.mubr.f32.gmra.mxu0 %v7590
        %v7673 = vpop.f32.mrf.mxu0
        %v7674 = vadd.f32 %v7579, %v7673
        %v7675 = vpop.f32.mrf.mxu0
        %7676 = vdwg.mxu0
        %v7677 = vsel %vm343, %v7567, 0.0
        %v7678 = vsel %vm343, %v7568, 0.0
        %v7679 = vsel %vm343, %v7569, 0.0
        %v7680 = vsel %vm343, %v7570, 0.0
        %7681 = vst [vmem:[%s222] sm:$0xff] %v7677
        %7682 = vst [vmem:[%s222 + $0x8] sm:$0xff] %v7659
        %7683 = vst [vmem:[%s222 + $0x10] sm:$0xff] %v7678
        %7684 = vst [vmem:[%s222 + $0x18] sm:$0xff] %v7664
        %7685 = vst [vmem:[%s222 + $0x20] sm:$0xff] %v7679
        %7686 = vst [vmem:[%s222 + $0x28] sm:$0xff] %v7669
        %7687 = vst [vmem:[%s222 + $0x30] sm:$0xff] %v7680
        %7688 = vst [vmem:[%s222 + $0x38] sm:$0xff] %v7674
        %s7689 = sand.u32 %s102, 1
        %s7690 = scalar_lea.sflag [#allocation6], %s7689
        %s7691 = sand.u32 %s102, 1
        %s7692 = smul.addr %s7691, 64
        %s7693 = scalar_lea.vmem [#allocation10], %s7692
        // Predicated region
        $region45: #{tpu_custom_call.1} parent=31 // pred_check
          %p7694 = pneg %p112
        $region46: #{tpu_custom_call.1} parent=31 // pred_check_branch
          %7696 = sbr.rel (%p7694) target = $region48
        $region47: #{tpu_custom_call.1} parent=31 // pred_region
          %s7697 = smul.u32 4, %s26
          %s7699 = ssub.s32 1024, 1024
          %7700 = vsyncadd %s7690, %s7699
          %s7701 = smul.addr %s7697, 2
          %s7702 = smul.addr %s7701, 128
          %s7703 = scalar_lea.hbm %s4, %s7702
          %s7704 = sshll.u32 %s7693, 4
          %s7705 = int_to_ptr.vmem [resolvable:$true] %s7704
          %7710 = dma.vmem_to_hbm [thread:$0]  %s7705, 1024, %s7703, %s7690, 256, 256, 16
        $region48: #{tpu_custom_call.1} parent=31 // pred_fallthru
          _
      $region32: #{tpu_custom_call.1} parent=5 // pred_fallthru
        _
      %p7711 = scmp.le.s32.totalorder 2, %s21
      // Predicated region
      $region49: #{tpu_custom_call.1} parent=5 // pred_check
        %p7712 = pneg %p7711
      $region50: #{tpu_custom_call.1} parent=5 // pred_check_branch
        %7714 = sbr.rel (%p7712) target = $region52
      $region51: #{tpu_custom_call.1} parent=5 // pred_region
        %s7715 = ssub.s32 %s21, 2
        // Predicated region
        $region53: #{tpu_custom_call.1} parent=51 // pred_check
          %p7716 = pneg %p118
        $region54: #{tpu_custom_call.1} parent=51 // pred_check_branch
          %7718 = sbr.rel (%p7716) target = $region56
        $region55: #{tpu_custom_call.1} parent=51 // pred_region
          %s7719 = sand.u32 %s103, 1
          %s7720 = scalar_lea.sflag [#allocation6], %s7719
          %s7721 = sand.u32 %s103, 1
          %s7722 = smul.addr %s7721, 64
          %s7723 = scalar_lea.vmem [#allocation10], %s7722
          %7724 = dma.done %s7720, 1024
        $region56: #{tpu_custom_call.1} parent=51 // pred_fallthru
          _
      $region52: #{tpu_custom_call.1} parent=5 // pred_fallthru
        _
    $region6: #{tpu_custom_call.1} parent=1 // loop_footer
      %s25 = sadd.s32 1, %s21
    $region7: #{tpu_custom_call.1} parent=1 // loop_footer_branch
      %20 = sbr.rel target = $region3
    $region8: #{tpu_custom_call.1} parent=1 // loop_exit
      _
    %7725 = vsyncpa [#allocation5], 1
    %s7726 = scalar_lea.sflag [#allocation5], 1
    %7727 = vsyncpa %s7726, 1
    %7728 = vsyncpa [#allocation8], 1
    %7729 = vsyncpa [#allocation6], 1
    %s7730 = scalar_lea.sflag [#allocation6], 1
    %7731 = vsyncpa %s7730, 1

</llo_original>
